<compile_context>
chip_gen: v6e
topology: v6e:2x2x1
jax: 0.10.0
libtpu: 0.0.40
codegen_flags: <defaults>
</compile_context>

<pallas_src>
import numpy as np

import jax
import jax.numpy as jnp
from jax.experimental import pallas as pl
from jax.experimental.pallas import tpu as pltpu


# ---------------------------------------------------------------------------
# Pallas kernel: whole network for one batch element per grid step
# ---------------------------------------------------------------------------
def _cnn_fused_kernel(*refs):
    """refs = [x, (g, w, scale, shift) * n_layers, w_out, b_out, o_out]."""
    x_ref = refs[0]
    wout_ref = refs[-3]
    bout_ref = refs[-2]
    o_ref = refs[-1]
    n_layers = (len(refs) - 4) // 4

    h = x_ref[0]                                     # [H*W, Cin] bf16 (NHWC rows)
    y = None
    for l in range(n_layers):
        g_ref, w_ref, sc_ref, sh_ref = refs[1 + 4 * l:1 + 4 * (l + 1)]
        q = g_ref.shape[1]                           # OH*OW of this layer
        cout = w_ref.shape[2]
        acc = jnp.zeros((q, cout), jnp.float32)
        for t in range(9):                           # static unroll over conv taps
            # gather matrix is 0/1 -> result is exactly the bf16 inputs (or 0)
            gathered = jnp.dot(g_ref[t], h, preferred_element_type=jnp.float32)
            acc = acc + jnp.dot(gathered.astype(jnp.bfloat16), w_ref[t],
                                preferred_element_type=jnp.float32)
        # folded eval-mode BatchNorm + ReLU epilogue, kept in f32 on the VPU
        y = jnp.maximum(acc * sc_ref[...] + sh_ref[...], 0.0)
        h = y.astype(jnp.bfloat16)                   # bf16 operands for next layer

    # AdaptiveAvgPool2d((1, 1)): mean over spatial rows (f32)
    pooled = jnp.mean(y, axis=0, keepdims=True)      # [1, C_last]
    # 1x1 output conv == per-channel dot product + bias (no BN, no ReLU)
    out = jnp.sum(pooled * wout_ref[...], axis=-1, keepdims=True) + bout_ref[...]
    o_ref[...] = out[None].astype(o_ref.dtype)       # [1, 1, 1]


# ---------------------------------------------------------------------------
# Host-side constants: gather matrices for 3x3 / stride-2 / pad-1 conv
# ---------------------------------------------------------------------------
def _gather_matrices_3x3_s2_p1(h, w):
    oh = (h - 1) // 2 + 1
    ow = (w - 1) // 2 + 1
    g = np.zeros((9, oh * ow, h * w), np.float32)
    for kh in range(3):
        for kw in range(3):
            t = kh * 3 + kw
            for oy in range(oh):
                iy = 2 * oy + kh - 1
                if not (0 <= iy < h):
                    continue
                for ox in range(ow):
                    ix = 2 * ox + kw - 1
                    if not (0 <= ix < w):
                        continue
                    g[t, oy * ow + ox, iy * w + ix] = 1.0
    return g, oh, ow


# ---------------------------------------------------------------------------
# Forward pass wrapper: one pallas_call for the whole network
# ---------------------------------------------------------------------------
def cnn_forward(params, x, *, eps=1e-5):
    n, cin, h_sp, w_sp = x.shape
    # single NCHW -> NHWC-flattened bridge (the only layout glue outside the kernel)
    x_rows = jnp.transpose(x, (0, 2, 3, 1)).reshape(n, h_sp * w_sp, cin)
    x_rows = x_rows.astype(jnp.bfloat16)

    in_arrays = [x_rows]
    in_specs = [pl.BlockSpec((1, h_sp * w_sp, cin), lambda i: (i, 0, 0))]

    ph, pw = h_sp, w_sp
    for p in params["convs"]:
        w = p["w"]                                   # [Cout, Cin, 3, 3]
        cout, cin_l = w.shape[0], w.shape[1]
        g_np, oh, ow = _gather_matrices_3x3_s2_p1(ph, pw)
        g = jnp.asarray(g_np, jnp.bfloat16)          # [9, OH*OW, H*W]
        w_taps = jnp.transpose(w, (2, 3, 1, 0)).reshape(9, cin_l, cout)
        w_taps = w_taps.astype(jnp.bfloat16)         # [9, Cin, Cout]
        inv = p["gamma"] / jnp.sqrt(p["var"] + eps)
        scale = inv.reshape(1, cout).astype(jnp.float32)
        shift = ((p["b"] - p["mean"]) * inv + p["beta"]).reshape(1, cout)
        shift = shift.astype(jnp.float32)

        in_arrays += [g, w_taps, scale, shift]
        in_specs += [
            pl.BlockSpec(g.shape, lambda i: (0, 0, 0)),
            pl.BlockSpec(w_taps.shape, lambda i: (0, 0, 0)),
            pl.BlockSpec((1, cout), lambda i: (0, 0)),
            pl.BlockSpec((1, cout), lambda i: (0, 0)),
        ]
        ph, pw = oh, ow

    c_last = params["out_w"].shape[1]
    wout = params["out_w"].reshape(1, c_last).astype(jnp.float32)
    bout = params["out_b"].reshape(1, 1).astype(jnp.float32)
    in_arrays += [wout, bout]
    in_specs += [
        pl.BlockSpec((1, c_last), lambda i: (0, 0)),
        pl.BlockSpec((1, 1), lambda i: (0, 0)),
    ]

    out = pl.pallas_call(
        _cnn_fused_kernel,
        out_shape=jax.ShapeDtypeStruct((n, 1, 1), jnp.float32),
        grid=(n,),
        in_specs=in_specs,
        out_specs=pl.BlockSpec((1, 1, 1), lambda i: (i, 0, 0)),
        compiler_params=pltpu.CompilerParams(dimension_semantics=("parallel",)),
    )(*in_arrays)
    return out.reshape(n, 1)


# ---------------------------------------------------------------------------
# Pure-JAX reference (f32) for a correctness sanity check
# ---------------------------------------------------------------------------
def cnn_forward_ref(params, x, *, eps=1e-5):
    h = x
    for p in params["convs"]:
        h = jax.lax.conv_general_dilated(
            h, p["w"], window_strides=(2, 2), padding=((1, 1), (1, 1)),
            dimension_numbers=("NCHW", "OIHW", "NCHW"))
        h = h + p["b"].reshape(1, -1, 1, 1)
        inv = (p["gamma"] / jnp.sqrt(p["var"] + eps)).reshape(1, -1, 1, 1)
        h = (h - p["mean"].reshape(1, -1, 1, 1)) * inv + p["beta"].reshape(1, -1, 1, 1)
        h = jnp.maximum(h, 0.0)
    pooled = h.mean(axis=(2, 3))                      # [N, C_last]
    w = params["out_w"].reshape(1, -1)                # [1, C_last]
    return pooled @ w.T + params["out_b"].reshape(1, 1)


# ---------------------------------------------------------------------------
# Parameter construction (deterministic)
# ---------------------------------------------------------------------------
def make_params(key, in_channel, mid_channel):
    chans = [
        (in_channel, mid_channel),
        (mid_channel, mid_channel * 2),
        (mid_channel * 2, mid_channel * 4),
        (mid_channel * 4, mid_channel * 8),
    ]
    params = {"convs": []}
    for (cin, cout) in chans:
        key, k1, k2, k3, k4, k5, k6 = jax.random.split(key, 7)
        fan_in = cin * 9
        params["convs"].append(dict(
            w=jax.random.normal(k1, (cout, cin, 3, 3), jnp.float32) / jnp.sqrt(fan_in),
            b=0.01 * jax.random.normal(k2, (cout,), jnp.float32),
            gamma=1.0 + 0.1 * jax.random.normal(k3, (cout,), jnp.float32),
            beta=0.1 * jax.random.normal(k4, (cout,), jnp.float32),
            mean=0.1 * jax.random.normal(k5, (cout,), jnp.float32),
            var=0.5 + jnp.abs(jax.random.normal(k6, (cout,), jnp.float32)) * 0.5,
        ))
    key, k1, k2 = jax.random.split(key, 3)
    c8 = mid_channel * 8
    params["out_w"] = jax.random.normal(k1, (1, c8, 1, 1), jnp.float32) / jnp.sqrt(c8)
    params["out_b"] = 0.01 * jax.random.normal(k2, (1,), jnp.float32)
    return params


if __name__ == "__main__":
    key = jax.random.PRNGKey(0)
    key, kx = jax.random.split(key)

    in_channel, mid_channel = 3, 16
    # NCHW input; spatial 16 -> 8 -> 4 -> 2 -> 1 through the four stride-2 convs
    x = jax.random.normal(kx, (2, in_channel, 16, 16), jnp.float32)

    params = make_params(key, in_channel, mid_channel)

    out = cnn_forward(params, x)
    out = jax.block_until_ready(out)

    assert out.shape == (2, 1), out.shape
    assert jnp.all(jnp.isfinite(out))

    ref = jax.block_until_ready(cnn_forward_ref(params, x))
    assert jnp.allclose(out, ref, atol=1e-1, rtol=1e-1), (out, ref)

    print("KERNEL_OK")
</pallas_src>

<mosaic_0001>
module attributes {stable_mosaic.version = 11 : i64} {
  func.func @_cnn_fused_kernel(%arg0: i32, %arg1: memref<1x256x3xbf16, #tpu.memory_space<vmem>>, %arg2: memref<9x64x256xbf16, #tpu.memory_space<vmem>>, %arg3: memref<9x3x16xbf16, #tpu.memory_space<vmem>>, %arg4: memref<1x16xf32, #tpu.memory_space<vmem>>, %arg5: memref<1x16xf32, #tpu.memory_space<vmem>>, %arg6: memref<9x16x64xbf16, #tpu.memory_space<vmem>>, %arg7: memref<9x16x32xbf16, #tpu.memory_space<vmem>>, %arg8: memref<1x32xf32, #tpu.memory_space<vmem>>, %arg9: memref<1x32xf32, #tpu.memory_space<vmem>>, %arg10: memref<9x4x16xbf16, #tpu.memory_space<vmem>>, %arg11: memref<9x32x64xbf16, #tpu.memory_space<vmem>>, %arg12: memref<1x64xf32, #tpu.memory_space<vmem>>, %arg13: memref<1x64xf32, #tpu.memory_space<vmem>>, %arg14: memref<9x1x4xbf16, #tpu.memory_space<vmem>>, %arg15: memref<9x64x128xbf16, #tpu.memory_space<vmem>>, %arg16: memref<1x128xf32, #tpu.memory_space<vmem>>, %arg17: memref<1x128xf32, #tpu.memory_space<vmem>>, %arg18: memref<1x128xf32, #tpu.memory_space<vmem>>, %arg19: memref<1x1xf32, #tpu.memory_space<vmem>>, %arg20: memref<1x1x1xf32, #tpu.memory_space<vmem>>) attributes {dimension_semantics = [#tpu.dimension_semantics<parallel>], iteration_bounds = array<i64: 2>, scalar_prefetch = 0 : i64, scratch_operands = 0 : i64, tpu.core_type = #tpu.core_type<tc>, window_params = [{transform_indices = @transform_0, window_bounds = array<i64: 1, 256, 3>}, {pipeline_mode = #tpu.pipeline_mode<synchronous>, transform_indices = @transform_1, window_bounds = array<i64: 9, 64, 256>}, {pipeline_mode = #tpu.pipeline_mode<synchronous>, transform_indices = @transform_2, window_bounds = array<i64: 9, 3, 16>}, {pipeline_mode = #tpu.pipeline_mode<synchronous>, transform_indices = @transform_3, window_bounds = array<i64: 1, 16>}, {pipeline_mode = #tpu.pipeline_mode<synchronous>, transform_indices = @transform_4, window_bounds = array<i64: 1, 16>}, {pipeline_mode = #tpu.pipeline_mode<synchronous>, transform_indices = @transform_5, window_bounds = array<i64: 9, 16, 64>}, {pipeline_mode = #tpu.pipeline_mode<synchronous>, transform_indices = @transform_6, window_bounds = array<i64: 9, 16, 32>}, {pipeline_mode = #tpu.pipeline_mode<synchronous>, transform_indices = @transform_7, window_bounds = array<i64: 1, 32>}, {pipeline_mode = #tpu.pipeline_mode<synchronous>, transform_indices = @transform_8, window_bounds = array<i64: 1, 32>}, {pipeline_mode = #tpu.pipeline_mode<synchronous>, transform_indices = @transform_9, window_bounds = array<i64: 9, 4, 16>}, {pipeline_mode = #tpu.pipeline_mode<synchronous>, transform_indices = @transform_10, window_bounds = array<i64: 9, 32, 64>}, {pipeline_mode = #tpu.pipeline_mode<synchronous>, transform_indices = @transform_11, window_bounds = array<i64: 1, 64>}, {pipeline_mode = #tpu.pipeline_mode<synchronous>, transform_indices = @transform_12, window_bounds = array<i64: 1, 64>}, {pipeline_mode = #tpu.pipeline_mode<synchronous>, transform_indices = @transform_13, window_bounds = array<i64: 9, 1, 4>}, {pipeline_mode = #tpu.pipeline_mode<synchronous>, transform_indices = @transform_14, window_bounds = array<i64: 9, 64, 128>}, {pipeline_mode = #tpu.pipeline_mode<synchronous>, transform_indices = @transform_15, window_bounds = array<i64: 1, 128>}, {pipeline_mode = #tpu.pipeline_mode<synchronous>, transform_indices = @transform_16, window_bounds = array<i64: 1, 128>}, {pipeline_mode = #tpu.pipeline_mode<synchronous>, transform_indices = @transform_17, window_bounds = array<i64: 1, 128>}, {pipeline_mode = #tpu.pipeline_mode<synchronous>, transform_indices = @transform_18, window_bounds = array<i64: 1, 1>}, {transform_indices = @transform_19, window_bounds = array<i64: 1, 1, 1>}]} {
    %c0 = arith.constant 0 : index
    %c0_0 = arith.constant 0 : index
    %c0_1 = arith.constant 0 : index
    %0 = vector.load %arg1[%c0, %c0_0, %c0_1] : memref<1x256x3xbf16, #tpu.memory_space<vmem>>, vector<1x256x3xbf16>
    %1 = vector.shape_cast %0 : vector<1x256x3xbf16> to vector<256x3xbf16>
    %cst = arith.constant 0.000000e+00 : f32
    %2 = vector.broadcast %cst : f32 to vector<64x16xf32>
    %c0_2 = arith.constant 0 : index
    %c0_3 = arith.constant 0 : index
    %c0_4 = arith.constant 0 : index
    %3 = vector.load %arg2[%c0_2, %c0_3, %c0_4] : memref<9x64x256xbf16, #tpu.memory_space<vmem>>, vector<1x64x256xbf16>
    %4 = vector.shape_cast %3 : vector<1x64x256xbf16> to vector<64x256xbf16>
    %cst_5 = arith.constant dense<0.000000e+00> : vector<64x3xf32>
    %5 = tpu.matmul %4, %1, %cst_5 {dimension_numbers = #tpu.dot_dimension_numbers<[1], [0], [0], [1], [0, 0, 1, 1], [], []>} : vector<64x256xbf16>, vector<256x3xbf16>, vector<64x3xf32> -> vector<64x3xf32>
    %6 = arith.truncf %5 : vector<64x3xf32> to vector<64x3xbf16>
    %c0_6 = arith.constant 0 : index
    %c0_7 = arith.constant 0 : index
    %c0_8 = arith.constant 0 : index
    %7 = vector.load %arg3[%c0_6, %c0_7, %c0_8] : memref<9x3x16xbf16, #tpu.memory_space<vmem>>, vector<1x3x16xbf16>
    %8 = vector.shape_cast %7 : vector<1x3x16xbf16> to vector<3x16xbf16>
    %cst_9 = arith.constant dense<0.000000e+00> : vector<64x16xf32>
    %9 = tpu.matmul %6, %8, %cst_9 {dimension_numbers = #tpu.dot_dimension_numbers<[1], [0], [0], [1], [0, 0, 1, 1], [], []>} : vector<64x3xbf16>, vector<3x16xbf16>, vector<64x16xf32> -> vector<64x16xf32>
    %10 = arith.addf %2, %9 : vector<64x16xf32>
    %c1 = arith.constant 1 : index
    %c0_10 = arith.constant 0 : index
    %c0_11 = arith.constant 0 : index
    %11 = vector.load %arg2[%c1, %c0_10, %c0_11] : memref<9x64x256xbf16, #tpu.memory_space<vmem>>, vector<1x64x256xbf16>
    %12 = vector.shape_cast %11 : vector<1x64x256xbf16> to vector<64x256xbf16>
    %cst_12 = arith.constant dense<0.000000e+00> : vector<64x3xf32>
    %13 = tpu.matmul %12, %1, %cst_12 {dimension_numbers = #tpu.dot_dimension_numbers<[1], [0], [0], [1], [0, 0, 1, 1], [], []>} : vector<64x256xbf16>, vector<256x3xbf16>, vector<64x3xf32> -> vector<64x3xf32>
    %14 = arith.truncf %13 : vector<64x3xf32> to vector<64x3xbf16>
    %c1_13 = arith.constant 1 : index
    %c0_14 = arith.constant 0 : index
    %c0_15 = arith.constant 0 : index
    %15 = vector.load %arg3[%c1_13, %c0_14, %c0_15] : memref<9x3x16xbf16, #tpu.memory_space<vmem>>, vector<1x3x16xbf16>
    %16 = vector.shape_cast %15 : vector<1x3x16xbf16> to vector<3x16xbf16>
    %cst_16 = arith.constant dense<0.000000e+00> : vector<64x16xf32>
    %17 = tpu.matmul %14, %16, %cst_16 {dimension_numbers = #tpu.dot_dimension_numbers<[1], [0], [0], [1], [0, 0, 1, 1], [], []>} : vector<64x3xbf16>, vector<3x16xbf16>, vector<64x16xf32> -> vector<64x16xf32>
    %18 = arith.addf %10, %17 : vector<64x16xf32>
    %c2 = arith.constant 2 : index
    %c0_17 = arith.constant 0 : index
    %c0_18 = arith.constant 0 : index
    %19 = vector.load %arg2[%c2, %c0_17, %c0_18] : memref<9x64x256xbf16, #tpu.memory_space<vmem>>, vector<1x64x256xbf16>
    %20 = vector.shape_cast %19 : vector<1x64x256xbf16> to vector<64x256xbf16>
    %cst_19 = arith.constant dense<0.000000e+00> : vector<64x3xf32>
    %21 = tpu.matmul %20, %1, %cst_19 {dimension_numbers = #tpu.dot_dimension_numbers<[1], [0], [0], [1], [0, 0, 1, 1], [], []>} : vector<64x256xbf16>, vector<256x3xbf16>, vector<64x3xf32> -> vector<64x3xf32>
    %22 = arith.truncf %21 : vector<64x3xf32> to vector<64x3xbf16>
    %c2_20 = arith.constant 2 : index
    %c0_21 = arith.constant 0 : index
    %c0_22 = arith.constant 0 : index
    %23 = vector.load %arg3[%c2_20, %c0_21, %c0_22] : memref<9x3x16xbf16, #tpu.memory_space<vmem>>, vector<1x3x16xbf16>
    %24 = vector.shape_cast %23 : vector<1x3x16xbf16> to vector<3x16xbf16>
    %cst_23 = arith.constant dense<0.000000e+00> : vector<64x16xf32>
    %25 = tpu.matmul %22, %24, %cst_23 {dimension_numbers = #tpu.dot_dimension_numbers<[1], [0], [0], [1], [0, 0, 1, 1], [], []>} : vector<64x3xbf16>, vector<3x16xbf16>, vector<64x16xf32> -> vector<64x16xf32>
    %26 = arith.addf %18, %25 : vector<64x16xf32>
    %c3 = arith.constant 3 : index
    %c0_24 = arith.constant 0 : index
    %c0_25 = arith.constant 0 : index
    %27 = vector.load %arg2[%c3, %c0_24, %c0_25] : memref<9x64x256xbf16, #tpu.memory_space<vmem>>, vector<1x64x256xbf16>
    %28 = vector.shape_cast %27 : vector<1x64x256xbf16> to vector<64x256xbf16>
    %cst_26 = arith.constant dense<0.000000e+00> : vector<64x3xf32>
    %29 = tpu.matmul %28, %1, %cst_26 {dimension_numbers = #tpu.dot_dimension_numbers<[1], [0], [0], [1], [0, 0, 1, 1], [], []>} : vector<64x256xbf16>, vector<256x3xbf16>, vector<64x3xf32> -> vector<64x3xf32>
    %30 = arith.truncf %29 : vector<64x3xf32> to vector<64x3xbf16>
    %c3_27 = arith.constant 3 : index
    %c0_28 = arith.constant 0 : index
    %c0_29 = arith.constant 0 : index
    %31 = vector.load %arg3[%c3_27, %c0_28, %c0_29] : memref<9x3x16xbf16, #tpu.memory_space<vmem>>, vector<1x3x16xbf16>
    %32 = vector.shape_cast %31 : vector<1x3x16xbf16> to vector<3x16xbf16>
    %cst_30 = arith.constant dense<0.000000e+00> : vector<64x16xf32>
    %33 = tpu.matmul %30, %32, %cst_30 {dimension_numbers = #tpu.dot_dimension_numbers<[1], [0], [0], [1], [0, 0, 1, 1], [], []>} : vector<64x3xbf16>, vector<3x16xbf16>, vector<64x16xf32> -> vector<64x16xf32>
    %34 = arith.addf %26, %33 : vector<64x16xf32>
    %c4 = arith.constant 4 : index
    %c0_31 = arith.constant 0 : index
    %c0_32 = arith.constant 0 : index
    %35 = vector.load %arg2[%c4, %c0_31, %c0_32] : memref<9x64x256xbf16, #tpu.memory_space<vmem>>, vector<1x64x256xbf16>
    %36 = vector.shape_cast %35 : vector<1x64x256xbf16> to vector<64x256xbf16>
    %cst_33 = arith.constant dense<0.000000e+00> : vector<64x3xf32>
    %37 = tpu.matmul %36, %1, %cst_33 {dimension_numbers = #tpu.dot_dimension_numbers<[1], [0], [0], [1], [0, 0, 1, 1], [], []>} : vector<64x256xbf16>, vector<256x3xbf16>, vector<64x3xf32> -> vector<64x3xf32>
    %38 = arith.truncf %37 : vector<64x3xf32> to vector<64x3xbf16>
    %c4_34 = arith.constant 4 : index
    %c0_35 = arith.constant 0 : index
    %c0_36 = arith.constant 0 : index
    %39 = vector.load %arg3[%c4_34, %c0_35, %c0_36] : memref<9x3x16xbf16, #tpu.memory_space<vmem>>, vector<1x3x16xbf16>
    %40 = vector.shape_cast %39 : vector<1x3x16xbf16> to vector<3x16xbf16>
    %cst_37 = arith.constant dense<0.000000e+00> : vector<64x16xf32>
    %41 = tpu.matmul %38, %40, %cst_37 {dimension_numbers = #tpu.dot_dimension_numbers<[1], [0], [0], [1], [0, 0, 1, 1], [], []>} : vector<64x3xbf16>, vector<3x16xbf16>, vector<64x16xf32> -> vector<64x16xf32>
    %42 = arith.addf %34, %41 : vector<64x16xf32>
    %c5 = arith.constant 5 : index
    %c0_38 = arith.constant 0 : index
    %c0_39 = arith.constant 0 : index
    %43 = vector.load %arg2[%c5, %c0_38, %c0_39] : memref<9x64x256xbf16, #tpu.memory_space<vmem>>, vector<1x64x256xbf16>
    %44 = vector.shape_cast %43 : vector<1x64x256xbf16> to vector<64x256xbf16>
    %cst_40 = arith.constant dense<0.000000e+00> : vector<64x3xf32>
    %45 = tpu.matmul %44, %1, %cst_40 {dimension_numbers = #tpu.dot_dimension_numbers<[1], [0], [0], [1], [0, 0, 1, 1], [], []>} : vector<64x256xbf16>, vector<256x3xbf16>, vector<64x3xf32> -> vector<64x3xf32>
    %46 = arith.truncf %45 : vector<64x3xf32> to vector<64x3xbf16>
    %c5_41 = arith.constant 5 : index
    %c0_42 = arith.constant 0 : index
    %c0_43 = arith.constant 0 : index
    %47 = vector.load %arg3[%c5_41, %c0_42, %c0_43] : memref<9x3x16xbf16, #tpu.memory_space<vmem>>, vector<1x3x16xbf16>
    %48 = vector.shape_cast %47 : vector<1x3x16xbf16> to vector<3x16xbf16>
    %cst_44 = arith.constant dense<0.000000e+00> : vector<64x16xf32>
    %49 = tpu.matmul %46, %48, %cst_44 {dimension_numbers = #tpu.dot_dimension_numbers<[1], [0], [0], [1], [0, 0, 1, 1], [], []>} : vector<64x3xbf16>, vector<3x16xbf16>, vector<64x16xf32> -> vector<64x16xf32>
    %50 = arith.addf %42, %49 : vector<64x16xf32>
    %c6 = arith.constant 6 : index
    %c0_45 = arith.constant 0 : index
    %c0_46 = arith.constant 0 : index
    %51 = vector.load %arg2[%c6, %c0_45, %c0_46] : memref<9x64x256xbf16, #tpu.memory_space<vmem>>, vector<1x64x256xbf16>
    %52 = vector.shape_cast %51 : vector<1x64x256xbf16> to vector<64x256xbf16>
    %cst_47 = arith.constant dense<0.000000e+00> : vector<64x3xf32>
    %53 = tpu.matmul %52, %1, %cst_47 {dimension_numbers = #tpu.dot_dimension_numbers<[1], [0], [0], [1], [0, 0, 1, 1], [], []>} : vector<64x256xbf16>, vector<256x3xbf16>, vector<64x3xf32> -> vector<64x3xf32>
    %54 = arith.truncf %53 : vector<64x3xf32> to vector<64x3xbf16>
    %c6_48 = arith.constant 6 : index
    %c0_49 = arith.constant 0 : index
    %c0_50 = arith.constant 0 : index
    %55 = vector.load %arg3[%c6_48, %c0_49, %c0_50] : memref<9x3x16xbf16, #tpu.memory_space<vmem>>, vector<1x3x16xbf16>
    %56 = vector.shape_cast %55 : vector<1x3x16xbf16> to vector<3x16xbf16>
    %cst_51 = arith.constant dense<0.000000e+00> : vector<64x16xf32>
    %57 = tpu.matmul %54, %56, %cst_51 {dimension_numbers = #tpu.dot_dimension_numbers<[1], [0], [0], [1], [0, 0, 1, 1], [], []>} : vector<64x3xbf16>, vector<3x16xbf16>, vector<64x16xf32> -> vector<64x16xf32>
    %58 = arith.addf %50, %57 : vector<64x16xf32>
    %c7 = arith.constant 7 : index
    %c0_52 = arith.constant 0 : index
    %c0_53 = arith.constant 0 : index
    %59 = vector.load %arg2[%c7, %c0_52, %c0_53] : memref<9x64x256xbf16, #tpu.memory_space<vmem>>, vector<1x64x256xbf16>
    %60 = vector.shape_cast %59 : vector<1x64x256xbf16> to vector<64x256xbf16>
    %cst_54 = arith.constant dense<0.000000e+00> : vector<64x3xf32>
    %61 = tpu.matmul %60, %1, %cst_54 {dimension_numbers = #tpu.dot_dimension_numbers<[1], [0], [0], [1], [0, 0, 1, 1], [], []>} : vector<64x256xbf16>, vector<256x3xbf16>, vector<64x3xf32> -> vector<64x3xf32>
    %62 = arith.truncf %61 : vector<64x3xf32> to vector<64x3xbf16>
    %c7_55 = arith.constant 7 : index
    %c0_56 = arith.constant 0 : index
    %c0_57 = arith.constant 0 : index
    %63 = vector.load %arg3[%c7_55, %c0_56, %c0_57] : memref<9x3x16xbf16, #tpu.memory_space<vmem>>, vector<1x3x16xbf16>
    %64 = vector.shape_cast %63 : vector<1x3x16xbf16> to vector<3x16xbf16>
    %cst_58 = arith.constant dense<0.000000e+00> : vector<64x16xf32>
    %65 = tpu.matmul %62, %64, %cst_58 {dimension_numbers = #tpu.dot_dimension_numbers<[1], [0], [0], [1], [0, 0, 1, 1], [], []>} : vector<64x3xbf16>, vector<3x16xbf16>, vector<64x16xf32> -> vector<64x16xf32>
    %66 = arith.addf %58, %65 : vector<64x16xf32>
    %c8 = arith.constant 8 : index
    %c0_59 = arith.constant 0 : index
    %c0_60 = arith.constant 0 : index
    %67 = vector.load %arg2[%c8, %c0_59, %c0_60] : memref<9x64x256xbf16, #tpu.memory_space<vmem>>, vector<1x64x256xbf16>
    %68 = vector.shape_cast %67 : vector<1x64x256xbf16> to vector<64x256xbf16>
    %cst_61 = arith.constant dense<0.000000e+00> : vector<64x3xf32>
    %69 = tpu.matmul %68, %1, %cst_61 {dimension_numbers = #tpu.dot_dimension_numbers<[1], [0], [0], [1], [0, 0, 1, 1], [], []>} : vector<64x256xbf16>, vector<256x3xbf16>, vector<64x3xf32> -> vector<64x3xf32>
    %70 = arith.truncf %69 : vector<64x3xf32> to vector<64x3xbf16>
    %c8_62 = arith.constant 8 : index
    %c0_63 = arith.constant 0 : index
    %c0_64 = arith.constant 0 : index
    %71 = vector.load %arg3[%c8_62, %c0_63, %c0_64] : memref<9x3x16xbf16, #tpu.memory_space<vmem>>, vector<1x3x16xbf16>
    %72 = vector.shape_cast %71 : vector<1x3x16xbf16> to vector<3x16xbf16>
    %cst_65 = arith.constant dense<0.000000e+00> : vector<64x16xf32>
    %73 = tpu.matmul %70, %72, %cst_65 {dimension_numbers = #tpu.dot_dimension_numbers<[1], [0], [0], [1], [0, 0, 1, 1], [], []>} : vector<64x3xbf16>, vector<3x16xbf16>, vector<64x16xf32> -> vector<64x16xf32>
    %74 = arith.addf %66, %73 : vector<64x16xf32>
    %c0_66 = arith.constant 0 : index
    %c0_67 = arith.constant 0 : index
    %75 = vector.load %arg4[%c0_66, %c0_67] : memref<1x16xf32, #tpu.memory_space<vmem>>, vector<1x16xf32>
    %76 = vector.broadcast %75 : vector<1x16xf32> to vector<64x16xf32>
    %77 = arith.mulf %74, %76 : vector<64x16xf32>
    %c0_68 = arith.constant 0 : index
    %c0_69 = arith.constant 0 : index
    %78 = vector.load %arg5[%c0_68, %c0_69] : memref<1x16xf32, #tpu.memory_space<vmem>>, vector<1x16xf32>
    %79 = vector.broadcast %78 : vector<1x16xf32> to vector<64x16xf32>
    %80 = arith.addf %77, %79 : vector<64x16xf32>
    %cst_70 = arith.constant 0.000000e+00 : f32
    %81 = vector.broadcast %cst_70 : f32 to vector<64x16xf32>
    %82 = arith.maximumf %80, %81 : vector<64x16xf32>
    %83 = arith.truncf %82 : vector<64x16xf32> to vector<64x16xbf16>
    %cst_71 = arith.constant 0.000000e+00 : f32
    %84 = vector.broadcast %cst_71 : f32 to vector<16x32xf32>
    %c0_72 = arith.constant 0 : index
    %c0_73 = arith.constant 0 : index
    %c0_74 = arith.constant 0 : index
    %85 = vector.load %arg6[%c0_72, %c0_73, %c0_74] : memref<9x16x64xbf16, #tpu.memory_space<vmem>>, vector<1x16x64xbf16>
    %86 = vector.shape_cast %85 : vector<1x16x64xbf16> to vector<16x64xbf16>
    %cst_75 = arith.constant dense<0.000000e+00> : vector<16x16xf32>
    %87 = tpu.matmul %86, %83, %cst_75 {dimension_numbers = #tpu.dot_dimension_numbers<[1], [0], [0], [1], [0, 0, 1, 1], [], []>} : vector<16x64xbf16>, vector<64x16xbf16>, vector<16x16xf32> -> vector<16x16xf32>
    %88 = arith.truncf %87 : vector<16x16xf32> to vector<16x16xbf16>
    %c0_76 = arith.constant 0 : index
    %c0_77 = arith.constant 0 : index
    %c0_78 = arith.constant 0 : index
    %89 = vector.load %arg7[%c0_76, %c0_77, %c0_78] : memref<9x16x32xbf16, #tpu.memory_space<vmem>>, vector<1x16x32xbf16>
    %90 = vector.shape_cast %89 : vector<1x16x32xbf16> to vector<16x32xbf16>
    %cst_79 = arith.constant dense<0.000000e+00> : vector<16x32xf32>
    %91 = tpu.matmul %88, %90, %cst_79 {dimension_numbers = #tpu.dot_dimension_numbers<[1], [0], [0], [1], [0, 0, 1, 1], [], []>} : vector<16x16xbf16>, vector<16x32xbf16>, vector<16x32xf32> -> vector<16x32xf32>
    %92 = arith.addf %84, %91 : vector<16x32xf32>
    %c1_80 = arith.constant 1 : index
    %c0_81 = arith.constant 0 : index
    %c0_82 = arith.constant 0 : index
    %93 = vector.load %arg6[%c1_80, %c0_81, %c0_82] : memref<9x16x64xbf16, #tpu.memory_space<vmem>>, vector<1x16x64xbf16>
    %94 = vector.shape_cast %93 : vector<1x16x64xbf16> to vector<16x64xbf16>
    %cst_83 = arith.constant dense<0.000000e+00> : vector<16x16xf32>
    %95 = tpu.matmul %94, %83, %cst_83 {dimension_numbers = #tpu.dot_dimension_numbers<[1], [0], [0], [1], [0, 0, 1, 1], [], []>} : vector<16x64xbf16>, vector<64x16xbf16>, vector<16x16xf32> -> vector<16x16xf32>
    %96 = arith.truncf %95 : vector<16x16xf32> to vector<16x16xbf16>
    %c1_84 = arith.constant 1 : index
    %c0_85 = arith.constant 0 : index
    %c0_86 = arith.constant 0 : index
    %97 = vector.load %arg7[%c1_84, %c0_85, %c0_86] : memref<9x16x32xbf16, #tpu.memory_space<vmem>>, vector<1x16x32xbf16>
    %98 = vector.shape_cast %97 : vector<1x16x32xbf16> to vector<16x32xbf16>
    %cst_87 = arith.constant dense<0.000000e+00> : vector<16x32xf32>
    %99 = tpu.matmul %96, %98, %cst_87 {dimension_numbers = #tpu.dot_dimension_numbers<[1], [0], [0], [1], [0, 0, 1, 1], [], []>} : vector<16x16xbf16>, vector<16x32xbf16>, vector<16x32xf32> -> vector<16x32xf32>
    %100 = arith.addf %92, %99 : vector<16x32xf32>
    %c2_88 = arith.constant 2 : index
    %c0_89 = arith.constant 0 : index
    %c0_90 = arith.constant 0 : index
    %101 = vector.load %arg6[%c2_88, %c0_89, %c0_90] : memref<9x16x64xbf16, #tpu.memory_space<vmem>>, vector<1x16x64xbf16>
    %102 = vector.shape_cast %101 : vector<1x16x64xbf16> to vector<16x64xbf16>
    %cst_91 = arith.constant dense<0.000000e+00> : vector<16x16xf32>
    %103 = tpu.matmul %102, %83, %cst_91 {dimension_numbers = #tpu.dot_dimension_numbers<[1], [0], [0], [1], [0, 0, 1, 1], [], []>} : vector<16x64xbf16>, vector<64x16xbf16>, vector<16x16xf32> -> vector<16x16xf32>
    %104 = arith.truncf %103 : vector<16x16xf32> to vector<16x16xbf16>
    %c2_92 = arith.constant 2 : index
    %c0_93 = arith.constant 0 : index
    %c0_94 = arith.constant 0 : index
    %105 = vector.load %arg7[%c2_92, %c0_93, %c0_94] : memref<9x16x32xbf16, #tpu.memory_space<vmem>>, vector<1x16x32xbf16>
    %106 = vector.shape_cast %105 : vector<1x16x32xbf16> to vector<16x32xbf16>
    %cst_95 = arith.constant dense<0.000000e+00> : vector<16x32xf32>
    %107 = tpu.matmul %104, %106, %cst_95 {dimension_numbers = #tpu.dot_dimension_numbers<[1], [0], [0], [1], [0, 0, 1, 1], [], []>} : vector<16x16xbf16>, vector<16x32xbf16>, vector<16x32xf32> -> vector<16x32xf32>
    %108 = arith.addf %100, %107 : vector<16x32xf32>
    %c3_96 = arith.constant 3 : index
    %c0_97 = arith.constant 0 : index
    %c0_98 = arith.constant 0 : index
    %109 = vector.load %arg6[%c3_96, %c0_97, %c0_98] : memref<9x16x64xbf16, #tpu.memory_space<vmem>>, vector<1x16x64xbf16>
    %110 = vector.shape_cast %109 : vector<1x16x64xbf16> to vector<16x64xbf16>
    %cst_99 = arith.constant dense<0.000000e+00> : vector<16x16xf32>
    %111 = tpu.matmul %110, %83, %cst_99 {dimension_numbers = #tpu.dot_dimension_numbers<[1], [0], [0], [1], [0, 0, 1, 1], [], []>} : vector<16x64xbf16>, vector<64x16xbf16>, vector<16x16xf32> -> vector<16x16xf32>
    %112 = arith.truncf %111 : vector<16x16xf32> to vector<16x16xbf16>
    %c3_100 = arith.constant 3 : index
    %c0_101 = arith.constant 0 : index
    %c0_102 = arith.constant 0 : index
    %113 = vector.load %arg7[%c3_100, %c0_101, %c0_102] : memref<9x16x32xbf16, #tpu.memory_space<vmem>>, vector<1x16x32xbf16>
    %114 = vector.shape_cast %113 : vector<1x16x32xbf16> to vector<16x32xbf16>
    %cst_103 = arith.constant dense<0.000000e+00> : vector<16x32xf32>
    %115 = tpu.matmul %112, %114, %cst_103 {dimension_numbers = #tpu.dot_dimension_numbers<[1], [0], [0], [1], [0, 0, 1, 1], [], []>} : vector<16x16xbf16>, vector<16x32xbf16>, vector<16x32xf32> -> vector<16x32xf32>
    %116 = arith.addf %108, %115 : vector<16x32xf32>
    %c4_104 = arith.constant 4 : index
    %c0_105 = arith.constant 0 : index
    %c0_106 = arith.constant 0 : index
    %117 = vector.load %arg6[%c4_104, %c0_105, %c0_106] : memref<9x16x64xbf16, #tpu.memory_space<vmem>>, vector<1x16x64xbf16>
    %118 = vector.shape_cast %117 : vector<1x16x64xbf16> to vector<16x64xbf16>
    %cst_107 = arith.constant dense<0.000000e+00> : vector<16x16xf32>
    %119 = tpu.matmul %118, %83, %cst_107 {dimension_numbers = #tpu.dot_dimension_numbers<[1], [0], [0], [1], [0, 0, 1, 1], [], []>} : vector<16x64xbf16>, vector<64x16xbf16>, vector<16x16xf32> -> vector<16x16xf32>
    %120 = arith.truncf %119 : vector<16x16xf32> to vector<16x16xbf16>
    %c4_108 = arith.constant 4 : index
    %c0_109 = arith.constant 0 : index
    %c0_110 = arith.constant 0 : index
    %121 = vector.load %arg7[%c4_108, %c0_109, %c0_110] : memref<9x16x32xbf16, #tpu.memory_space<vmem>>, vector<1x16x32xbf16>
    %122 = vector.shape_cast %121 : vector<1x16x32xbf16> to vector<16x32xbf16>
    %cst_111 = arith.constant dense<0.000000e+00> : vector<16x32xf32>
    %123 = tpu.matmul %120, %122, %cst_111 {dimension_numbers = #tpu.dot_dimension_numbers<[1], [0], [0], [1], [0, 0, 1, 1], [], []>} : vector<16x16xbf16>, vector<16x32xbf16>, vector<16x32xf32> -> vector<16x32xf32>
    %124 = arith.addf %116, %123 : vector<16x32xf32>
    %c5_112 = arith.constant 5 : index
    %c0_113 = arith.constant 0 : index
    %c0_114 = arith.constant 0 : index
    %125 = vector.load %arg6[%c5_112, %c0_113, %c0_114] : memref<9x16x64xbf16, #tpu.memory_space<vmem>>, vector<1x16x64xbf16>
    %126 = vector.shape_cast %125 : vector<1x16x64xbf16> to vector<16x64xbf16>
    %cst_115 = arith.constant dense<0.000000e+00> : vector<16x16xf32>
    %127 = tpu.matmul %126, %83, %cst_115 {dimension_numbers = #tpu.dot_dimension_numbers<[1], [0], [0], [1], [0, 0, 1, 1], [], []>} : vector<16x64xbf16>, vector<64x16xbf16>, vector<16x16xf32> -> vector<16x16xf32>
    %128 = arith.truncf %127 : vector<16x16xf32> to vector<16x16xbf16>
    %c5_116 = arith.constant 5 : index
    %c0_117 = arith.constant 0 : index
    %c0_118 = arith.constant 0 : index
    %129 = vector.load %arg7[%c5_116, %c0_117, %c0_118] : memref<9x16x32xbf16, #tpu.memory_space<vmem>>, vector<1x16x32xbf16>
    %130 = vector.shape_cast %129 : vector<1x16x32xbf16> to vector<16x32xbf16>
    %cst_119 = arith.constant dense<0.000000e+00> : vector<16x32xf32>
    %131 = tpu.matmul %128, %130, %cst_119 {dimension_numbers = #tpu.dot_dimension_numbers<[1], [0], [0], [1], [0, 0, 1, 1], [], []>} : vector<16x16xbf16>, vector<16x32xbf16>, vector<16x32xf32> -> vector<16x32xf32>
    %132 = arith.addf %124, %131 : vector<16x32xf32>
    %c6_120 = arith.constant 6 : index
    %c0_121 = arith.constant 0 : index
    %c0_122 = arith.constant 0 : index
    %133 = vector.load %arg6[%c6_120, %c0_121, %c0_122] : memref<9x16x64xbf16, #tpu.memory_space<vmem>>, vector<1x16x64xbf16>
    %134 = vector.shape_cast %133 : vector<1x16x64xbf16> to vector<16x64xbf16>
    %cst_123 = arith.constant dense<0.000000e+00> : vector<16x16xf32>
    %135 = tpu.matmul %134, %83, %cst_123 {dimension_numbers = #tpu.dot_dimension_numbers<[1], [0], [0], [1], [0, 0, 1, 1], [], []>} : vector<16x64xbf16>, vector<64x16xbf16>, vector<16x16xf32> -> vector<16x16xf32>
    %136 = arith.truncf %135 : vector<16x16xf32> to vector<16x16xbf16>
    %c6_124 = arith.constant 6 : index
    %c0_125 = arith.constant 0 : index
    %c0_126 = arith.constant 0 : index
    %137 = vector.load %arg7[%c6_124, %c0_125, %c0_126] : memref<9x16x32xbf16, #tpu.memory_space<vmem>>, vector<1x16x32xbf16>
    %138 = vector.shape_cast %137 : vector<1x16x32xbf16> to vector<16x32xbf16>
    %cst_127 = arith.constant dense<0.000000e+00> : vector<16x32xf32>
    %139 = tpu.matmul %136, %138, %cst_127 {dimension_numbers = #tpu.dot_dimension_numbers<[1], [0], [0], [1], [0, 0, 1, 1], [], []>} : vector<16x16xbf16>, vector<16x32xbf16>, vector<16x32xf32> -> vector<16x32xf32>
    %140 = arith.addf %132, %139 : vector<16x32xf32>
    %c7_128 = arith.constant 7 : index
    %c0_129 = arith.constant 0 : index
    %c0_130 = arith.constant 0 : index
    %141 = vector.load %arg6[%c7_128, %c0_129, %c0_130] : memref<9x16x64xbf16, #tpu.memory_space<vmem>>, vector<1x16x64xbf16>
    %142 = vector.shape_cast %141 : vector<1x16x64xbf16> to vector<16x64xbf16>
    %cst_131 = arith.constant dense<0.000000e+00> : vector<16x16xf32>
    %143 = tpu.matmul %142, %83, %cst_131 {dimension_numbers = #tpu.dot_dimension_numbers<[1], [0], [0], [1], [0, 0, 1, 1], [], []>} : vector<16x64xbf16>, vector<64x16xbf16>, vector<16x16xf32> -> vector<16x16xf32>
    %144 = arith.truncf %143 : vector<16x16xf32> to vector<16x16xbf16>
    %c7_132 = arith.constant 7 : index
    %c0_133 = arith.constant 0 : index
    %c0_134 = arith.constant 0 : index
    %145 = vector.load %arg7[%c7_132, %c0_133, %c0_134] : memref<9x16x32xbf16, #tpu.memory_space<vmem>>, vector<1x16x32xbf16>
    %146 = vector.shape_cast %145 : vector<1x16x32xbf16> to vector<16x32xbf16>
    %cst_135 = arith.constant dense<0.000000e+00> : vector<16x32xf32>
    %147 = tpu.matmul %144, %146, %cst_135 {dimension_numbers = #tpu.dot_dimension_numbers<[1], [0], [0], [1], [0, 0, 1, 1], [], []>} : vector<16x16xbf16>, vector<16x32xbf16>, vector<16x32xf32> -> vector<16x32xf32>
    %148 = arith.addf %140, %147 : vector<16x32xf32>
    %c8_136 = arith.constant 8 : index
    %c0_137 = arith.constant 0 : index
    %c0_138 = arith.constant 0 : index
    %149 = vector.load %arg6[%c8_136, %c0_137, %c0_138] : memref<9x16x64xbf16, #tpu.memory_space<vmem>>, vector<1x16x64xbf16>
    %150 = vector.shape_cast %149 : vector<1x16x64xbf16> to vector<16x64xbf16>
    %cst_139 = arith.constant dense<0.000000e+00> : vector<16x16xf32>
    %151 = tpu.matmul %150, %83, %cst_139 {dimension_numbers = #tpu.dot_dimension_numbers<[1], [0], [0], [1], [0, 0, 1, 1], [], []>} : vector<16x64xbf16>, vector<64x16xbf16>, vector<16x16xf32> -> vector<16x16xf32>
    %152 = arith.truncf %151 : vector<16x16xf32> to vector<16x16xbf16>
    %c8_140 = arith.constant 8 : index
    %c0_141 = arith.constant 0 : index
    %c0_142 = arith.constant 0 : index
    %153 = vector.load %arg7[%c8_140, %c0_141, %c0_142] : memref<9x16x32xbf16, #tpu.memory_space<vmem>>, vector<1x16x32xbf16>
    %154 = vector.shape_cast %153 : vector<1x16x32xbf16> to vector<16x32xbf16>
    %cst_143 = arith.constant dense<0.000000e+00> : vector<16x32xf32>
    %155 = tpu.matmul %152, %154, %cst_143 {dimension_numbers = #tpu.dot_dimension_numbers<[1], [0], [0], [1], [0, 0, 1, 1], [], []>} : vector<16x16xbf16>, vector<16x32xbf16>, vector<16x32xf32> -> vector<16x32xf32>
    %156 = arith.addf %148, %155 : vector<16x32xf32>
    %c0_144 = arith.constant 0 : index
    %c0_145 = arith.constant 0 : index
    %157 = vector.load %arg8[%c0_144, %c0_145] : memref<1x32xf32, #tpu.memory_space<vmem>>, vector<1x32xf32>
    %158 = vector.broadcast %157 : vector<1x32xf32> to vector<16x32xf32>
    %159 = arith.mulf %156, %158 : vector<16x32xf32>
    %c0_146 = arith.constant 0 : index
    %c0_147 = arith.constant 0 : index
    %160 = vector.load %arg9[%c0_146, %c0_147] : memref<1x32xf32, #tpu.memory_space<vmem>>, vector<1x32xf32>
    %161 = vector.broadcast %160 : vector<1x32xf32> to vector<16x32xf32>
    %162 = arith.addf %159, %161 : vector<16x32xf32>
    %cst_148 = arith.constant 0.000000e+00 : f32
    %163 = vector.broadcast %cst_148 : f32 to vector<16x32xf32>
    %164 = arith.maximumf %162, %163 : vector<16x32xf32>
    %165 = arith.truncf %164 : vector<16x32xf32> to vector<16x32xbf16>
    %cst_149 = arith.constant 0.000000e+00 : f32
    %166 = vector.broadcast %cst_149 : f32 to vector<4x64xf32>
    %c0_150 = arith.constant 0 : index
    %c0_151 = arith.constant 0 : index
    %c0_152 = arith.constant 0 : index
    %167 = vector.load %arg10[%c0_150, %c0_151, %c0_152] : memref<9x4x16xbf16, #tpu.memory_space<vmem>>, vector<1x4x16xbf16>
    %168 = vector.shape_cast %167 : vector<1x4x16xbf16> to vector<4x16xbf16>
    %cst_153 = arith.constant dense<0.000000e+00> : vector<4x32xf32>
    %169 = tpu.matmul %168, %165, %cst_153 {dimension_numbers = #tpu.dot_dimension_numbers<[1], [0], [0], [1], [0, 0, 1, 1], [], []>} : vector<4x16xbf16>, vector<16x32xbf16>, vector<4x32xf32> -> vector<4x32xf32>
    %170 = arith.truncf %169 : vector<4x32xf32> to vector<4x32xbf16>
    %c0_154 = arith.constant 0 : index
    %c0_155 = arith.constant 0 : index
    %c0_156 = arith.constant 0 : index
    %171 = vector.load %arg11[%c0_154, %c0_155, %c0_156] : memref<9x32x64xbf16, #tpu.memory_space<vmem>>, vector<1x32x64xbf16>
    %172 = vector.shape_cast %171 : vector<1x32x64xbf16> to vector<32x64xbf16>
    %cst_157 = arith.constant dense<0.000000e+00> : vector<4x64xf32>
    %173 = tpu.matmul %170, %172, %cst_157 {dimension_numbers = #tpu.dot_dimension_numbers<[1], [0], [0], [1], [0, 0, 1, 1], [], []>} : vector<4x32xbf16>, vector<32x64xbf16>, vector<4x64xf32> -> vector<4x64xf32>
    %174 = arith.addf %166, %173 : vector<4x64xf32>
    %c1_158 = arith.constant 1 : index
    %c0_159 = arith.constant 0 : index
    %c0_160 = arith.constant 0 : index
    %175 = vector.load %arg10[%c1_158, %c0_159, %c0_160] : memref<9x4x16xbf16, #tpu.memory_space<vmem>>, vector<1x4x16xbf16>
    %176 = vector.shape_cast %175 : vector<1x4x16xbf16> to vector<4x16xbf16>
    %cst_161 = arith.constant dense<0.000000e+00> : vector<4x32xf32>
    %177 = tpu.matmul %176, %165, %cst_161 {dimension_numbers = #tpu.dot_dimension_numbers<[1], [0], [0], [1], [0, 0, 1, 1], [], []>} : vector<4x16xbf16>, vector<16x32xbf16>, vector<4x32xf32> -> vector<4x32xf32>
    %178 = arith.truncf %177 : vector<4x32xf32> to vector<4x32xbf16>
    %c1_162 = arith.constant 1 : index
    %c0_163 = arith.constant 0 : index
    %c0_164 = arith.constant 0 : index
    %179 = vector.load %arg11[%c1_162, %c0_163, %c0_164] : memref<9x32x64xbf16, #tpu.memory_space<vmem>>, vector<1x32x64xbf16>
    %180 = vector.shape_cast %179 : vector<1x32x64xbf16> to vector<32x64xbf16>
    %cst_165 = arith.constant dense<0.000000e+00> : vector<4x64xf32>
    %181 = tpu.matmul %178, %180, %cst_165 {dimension_numbers = #tpu.dot_dimension_numbers<[1], [0], [0], [1], [0, 0, 1, 1], [], []>} : vector<4x32xbf16>, vector<32x64xbf16>, vector<4x64xf32> -> vector<4x64xf32>
    %182 = arith.addf %174, %181 : vector<4x64xf32>
    %c2_166 = arith.constant 2 : index
    %c0_167 = arith.constant 0 : index
    %c0_168 = arith.constant 0 : index
    %183 = vector.load %arg10[%c2_166, %c0_167, %c0_168] : memref<9x4x16xbf16, #tpu.memory_space<vmem>>, vector<1x4x16xbf16>
    %184 = vector.shape_cast %183 : vector<1x4x16xbf16> to vector<4x16xbf16>
    %cst_169 = arith.constant dense<0.000000e+00> : vector<4x32xf32>
    %185 = tpu.matmul %184, %165, %cst_169 {dimension_numbers = #tpu.dot_dimension_numbers<[1], [0], [0], [1], [0, 0, 1, 1], [], []>} : vector<4x16xbf16>, vector<16x32xbf16>, vector<4x32xf32> -> vector<4x32xf32>
    %186 = arith.truncf %185 : vector<4x32xf32> to vector<4x32xbf16>
    %c2_170 = arith.constant 2 : index
    %c0_171 = arith.constant 0 : index
    %c0_172 = arith.constant 0 : index
    %187 = vector.load %arg11[%c2_170, %c0_171, %c0_172] : memref<9x32x64xbf16, #tpu.memory_space<vmem>>, vector<1x32x64xbf16>
    %188 = vector.shape_cast %187 : vector<1x32x64xbf16> to vector<32x64xbf16>
    %cst_173 = arith.constant dense<0.000000e+00> : vector<4x64xf32>
    %189 = tpu.matmul %186, %188, %cst_173 {dimension_numbers = #tpu.dot_dimension_numbers<[1], [0], [0], [1], [0, 0, 1, 1], [], []>} : vector<4x32xbf16>, vector<32x64xbf16>, vector<4x64xf32> -> vector<4x64xf32>
    %190 = arith.addf %182, %189 : vector<4x64xf32>
    %c3_174 = arith.constant 3 : index
    %c0_175 = arith.constant 0 : index
    %c0_176 = arith.constant 0 : index
    %191 = vector.load %arg10[%c3_174, %c0_175, %c0_176] : memref<9x4x16xbf16, #tpu.memory_space<vmem>>, vector<1x4x16xbf16>
    %192 = vector.shape_cast %191 : vector<1x4x16xbf16> to vector<4x16xbf16>
    %cst_177 = arith.constant dense<0.000000e+00> : vector<4x32xf32>
    %193 = tpu.matmul %192, %165, %cst_177 {dimension_numbers = #tpu.dot_dimension_numbers<[1], [0], [0], [1], [0, 0, 1, 1], [], []>} : vector<4x16xbf16>, vector<16x32xbf16>, vector<4x32xf32> -> vector<4x32xf32>
    %194 = arith.truncf %193 : vector<4x32xf32> to vector<4x32xbf16>
    %c3_178 = arith.constant 3 : index
    %c0_179 = arith.constant 0 : index
    %c0_180 = arith.constant 0 : index
    %195 = vector.load %arg11[%c3_178, %c0_179, %c0_180] : memref<9x32x64xbf16, #tpu.memory_space<vmem>>, vector<1x32x64xbf16>
    %196 = vector.shape_cast %195 : vector<1x32x64xbf16> to vector<32x64xbf16>
    %cst_181 = arith.constant dense<0.000000e+00> : vector<4x64xf32>
    %197 = tpu.matmul %194, %196, %cst_181 {dimension_numbers = #tpu.dot_dimension_numbers<[1], [0], [0], [1], [0, 0, 1, 1], [], []>} : vector<4x32xbf16>, vector<32x64xbf16>, vector<4x64xf32> -> vector<4x64xf32>
    %198 = arith.addf %190, %197 : vector<4x64xf32>
    %c4_182 = arith.constant 4 : index
    %c0_183 = arith.constant 0 : index
    %c0_184 = arith.constant 0 : index
    %199 = vector.load %arg10[%c4_182, %c0_183, %c0_184] : memref<9x4x16xbf16, #tpu.memory_space<vmem>>, vector<1x4x16xbf16>
    %200 = vector.shape_cast %199 : vector<1x4x16xbf16> to vector<4x16xbf16>
    %cst_185 = arith.constant dense<0.000000e+00> : vector<4x32xf32>
    %201 = tpu.matmul %200, %165, %cst_185 {dimension_numbers = #tpu.dot_dimension_numbers<[1], [0], [0], [1], [0, 0, 1, 1], [], []>} : vector<4x16xbf16>, vector<16x32xbf16>, vector<4x32xf32> -> vector<4x32xf32>
    %202 = arith.truncf %201 : vector<4x32xf32> to vector<4x32xbf16>
    %c4_186 = arith.constant 4 : index
    %c0_187 = arith.constant 0 : index
    %c0_188 = arith.constant 0 : index
    %203 = vector.load %arg11[%c4_186, %c0_187, %c0_188] : memref<9x32x64xbf16, #tpu.memory_space<vmem>>, vector<1x32x64xbf16>
    %204 = vector.shape_cast %203 : vector<1x32x64xbf16> to vector<32x64xbf16>
    %cst_189 = arith.constant dense<0.000000e+00> : vector<4x64xf32>
    %205 = tpu.matmul %202, %204, %cst_189 {dimension_numbers = #tpu.dot_dimension_numbers<[1], [0], [0], [1], [0, 0, 1, 1], [], []>} : vector<4x32xbf16>, vector<32x64xbf16>, vector<4x64xf32> -> vector<4x64xf32>
    %206 = arith.addf %198, %205 : vector<4x64xf32>
    %c5_190 = arith.constant 5 : index
    %c0_191 = arith.constant 0 : index
    %c0_192 = arith.constant 0 : index
    %207 = vector.load %arg10[%c5_190, %c0_191, %c0_192] : memref<9x4x16xbf16, #tpu.memory_space<vmem>>, vector<1x4x16xbf16>
    %208 = vector.shape_cast %207 : vector<1x4x16xbf16> to vector<4x16xbf16>
    %cst_193 = arith.constant dense<0.000000e+00> : vector<4x32xf32>
    %209 = tpu.matmul %208, %165, %cst_193 {dimension_numbers = #tpu.dot_dimension_numbers<[1], [0], [0], [1], [0, 0, 1, 1], [], []>} : vector<4x16xbf16>, vector<16x32xbf16>, vector<4x32xf32> -> vector<4x32xf32>
    %210 = arith.truncf %209 : vector<4x32xf32> to vector<4x32xbf16>
    %c5_194 = arith.constant 5 : index
    %c0_195 = arith.constant 0 : index
    %c0_196 = arith.constant 0 : index
    %211 = vector.load %arg11[%c5_194, %c0_195, %c0_196] : memref<9x32x64xbf16, #tpu.memory_space<vmem>>, vector<1x32x64xbf16>
    %212 = vector.shape_cast %211 : vector<1x32x64xbf16> to vector<32x64xbf16>
    %cst_197 = arith.constant dense<0.000000e+00> : vector<4x64xf32>
    %213 = tpu.matmul %210, %212, %cst_197 {dimension_numbers = #tpu.dot_dimension_numbers<[1], [0], [0], [1], [0, 0, 1, 1], [], []>} : vector<4x32xbf16>, vector<32x64xbf16>, vector<4x64xf32> -> vector<4x64xf32>
    %214 = arith.addf %206, %213 : vector<4x64xf32>
    %c6_198 = arith.constant 6 : index
    %c0_199 = arith.constant 0 : index
    %c0_200 = arith.constant 0 : index
    %215 = vector.load %arg10[%c6_198, %c0_199, %c0_200] : memref<9x4x16xbf16, #tpu.memory_space<vmem>>, vector<1x4x16xbf16>
    %216 = vector.shape_cast %215 : vector<1x4x16xbf16> to vector<4x16xbf16>
    %cst_201 = arith.constant dense<0.000000e+00> : vector<4x32xf32>
    %217 = tpu.matmul %216, %165, %cst_201 {dimension_numbers = #tpu.dot_dimension_numbers<[1], [0], [0], [1], [0, 0, 1, 1], [], []>} : vector<4x16xbf16>, vector<16x32xbf16>, vector<4x32xf32> -> vector<4x32xf32>
    %218 = arith.truncf %217 : vector<4x32xf32> to vector<4x32xbf16>
    %c6_202 = arith.constant 6 : index
    %c0_203 = arith.constant 0 : index
    %c0_204 = arith.constant 0 : index
    %219 = vector.load %arg11[%c6_202, %c0_203, %c0_204] : memref<9x32x64xbf16, #tpu.memory_space<vmem>>, vector<1x32x64xbf16>
    %220 = vector.shape_cast %219 : vector<1x32x64xbf16> to vector<32x64xbf16>
    %cst_205 = arith.constant dense<0.000000e+00> : vector<4x64xf32>
    %221 = tpu.matmul %218, %220, %cst_205 {dimension_numbers = #tpu.dot_dimension_numbers<[1], [0], [0], [1], [0, 0, 1, 1], [], []>} : vector<4x32xbf16>, vector<32x64xbf16>, vector<4x64xf32> -> vector<4x64xf32>
    %222 = arith.addf %214, %221 : vector<4x64xf32>
    %c7_206 = arith.constant 7 : index
    %c0_207 = arith.constant 0 : index
    %c0_208 = arith.constant 0 : index
    %223 = vector.load %arg10[%c7_206, %c0_207, %c0_208] : memref<9x4x16xbf16, #tpu.memory_space<vmem>>, vector<1x4x16xbf16>
    %224 = vector.shape_cast %223 : vector<1x4x16xbf16> to vector<4x16xbf16>
    %cst_209 = arith.constant dense<0.000000e+00> : vector<4x32xf32>
    %225 = tpu.matmul %224, %165, %cst_209 {dimension_numbers = #tpu.dot_dimension_numbers<[1], [0], [0], [1], [0, 0, 1, 1], [], []>} : vector<4x16xbf16>, vector<16x32xbf16>, vector<4x32xf32> -> vector<4x32xf32>
    %226 = arith.truncf %225 : vector<4x32xf32> to vector<4x32xbf16>
    %c7_210 = arith.constant 7 : index
    %c0_211 = arith.constant 0 : index
    %c0_212 = arith.constant 0 : index
    %227 = vector.load %arg11[%c7_210, %c0_211, %c0_212] : memref<9x32x64xbf16, #tpu.memory_space<vmem>>, vector<1x32x64xbf16>
    %228 = vector.shape_cast %227 : vector<1x32x64xbf16> to vector<32x64xbf16>
    %cst_213 = arith.constant dense<0.000000e+00> : vector<4x64xf32>
    %229 = tpu.matmul %226, %228, %cst_213 {dimension_numbers = #tpu.dot_dimension_numbers<[1], [0], [0], [1], [0, 0, 1, 1], [], []>} : vector<4x32xbf16>, vector<32x64xbf16>, vector<4x64xf32> -> vector<4x64xf32>
    %230 = arith.addf %222, %229 : vector<4x64xf32>
    %c8_214 = arith.constant 8 : index
    %c0_215 = arith.constant 0 : index
    %c0_216 = arith.constant 0 : index
    %231 = vector.load %arg10[%c8_214, %c0_215, %c0_216] : memref<9x4x16xbf16, #tpu.memory_space<vmem>>, vector<1x4x16xbf16>
    %232 = vector.shape_cast %231 : vector<1x4x16xbf16> to vector<4x16xbf16>
    %cst_217 = arith.constant dense<0.000000e+00> : vector<4x32xf32>
    %233 = tpu.matmul %232, %165, %cst_217 {dimension_numbers = #tpu.dot_dimension_numbers<[1], [0], [0], [1], [0, 0, 1, 1], [], []>} : vector<4x16xbf16>, vector<16x32xbf16>, vector<4x32xf32> -> vector<4x32xf32>
    %234 = arith.truncf %233 : vector<4x32xf32> to vector<4x32xbf16>
    %c8_218 = arith.constant 8 : index
    %c0_219 = arith.constant 0 : index
    %c0_220 = arith.constant 0 : index
    %235 = vector.load %arg11[%c8_218, %c0_219, %c0_220] : memref<9x32x64xbf16, #tpu.memory_space<vmem>>, vector<1x32x64xbf16>
    %236 = vector.shape_cast %235 : vector<1x32x64xbf16> to vector<32x64xbf16>
    %cst_221 = arith.constant dense<0.000000e+00> : vector<4x64xf32>
    %237 = tpu.matmul %234, %236, %cst_221 {dimension_numbers = #tpu.dot_dimension_numbers<[1], [0], [0], [1], [0, 0, 1, 1], [], []>} : vector<4x32xbf16>, vector<32x64xbf16>, vector<4x64xf32> -> vector<4x64xf32>
    %238 = arith.addf %230, %237 : vector<4x64xf32>
    %c0_222 = arith.constant 0 : index
    %c0_223 = arith.constant 0 : index
    %239 = vector.load %arg12[%c0_222, %c0_223] : memref<1x64xf32, #tpu.memory_space<vmem>>, vector<1x64xf32>
    %240 = vector.broadcast %239 : vector<1x64xf32> to vector<4x64xf32>
    %241 = arith.mulf %238, %240 : vector<4x64xf32>
    %c0_224 = arith.constant 0 : index
    %c0_225 = arith.constant 0 : index
    %242 = vector.load %arg13[%c0_224, %c0_225] : memref<1x64xf32, #tpu.memory_space<vmem>>, vector<1x64xf32>
    %243 = vector.broadcast %242 : vector<1x64xf32> to vector<4x64xf32>
    %244 = arith.addf %241, %243 : vector<4x64xf32>
    %cst_226 = arith.constant 0.000000e+00 : f32
    %245 = vector.broadcast %cst_226 : f32 to vector<4x64xf32>
    %246 = arith.maximumf %244, %245 : vector<4x64xf32>
    %247 = arith.truncf %246 : vector<4x64xf32> to vector<4x64xbf16>
    %cst_227 = arith.constant 0.000000e+00 : f32
    %248 = vector.broadcast %cst_227 : f32 to vector<1x128xf32>
    %c0_228 = arith.constant 0 : index
    %c0_229 = arith.constant 0 : index
    %c0_230 = arith.constant 0 : index
    %249 = vector.load %arg14[%c0_228, %c0_229, %c0_230] : memref<9x1x4xbf16, #tpu.memory_space<vmem>>, vector<1x1x4xbf16>
    %250 = vector.shape_cast %249 : vector<1x1x4xbf16> to vector<1x4xbf16>
    %cst_231 = arith.constant dense<0.000000e+00> : vector<1x64xf32>
    %251 = tpu.matmul %250, %247, %cst_231 {dimension_numbers = #tpu.dot_dimension_numbers<[1], [0], [0], [1], [0, 0, 1, 1], [], []>} : vector<1x4xbf16>, vector<4x64xbf16>, vector<1x64xf32> -> vector<1x64xf32>
    %252 = arith.truncf %251 : vector<1x64xf32> to vector<1x64xbf16>
    %c0_232 = arith.constant 0 : index
    %c0_233 = arith.constant 0 : index
    %c0_234 = arith.constant 0 : index
    %253 = vector.load %arg15[%c0_232, %c0_233, %c0_234] : memref<9x64x128xbf16, #tpu.memory_space<vmem>>, vector<1x64x128xbf16>
    %254 = vector.shape_cast %253 : vector<1x64x128xbf16> to vector<64x128xbf16>
    %cst_235 = arith.constant dense<0.000000e+00> : vector<1x128xf32>
    %255 = tpu.matmul %252, %254, %cst_235 {dimension_numbers = #tpu.dot_dimension_numbers<[1], [0], [0], [1], [0, 0, 1, 1], [], []>} : vector<1x64xbf16>, vector<64x128xbf16>, vector<1x128xf32> -> vector<1x128xf32>
    %256 = arith.addf %248, %255 : vector<1x128xf32>
    %c1_236 = arith.constant 1 : index
    %c0_237 = arith.constant 0 : index
    %c0_238 = arith.constant 0 : index
    %257 = vector.load %arg14[%c1_236, %c0_237, %c0_238] : memref<9x1x4xbf16, #tpu.memory_space<vmem>>, vector<1x1x4xbf16>
    %258 = vector.shape_cast %257 : vector<1x1x4xbf16> to vector<1x4xbf16>
    %cst_239 = arith.constant dense<0.000000e+00> : vector<1x64xf32>
    %259 = tpu.matmul %258, %247, %cst_239 {dimension_numbers = #tpu.dot_dimension_numbers<[1], [0], [0], [1], [0, 0, 1, 1], [], []>} : vector<1x4xbf16>, vector<4x64xbf16>, vector<1x64xf32> -> vector<1x64xf32>
    %260 = arith.truncf %259 : vector<1x64xf32> to vector<1x64xbf16>
    %c1_240 = arith.constant 1 : index
    %c0_241 = arith.constant 0 : index
    %c0_242 = arith.constant 0 : index
    %261 = vector.load %arg15[%c1_240, %c0_241, %c0_242] : memref<9x64x128xbf16, #tpu.memory_space<vmem>>, vector<1x64x128xbf16>
    %262 = vector.shape_cast %261 : vector<1x64x128xbf16> to vector<64x128xbf16>
    %cst_243 = arith.constant dense<0.000000e+00> : vector<1x128xf32>
    %263 = tpu.matmul %260, %262, %cst_243 {dimension_numbers = #tpu.dot_dimension_numbers<[1], [0], [0], [1], [0, 0, 1, 1], [], []>} : vector<1x64xbf16>, vector<64x128xbf16>, vector<1x128xf32> -> vector<1x128xf32>
    %264 = arith.addf %256, %263 : vector<1x128xf32>
    %c2_244 = arith.constant 2 : index
    %c0_245 = arith.constant 0 : index
    %c0_246 = arith.constant 0 : index
    %265 = vector.load %arg14[%c2_244, %c0_245, %c0_246] : memref<9x1x4xbf16, #tpu.memory_space<vmem>>, vector<1x1x4xbf16>
    %266 = vector.shape_cast %265 : vector<1x1x4xbf16> to vector<1x4xbf16>
    %cst_247 = arith.constant dense<0.000000e+00> : vector<1x64xf32>
    %267 = tpu.matmul %266, %247, %cst_247 {dimension_numbers = #tpu.dot_dimension_numbers<[1], [0], [0], [1], [0, 0, 1, 1], [], []>} : vector<1x4xbf16>, vector<4x64xbf16>, vector<1x64xf32> -> vector<1x64xf32>
    %268 = arith.truncf %267 : vector<1x64xf32> to vector<1x64xbf16>
    %c2_248 = arith.constant 2 : index
    %c0_249 = arith.constant 0 : index
    %c0_250 = arith.constant 0 : index
    %269 = vector.load %arg15[%c2_248, %c0_249, %c0_250] : memref<9x64x128xbf16, #tpu.memory_space<vmem>>, vector<1x64x128xbf16>
    %270 = vector.shape_cast %269 : vector<1x64x128xbf16> to vector<64x128xbf16>
    %cst_251 = arith.constant dense<0.000000e+00> : vector<1x128xf32>
    %271 = tpu.matmul %268, %270, %cst_251 {dimension_numbers = #tpu.dot_dimension_numbers<[1], [0], [0], [1], [0, 0, 1, 1], [], []>} : vector<1x64xbf16>, vector<64x128xbf16>, vector<1x128xf32> -> vector<1x128xf32>
    %272 = arith.addf %264, %271 : vector<1x128xf32>
    %c3_252 = arith.constant 3 : index
    %c0_253 = arith.constant 0 : index
    %c0_254 = arith.constant 0 : index
    %273 = vector.load %arg14[%c3_252, %c0_253, %c0_254] : memref<9x1x4xbf16, #tpu.memory_space<vmem>>, vector<1x1x4xbf16>
    %274 = vector.shape_cast %273 : vector<1x1x4xbf16> to vector<1x4xbf16>
    %cst_255 = arith.constant dense<0.000000e+00> : vector<1x64xf32>
    %275 = tpu.matmul %274, %247, %cst_255 {dimension_numbers = #tpu.dot_dimension_numbers<[1], [0], [0], [1], [0, 0, 1, 1], [], []>} : vector<1x4xbf16>, vector<4x64xbf16>, vector<1x64xf32> -> vector<1x64xf32>
    %276 = arith.truncf %275 : vector<1x64xf32> to vector<1x64xbf16>
    %c3_256 = arith.constant 3 : index
    %c0_257 = arith.constant 0 : index
    %c0_258 = arith.constant 0 : index
    %277 = vector.load %arg15[%c3_256, %c0_257, %c0_258] : memref<9x64x128xbf16, #tpu.memory_space<vmem>>, vector<1x64x128xbf16>
    %278 = vector.shape_cast %277 : vector<1x64x128xbf16> to vector<64x128xbf16>
    %cst_259 = arith.constant dense<0.000000e+00> : vector<1x128xf32>
    %279 = tpu.matmul %276, %278, %cst_259 {dimension_numbers = #tpu.dot_dimension_numbers<[1], [0], [0], [1], [0, 0, 1, 1], [], []>} : vector<1x64xbf16>, vector<64x128xbf16>, vector<1x128xf32> -> vector<1x128xf32>
    %280 = arith.addf %272, %279 : vector<1x128xf32>
    %c4_260 = arith.constant 4 : index
    %c0_261 = arith.constant 0 : index
    %c0_262 = arith.constant 0 : index
    %281 = vector.load %arg14[%c4_260, %c0_261, %c0_262] : memref<9x1x4xbf16, #tpu.memory_space<vmem>>, vector<1x1x4xbf16>
    %282 = vector.shape_cast %281 : vector<1x1x4xbf16> to vector<1x4xbf16>
    %cst_263 = arith.constant dense<0.000000e+00> : vector<1x64xf32>
    %283 = tpu.matmul %282, %247, %cst_263 {dimension_numbers = #tpu.dot_dimension_numbers<[1], [0], [0], [1], [0, 0, 1, 1], [], []>} : vector<1x4xbf16>, vector<4x64xbf16>, vector<1x64xf32> -> vector<1x64xf32>
    %284 = arith.truncf %283 : vector<1x64xf32> to vector<1x64xbf16>
    %c4_264 = arith.constant 4 : index
    %c0_265 = arith.constant 0 : index
    %c0_266 = arith.constant 0 : index
    %285 = vector.load %arg15[%c4_264, %c0_265, %c0_266] : memref<9x64x128xbf16, #tpu.memory_space<vmem>>, vector<1x64x128xbf16>
    %286 = vector.shape_cast %285 : vector<1x64x128xbf16> to vector<64x128xbf16>
    %cst_267 = arith.constant dense<0.000000e+00> : vector<1x128xf32>
    %287 = tpu.matmul %284, %286, %cst_267 {dimension_numbers = #tpu.dot_dimension_numbers<[1], [0], [0], [1], [0, 0, 1, 1], [], []>} : vector<1x64xbf16>, vector<64x128xbf16>, vector<1x128xf32> -> vector<1x128xf32>
    %288 = arith.addf %280, %287 : vector<1x128xf32>
    %c5_268 = arith.constant 5 : index
    %c0_269 = arith.constant 0 : index
    %c0_270 = arith.constant 0 : index
    %289 = vector.load %arg14[%c5_268, %c0_269, %c0_270] : memref<9x1x4xbf16, #tpu.memory_space<vmem>>, vector<1x1x4xbf16>
    %290 = vector.shape_cast %289 : vector<1x1x4xbf16> to vector<1x4xbf16>
    %cst_271 = arith.constant dense<0.000000e+00> : vector<1x64xf32>
    %291 = tpu.matmul %290, %247, %cst_271 {dimension_numbers = #tpu.dot_dimension_numbers<[1], [0], [0], [1], [0, 0, 1, 1], [], []>} : vector<1x4xbf16>, vector<4x64xbf16>, vector<1x64xf32> -> vector<1x64xf32>
    %292 = arith.truncf %291 : vector<1x64xf32> to vector<1x64xbf16>
    %c5_272 = arith.constant 5 : index
    %c0_273 = arith.constant 0 : index
    %c0_274 = arith.constant 0 : index
    %293 = vector.load %arg15[%c5_272, %c0_273, %c0_274] : memref<9x64x128xbf16, #tpu.memory_space<vmem>>, vector<1x64x128xbf16>
    %294 = vector.shape_cast %293 : vector<1x64x128xbf16> to vector<64x128xbf16>
    %cst_275 = arith.constant dense<0.000000e+00> : vector<1x128xf32>
    %295 = tpu.matmul %292, %294, %cst_275 {dimension_numbers = #tpu.dot_dimension_numbers<[1], [0], [0], [1], [0, 0, 1, 1], [], []>} : vector<1x64xbf16>, vector<64x128xbf16>, vector<1x128xf32> -> vector<1x128xf32>
    %296 = arith.addf %288, %295 : vector<1x128xf32>
    %c6_276 = arith.constant 6 : index
    %c0_277 = arith.constant 0 : index
    %c0_278 = arith.constant 0 : index
    %297 = vector.load %arg14[%c6_276, %c0_277, %c0_278] : memref<9x1x4xbf16, #tpu.memory_space<vmem>>, vector<1x1x4xbf16>
    %298 = vector.shape_cast %297 : vector<1x1x4xbf16> to vector<1x4xbf16>
    %cst_279 = arith.constant dense<0.000000e+00> : vector<1x64xf32>
    %299 = tpu.matmul %298, %247, %cst_279 {dimension_numbers = #tpu.dot_dimension_numbers<[1], [0], [0], [1], [0, 0, 1, 1], [], []>} : vector<1x4xbf16>, vector<4x64xbf16>, vector<1x64xf32> -> vector<1x64xf32>
    %300 = arith.truncf %299 : vector<1x64xf32> to vector<1x64xbf16>
    %c6_280 = arith.constant 6 : index
    %c0_281 = arith.constant 0 : index
    %c0_282 = arith.constant 0 : index
    %301 = vector.load %arg15[%c6_280, %c0_281, %c0_282] : memref<9x64x128xbf16, #tpu.memory_space<vmem>>, vector<1x64x128xbf16>
    %302 = vector.shape_cast %301 : vector<1x64x128xbf16> to vector<64x128xbf16>
    %cst_283 = arith.constant dense<0.000000e+00> : vector<1x128xf32>
    %303 = tpu.matmul %300, %302, %cst_283 {dimension_numbers = #tpu.dot_dimension_numbers<[1], [0], [0], [1], [0, 0, 1, 1], [], []>} : vector<1x64xbf16>, vector<64x128xbf16>, vector<1x128xf32> -> vector<1x128xf32>
    %304 = arith.addf %296, %303 : vector<1x128xf32>
    %c7_284 = arith.constant 7 : index
    %c0_285 = arith.constant 0 : index
    %c0_286 = arith.constant 0 : index
    %305 = vector.load %arg14[%c7_284, %c0_285, %c0_286] : memref<9x1x4xbf16, #tpu.memory_space<vmem>>, vector<1x1x4xbf16>
    %306 = vector.shape_cast %305 : vector<1x1x4xbf16> to vector<1x4xbf16>
    %cst_287 = arith.constant dense<0.000000e+00> : vector<1x64xf32>
    %307 = tpu.matmul %306, %247, %cst_287 {dimension_numbers = #tpu.dot_dimension_numbers<[1], [0], [0], [1], [0, 0, 1, 1], [], []>} : vector<1x4xbf16>, vector<4x64xbf16>, vector<1x64xf32> -> vector<1x64xf32>
    %308 = arith.truncf %307 : vector<1x64xf32> to vector<1x64xbf16>
    %c7_288 = arith.constant 7 : index
    %c0_289 = arith.constant 0 : index
    %c0_290 = arith.constant 0 : index
    %309 = vector.load %arg15[%c7_288, %c0_289, %c0_290] : memref<9x64x128xbf16, #tpu.memory_space<vmem>>, vector<1x64x128xbf16>
    %310 = vector.shape_cast %309 : vector<1x64x128xbf16> to vector<64x128xbf16>
    %cst_291 = arith.constant dense<0.000000e+00> : vector<1x128xf32>
    %311 = tpu.matmul %308, %310, %cst_291 {dimension_numbers = #tpu.dot_dimension_numbers<[1], [0], [0], [1], [0, 0, 1, 1], [], []>} : vector<1x64xbf16>, vector<64x128xbf16>, vector<1x128xf32> -> vector<1x128xf32>
    %312 = arith.addf %304, %311 : vector<1x128xf32>
    %c8_292 = arith.constant 8 : index
    %c0_293 = arith.constant 0 : index
    %c0_294 = arith.constant 0 : index
    %313 = vector.load %arg14[%c8_292, %c0_293, %c0_294] : memref<9x1x4xbf16, #tpu.memory_space<vmem>>, vector<1x1x4xbf16>
    %314 = vector.shape_cast %313 : vector<1x1x4xbf16> to vector<1x4xbf16>
    %cst_295 = arith.constant dense<0.000000e+00> : vector<1x64xf32>
    %315 = tpu.matmul %314, %247, %cst_295 {dimension_numbers = #tpu.dot_dimension_numbers<[1], [0], [0], [1], [0, 0, 1, 1], [], []>} : vector<1x4xbf16>, vector<4x64xbf16>, vector<1x64xf32> -> vector<1x64xf32>
    %316 = arith.truncf %315 : vector<1x64xf32> to vector<1x64xbf16>
    %c8_296 = arith.constant 8 : index
    %c0_297 = arith.constant 0 : index
    %c0_298 = arith.constant 0 : index
    %317 = vector.load %arg15[%c8_296, %c0_297, %c0_298] : memref<9x64x128xbf16, #tpu.memory_space<vmem>>, vector<1x64x128xbf16>
    %318 = vector.shape_cast %317 : vector<1x64x128xbf16> to vector<64x128xbf16>
    %cst_299 = arith.constant dense<0.000000e+00> : vector<1x128xf32>
    %319 = tpu.matmul %316, %318, %cst_299 {dimension_numbers = #tpu.dot_dimension_numbers<[1], [0], [0], [1], [0, 0, 1, 1], [], []>} : vector<1x64xbf16>, vector<64x128xbf16>, vector<1x128xf32> -> vector<1x128xf32>
    %320 = arith.addf %312, %319 : vector<1x128xf32>
    %c0_300 = arith.constant 0 : index
    %c0_301 = arith.constant 0 : index
    %321 = vector.load %arg16[%c0_300, %c0_301] : memref<1x128xf32, #tpu.memory_space<vmem>>, vector<1x128xf32>
    %322 = arith.mulf %320, %321 : vector<1x128xf32>
    %c0_302 = arith.constant 0 : index
    %c0_303 = arith.constant 0 : index
    %323 = vector.load %arg17[%c0_302, %c0_303] : memref<1x128xf32, #tpu.memory_space<vmem>>, vector<1x128xf32>
    %324 = arith.addf %322, %323 : vector<1x128xf32>
    %cst_304 = arith.constant 0.000000e+00 : f32
    %325 = vector.broadcast %cst_304 : f32 to vector<1x128xf32>
    %326 = arith.maximumf %324, %325 : vector<1x128xf32>
    %cst_305 = arith.constant dense<0.000000e+00> : vector<128xf32>
    %327 = vector.multi_reduction <add>, %326, %cst_305 [0] : vector<1x128xf32> to vector<128xf32>
    %328 = vector.shape_cast %327 : vector<128xf32> to vector<1x128xf32>
    %cst_306 = arith.constant 1.000000e+00 : f32
    %329 = vector.broadcast %cst_306 : f32 to vector<1x128xf32>
    %330 = arith.divf %328, %329 : vector<1x128xf32>
    %c0_307 = arith.constant 0 : index
    %c0_308 = arith.constant 0 : index
    %331 = vector.load %arg18[%c0_307, %c0_308] : memref<1x128xf32, #tpu.memory_space<vmem>>, vector<1x128xf32>
    %332 = arith.mulf %330, %331 : vector<1x128xf32>
    %cst_309 = arith.constant dense<0.000000e+00> : vector<1xf32>
    %333 = vector.multi_reduction <add>, %332, %cst_309 [1] : vector<1x128xf32> to vector<1xf32>
    %334 = vector.shape_cast %333 : vector<1xf32> to vector<1x1xf32>
    %c0_310 = arith.constant 0 : index
    %c0_311 = arith.constant 0 : index
    %335 = vector.load %arg19[%c0_310, %c0_311] : memref<1x1xf32, #tpu.memory_space<vmem>>, vector<1x1xf32>
    %336 = arith.addf %334, %335 : vector<1x1xf32>
    %337 = vector.shape_cast %336 : vector<1x1xf32> to vector<1x1x1xf32>
    %c0_312 = arith.constant 0 : index
    %c0_313 = arith.constant 0 : index
    %c0_314 = arith.constant 0 : index
    %338 = vector.load %arg20[%c0_312, %c0_313, %c0_314] : memref<1x1x1xf32, #tpu.memory_space<vmem>>, vector<1x1x1xf32>
    tpu.vector_store %arg20[%c0_312, %c0_313, %c0_314], %337 {strides = array<i32>} : memref<1x1x1xf32, #tpu.memory_space<vmem>>, vector<1x1x1xf32>,
    return
  }
  func.func @transform_0(%arg0: i32) -> (i32, i32, i32) {
    %c0_i32 = arith.constant 0 : i32
    %c0_i32_0 = arith.constant 0 : i32
    %c0_i32_1 = arith.constant 0 : i32
    return %arg0, %c0_i32, %c0_i32_0 : i32, i32, i32
  }
  func.func @transform_1(%arg0: i32) -> (i32, i32, i32) {
    %c0_i32 = arith.constant 0 : i32
    %c0_i32_0 = arith.constant 0 : i32
    %c0_i32_1 = arith.constant 0 : i32
    %c0_i32_2 = arith.constant 0 : i32
    return %c0_i32, %c0_i32_0, %c0_i32_1 : i32, i32, i32
  }
  func.func @transform_2(%arg0: i32) -> (i32, i32, i32) {
    %c0_i32 = arith.constant 0 : i32
    %c0_i32_0 = arith.constant 0 : i32
    %c0_i32_1 = arith.constant 0 : i32
    %c0_i32_2 = arith.constant 0 : i32
    return %c0_i32, %c0_i32_0, %c0_i32_1 : i32, i32, i32
  }
  func.func @transform_3(%arg0: i32) -> (i32, i32) {
    %c0_i32 = arith.constant 0 : i32
    %c0_i32_0 = arith.constant 0 : i32
    %c0_i32_1 = arith.constant 0 : i32
    return %c0_i32, %c0_i32_0 : i32, i32
  }
  func.func @transform_4(%arg0: i32) -> (i32, i32) {
    %c0_i32 = arith.constant 0 : i32
    %c0_i32_0 = arith.constant 0 : i32
    %c0_i32_1 = arith.constant 0 : i32
    return %c0_i32, %c0_i32_0 : i32, i32
  }
  func.func @transform_5(%arg0: i32) -> (i32, i32, i32) {
    %c0_i32 = arith.constant 0 : i32
    %c0_i32_0 = arith.constant 0 : i32
    %c0_i32_1 = arith.constant 0 : i32
    %c0_i32_2 = arith.constant 0 : i32
    return %c0_i32, %c0_i32_0, %c0_i32_1 : i32, i32, i32
  }
  func.func @transform_6(%arg0: i32) -> (i32, i32, i32) {
    %c0_i32 = arith.constant 0 : i32
    %c0_i32_0 = arith.constant 0 : i32
    %c0_i32_1 = arith.constant 0 : i32
    %c0_i32_2 = arith.constant 0 : i32
    return %c0_i32, %c0_i32_0, %c0_i32_1 : i32, i32, i32
  }
  func.func @transform_7(%arg0: i32) -> (i32, i32) {
    %c0_i32 = arith.constant 0 : i32
    %c0_i32_0 = arith.constant 0 : i32
    %c0_i32_1 = arith.constant 0 : i32
    return %c0_i32, %c0_i32_0 : i32, i32
  }
  func.func @transform_8(%arg0: i32) -> (i32, i32) {
    %c0_i32 = arith.constant 0 : i32
    %c0_i32_0 = arith.constant 0 : i32
    %c0_i32_1 = arith.constant 0 : i32
    return %c0_i32, %c0_i32_0 : i32, i32
  }
  func.func @transform_9(%arg0: i32) -> (i32, i32, i32) {
    %c0_i32 = arith.constant 0 : i32
    %c0_i32_0 = arith.constant 0 : i32
    %c0_i32_1 = arith.constant 0 : i32
    %c0_i32_2 = arith.constant 0 : i32
    return %c0_i32, %c0_i32_0, %c0_i32_1 : i32, i32, i32
  }
  func.func @transform_10(%arg0: i32) -> (i32, i32, i32) {
    %c0_i32 = arith.constant 0 : i32
    %c0_i32_0 = arith.constant 0 : i32
    %c0_i32_1 = arith.constant 0 : i32
    %c0_i32_2 = arith.constant 0 : i32
    return %c0_i32, %c0_i32_0, %c0_i32_1 : i32, i32, i32
  }
  func.func @transform_11(%arg0: i32) -> (i32, i32) {
    %c0_i32 = arith.constant 0 : i32
    %c0_i32_0 = arith.constant 0 : i32
    %c0_i32_1 = arith.constant 0 : i32
    return %c0_i32, %c0_i32_0 : i32, i32
  }
  func.func @transform_12(%arg0: i32) -> (i32, i32) {
    %c0_i32 = arith.constant 0 : i32
    %c0_i32_0 = arith.constant 0 : i32
    %c0_i32_1 = arith.constant 0 : i32
    return %c0_i32, %c0_i32_0 : i32, i32
  }
  func.func @transform_13(%arg0: i32) -> (i32, i32, i32) {
    %c0_i32 = arith.constant 0 : i32
    %c0_i32_0 = arith.constant 0 : i32
    %c0_i32_1 = arith.constant 0 : i32
    %c0_i32_2 = arith.constant 0 : i32
    return %c0_i32, %c0_i32_0, %c0_i32_1 : i32, i32, i32
  }
  func.func @transform_14(%arg0: i32) -> (i32, i32, i32) {
    %c0_i32 = arith.constant 0 : i32
    %c0_i32_0 = arith.constant 0 : i32
    %c0_i32_1 = arith.constant 0 : i32
    %c0_i32_2 = arith.constant 0 : i32
    return %c0_i32, %c0_i32_0, %c0_i32_1 : i32, i32, i32
  }
  func.func @transform_15(%arg0: i32) -> (i32, i32) {
    %c0_i32 = arith.constant 0 : i32
    %c0_i32_0 = arith.constant 0 : i32
    %c0_i32_1 = arith.constant 0 : i32
    return %c0_i32, %c0_i32_0 : i32, i32
  }
  func.func @transform_16(%arg0: i32) -> (i32, i32) {
    %c0_i32 = arith.constant 0 : i32
    %c0_i32_0 = arith.constant 0 : i32
    %c0_i32_1 = arith.constant 0 : i32
    return %c0_i32, %c0_i32_0 : i32, i32
  }
  func.func @transform_17(%arg0: i32) -> (i32, i32) {
    %c0_i32 = arith.constant 0 : i32
    %c0_i32_0 = arith.constant 0 : i32
    %c0_i32_1 = arith.constant 0 : i32
    return %c0_i32, %c0_i32_0 : i32, i32
  }
  func.func @transform_18(%arg0: i32) -> (i32, i32) {
    %c0_i32 = arith.constant 0 : i32
    %c0_i32_0 = arith.constant 0 : i32
    %c0_i32_1 = arith.constant 0 : i32
    return %c0_i32, %c0_i32_0 : i32, i32
  }
  func.func @transform_19(%arg0: i32) -> (i32, i32, i32) {
    %c0_i32 = arith.constant 0 : i32
    %c0_i32_0 = arith.constant 0 : i32
    %c0_i32_1 = arith.constant 0 : i32
    return %arg0, %c0_i32, %c0_i32_0 : i32, i32, i32
  }
}

</mosaic_0001>

<llo_original>
// kernel: tpu_custom_call.1
$region0: #{tpu_custom_call.1}
  #allocation0 [shape = 'u32[]', space=smem, size = 0x4, offset = 0x4, fixed_abs, tag = 'smem constant byte address 0x4 - core index']
  #allocation1 [shape = 'u32[144,128]{1,0:T(1,128)}', space=vmem, size = 0x12000, scoped, tag = 'internal scratch']
  #allocation2 [shape = 'f32[1,1]{1,0:T(1,128)S(1)}', space=vmem, size = 0x200, scoped, tag = 'scoped memory for tpu_custom_call.1']
  %s0 = inlined_call_operand.vmem [shape: bf16[2,256,3], index: 0, kind: input, shape index: {}]
  %s1 = inlined_call_operand.hbm [shape: bf16[9,64,256], index: 1, kind: input, shape index: {}]
  %s2 = inlined_call_operand.hbm [shape: bf16[9,3,16], index: 2, kind: input, shape index: {}]
  %s3 = inlined_call_operand.vmem [shape: f32[1,16], index: 3, kind: input, shape index: {}]
  %s4 = inlined_call_operand.vmem [shape: f32[1,16], index: 4, kind: input, shape index: {}]
  %s5 = inlined_call_operand.hbm [shape: bf16[9,16,64], index: 5, kind: input, shape index: {}]
  %s6 = inlined_call_operand.hbm [shape: bf16[9,16,32], index: 6, kind: input, shape index: {}]
  %s7 = inlined_call_operand.vmem [shape: f32[1,32], index: 7, kind: input, shape index: {}]
  %s8 = inlined_call_operand.vmem [shape: f32[1,32], index: 8, kind: input, shape index: {}]
  %s9 = inlined_call_operand.hbm [shape: bf16[9,4,16], index: 9, kind: input, shape index: {}]
  %s10 = inlined_call_operand.hbm [shape: bf16[9,32,64], index: 10, kind: input, shape index: {}]
  %s11 = inlined_call_operand.vmem [shape: f32[1,64], index: 11, kind: input, shape index: {}]
  %s12 = inlined_call_operand.vmem [shape: f32[1,64], index: 12, kind: input, shape index: {}]
  %s13 = inlined_call_operand.vmem [shape: bf16[9,1,4], index: 13, kind: input, shape index: {}]
  %s14 = inlined_call_operand.vmem [shape: bf16[9,64,128], index: 14, kind: input, shape index: {}]
  %s15 = inlined_call_operand.vmem [shape: f32[1,128], index: 15, kind: input, shape index: {}]
  %s16 = inlined_call_operand.vmem [shape: f32[1,128], index: 16, kind: input, shape index: {}]
  %s17 = inlined_call_operand.vmem [shape: f32[1,128], index: 17, kind: input, shape index: {}]
  %s18 = inlined_call_operand.<no memory space> [shape: f32[1,1], index: 18, kind: input, shape index: {}]
  %s19 = inlined_call_operand.vmem [shape: f32[2,1,1], index: 19, kind: output, shape index: {}]
  %s20 = sld [smem:[#allocation0]]
  $region133: #{tpu_custom_call.1} parent=0
    _
  %s22 = ssub.s32 1, %s20
  %s23 = scalar_select 0, %s22, %s20
  %v24 = vstv %s18
  %25 = vst [vmem:[#allocation2] sm:$0x1] %v24
  $region1: #{tpu_custom_call.1} parent=0
    #allocation3 [shape = 'u8[294912]{0}', space=vmem, size = 0x48000, scoped, tag = 'input window, operand 1, single buffered']
    #allocation4 [shape = 's32[2]{0}', space=sflag, size = 0x8, scoped, tag = 'scoped memory for tpu_custom_call.1']
    #allocation5 [shape = 'u8[9216]{0}', space=vmem, size = 0x2400, scoped, tag = 'input window, operand 2, single buffered']
    #allocation6 [shape = 's32[1]{0}', space=sflag, size = 0x4, scoped, tag = 'scoped memory for tpu_custom_call.1']
    #allocation7 [shape = 'u8[36864]{0}', space=vmem, size = 0x9000, scoped, tag = 'input window, operand 5, single buffered']
    #allocation8 [shape = 'u8[36864]{0}', space=vmem, size = 0x9000, scoped, tag = 'input window, operand 6, single buffered']
    #allocation9 [shape = 's32[1]{0}', space=sflag, size = 0x4, scoped, tag = 'scoped memory for tpu_custom_call.1']
    #allocation10 [shape = 'u8[9216]{0}', space=vmem, size = 0x2400, scoped, tag = 'input window, operand 9, single buffered']
    #allocation11 [shape = 'u8[73728]{0}', space=vmem, size = 0x12000, scoped, tag = 'input window, operand 10, single buffered']
    #allocation12 [shape = 's32[1]{0}', space=sflag, size = 0x4, scoped, tag = 'scoped memory for tpu_custom_call.1']
    %26 = vsyncpa [#allocation4], 0
    %27 = vsyncpa [#allocation6], 0
    %28 = vsyncpa [#allocation9], 0
    %29 = vsyncpa [#allocation12], 0
    loop: start=0, step=1, limit=4
    $region2: #{tpu_custom_call.1} parent=1 // loop_pre_header
      _
    $region3: #{tpu_custom_call.1} parent=1 // loop_header
      %s31 = sphi 0, %s35
      %p32 = scmp.ge.s32.totalorder %s31, 4
      %s41 = sphi 0, %s43
      %s44 = sphi 0, %s41
      %s45 = sphi 0, %s44
      %s61 = sphi 0, %s45
      %s65 = sphi 0, %s65
      %s67 = sphi 0, %s65
      %s68 = sphi 0, %s67
      %s82 = sphi 0, %s68
      %s86 = sphi 0, %s86
      %s88 = sphi 0, %s86
      %s89 = sphi 0, %s88
      %s103 = sphi 0, %s89
      %s107 = sphi 0, %s107
      %s109 = sphi 0, %s107
      %s110 = sphi 0, %s109
      %s124 = sphi 0, %s110
      %s128 = sphi 0, %s128
      %s130 = sphi 0, %s128
      %s131 = sphi 0, %s130
      %s145 = sphi 0, %s131
      %s149 = sphi 0, %s149
      %s151 = sphi 0, %s149
      %s152 = sphi 0, %s151
      %s166 = sphi 0, %s152
      %s170 = sphi 0, %s170
      %s172 = sphi 0, %s170
      %s173 = sphi 0, %s172
      %s187 = sphi 0, %s173
      %s191 = sphi 0, %s191
      %s193 = sphi 0, %s191
      %s194 = sphi 0, %s193
      %s208 = sphi 0, %s194
      %s212 = sphi 0, %s212
      %s214 = sphi 0, %s212
      %s215 = sphi 0, %s214
      %s229 = sphi 0, %s215
      %s233 = sphi 0, %s233
      %s235 = sphi 0, %s233
      %s236 = sphi 0, %s235
      %s250 = sphi 0, %s236
      %s254 = sphi 0, %s254
      %s256 = sphi 0, %s254
      %s257 = sphi 0, %s256
      %s271 = sphi 0, %s257
      %s275 = sphi 0, %s275
      %s277 = sphi 0, %s275
      %s278 = sphi 0, %s277
      %s292 = sphi 0, %s278
      %s296 = sphi 0, %s296
      %s298 = sphi 0, %s296
      %s299 = sphi 0, %s298
      %s313 = sphi 0, %s299
      %s317 = sphi 0, %s317
      %s319 = sphi 0, %s317
      %s320 = sphi 0, %s319
      %s334 = sphi 0, %s320
      %s338 = sphi 0, %s338
      %s340 = sphi 0, %s338
      %s341 = sphi 0, %s340
      %s355 = sphi 0, %s341
      %s359 = sphi 0, %s359
      %s361 = sphi 0, %s359
      %s362 = sphi 0, %s361
      %s376 = sphi 0, %s362
      %s380 = sphi 0, %s380
      %s382 = sphi 0, %s380
      %s383 = sphi 0, %s382
      %s397 = sphi 0, %s383
      %s401 = sphi 0, %s401
      %s403 = sphi 0, %s401
      %s404 = sphi 0, %s403
      %s418 = sphi 0, %s404
      %s422 = sphi 0, %s422
      %s424 = sphi 0, %s422
      %s425 = sphi 0, %s424
      %s439 = sphi 0, %s425
      %s445 = sphi 0, %s447
      %s448 = sphi 0, %s445
      %s449 = sphi 0, %s448
      %s465 = sphi 0, %s449
    $region4: #{tpu_custom_call.1} parent=1 // loop_header_branch
      %34 = sbr.rel (%p32) target = $region8
    $region5: #{tpu_custom_call.1} parent=1 // loop_body
      %s36 = ssub.s32 %s31, 1
      %s37 = ssub.s32 %s31, 2
      %s38 = sadd.s32 %s31, 1
      %s39 = ssub.s32 %s31, %s38
      %p40 = scmp.eq.s32.totalorder %s39, 0
      %s42 = sadd.s32 %s41, 1
      %s43 = scalar_select %p40, %s41, %s42
      %p46 = pneg %p40
      %p47 = scmp.eq.s32.totalorder %s31, 1
      %p48 = por %p46, %p47
      %p49 = scmp.ne.s32.totalorder %s41, %s44
      %p50 = scmp.eq.s32.totalorder %s31, 0
      %p51 = por %p49, %p50
      %p52 = scmp.ne.s32.totalorder %s41, %s44
      %p53 = scmp.eq.s32.totalorder %s36, 1
      %p54 = por %p52, %p53
      %p55 = scmp.ne.s32.totalorder %s44, %s45
      %p56 = scmp.eq.s32.totalorder %s36, 0
      %p57 = por %p55, %p56
      %p58 = scmp.ne.s32.totalorder %s44, %s45
      %p59 = scmp.eq.s32.totalorder %s37, 1
      %p60 = por %p58, %p59
      %p62 = scmp.ne.s32.totalorder %s45, %s61
      %p63 = scmp.eq.s32.totalorder %s37, 0
      %p64 = por %p62, %p63
      %s66 = sadd.s32 %s65, 1
      %p69 = scmp.eq.s32.totalorder %s31, 1
      %p70 = scmp.ne.s32.totalorder %s65, %s67
      %p71 = scmp.eq.s32.totalorder %s31, 0
      %p72 = por %p70, %p71
      %p73 = scmp.ne.s32.totalorder %s65, %s67
      %p74 = scmp.eq.s32.totalorder %s36, 1
      %p75 = por %p73, %p74
      %p76 = scmp.ne.s32.totalorder %s67, %s68
      %p77 = scmp.eq.s32.totalorder %s36, 0
      %p78 = por %p76, %p77
      %p79 = scmp.ne.s32.totalorder %s67, %s68
      %p80 = scmp.eq.s32.totalorder %s37, 1
      %p81 = por %p79, %p80
      %p83 = scmp.ne.s32.totalorder %s68, %s82
      %p84 = scmp.eq.s32.totalorder %s37, 0
      %p85 = por %p83, %p84
      %s87 = sadd.s32 %s86, 1
      %p90 = scmp.eq.s32.totalorder %s31, 1
      %p91 = scmp.ne.s32.totalorder %s86, %s88
      %p92 = scmp.eq.s32.totalorder %s31, 0
      %p93 = por %p91, %p92
      %p94 = scmp.ne.s32.totalorder %s86, %s88
      %p95 = scmp.eq.s32.totalorder %s36, 1
      %p96 = por %p94, %p95
      %p97 = scmp.ne.s32.totalorder %s88, %s89
      %p98 = scmp.eq.s32.totalorder %s36, 0
      %p99 = por %p97, %p98
      %p100 = scmp.ne.s32.totalorder %s88, %s89
      %p101 = scmp.eq.s32.totalorder %s37, 1
      %p102 = por %p100, %p101
      %p104 = scmp.ne.s32.totalorder %s89, %s103
      %p105 = scmp.eq.s32.totalorder %s37, 0
      %p106 = por %p104, %p105
      %s108 = sadd.s32 %s107, 1
      %p111 = scmp.eq.s32.totalorder %s31, 1
      %p112 = scmp.ne.s32.totalorder %s107, %s109
      %p113 = scmp.eq.s32.totalorder %s31, 0
      %p114 = por %p112, %p113
      %p115 = scmp.ne.s32.totalorder %s107, %s109
      %p116 = scmp.eq.s32.totalorder %s36, 1
      %p117 = por %p115, %p116
      %p118 = scmp.ne.s32.totalorder %s109, %s110
      %p119 = scmp.eq.s32.totalorder %s36, 0
      %p120 = por %p118, %p119
      %p121 = scmp.ne.s32.totalorder %s109, %s110
      %p122 = scmp.eq.s32.totalorder %s37, 1
      %p123 = por %p121, %p122
      %p125 = scmp.ne.s32.totalorder %s110, %s124
      %p126 = scmp.eq.s32.totalorder %s37, 0
      %p127 = por %p125, %p126
      %s129 = sadd.s32 %s128, 1
      %p132 = scmp.eq.s32.totalorder %s31, 1
      %p133 = scmp.ne.s32.totalorder %s128, %s130
      %p134 = scmp.eq.s32.totalorder %s31, 0
      %p135 = por %p133, %p134
      %p136 = scmp.ne.s32.totalorder %s128, %s130
      %p137 = scmp.eq.s32.totalorder %s36, 1
      %p138 = por %p136, %p137
      %p139 = scmp.ne.s32.totalorder %s130, %s131
      %p140 = scmp.eq.s32.totalorder %s36, 0
      %p141 = por %p139, %p140
      %p142 = scmp.ne.s32.totalorder %s130, %s131
      %p143 = scmp.eq.s32.totalorder %s37, 1
      %p144 = por %p142, %p143
      %p146 = scmp.ne.s32.totalorder %s131, %s145
      %p147 = scmp.eq.s32.totalorder %s37, 0
      %p148 = por %p146, %p147
      %s150 = sadd.s32 %s149, 1
      %p153 = scmp.eq.s32.totalorder %s31, 1
      %p154 = scmp.ne.s32.totalorder %s149, %s151
      %p155 = scmp.eq.s32.totalorder %s31, 0
      %p156 = por %p154, %p155
      %p157 = scmp.ne.s32.totalorder %s149, %s151
      %p158 = scmp.eq.s32.totalorder %s36, 1
      %p159 = por %p157, %p158
      %p160 = scmp.ne.s32.totalorder %s151, %s152
      %p161 = scmp.eq.s32.totalorder %s36, 0
      %p162 = por %p160, %p161
      %p163 = scmp.ne.s32.totalorder %s151, %s152
      %p164 = scmp.eq.s32.totalorder %s37, 1
      %p165 = por %p163, %p164
      %p167 = scmp.ne.s32.totalorder %s152, %s166
      %p168 = scmp.eq.s32.totalorder %s37, 0
      %p169 = por %p167, %p168
      %s171 = sadd.s32 %s170, 1
      %p174 = scmp.eq.s32.totalorder %s31, 1
      %p175 = scmp.ne.s32.totalorder %s170, %s172
      %p176 = scmp.eq.s32.totalorder %s31, 0
      %p177 = por %p175, %p176
      %p178 = scmp.ne.s32.totalorder %s170, %s172
      %p179 = scmp.eq.s32.totalorder %s36, 1
      %p180 = por %p178, %p179
      %p181 = scmp.ne.s32.totalorder %s172, %s173
      %p182 = scmp.eq.s32.totalorder %s36, 0
      %p183 = por %p181, %p182
      %p184 = scmp.ne.s32.totalorder %s172, %s173
      %p185 = scmp.eq.s32.totalorder %s37, 1
      %p186 = por %p184, %p185
      %p188 = scmp.ne.s32.totalorder %s173, %s187
      %p189 = scmp.eq.s32.totalorder %s37, 0
      %p190 = por %p188, %p189
      %s192 = sadd.s32 %s191, 1
      %p195 = scmp.eq.s32.totalorder %s31, 1
      %p196 = scmp.ne.s32.totalorder %s191, %s193
      %p197 = scmp.eq.s32.totalorder %s31, 0
      %p198 = por %p196, %p197
      %p199 = scmp.ne.s32.totalorder %s191, %s193
      %p200 = scmp.eq.s32.totalorder %s36, 1
      %p201 = por %p199, %p200
      %p202 = scmp.ne.s32.totalorder %s193, %s194
      %p203 = scmp.eq.s32.totalorder %s36, 0
      %p204 = por %p202, %p203
      %p205 = scmp.ne.s32.totalorder %s193, %s194
      %p206 = scmp.eq.s32.totalorder %s37, 1
      %p207 = por %p205, %p206
      %p209 = scmp.ne.s32.totalorder %s194, %s208
      %p210 = scmp.eq.s32.totalorder %s37, 0
      %p211 = por %p209, %p210
      %s213 = sadd.s32 %s212, 1
      %p216 = scmp.eq.s32.totalorder %s31, 1
      %p217 = scmp.ne.s32.totalorder %s212, %s214
      %p218 = scmp.eq.s32.totalorder %s31, 0
      %p219 = por %p217, %p218
      %p220 = scmp.ne.s32.totalorder %s212, %s214
      %p221 = scmp.eq.s32.totalorder %s36, 1
      %p222 = por %p220, %p221
      %p223 = scmp.ne.s32.totalorder %s214, %s215
      %p224 = scmp.eq.s32.totalorder %s36, 0
      %p225 = por %p223, %p224
      %p226 = scmp.ne.s32.totalorder %s214, %s215
      %p227 = scmp.eq.s32.totalorder %s37, 1
      %p228 = por %p226, %p227
      %p230 = scmp.ne.s32.totalorder %s215, %s229
      %p231 = scmp.eq.s32.totalorder %s37, 0
      %p232 = por %p230, %p231
      %s234 = sadd.s32 %s233, 1
      %p237 = scmp.eq.s32.totalorder %s31, 1
      %p238 = scmp.ne.s32.totalorder %s233, %s235
      %p239 = scmp.eq.s32.totalorder %s31, 0
      %p240 = por %p238, %p239
      %p241 = scmp.ne.s32.totalorder %s233, %s235
      %p242 = scmp.eq.s32.totalorder %s36, 1
      %p243 = por %p241, %p242
      %p244 = scmp.ne.s32.totalorder %s235, %s236
      %p245 = scmp.eq.s32.totalorder %s36, 0
      %p246 = por %p244, %p245
      %p247 = scmp.ne.s32.totalorder %s235, %s236
      %p248 = scmp.eq.s32.totalorder %s37, 1
      %p249 = por %p247, %p248
      %p251 = scmp.ne.s32.totalorder %s236, %s250
      %p252 = scmp.eq.s32.totalorder %s37, 0
      %p253 = por %p251, %p252
      %s255 = sadd.s32 %s254, 1
      %p258 = scmp.eq.s32.totalorder %s31, 1
      %p259 = scmp.ne.s32.totalorder %s254, %s256
      %p260 = scmp.eq.s32.totalorder %s31, 0
      %p261 = por %p259, %p260
      %p262 = scmp.ne.s32.totalorder %s254, %s256
      %p263 = scmp.eq.s32.totalorder %s36, 1
      %p264 = por %p262, %p263
      %p265 = scmp.ne.s32.totalorder %s256, %s257
      %p266 = scmp.eq.s32.totalorder %s36, 0
      %p267 = por %p265, %p266
      %p268 = scmp.ne.s32.totalorder %s256, %s257
      %p269 = scmp.eq.s32.totalorder %s37, 1
      %p270 = por %p268, %p269
      %p272 = scmp.ne.s32.totalorder %s257, %s271
      %p273 = scmp.eq.s32.totalorder %s37, 0
      %p274 = por %p272, %p273
      %s276 = sadd.s32 %s275, 1
      %p279 = scmp.eq.s32.totalorder %s31, 1
      %p280 = scmp.ne.s32.totalorder %s275, %s277
      %p281 = scmp.eq.s32.totalorder %s31, 0
      %p282 = por %p280, %p281
      %p283 = scmp.ne.s32.totalorder %s275, %s277
      %p284 = scmp.eq.s32.totalorder %s36, 1
      %p285 = por %p283, %p284
      %p286 = scmp.ne.s32.totalorder %s277, %s278
      %p287 = scmp.eq.s32.totalorder %s36, 0
      %p288 = por %p286, %p287
      %p289 = scmp.ne.s32.totalorder %s277, %s278
      %p290 = scmp.eq.s32.totalorder %s37, 1
      %p291 = por %p289, %p290
      %p293 = scmp.ne.s32.totalorder %s278, %s292
      %p294 = scmp.eq.s32.totalorder %s37, 0
      %p295 = por %p293, %p294
      %s297 = sadd.s32 %s296, 1
      %p300 = scmp.eq.s32.totalorder %s31, 1
      %p301 = scmp.ne.s32.totalorder %s296, %s298
      %p302 = scmp.eq.s32.totalorder %s31, 0
      %p303 = por %p301, %p302
      %p304 = scmp.ne.s32.totalorder %s296, %s298
      %p305 = scmp.eq.s32.totalorder %s36, 1
      %p306 = por %p304, %p305
      %p307 = scmp.ne.s32.totalorder %s298, %s299
      %p308 = scmp.eq.s32.totalorder %s36, 0
      %p309 = por %p307, %p308
      %p310 = scmp.ne.s32.totalorder %s298, %s299
      %p311 = scmp.eq.s32.totalorder %s37, 1
      %p312 = por %p310, %p311
      %p314 = scmp.ne.s32.totalorder %s299, %s313
      %p315 = scmp.eq.s32.totalorder %s37, 0
      %p316 = por %p314, %p315
      %s318 = sadd.s32 %s317, 1
      %p321 = scmp.eq.s32.totalorder %s31, 1
      %p322 = scmp.ne.s32.totalorder %s317, %s319
      %p323 = scmp.eq.s32.totalorder %s31, 0
      %p324 = por %p322, %p323
      %p325 = scmp.ne.s32.totalorder %s317, %s319
      %p326 = scmp.eq.s32.totalorder %s36, 1
      %p327 = por %p325, %p326
      %p328 = scmp.ne.s32.totalorder %s319, %s320
      %p329 = scmp.eq.s32.totalorder %s36, 0
      %p330 = por %p328, %p329
      %p331 = scmp.ne.s32.totalorder %s319, %s320
      %p332 = scmp.eq.s32.totalorder %s37, 1
      %p333 = por %p331, %p332
      %p335 = scmp.ne.s32.totalorder %s320, %s334
      %p336 = scmp.eq.s32.totalorder %s37, 0
      %p337 = por %p335, %p336
      %s339 = sadd.s32 %s338, 1
      %p342 = scmp.eq.s32.totalorder %s31, 1
      %p343 = scmp.ne.s32.totalorder %s338, %s340
      %p344 = scmp.eq.s32.totalorder %s31, 0
      %p345 = por %p343, %p344
      %p346 = scmp.ne.s32.totalorder %s338, %s340
      %p347 = scmp.eq.s32.totalorder %s36, 1
      %p348 = por %p346, %p347
      %p349 = scmp.ne.s32.totalorder %s340, %s341
      %p350 = scmp.eq.s32.totalorder %s36, 0
      %p351 = por %p349, %p350
      %p352 = scmp.ne.s32.totalorder %s340, %s341
      %p353 = scmp.eq.s32.totalorder %s37, 1
      %p354 = por %p352, %p353
      %p356 = scmp.ne.s32.totalorder %s341, %s355
      %p357 = scmp.eq.s32.totalorder %s37, 0
      %p358 = por %p356, %p357
      %s360 = sadd.s32 %s359, 1
      %p363 = scmp.eq.s32.totalorder %s31, 1
      %p364 = scmp.ne.s32.totalorder %s359, %s361
      %p365 = scmp.eq.s32.totalorder %s31, 0
      %p366 = por %p364, %p365
      %p367 = scmp.ne.s32.totalorder %s359, %s361
      %p368 = scmp.eq.s32.totalorder %s36, 1
      %p369 = por %p367, %p368
      %p370 = scmp.ne.s32.totalorder %s361, %s362
      %p371 = scmp.eq.s32.totalorder %s36, 0
      %p372 = por %p370, %p371
      %p373 = scmp.ne.s32.totalorder %s361, %s362
      %p374 = scmp.eq.s32.totalorder %s37, 1
      %p375 = por %p373, %p374
      %p377 = scmp.ne.s32.totalorder %s362, %s376
      %p378 = scmp.eq.s32.totalorder %s37, 0
      %p379 = por %p377, %p378
      %s381 = sadd.s32 %s380, 1
      %p384 = scmp.eq.s32.totalorder %s31, 1
      %p385 = scmp.ne.s32.totalorder %s380, %s382
      %p386 = scmp.eq.s32.totalorder %s31, 0
      %p387 = por %p385, %p386
      %p388 = scmp.ne.s32.totalorder %s380, %s382
      %p389 = scmp.eq.s32.totalorder %s36, 1
      %p390 = por %p388, %p389
      %p391 = scmp.ne.s32.totalorder %s382, %s383
      %p392 = scmp.eq.s32.totalorder %s36, 0
      %p393 = por %p391, %p392
      %p394 = scmp.ne.s32.totalorder %s382, %s383
      %p395 = scmp.eq.s32.totalorder %s37, 1
      %p396 = por %p394, %p395
      %p398 = scmp.ne.s32.totalorder %s383, %s397
      %p399 = scmp.eq.s32.totalorder %s37, 0
      %p400 = por %p398, %p399
      %s402 = sadd.s32 %s401, 1
      %p405 = scmp.eq.s32.totalorder %s31, 1
      %p406 = scmp.ne.s32.totalorder %s401, %s403
      %p407 = scmp.eq.s32.totalorder %s31, 0
      %p408 = por %p406, %p407
      %p409 = scmp.ne.s32.totalorder %s401, %s403
      %p410 = scmp.eq.s32.totalorder %s36, 1
      %p411 = por %p409, %p410
      %p412 = scmp.ne.s32.totalorder %s403, %s404
      %p413 = scmp.eq.s32.totalorder %s36, 0
      %p414 = por %p412, %p413
      %p415 = scmp.ne.s32.totalorder %s403, %s404
      %p416 = scmp.eq.s32.totalorder %s37, 1
      %p417 = por %p415, %p416
      %p419 = scmp.ne.s32.totalorder %s404, %s418
      %p420 = scmp.eq.s32.totalorder %s37, 0
      %p421 = por %p419, %p420
      %s423 = sadd.s32 %s422, 1
      %p426 = scmp.eq.s32.totalorder %s31, 1
      %p427 = scmp.ne.s32.totalorder %s422, %s424
      %p428 = scmp.eq.s32.totalorder %s31, 0
      %p429 = por %p427, %p428
      %p430 = scmp.ne.s32.totalorder %s422, %s424
      %p431 = scmp.eq.s32.totalorder %s36, 1
      %p432 = por %p430, %p431
      %p433 = scmp.ne.s32.totalorder %s424, %s425
      %p434 = scmp.eq.s32.totalorder %s36, 0
      %p435 = por %p433, %p434
      %p436 = scmp.ne.s32.totalorder %s424, %s425
      %p437 = scmp.eq.s32.totalorder %s37, 1
      %p438 = por %p436, %p437
      %p440 = scmp.ne.s32.totalorder %s425, %s439
      %p441 = scmp.eq.s32.totalorder %s37, 0
      %p442 = por %p440, %p441
      %s443 = ssub.s32 %s31, %s38
      %p444 = scmp.eq.s32.totalorder %s443, 0
      %s446 = sadd.s32 %s445, 1
      %s447 = scalar_select %p444, %s445, %s446
      %p450 = pneg %p444
      %p451 = scmp.eq.s32.totalorder %s31, 1
      %p452 = por %p450, %p451
      %p453 = scmp.ne.s32.totalorder %s445, %s448
      %p454 = scmp.eq.s32.totalorder %s31, 0
      %p455 = por %p453, %p454
      %p456 = scmp.ne.s32.totalorder %s445, %s448
      %p457 = scmp.eq.s32.totalorder %s36, 1
      %p458 = por %p456, %p457
      %p459 = scmp.ne.s32.totalorder %s448, %s449
      %p460 = scmp.eq.s32.totalorder %s36, 0
      %p461 = por %p459, %p460
      %p462 = scmp.ne.s32.totalorder %s448, %s449
      %p463 = scmp.eq.s32.totalorder %s37, 1
      %p464 = por %p462, %p463
      %p466 = scmp.ne.s32.totalorder %s449, %s465
      %p467 = scmp.eq.s32.totalorder %s37, 0
      %p468 = por %p466, %p467
      %p469 = scmp.le.s32.totalorder 1, %s31
      %p470 = scmp.lt.s32.totalorder %s31, 3
      %p471 = pnand %p469, %p470
      %p472 = pneg %p471
      // Predicated region
      $region9: #{tpu_custom_call.1} parent=5 // pred_check
        _
      $region10: #{tpu_custom_call.1} parent=5 // pred_check_branch
        %474 = sbr.rel (%p471) target = $region12
      $region11: #{tpu_custom_call.1} parent=5 // pred_region
        %s475 = ssub.s32 %s31, 1
        // Predicated region
        $region13: #{tpu_custom_call.1} parent=11 // pred_check
          %p476 = pneg %p78
        $region14: #{tpu_custom_call.1} parent=11 // pred_check_branch
          %478 = sbr.rel (%p476) target = $region16
        $region15: #{tpu_custom_call.1} parent=11 // pred_region
          %s480 = ssub.s32 9216, 9216
          %481 = vsyncadd [#allocation4], %s480
          %s482 = sshll.u32 [#allocation3], 4
          %s483 = int_to_ptr.vmem [resolvable:$true] %s482
          %488 = dma.hbm_to_vmem [thread:$0]  %s1, 9216, %s483, [#allocation4], 128, 128, 8
        $region16: #{tpu_custom_call.1} parent=11 // pred_fallthru
          _
        // Predicated region
        $region17: #{tpu_custom_call.1} parent=11 // pred_check
          %p489 = pneg %p99
        $region18: #{tpu_custom_call.1} parent=11 // pred_check_branch
          %491 = sbr.rel (%p489) target = $region20
        $region19: #{tpu_custom_call.1} parent=11 // pred_region
          %s493 = ssub.s32 288, 288
          %494 = vsyncadd [#allocation6], %s493
          %s495 = sshll.u32 [#allocation5], 4
          %s496 = int_to_ptr.vmem [resolvable:$true] %s495
          %501 = dma.hbm_to_vmem [thread:$0]  %s2, 288, %s496, [#allocation6], 32, 32, 2
        $region20: #{tpu_custom_call.1} parent=11 // pred_fallthru
          _
        // Predicated region
        $region21: #{tpu_custom_call.1} parent=11 // pred_check
          %p502 = pneg %p120
        $region22: #{tpu_custom_call.1} parent=11 // pred_check_branch
          %504 = sbr.rel (%p502) target = $region24
        $region23: #{tpu_custom_call.1} parent=11 // pred_region
          _
        $region24: #{tpu_custom_call.1} parent=11 // pred_fallthru
          _
        // Predicated region
        $region25: #{tpu_custom_call.1} parent=11 // pred_check
          %p505 = pneg %p141
        $region26: #{tpu_custom_call.1} parent=11 // pred_check_branch
          %507 = sbr.rel (%p505) target = $region28
        $region27: #{tpu_custom_call.1} parent=11 // pred_region
          _
        $region28: #{tpu_custom_call.1} parent=11 // pred_fallthru
          _
        // Predicated region
        $region29: #{tpu_custom_call.1} parent=11 // pred_check
          %p508 = pneg %p162
        $region30: #{tpu_custom_call.1} parent=11 // pred_check_branch
          %510 = sbr.rel (%p508) target = $region32
        $region31: #{tpu_custom_call.1} parent=11 // pred_region
          %s512 = ssub.s32 1152, 1152
          %513 = vsyncadd [#allocation6], %s512
          %s514 = sshll.u32 [#allocation7], 4
          %s515 = int_to_ptr.vmem [resolvable:$true] %s514
          %520 = dma.hbm_to_vmem [thread:$0]  %s5, 1152, %s515, [#allocation6], 64, 64, 4
        $region32: #{tpu_custom_call.1} parent=11 // pred_fallthru
          _
        // Predicated region
        $region33: #{tpu_custom_call.1} parent=11 // pred_check
          %p521 = pneg %p183
        $region34: #{tpu_custom_call.1} parent=11 // pred_check_branch
          %523 = sbr.rel (%p521) target = $region36
        $region35: #{tpu_custom_call.1} parent=11 // pred_region
          %s525 = ssub.s32 1152, 1152
          %526 = vsyncadd [#allocation9], %s525
          %s527 = sshll.u32 [#allocation8], 4
          %s528 = int_to_ptr.vmem [resolvable:$true] %s527
          %533 = dma.hbm_to_vmem [thread:$0]  %s6, 1152, %s528, [#allocation9], 64, 64, 4
        $region36: #{tpu_custom_call.1} parent=11 // pred_fallthru
          _
        // Predicated region
        $region37: #{tpu_custom_call.1} parent=11 // pred_check
          %p534 = pneg %p204
        $region38: #{tpu_custom_call.1} parent=11 // pred_check_branch
          %536 = sbr.rel (%p534) target = $region40
        $region39: #{tpu_custom_call.1} parent=11 // pred_region
          _
        $region40: #{tpu_custom_call.1} parent=11 // pred_fallthru
          _
        // Predicated region
        $region41: #{tpu_custom_call.1} parent=11 // pred_check
          %p537 = pneg %p225
        $region42: #{tpu_custom_call.1} parent=11 // pred_check_branch
          %539 = sbr.rel (%p537) target = $region44
        $region43: #{tpu_custom_call.1} parent=11 // pred_region
          _
        $region44: #{tpu_custom_call.1} parent=11 // pred_fallthru
          _
        // Predicated region
        $region45: #{tpu_custom_call.1} parent=11 // pred_check
          %p540 = pneg %p246
        $region46: #{tpu_custom_call.1} parent=11 // pred_check_branch
          %542 = sbr.rel (%p540) target = $region48
        $region47: #{tpu_custom_call.1} parent=11 // pred_region
          %s544 = ssub.s32 288, 288
          %545 = vsyncadd [#allocation9], %s544
          %s546 = sshll.u32 [#allocation10], 4
          %s547 = int_to_ptr.vmem [resolvable:$true] %s546
          %552 = dma.hbm_to_vmem [thread:$0]  %s9, 288, %s547, [#allocation9], 32, 32, 2
        $region48: #{tpu_custom_call.1} parent=11 // pred_fallthru
          _
        // Predicated region
        $region49: #{tpu_custom_call.1} parent=11 // pred_check
          %p553 = pneg %p267
        $region50: #{tpu_custom_call.1} parent=11 // pred_check_branch
          %555 = sbr.rel (%p553) target = $region52
        $region51: #{tpu_custom_call.1} parent=11 // pred_region
          %s557 = ssub.s32 2304, 2304
          %558 = vsyncadd [#allocation12], %s557
          %s559 = sshll.u32 [#allocation11], 4
          %s560 = int_to_ptr.vmem [resolvable:$true] %s559
          %565 = dma.hbm_to_vmem [thread:$0]  %s10, 2304, %s560, [#allocation12], 64, 64, 4
        $region52: #{tpu_custom_call.1} parent=11 // pred_fallthru
          _
        // Predicated region
        $region53: #{tpu_custom_call.1} parent=11 // pred_check
          %p566 = pneg %p288
        $region54: #{tpu_custom_call.1} parent=11 // pred_check_branch
          %568 = sbr.rel (%p566) target = $region56
        $region55: #{tpu_custom_call.1} parent=11 // pred_region
          _
        $region56: #{tpu_custom_call.1} parent=11 // pred_fallthru
          _
        // Predicated region
        $region57: #{tpu_custom_call.1} parent=11 // pred_check
          %p569 = pneg %p309
        $region58: #{tpu_custom_call.1} parent=11 // pred_check_branch
          %571 = sbr.rel (%p569) target = $region60
        $region59: #{tpu_custom_call.1} parent=11 // pred_region
          _
        $region60: #{tpu_custom_call.1} parent=11 // pred_fallthru
          _
        // Predicated region
        $region61: #{tpu_custom_call.1} parent=11 // pred_check
          %p572 = pneg %p330
        $region62: #{tpu_custom_call.1} parent=11 // pred_check_branch
          %574 = sbr.rel (%p572) target = $region64
        $region63: #{tpu_custom_call.1} parent=11 // pred_region
          _
        $region64: #{tpu_custom_call.1} parent=11 // pred_fallthru
          _
        // Predicated region
        $region65: #{tpu_custom_call.1} parent=11 // pred_check
          %p575 = pneg %p351
        $region66: #{tpu_custom_call.1} parent=11 // pred_check_branch
          %577 = sbr.rel (%p575) target = $region68
        $region67: #{tpu_custom_call.1} parent=11 // pred_region
          _
        $region68: #{tpu_custom_call.1} parent=11 // pred_fallthru
          _
        // Predicated region
        $region69: #{tpu_custom_call.1} parent=11 // pred_check
          %p578 = pneg %p372
        $region70: #{tpu_custom_call.1} parent=11 // pred_check_branch
          %580 = sbr.rel (%p578) target = $region72
        $region71: #{tpu_custom_call.1} parent=11 // pred_region
          _
        $region72: #{tpu_custom_call.1} parent=11 // pred_fallthru
          _
        // Predicated region
        $region73: #{tpu_custom_call.1} parent=11 // pred_check
          %p581 = pneg %p393
        $region74: #{tpu_custom_call.1} parent=11 // pred_check_branch
          %583 = sbr.rel (%p581) target = $region76
        $region75: #{tpu_custom_call.1} parent=11 // pred_region
          _
        $region76: #{tpu_custom_call.1} parent=11 // pred_fallthru
          _
        // Predicated region
        $region77: #{tpu_custom_call.1} parent=11 // pred_check
          %p584 = pneg %p414
        $region78: #{tpu_custom_call.1} parent=11 // pred_check_branch
          %586 = sbr.rel (%p584) target = $region80
        $region79: #{tpu_custom_call.1} parent=11 // pred_region
          _
        $region80: #{tpu_custom_call.1} parent=11 // pred_fallthru
          _
        // Predicated region
        $region81: #{tpu_custom_call.1} parent=11 // pred_check
          %p587 = pneg %p435
        $region82: #{tpu_custom_call.1} parent=11 // pred_check_branch
          %589 = sbr.rel (%p587) target = $region84
        $region83: #{tpu_custom_call.1} parent=11 // pred_region
          _
        $region84: #{tpu_custom_call.1} parent=11 // pred_fallthru
          _
      $region12: #{tpu_custom_call.1} parent=5 // pred_fallthru
        _
      %p590 = scmp.lt.s32.totalorder %s31, 2
      // Predicated region
      $region85: #{tpu_custom_call.1} parent=5 // pred_check
        %p591 = pneg %p590
      $region86: #{tpu_custom_call.1} parent=5 // pred_check_branch
        %593 = sbr.rel (%p591) target = $region88
      $region87: #{tpu_custom_call.1} parent=5 // pred_region
        // Predicated region
        $region89: #{tpu_custom_call.1} parent=87 // pred_check
          %p594 = pneg %p51
        $region90: #{tpu_custom_call.1} parent=87 // pred_check_branch
          %596 = sbr.rel (%p594) target = $region92
        $region91: #{tpu_custom_call.1} parent=87 // pred_region
          %p597 = scmp.lt.s32.totalorder %s31, 1
          %s598 = scalar_select %p597, %s31, 1
          %s599 = smul.addr %s598, 32
          %s600 = smul.addr %s599, 4
          %s601 = scalar_lea.vmem %s0, %s600
        $region92: #{tpu_custom_call.1} parent=87 // pred_fallthru
          _
      $region88: #{tpu_custom_call.1} parent=5 // pred_fallthru
        _
      %p602 = scmp.le.s32.totalorder 1, %s31
      %p603 = scmp.lt.s32.totalorder %s31, 3
      %p604 = pnand %p602, %p603
      %p605 = pneg %p604
      // Predicated region
      $region93: #{tpu_custom_call.1} parent=5 // pred_check
        _
      $region94: #{tpu_custom_call.1} parent=5 // pred_check_branch
        %607 = sbr.rel (%p604) target = $region96
      $region95: #{tpu_custom_call.1} parent=5 // pred_region
        %s608 = ssub.s32 %s31, 1
        // Predicated region
        $region97: #{tpu_custom_call.1} parent=95 // pred_check
          %p609 = pneg %p78
        $region98: #{tpu_custom_call.1} parent=95 // pred_check_branch
          %611 = sbr.rel (%p609) target = $region100
        $region99: #{tpu_custom_call.1} parent=95 // pred_region
          %612 = dma.done [#allocation4], 9216
        $region100: #{tpu_custom_call.1} parent=95 // pred_fallthru
          _
        // Predicated region
        $region101: #{tpu_custom_call.1} parent=95 // pred_check
          %p613 = pneg %p99
        $region102: #{tpu_custom_call.1} parent=95 // pred_check_branch
          %615 = sbr.rel (%p613) target = $region104
        $region103: #{tpu_custom_call.1} parent=95 // pred_region
          %616 = dma.done [#allocation6], 288
        $region104: #{tpu_custom_call.1} parent=95 // pred_fallthru
          _
        // Predicated region
        $region105: #{tpu_custom_call.1} parent=95 // pred_check
          %p617 = pneg %p162
        $region106: #{tpu_custom_call.1} parent=95 // pred_check_branch
          %619 = sbr.rel (%p617) target = $region108
        $region107: #{tpu_custom_call.1} parent=95 // pred_region
          %620 = dma.done [#allocation6], 1152
        $region108: #{tpu_custom_call.1} parent=95 // pred_fallthru
          _
        // Predicated region
        $region109: #{tpu_custom_call.1} parent=95 // pred_check
          %p621 = pneg %p183
        $region110: #{tpu_custom_call.1} parent=95 // pred_check_branch
          %623 = sbr.rel (%p621) target = $region112
        $region111: #{tpu_custom_call.1} parent=95 // pred_region
          %624 = dma.done [#allocation9], 1152
        $region112: #{tpu_custom_call.1} parent=95 // pred_fallthru
          _
        // Predicated region
        $region113: #{tpu_custom_call.1} parent=95 // pred_check
          %p625 = pneg %p246
        $region114: #{tpu_custom_call.1} parent=95 // pred_check_branch
          %627 = sbr.rel (%p625) target = $region116
        $region115: #{tpu_custom_call.1} parent=95 // pred_region
          %628 = dma.done [#allocation9], 288
        $region116: #{tpu_custom_call.1} parent=95 // pred_fallthru
          _
        // Predicated region
        $region117: #{tpu_custom_call.1} parent=95 // pred_check
          %p629 = pneg %p267
        $region118: #{tpu_custom_call.1} parent=95 // pred_check_branch
          %631 = sbr.rel (%p629) target = $region120
        $region119: #{tpu_custom_call.1} parent=95 // pred_region
          %632 = dma.done [#allocation12], 2304
        $region120: #{tpu_custom_call.1} parent=95 // pred_fallthru
          _
        %p633 = scmp.lt.s32.totalorder %s36, 1
        %s634 = scalar_select %p633, %s36, 1
        %s635 = smul.addr %s634, 32
        %s636 = smul.addr %s635, 4
        %s637 = scalar_lea.vmem %s0, %s636
        %p638 = pneg %p57
        %p639 = pneg %p54
        %p640 = pneg %p78
        %p641 = pneg %p75
        %p642 = pneg %p99
        %p643 = pneg %p96
        %p644 = pneg %p120
        %p645 = pneg %p117
        %p646 = pneg %p141
        %p647 = pneg %p138
        %p648 = pneg %p162
        %p649 = pneg %p159
        %p650 = pneg %p183
        %p651 = pneg %p180
        %p652 = pneg %p204
        %p653 = pneg %p201
        %p654 = pneg %p225
        %p655 = pneg %p222
        %p656 = pneg %p246
        %p657 = pneg %p243
        %p658 = pneg %p267
        %p659 = pneg %p264
        %p660 = pneg %p288
        %p661 = pneg %p285
        %p662 = pneg %p309
        %p663 = pneg %p306
        %p664 = pneg %p330
        %p665 = pneg %p327
        %p666 = pneg %p351
        %p667 = pneg %p348
        %p668 = pneg %p372
        %p669 = pneg %p369
        %p670 = pneg %p393
        %p671 = pneg %p390
        %p672 = pneg %p414
        %p673 = pneg %p411
        %p674 = pneg %p435
        %p675 = pneg %p432
        %p676 = pneg %p461
        %p677 = pneg %p458
        %p678 = scmp.lt.s32.totalorder %s36, 1
        %s679 = scalar_select %p678, %s36, 1
        %s680 = scalar_lea.vmem %s19, %s679
        %p681 = scmp.lt.s32.totalorder %s36, 1
        %s682 = scalar_select %p681, %s36, 1
        %s683 = smul.addr %s682, 32
        %s684 = smul.addr %s683, 4
        %s685 = scalar_lea.vmem %s0, %s684
        %p686 = scmp.lt.s32.totalorder %s36, 1
        %s687 = scalar_select %p686, %s36, 1
        %s688 = scalar_lea.vmem %s19, %s687
        %v690 = vld [vmem:[%s685] sm:$0xf]
        %v691 = vld [vmem:[%s685 + $0x4] sm:$0xf]
        %v692 = vld [vmem:[%s685 + $0x8] sm:$0xf]
        %v693 = vld [vmem:[%s685 + $0xc] sm:$0xf]
        %v694 = vld [vmem:[%s685 + $0x10] sm:$0xf]
        %v695 = vld [vmem:[%s685 + $0x14] sm:$0xf]
        %v696 = vld [vmem:[%s685 + $0x18] sm:$0xf]
        %v697 = vld [vmem:[%s685 + $0x1c] sm:$0xf]
        %v698 = vld [vmem:[%s685 + $0x20] sm:$0xf]
        %v699 = vld [vmem:[%s685 + $0x24] sm:$0xf]
        %v700 = vld [vmem:[%s685 + $0x28] sm:$0xf]
        %v701 = vld [vmem:[%s685 + $0x2c] sm:$0xf]
        %v702 = vld [vmem:[%s685 + $0x30] sm:$0xf]
        %v703 = vld [vmem:[%s685 + $0x34] sm:$0xf]
        %v704 = vld [vmem:[%s685 + $0x38] sm:$0xf]
        %v705 = vld [vmem:[%s685 + $0x3c] sm:$0xf]
        %v706 = vld [vmem:[%s685 + $0x40] sm:$0xf]
        %v707 = vld [vmem:[%s685 + $0x44] sm:$0xf]
        %v708 = vld [vmem:[%s685 + $0x48] sm:$0xf]
        %v709 = vld [vmem:[%s685 + $0x4c] sm:$0xf]
        %v710 = vld [vmem:[%s685 + $0x50] sm:$0xf]
        %v711 = vld [vmem:[%s685 + $0x54] sm:$0xf]
        %v712 = vld [vmem:[%s685 + $0x58] sm:$0xf]
        %v713 = vld [vmem:[%s685 + $0x5c] sm:$0xf]
        %v714 = vld [vmem:[%s685 + $0x60] sm:$0xf]
        %v715 = vld [vmem:[%s685 + $0x64] sm:$0xf]
        %v716 = vld [vmem:[%s685 + $0x68] sm:$0xf]
        %v717 = vld [vmem:[%s685 + $0x6c] sm:$0xf]
        %v718 = vld [vmem:[%s685 + $0x70] sm:$0xf]
        %v719 = vld [vmem:[%s685 + $0x74] sm:$0xf]
        %v720 = vld [vmem:[%s685 + $0x78] sm:$0xf]
        %v721 = vld [vmem:[%s685 + $0x7c] sm:$0xf]
        %v722 = vld [vmem:[#allocation3] sm:$0xff]
        %v723 = vld [vmem:[#allocation3 + $0x8] sm:$0xff]
        %v724 = vld [vmem:[#allocation3 + $0x10] sm:$0xff]
        %v725 = vld [vmem:[#allocation3 + $0x18] sm:$0xff]
        %v726 = vld [vmem:[#allocation3 + $0x20] sm:$0xff]
        %v727 = vld [vmem:[#allocation3 + $0x28] sm:$0xff]
        %v728 = vld [vmem:[#allocation3 + $0x30] sm:$0xff]
        %v729 = vld [vmem:[#allocation3 + $0x38] sm:$0xff]
        %v738 = vunpack.c.l.b16 %v722
        %v739 = vunpack.c.h.b16 %v722
        %v740 = vunpack.c.l.b16 %v723
        %v741 = vunpack.c.h.b16 %v723
        %v742 = vunpack.c.l.b16 %v724
        %v743 = vunpack.c.h.b16 %v724
        %v744 = vunpack.c.l.b16 %v725
        %v745 = vunpack.c.h.b16 %v725
        %v746 = vunpack.c.l.b16 %v726
        %v747 = vunpack.c.h.b16 %v726
        %v748 = vunpack.c.l.b16 %v727
        %v749 = vunpack.c.h.b16 %v727
        %v750 = vunpack.c.l.b16 %v728
        %v751 = vunpack.c.h.b16 %v728
        %v752 = vunpack.c.l.b16 %v729
        %v753 = vunpack.c.h.b16 %v729
        %v754 = vpack.c.b16 %v740, %v738
        %v755 = vpack.c.b16 %v741, %v739
        %v756 = vpack.c.b16 %v744, %v742
        %v757 = vpack.c.b16 %v745, %v743
        %v758 = vpack.c.b16 %v748, %v746
        %v759 = vpack.c.b16 %v749, %v747
        %v760 = vpack.c.b16 %v752, %v750
        %v761 = vpack.c.b16 %v753, %v751
        %v802 = vunpack.c.l.b16 %v690
        %v803 = vunpack.c.l.b16 %v691
        %v804 = vunpack.c.l.b16 %v692
        %v805 = vunpack.c.l.b16 %v693
        %v806 = vunpack.c.l.b16 %v694
        %v807 = vunpack.c.l.b16 %v695
        %v808 = vunpack.c.l.b16 %v696
        %v809 = vunpack.c.l.b16 %v697
        %v810 = vunpack.c.l.b16 %v698
        %v811 = vunpack.c.l.b16 %v699
        %v812 = vunpack.c.l.b16 %v700
        %v813 = vunpack.c.l.b16 %v701
        %v814 = vunpack.c.l.b16 %v702
        %v815 = vunpack.c.l.b16 %v703
        %v816 = vunpack.c.l.b16 %v704
        %v817 = vunpack.c.l.b16 %v705
        %v818 = vunpack.c.l.b16 %v706
        %v819 = vunpack.c.l.b16 %v707
        %v820 = vunpack.c.l.b16 %v708
        %v821 = vunpack.c.l.b16 %v709
        %v822 = vunpack.c.l.b16 %v710
        %v823 = vunpack.c.l.b16 %v711
        %v824 = vunpack.c.l.b16 %v712
        %v825 = vunpack.c.l.b16 %v713
        %v826 = vunpack.c.l.b16 %v714
        %v827 = vunpack.c.l.b16 %v715
        %v828 = vunpack.c.l.b16 %v716
        %v829 = vunpack.c.l.b16 %v717
        %v830 = vunpack.c.l.b16 %v718
        %v831 = vunpack.c.l.b16 %v719
        %v832 = vunpack.c.l.b16 %v720
        %v833 = vunpack.c.l.b16 %v721
        %v834 = vpack.c.b16 %v803, %v802
        %v835 = vpack.c.b16 %v805, %v804
        %v836 = vpack.c.b16 %v807, %v806
        %v837 = vpack.c.b16 %v809, %v808
        %v838 = vpack.c.b16 %v811, %v810
        %v839 = vpack.c.b16 %v813, %v812
        %v840 = vpack.c.b16 %v815, %v814
        %v841 = vpack.c.b16 %v817, %v816
        %v842 = vpack.c.b16 %v819, %v818
        %v843 = vpack.c.b16 %v821, %v820
        %v844 = vpack.c.b16 %v823, %v822
        %v845 = vpack.c.b16 %v825, %v824
        %v846 = vpack.c.b16 %v827, %v826
        %v847 = vpack.c.b16 %v829, %v828
        %v848 = vpack.c.b16 %v831, %v830
        %v849 = vpack.c.b16 %v833, %v832
        %866 = vmatprep.subr.bf16.mxu0 0
        %867 = vmatpush1.bf16.msra.mxu0 %v841
        %868 = vmatprep.subr.bf16.mxu0 0
        %869 = vmatpush1.bf16.msra.mxu0 %v840
        %870 = vmatprep.subr.bf16.mxu0 0
        %871 = vmatpush1.bf16.msra.mxu0 %v839
        %872 = vmatprep.subr.bf16.mxu0 0
        %873 = vmatpush1.bf16.msra.mxu0 %v838
        %874 = vmatprep.subr.bf16.mxu0 0
        %875 = vmatpush1.bf16.msra.mxu0 %v837
        %876 = vmatprep.subr.bf16.mxu0 0
        %877 = vmatpush1.bf16.msra.mxu0 %v836
        %878 = vmatprep.subr.bf16.mxu0 0
        %879 = vmatpush1.bf16.msra.mxu0 %v835
        %880 = vmatprep.subr.bf16.mxu0 0
        %881 = vmatpush1.bf16.msra.mxu0 %v834
        %882 = vmatprep.subr.bf16.mxu0 0
        %883 = vmatpush2.bf16.msra.mxu0 %v849
        %884 = vmatprep.subr.bf16.mxu0 0
        %885 = vmatpush2.bf16.msra.mxu0 %v848
        %886 = vmatprep.subr.bf16.mxu0 0
        %887 = vmatpush2.bf16.msra.mxu0 %v847
        %888 = vmatprep.subr.bf16.mxu0 0
        %889 = vmatpush2.bf16.msra.mxu0 %v846
        %890 = vmatprep.subr.bf16.mxu0 0
        %891 = vmatpush2.bf16.msra.mxu0 %v845
        %892 = vmatprep.subr.bf16.mxu0 0
        %893 = vmatpush2.bf16.msra.mxu0 %v844
        %894 = vmatprep.subr.bf16.mxu0 0
        %895 = vmatpush2.bf16.msra.mxu0 %v843
        %896 = vmatprep.subr.bf16.mxu0 0
        %897 = vmatpush2.bf16.msra.mxu0 %v842
        %898 = vmatprep.mubr.bf16.mxu0 %v755
        %899 = vmatmul.mubr.bf16.gmra.mxu0 %v754
        %v900 = vpop.f32.mrf.mxu0
        %v901 = vadd.f32 0.0, %v900
        %v902 = vpop.f32.mrf.mxu0
        %v903 = vpop.f32.mrf.mxu0
        %v904 = vadd.f32 0.0, %v903
        %v905 = vpop.f32.mrf.mxu0
        %906 = vmatprep.mubr.bf16.mxu0 %v757
        %907 = vmatmul.mubr.bf16.gmra.mxu0 %v756
        %v908 = vpop.f32.mrf.mxu0
        %v909 = vadd.f32 0.0, %v908
        %v910 = vpop.f32.mrf.mxu0
        %v911 = vpop.f32.mrf.mxu0
        %v912 = vadd.f32 0.0, %v911
        %v913 = vpop.f32.mrf.mxu0
        %914 = vmatprep.mubr.bf16.mxu0 %v759
        %915 = vmatmul.mubr.bf16.gmra.mxu0 %v758
        %v916 = vpop.f32.mrf.mxu0
        %v917 = vadd.f32 0.0, %v916
        %v918 = vpop.f32.mrf.mxu0
        %v919 = vpop.f32.mrf.mxu0
        %v920 = vadd.f32 0.0, %v919
        %v921 = vpop.f32.mrf.mxu0
        %922 = vmatprep.mubr.bf16.mxu0 %v761
        %923 = vmatmul.mubr.bf16.gmra.mxu0 %v760
        %v924 = vpop.f32.mrf.mxu0
        %v925 = vadd.f32 0.0, %v924
        %v926 = vpop.f32.mrf.mxu0
        %v927 = vpop.f32.mrf.mxu0
        %v928 = vadd.f32 0.0, %v927
        %v929 = vpop.f32.mrf.mxu0
        %930 = vdwg.mxu0
        %v931 = vpack.c.bf16 %v904, %v901
        %v932 = vpack.c.bf16 %v912, %v909
        %v933 = vpack.c.bf16 %v920, %v917
        %v934 = vpack.c.bf16 %v928, %v925
        %v935 = vld [vmem:[#allocation5] sm:$0x3]
        %s936 = scalar_lea.vmem [#allocation3], 64
        %v937 = vld [vmem:[%s936] sm:$0xff]
        %v938 = vld [vmem:[%s936 + $0x8] sm:$0xff]
        %v939 = vld [vmem:[%s936 + $0x10] sm:$0xff]
        %v940 = vld [vmem:[%s936 + $0x18] sm:$0xff]
        %v941 = vld [vmem:[%s936 + $0x20] sm:$0xff]
        %v942 = vld [vmem:[%s936 + $0x28] sm:$0xff]
        %v943 = vld [vmem:[%s936 + $0x30] sm:$0xff]
        %v944 = vld [vmem:[%s936 + $0x38] sm:$0xff]
        %v953 = vunpack.c.l.b16 %v937
        %v954 = vunpack.c.h.b16 %v937
        %v955 = vunpack.c.l.b16 %v938
        %v956 = vunpack.c.h.b16 %v938
        %v957 = vunpack.c.l.b16 %v939
        %v958 = vunpack.c.h.b16 %v939
        %v959 = vunpack.c.l.b16 %v940
        %v960 = vunpack.c.h.b16 %v940
        %v961 = vunpack.c.l.b16 %v941
        %v962 = vunpack.c.h.b16 %v941
        %v963 = vunpack.c.l.b16 %v942
        %v964 = vunpack.c.h.b16 %v942
        %v965 = vunpack.c.l.b16 %v943
        %v966 = vunpack.c.h.b16 %v943
        %v967 = vunpack.c.l.b16 %v944
        %v968 = vunpack.c.h.b16 %v944
        %v969 = vpack.c.b16 %v955, %v953
        %v970 = vpack.c.b16 %v956, %v954
        %v971 = vpack.c.b16 %v959, %v957
        %v972 = vpack.c.b16 %v960, %v958
        %v973 = vpack.c.b16 %v963, %v961
        %v974 = vpack.c.b16 %v964, %v962
        %v975 = vpack.c.b16 %v967, %v965
        %v976 = vpack.c.b16 %v968, %v966
        %985 = vmatprep.subr.bf16.mxu0 0
        %986 = vmatpush1.bf16.msra.mxu0 %v841
        %987 = vmatprep.subr.bf16.mxu0 0
        %988 = vmatpush1.bf16.msra.mxu0 %v840
        %989 = vmatprep.subr.bf16.mxu0 0
        %990 = vmatpush1.bf16.msra.mxu0 %v839
        %991 = vmatprep.subr.bf16.mxu0 0
        %992 = vmatpush1.bf16.msra.mxu0 %v838
        %993 = vmatprep.subr.bf16.mxu0 0
        %994 = vmatpush1.bf16.msra.mxu0 %v837
        %995 = vmatprep.subr.bf16.mxu0 0
        %996 = vmatpush1.bf16.msra.mxu0 %v836
        %997 = vmatprep.subr.bf16.mxu0 0
        %998 = vmatpush1.bf16.msra.mxu0 %v835
        %999 = vmatprep.subr.bf16.mxu0 0
        %1000 = vmatpush1.bf16.msra.mxu0 %v834
        %1001 = vmatprep.subr.bf16.mxu0 0
        %1002 = vmatpush2.bf16.msra.mxu0 %v849
        %1003 = vmatprep.subr.bf16.mxu0 0
        %1004 = vmatpush2.bf16.msra.mxu0 %v848
        %1005 = vmatprep.subr.bf16.mxu0 0
        %1006 = vmatpush2.bf16.msra.mxu0 %v847
        %1007 = vmatprep.subr.bf16.mxu0 0
        %1008 = vmatpush2.bf16.msra.mxu0 %v846
        %1009 = vmatprep.subr.bf16.mxu0 0
        %1010 = vmatpush2.bf16.msra.mxu0 %v845
        %1011 = vmatprep.subr.bf16.mxu0 0
        %1012 = vmatpush2.bf16.msra.mxu0 %v844
        %1013 = vmatprep.subr.bf16.mxu0 0
        %1014 = vmatpush2.bf16.msra.mxu0 %v843
        %1015 = vmatprep.subr.bf16.mxu0 0
        %1016 = vmatpush2.bf16.msra.mxu0 %v842
        %1017 = vmatprep.mubr.bf16.mxu0 %v970
        %1018 = vmatmul.mubr.bf16.gmra.mxu0 %v969
        %v1019 = vpop.f32.mrf.mxu0
        %v1020 = vadd.f32 0.0, %v1019
        %v1021 = vpop.f32.mrf.mxu0
        %v1022 = vpop.f32.mrf.mxu0
        %v1023 = vadd.f32 0.0, %v1022
        %v1024 = vpop.f32.mrf.mxu0
        %1025 = vmatprep.mubr.bf16.mxu0 %v972
        %1026 = vmatmul.mubr.bf16.gmra.mxu0 %v971
        %v1027 = vpop.f32.mrf.mxu0
        %v1028 = vadd.f32 0.0, %v1027
        %v1029 = vpop.f32.mrf.mxu0
        %v1030 = vpop.f32.mrf.mxu0
        %v1031 = vadd.f32 0.0, %v1030
        %v1032 = vpop.f32.mrf.mxu0
        %1033 = vmatprep.mubr.bf16.mxu0 %v974
        %1034 = vmatmul.mubr.bf16.gmra.mxu0 %v973
        %v1035 = vpop.f32.mrf.mxu0
        %v1036 = vadd.f32 0.0, %v1035
        %v1037 = vpop.f32.mrf.mxu0
        %v1038 = vpop.f32.mrf.mxu0
        %v1039 = vadd.f32 0.0, %v1038
        %v1040 = vpop.f32.mrf.mxu0
        %1041 = vmatprep.mubr.bf16.mxu0 %v976
        %1042 = vmatmul.mubr.bf16.gmra.mxu0 %v975
        %v1043 = vpop.f32.mrf.mxu0
        %v1044 = vadd.f32 0.0, %v1043
        %v1045 = vpop.f32.mrf.mxu0
        %v1046 = vpop.f32.mrf.mxu0
        %v1047 = vadd.f32 0.0, %v1046
        %v1048 = vpop.f32.mrf.mxu0
        %1049 = vdwg.mxu0
        %v1050 = vpack.c.bf16 %v1023, %v1020
        %v1051 = vpack.c.bf16 %v1031, %v1028
        %v1052 = vpack.c.bf16 %v1039, %v1036
        %v1053 = vpack.c.bf16 %v1047, %v1044
        %s1054 = scalar_lea.vmem [#allocation5], 2
        %v1055 = vld [vmem:[%s1054] sm:$0x3]
        %vm1056 = vcmask 23552
        %v1058 = vsel %vm1056, %v1050, 0
        %v1061 = vsel %vm1056, %v1051, 0
        %v1064 = vsel %vm1056, %v1052, 0
        %v1067 = vsel %vm1056, %v1053, 0
        %vm1069 = vcmask 1040384
        %vm1070 = vcmask 1041408
        %v1071 = vsel %vm1069, 4294967295, 65535
        %v1072 = vsel %vm1070, %v1071, 0
        %v1074 = vand.u32 %v1055, %v1072
        %1076 = vmatprep.subr.bf16.mxu0 0
        %1077 = vmatpush1.bf16.msra.mxu0 0
        %1078 = vmatprep.subr.bf16.mxu0 0
        %1079 = vmatpush1.bf16.msra.mxu0 0
        %1080 = vmatprep.subr.bf16.mxu0 0
        %1081 = vmatpush1.bf16.msra.mxu0 0
        %1082 = vmatprep.subr.bf16.mxu0 0
        %1083 = vmatpush1.bf16.msra.mxu0 0
        %1084 = vmatprep.subr.bf16.mxu0 0
        %1085 = vmatpush1.bf16.msra.mxu0 0
        %1086 = vmatprep.subr.bf16.mxu0 0
        %1087 = vmatpush1.bf16.msra.mxu0 0
        %1088 = vmatprep.subr.bf16.mxu0 0
        %1089 = vmatpush1.bf16.msra.mxu0 0
        %1090 = vmatprep.subr.bf16.mxu0 0
        %1091 = vmatpush1.bf16.msra.mxu0 %v1074
        %1092 = vmatprep.subr.bf16.mxu0 0
        %1093 = vmatpush2.bf16.msra.mxu0 0
        %1094 = vmatprep.subr.bf16.mxu0 0
        %1095 = vmatpush2.bf16.msra.mxu0 0
        %1096 = vmatprep.subr.bf16.mxu0 0
        %1097 = vmatpush2.bf16.msra.mxu0 0
        %1098 = vmatprep.subr.bf16.mxu0 0
        %1099 = vmatpush2.bf16.msra.mxu0 0
        %1100 = vmatprep.subr.bf16.mxu0 0
        %1101 = vmatpush2.bf16.msra.mxu0 0
        %1102 = vmatprep.subr.bf16.mxu0 0
        %1103 = vmatpush2.bf16.msra.mxu0 0
        %1104 = vmatprep.subr.bf16.mxu0 0
        %1105 = vmatpush2.bf16.msra.mxu0 0
        %1106 = vmatprep.subr.bf16.mxu0 0
        %1107 = vmatpush2.bf16.msra.mxu0 0
        %1108 = vmatprep.mubr.bf16.mxu0 0
        %1109 = vmatmul.mubr.bf16.gmra.mxu0 %v1058
        %v1110 = vpop.f32.mrf.mxu0
        %v1111 = vadd.f32 0.0, %v1110
        %v1112 = vpop.f32.mrf.mxu0
        %v1113 = vpop.f32.mrf.mxu0
        %v1114 = vadd.f32 0.0, %v1113
        %v1115 = vpop.f32.mrf.mxu0
        %1116 = vmatprep.mubr.bf16.mxu0 0
        %1117 = vmatmul.mubr.bf16.gmra.mxu0 %v1061
        %v1118 = vpop.f32.mrf.mxu0
        %v1119 = vadd.f32 0.0, %v1118
        %v1120 = vpop.f32.mrf.mxu0
        %v1121 = vpop.f32.mrf.mxu0
        %v1122 = vadd.f32 0.0, %v1121
        %v1123 = vpop.f32.mrf.mxu0
        %1124 = vmatprep.mubr.bf16.mxu0 0
        %1125 = vmatmul.mubr.bf16.gmra.mxu0 %v1064
        %v1126 = vpop.f32.mrf.mxu0
        %v1127 = vadd.f32 0.0, %v1126
        %v1128 = vpop.f32.mrf.mxu0
        %v1129 = vpop.f32.mrf.mxu0
        %v1130 = vadd.f32 0.0, %v1129
        %v1131 = vpop.f32.mrf.mxu0
        %1132 = vmatprep.mubr.bf16.mxu0 0
        %1133 = vmatmul.mubr.bf16.gmra.mxu0 %v1067
        %v1134 = vpop.f32.mrf.mxu0
        %v1135 = vadd.f32 0.0, %v1134
        %v1136 = vpop.f32.mrf.mxu0
        %v1137 = vpop.f32.mrf.mxu0
        %v1138 = vadd.f32 0.0, %v1137
        %v1139 = vpop.f32.mrf.mxu0
        %1140 = vdwg.mxu0
        %v1142 = vsel %vm1056, %v931, 0
        %v1145 = vsel %vm1056, %v932, 0
        %v1148 = vsel %vm1056, %v933, 0
        %v1151 = vsel %vm1056, %v934, 0
        %v1154 = vand.u32 %v935, %v1072
        %1156 = vmatprep.subr.bf16.mxu0 0
        %1157 = vmatpush1.bf16.msra.mxu0 0
        %1158 = vmatprep.subr.bf16.mxu0 0
        %1159 = vmatpush1.bf16.msra.mxu0 0
        %1160 = vmatprep.subr.bf16.mxu0 0
        %1161 = vmatpush1.bf16.msra.mxu0 0
        %1162 = vmatprep.subr.bf16.mxu0 0
        %1163 = vmatpush1.bf16.msra.mxu0 0
        %1164 = vmatprep.subr.bf16.mxu0 0
        %1165 = vmatpush1.bf16.msra.mxu0 0
        %1166 = vmatprep.subr.bf16.mxu0 0
        %1167 = vmatpush1.bf16.msra.mxu0 0
        %1168 = vmatprep.subr.bf16.mxu0 0
        %1169 = vmatpush1.bf16.msra.mxu0 0
        %1170 = vmatprep.subr.bf16.mxu0 0
        %1171 = vmatpush1.bf16.msra.mxu0 %v1154
        %1172 = vmatprep.subr.bf16.mxu0 0
        %1173 = vmatpush2.bf16.msra.mxu0 0
        %1174 = vmatprep.subr.bf16.mxu0 0
        %1175 = vmatpush2.bf16.msra.mxu0 0
        %1176 = vmatprep.subr.bf16.mxu0 0
        %1177 = vmatpush2.bf16.msra.mxu0 0
        %1178 = vmatprep.subr.bf16.mxu0 0
        %1179 = vmatpush2.bf16.msra.mxu0 0
        %1180 = vmatprep.subr.bf16.mxu0 0
        %1181 = vmatpush2.bf16.msra.mxu0 0
        %1182 = vmatprep.subr.bf16.mxu0 0
        %1183 = vmatpush2.bf16.msra.mxu0 0
        %1184 = vmatprep.subr.bf16.mxu0 0
        %1185 = vmatpush2.bf16.msra.mxu0 0
        %1186 = vmatprep.subr.bf16.mxu0 0
        %1187 = vmatpush2.bf16.msra.mxu0 0
        %1188 = vmatprep.mubr.bf16.mxu0 0
        %1189 = vmatmul.mubr.bf16.gmra.mxu0 %v1142
        %v1190 = vpop.f32.mrf.mxu0
        %v1191 = vadd.f32 %v1111, %v1190
        %v1192 = vpop.f32.mrf.mxu0
        %v1193 = vpop.f32.mrf.mxu0
        %v1194 = vadd.f32 %v1114, %v1193
        %v1195 = vpop.f32.mrf.mxu0
        %1196 = vmatprep.mubr.bf16.mxu0 0
        %1197 = vmatmul.mubr.bf16.gmra.mxu0 %v1145
        %v1198 = vpop.f32.mrf.mxu0
        %v1199 = vadd.f32 %v1119, %v1198
        %v1200 = vpop.f32.mrf.mxu0
        %v1201 = vpop.f32.mrf.mxu0
        %v1202 = vadd.f32 %v1122, %v1201
        %v1203 = vpop.f32.mrf.mxu0
        %1204 = vmatprep.mubr.bf16.mxu0 0
        %1205 = vmatmul.mubr.bf16.gmra.mxu0 %v1148
        %v1206 = vpop.f32.mrf.mxu0
        %v1207 = vadd.f32 %v1127, %v1206
        %v1208 = vpop.f32.mrf.mxu0
        %v1209 = vpop.f32.mrf.mxu0
        %v1210 = vadd.f32 %v1130, %v1209
        %v1211 = vpop.f32.mrf.mxu0
        %1212 = vmatprep.mubr.bf16.mxu0 0
        %1213 = vmatmul.mubr.bf16.gmra.mxu0 %v1151
        %v1214 = vpop.f32.mrf.mxu0
        %v1215 = vadd.f32 %v1135, %v1214
        %v1216 = vpop.f32.mrf.mxu0
        %v1217 = vpop.f32.mrf.mxu0
        %v1218 = vadd.f32 %v1138, %v1217
        %v1219 = vpop.f32.mrf.mxu0
        %1220 = vdwg.mxu0
        %s1221 = scalar_lea.vmem [#allocation3], 128
        %v1222 = vld [vmem:[%s1221] sm:$0xff]
        %v1223 = vld [vmem:[%s1221 + $0x8] sm:$0xff]
        %v1224 = vld [vmem:[%s1221 + $0x10] sm:$0xff]
        %v1225 = vld [vmem:[%s1221 + $0x18] sm:$0xff]
        %v1226 = vld [vmem:[%s1221 + $0x20] sm:$0xff]
        %v1227 = vld [vmem:[%s1221 + $0x28] sm:$0xff]
        %v1228 = vld [vmem:[%s1221 + $0x30] sm:$0xff]
        %v1229 = vld [vmem:[%s1221 + $0x38] sm:$0xff]
        %v1238 = vunpack.c.l.b16 %v1222
        %v1239 = vunpack.c.h.b16 %v1222
        %v1240 = vunpack.c.l.b16 %v1223
        %v1241 = vunpack.c.h.b16 %v1223
        %v1242 = vunpack.c.l.b16 %v1224
        %v1243 = vunpack.c.h.b16 %v1224
        %v1244 = vunpack.c.l.b16 %v1225
        %v1245 = vunpack.c.h.b16 %v1225
        %v1246 = vunpack.c.l.b16 %v1226
        %v1247 = vunpack.c.h.b16 %v1226
        %v1248 = vunpack.c.l.b16 %v1227
        %v1249 = vunpack.c.h.b16 %v1227
        %v1250 = vunpack.c.l.b16 %v1228
        %v1251 = vunpack.c.h.b16 %v1228
        %v1252 = vunpack.c.l.b16 %v1229
        %v1253 = vunpack.c.h.b16 %v1229
        %v1254 = vpack.c.b16 %v1240, %v1238
        %v1255 = vpack.c.b16 %v1241, %v1239
        %v1256 = vpack.c.b16 %v1244, %v1242
        %v1257 = vpack.c.b16 %v1245, %v1243
        %v1258 = vpack.c.b16 %v1248, %v1246
        %v1259 = vpack.c.b16 %v1249, %v1247
        %v1260 = vpack.c.b16 %v1252, %v1250
        %v1261 = vpack.c.b16 %v1253, %v1251
        %1270 = vmatprep.subr.bf16.mxu0 0
        %1271 = vmatpush1.bf16.msra.mxu0 %v841
        %1272 = vmatprep.subr.bf16.mxu0 0
        %1273 = vmatpush1.bf16.msra.mxu0 %v840
        %1274 = vmatprep.subr.bf16.mxu0 0
        %1275 = vmatpush1.bf16.msra.mxu0 %v839
        %1276 = vmatprep.subr.bf16.mxu0 0
        %1277 = vmatpush1.bf16.msra.mxu0 %v838
        %1278 = vmatprep.subr.bf16.mxu0 0
        %1279 = vmatpush1.bf16.msra.mxu0 %v837
        %1280 = vmatprep.subr.bf16.mxu0 0
        %1281 = vmatpush1.bf16.msra.mxu0 %v836
        %1282 = vmatprep.subr.bf16.mxu0 0
        %1283 = vmatpush1.bf16.msra.mxu0 %v835
        %1284 = vmatprep.subr.bf16.mxu0 0
        %1285 = vmatpush1.bf16.msra.mxu0 %v834
        %1286 = vmatprep.subr.bf16.mxu0 0
        %1287 = vmatpush2.bf16.msra.mxu0 %v849
        %1288 = vmatprep.subr.bf16.mxu0 0
        %1289 = vmatpush2.bf16.msra.mxu0 %v848
        %1290 = vmatprep.subr.bf16.mxu0 0
        %1291 = vmatpush2.bf16.msra.mxu0 %v847
        %1292 = vmatprep.subr.bf16.mxu0 0
        %1293 = vmatpush2.bf16.msra.mxu0 %v846
        %1294 = vmatprep.subr.bf16.mxu0 0
        %1295 = vmatpush2.bf16.msra.mxu0 %v845
        %1296 = vmatprep.subr.bf16.mxu0 0
        %1297 = vmatpush2.bf16.msra.mxu0 %v844
        %1298 = vmatprep.subr.bf16.mxu0 0
        %1299 = vmatpush2.bf16.msra.mxu0 %v843
        %1300 = vmatprep.subr.bf16.mxu0 0
        %1301 = vmatpush2.bf16.msra.mxu0 %v842
        %1302 = vmatprep.mubr.bf16.mxu0 %v1255
        %1303 = vmatmul.mubr.bf16.gmra.mxu0 %v1254
        %v1304 = vpop.f32.mrf.mxu0
        %v1305 = vadd.f32 0.0, %v1304
        %v1306 = vpop.f32.mrf.mxu0
        %v1307 = vpop.f32.mrf.mxu0
        %v1308 = vadd.f32 0.0, %v1307
        %v1309 = vpop.f32.mrf.mxu0
        %1310 = vmatprep.mubr.bf16.mxu0 %v1257
        %1311 = vmatmul.mubr.bf16.gmra.mxu0 %v1256
        %v1312 = vpop.f32.mrf.mxu0
        %v1313 = vadd.f32 0.0, %v1312
        %v1314 = vpop.f32.mrf.mxu0
        %v1315 = vpop.f32.mrf.mxu0
        %v1316 = vadd.f32 0.0, %v1315
        %v1317 = vpop.f32.mrf.mxu0
        %1318 = vmatprep.mubr.bf16.mxu0 %v1259
        %1319 = vmatmul.mubr.bf16.gmra.mxu0 %v1258
        %v1320 = vpop.f32.mrf.mxu0
        %v1321 = vadd.f32 0.0, %v1320
        %v1322 = vpop.f32.mrf.mxu0
        %v1323 = vpop.f32.mrf.mxu0
        %v1324 = vadd.f32 0.0, %v1323
        %v1325 = vpop.f32.mrf.mxu0
        %1326 = vmatprep.mubr.bf16.mxu0 %v1261
        %1327 = vmatmul.mubr.bf16.gmra.mxu0 %v1260
        %v1328 = vpop.f32.mrf.mxu0
        %v1329 = vadd.f32 0.0, %v1328
        %v1330 = vpop.f32.mrf.mxu0
        %v1331 = vpop.f32.mrf.mxu0
        %v1332 = vadd.f32 0.0, %v1331
        %v1333 = vpop.f32.mrf.mxu0
        %1334 = vdwg.mxu0
        %v1335 = vpack.c.bf16 %v1308, %v1305
        %v1336 = vpack.c.bf16 %v1316, %v1313
        %v1337 = vpack.c.bf16 %v1324, %v1321
        %v1338 = vpack.c.bf16 %v1332, %v1329
        %s1339 = scalar_lea.vmem [#allocation5], 4
        %v1340 = vld [vmem:[%s1339] sm:$0x3]
        %v1342 = vsel %vm1056, %v1335, 0
        %v1345 = vsel %vm1056, %v1336, 0
        %v1348 = vsel %vm1056, %v1337, 0
        %v1351 = vsel %vm1056, %v1338, 0
        %v1354 = vand.u32 %v1340, %v1072
        %1356 = vmatprep.subr.bf16.mxu0 0
        %1357 = vmatpush1.bf16.msra.mxu0 0
        %1358 = vmatprep.subr.bf16.mxu0 0
        %1359 = vmatpush1.bf16.msra.mxu0 0
        %1360 = vmatprep.subr.bf16.mxu0 0
        %1361 = vmatpush1.bf16.msra.mxu0 0
        %1362 = vmatprep.subr.bf16.mxu0 0
        %1363 = vmatpush1.bf16.msra.mxu0 0
        %1364 = vmatprep.subr.bf16.mxu0 0
        %1365 = vmatpush1.bf16.msra.mxu0 0
        %1366 = vmatprep.subr.bf16.mxu0 0
        %1367 = vmatpush1.bf16.msra.mxu0 0
        %1368 = vmatprep.subr.bf16.mxu0 0
        %1369 = vmatpush1.bf16.msra.mxu0 0
        %1370 = vmatprep.subr.bf16.mxu0 0
        %1371 = vmatpush1.bf16.msra.mxu0 %v1354
        %1372 = vmatprep.subr.bf16.mxu0 0
        %1373 = vmatpush2.bf16.msra.mxu0 0
        %1374 = vmatprep.subr.bf16.mxu0 0
        %1375 = vmatpush2.bf16.msra.mxu0 0
        %1376 = vmatprep.subr.bf16.mxu0 0
        %1377 = vmatpush2.bf16.msra.mxu0 0
        %1378 = vmatprep.subr.bf16.mxu0 0
        %1379 = vmatpush2.bf16.msra.mxu0 0
        %1380 = vmatprep.subr.bf16.mxu0 0
        %1381 = vmatpush2.bf16.msra.mxu0 0
        %1382 = vmatprep.subr.bf16.mxu0 0
        %1383 = vmatpush2.bf16.msra.mxu0 0
        %1384 = vmatprep.subr.bf16.mxu0 0
        %1385 = vmatpush2.bf16.msra.mxu0 0
        %1386 = vmatprep.subr.bf16.mxu0 0
        %1387 = vmatpush2.bf16.msra.mxu0 0
        %1388 = vmatprep.mubr.bf16.mxu0 0
        %1389 = vmatmul.mubr.bf16.gmra.mxu0 %v1342
        %v1390 = vpop.f32.mrf.mxu0
        %v1391 = vadd.f32 0.0, %v1390
        %v1392 = vpop.f32.mrf.mxu0
        %v1393 = vpop.f32.mrf.mxu0
        %v1394 = vadd.f32 0.0, %v1393
        %v1395 = vpop.f32.mrf.mxu0
        %1396 = vmatprep.mubr.bf16.mxu0 0
        %1397 = vmatmul.mubr.bf16.gmra.mxu0 %v1345
        %v1398 = vpop.f32.mrf.mxu0
        %v1399 = vadd.f32 0.0, %v1398
        %v1400 = vpop.f32.mrf.mxu0
        %v1401 = vpop.f32.mrf.mxu0
        %v1402 = vadd.f32 0.0, %v1401
        %v1403 = vpop.f32.mrf.mxu0
        %1404 = vmatprep.mubr.bf16.mxu0 0
        %1405 = vmatmul.mubr.bf16.gmra.mxu0 %v1348
        %v1406 = vpop.f32.mrf.mxu0
        %v1407 = vadd.f32 0.0, %v1406
        %v1408 = vpop.f32.mrf.mxu0
        %v1409 = vpop.f32.mrf.mxu0
        %v1410 = vadd.f32 0.0, %v1409
        %v1411 = vpop.f32.mrf.mxu0
        %1412 = vmatprep.mubr.bf16.mxu0 0
        %1413 = vmatmul.mubr.bf16.gmra.mxu0 %v1351
        %v1414 = vpop.f32.mrf.mxu0
        %v1415 = vadd.f32 0.0, %v1414
        %v1416 = vpop.f32.mrf.mxu0
        %v1417 = vpop.f32.mrf.mxu0
        %v1418 = vadd.f32 0.0, %v1417
        %v1419 = vpop.f32.mrf.mxu0
        %1420 = vdwg.mxu0
        %v1421 = vadd.f32 %v1191, %v1391
        %v1422 = vadd.f32 %v1194, %v1394
        %v1423 = vadd.f32 %v1199, %v1399
        %v1424 = vadd.f32 %v1202, %v1402
        %v1425 = vadd.f32 %v1207, %v1407
        %v1426 = vadd.f32 %v1210, %v1410
        %v1427 = vadd.f32 %v1215, %v1415
        %v1428 = vadd.f32 %v1218, %v1418
        %s1429 = scalar_lea.vmem [#allocation3], 192
        %v1430 = vld [vmem:[%s1429] sm:$0xff]
        %v1431 = vld [vmem:[%s1429 + $0x8] sm:$0xff]
        %v1432 = vld [vmem:[%s1429 + $0x10] sm:$0xff]
        %v1433 = vld [vmem:[%s1429 + $0x18] sm:$0xff]
        %v1434 = vld [vmem:[%s1429 + $0x20] sm:$0xff]
        %v1435 = vld [vmem:[%s1429 + $0x28] sm:$0xff]
        %v1436 = vld [vmem:[%s1429 + $0x30] sm:$0xff]
        %v1437 = vld [vmem:[%s1429 + $0x38] sm:$0xff]
        %v1446 = vunpack.c.l.b16 %v1430
        %v1447 = vunpack.c.h.b16 %v1430
        %v1448 = vunpack.c.l.b16 %v1431
        %v1449 = vunpack.c.h.b16 %v1431
        %v1450 = vunpack.c.l.b16 %v1432
        %v1451 = vunpack.c.h.b16 %v1432
        %v1452 = vunpack.c.l.b16 %v1433
        %v1453 = vunpack.c.h.b16 %v1433
        %v1454 = vunpack.c.l.b16 %v1434
        %v1455 = vunpack.c.h.b16 %v1434
        %v1456 = vunpack.c.l.b16 %v1435
        %v1457 = vunpack.c.h.b16 %v1435
        %v1458 = vunpack.c.l.b16 %v1436
        %v1459 = vunpack.c.h.b16 %v1436
        %v1460 = vunpack.c.l.b16 %v1437
        %v1461 = vunpack.c.h.b16 %v1437
        %v1462 = vpack.c.b16 %v1448, %v1446
        %v1463 = vpack.c.b16 %v1449, %v1447
        %v1464 = vpack.c.b16 %v1452, %v1450
        %v1465 = vpack.c.b16 %v1453, %v1451
        %v1466 = vpack.c.b16 %v1456, %v1454
        %v1467 = vpack.c.b16 %v1457, %v1455
        %v1468 = vpack.c.b16 %v1460, %v1458
        %v1469 = vpack.c.b16 %v1461, %v1459
        %1478 = vmatprep.subr.bf16.mxu0 0
        %1479 = vmatpush1.bf16.msra.mxu0 %v841
        %1480 = vmatprep.subr.bf16.mxu0 0
        %1481 = vmatpush1.bf16.msra.mxu0 %v840
        %1482 = vmatprep.subr.bf16.mxu0 0
        %1483 = vmatpush1.bf16.msra.mxu0 %v839
        %1484 = vmatprep.subr.bf16.mxu0 0
        %1485 = vmatpush1.bf16.msra.mxu0 %v838
        %1486 = vmatprep.subr.bf16.mxu0 0
        %1487 = vmatpush1.bf16.msra.mxu0 %v837
        %1488 = vmatprep.subr.bf16.mxu0 0
        %1489 = vmatpush1.bf16.msra.mxu0 %v836
        %1490 = vmatprep.subr.bf16.mxu0 0
        %1491 = vmatpush1.bf16.msra.mxu0 %v835
        %1492 = vmatprep.subr.bf16.mxu0 0
        %1493 = vmatpush1.bf16.msra.mxu0 %v834
        %1494 = vmatprep.subr.bf16.mxu0 0
        %1495 = vmatpush2.bf16.msra.mxu0 %v849
        %1496 = vmatprep.subr.bf16.mxu0 0
        %1497 = vmatpush2.bf16.msra.mxu0 %v848
        %1498 = vmatprep.subr.bf16.mxu0 0
        %1499 = vmatpush2.bf16.msra.mxu0 %v847
        %1500 = vmatprep.subr.bf16.mxu0 0
        %1501 = vmatpush2.bf16.msra.mxu0 %v846
        %1502 = vmatprep.subr.bf16.mxu0 0
        %1503 = vmatpush2.bf16.msra.mxu0 %v845
        %1504 = vmatprep.subr.bf16.mxu0 0
        %1505 = vmatpush2.bf16.msra.mxu0 %v844
        %1506 = vmatprep.subr.bf16.mxu0 0
        %1507 = vmatpush2.bf16.msra.mxu0 %v843
        %1508 = vmatprep.subr.bf16.mxu0 0
        %1509 = vmatpush2.bf16.msra.mxu0 %v842
        %1510 = vmatprep.mubr.bf16.mxu0 %v1463
        %1511 = vmatmul.mubr.bf16.gmra.mxu0 %v1462
        %v1512 = vpop.f32.mrf.mxu0
        %v1513 = vadd.f32 0.0, %v1512
        %v1514 = vpop.f32.mrf.mxu0
        %v1515 = vpop.f32.mrf.mxu0
        %v1516 = vadd.f32 0.0, %v1515
        %v1517 = vpop.f32.mrf.mxu0
        %1518 = vmatprep.mubr.bf16.mxu0 %v1465
        %1519 = vmatmul.mubr.bf16.gmra.mxu0 %v1464
        %v1520 = vpop.f32.mrf.mxu0
        %v1521 = vadd.f32 0.0, %v1520
        %v1522 = vpop.f32.mrf.mxu0
        %v1523 = vpop.f32.mrf.mxu0
        %v1524 = vadd.f32 0.0, %v1523
        %v1525 = vpop.f32.mrf.mxu0
        %1526 = vmatprep.mubr.bf16.mxu0 %v1467
        %1527 = vmatmul.mubr.bf16.gmra.mxu0 %v1466
        %v1528 = vpop.f32.mrf.mxu0
        %v1529 = vadd.f32 0.0, %v1528
        %v1530 = vpop.f32.mrf.mxu0
        %v1531 = vpop.f32.mrf.mxu0
        %v1532 = vadd.f32 0.0, %v1531
        %v1533 = vpop.f32.mrf.mxu0
        %1534 = vmatprep.mubr.bf16.mxu0 %v1469
        %1535 = vmatmul.mubr.bf16.gmra.mxu0 %v1468
        %v1536 = vpop.f32.mrf.mxu0
        %v1537 = vadd.f32 0.0, %v1536
        %v1538 = vpop.f32.mrf.mxu0
        %v1539 = vpop.f32.mrf.mxu0
        %v1540 = vadd.f32 0.0, %v1539
        %v1541 = vpop.f32.mrf.mxu0
        %1542 = vdwg.mxu0
        %v1543 = vpack.c.bf16 %v1516, %v1513
        %v1544 = vpack.c.bf16 %v1524, %v1521
        %v1545 = vpack.c.bf16 %v1532, %v1529
        %v1546 = vpack.c.bf16 %v1540, %v1537
        %s1547 = scalar_lea.vmem [#allocation5], 6
        %v1548 = vld [vmem:[%s1547] sm:$0x3]
        %v1550 = vsel %vm1056, %v1543, 0
        %v1553 = vsel %vm1056, %v1544, 0
        %v1556 = vsel %vm1056, %v1545, 0
        %v1559 = vsel %vm1056, %v1546, 0
        %v1562 = vand.u32 %v1548, %v1072
        %1564 = vmatprep.subr.bf16.mxu0 0
        %1565 = vmatpush1.bf16.msra.mxu0 0
        %1566 = vmatprep.subr.bf16.mxu0 0
        %1567 = vmatpush1.bf16.msra.mxu0 0
        %1568 = vmatprep.subr.bf16.mxu0 0
        %1569 = vmatpush1.bf16.msra.mxu0 0
        %1570 = vmatprep.subr.bf16.mxu0 0
        %1571 = vmatpush1.bf16.msra.mxu0 0
        %1572 = vmatprep.subr.bf16.mxu0 0
        %1573 = vmatpush1.bf16.msra.mxu0 0
        %1574 = vmatprep.subr.bf16.mxu0 0
        %1575 = vmatpush1.bf16.msra.mxu0 0
        %1576 = vmatprep.subr.bf16.mxu0 0
        %1577 = vmatpush1.bf16.msra.mxu0 0
        %1578 = vmatprep.subr.bf16.mxu0 0
        %1579 = vmatpush1.bf16.msra.mxu0 %v1562
        %1580 = vmatprep.subr.bf16.mxu0 0
        %1581 = vmatpush2.bf16.msra.mxu0 0
        %1582 = vmatprep.subr.bf16.mxu0 0
        %1583 = vmatpush2.bf16.msra.mxu0 0
        %1584 = vmatprep.subr.bf16.mxu0 0
        %1585 = vmatpush2.bf16.msra.mxu0 0
        %1586 = vmatprep.subr.bf16.mxu0 0
        %1587 = vmatpush2.bf16.msra.mxu0 0
        %1588 = vmatprep.subr.bf16.mxu0 0
        %1589 = vmatpush2.bf16.msra.mxu0 0
        %1590 = vmatprep.subr.bf16.mxu0 0
        %1591 = vmatpush2.bf16.msra.mxu0 0
        %1592 = vmatprep.subr.bf16.mxu0 0
        %1593 = vmatpush2.bf16.msra.mxu0 0
        %1594 = vmatprep.subr.bf16.mxu0 0
        %1595 = vmatpush2.bf16.msra.mxu0 0
        %1596 = vmatprep.mubr.bf16.mxu0 0
        %1597 = vmatmul.mubr.bf16.gmra.mxu0 %v1550
        %v1598 = vpop.f32.mrf.mxu0
        %v1599 = vadd.f32 0.0, %v1598
        %v1600 = vpop.f32.mrf.mxu0
        %v1601 = vpop.f32.mrf.mxu0
        %v1602 = vadd.f32 0.0, %v1601
        %v1603 = vpop.f32.mrf.mxu0
        %1604 = vmatprep.mubr.bf16.mxu0 0
        %1605 = vmatmul.mubr.bf16.gmra.mxu0 %v1553
        %v1606 = vpop.f32.mrf.mxu0
        %v1607 = vadd.f32 0.0, %v1606
        %v1608 = vpop.f32.mrf.mxu0
        %v1609 = vpop.f32.mrf.mxu0
        %v1610 = vadd.f32 0.0, %v1609
        %v1611 = vpop.f32.mrf.mxu0
        %1612 = vmatprep.mubr.bf16.mxu0 0
        %1613 = vmatmul.mubr.bf16.gmra.mxu0 %v1556
        %v1614 = vpop.f32.mrf.mxu0
        %v1615 = vadd.f32 0.0, %v1614
        %v1616 = vpop.f32.mrf.mxu0
        %v1617 = vpop.f32.mrf.mxu0
        %v1618 = vadd.f32 0.0, %v1617
        %v1619 = vpop.f32.mrf.mxu0
        %1620 = vmatprep.mubr.bf16.mxu0 0
        %1621 = vmatmul.mubr.bf16.gmra.mxu0 %v1559
        %v1622 = vpop.f32.mrf.mxu0
        %v1623 = vadd.f32 0.0, %v1622
        %v1624 = vpop.f32.mrf.mxu0
        %v1625 = vpop.f32.mrf.mxu0
        %v1626 = vadd.f32 0.0, %v1625
        %v1627 = vpop.f32.mrf.mxu0
        %1628 = vdwg.mxu0
        %v1629 = vadd.f32 %v1421, %v1599
        %v1630 = vadd.f32 %v1422, %v1602
        %v1631 = vadd.f32 %v1423, %v1607
        %v1632 = vadd.f32 %v1424, %v1610
        %v1633 = vadd.f32 %v1425, %v1615
        %v1634 = vadd.f32 %v1426, %v1618
        %v1635 = vadd.f32 %v1427, %v1623
        %v1636 = vadd.f32 %v1428, %v1626
        %s1637 = scalar_lea.vmem [#allocation3], 256
        %v1638 = vld [vmem:[%s1637] sm:$0xff]
        %v1639 = vld [vmem:[%s1637 + $0x8] sm:$0xff]
        %v1640 = vld [vmem:[%s1637 + $0x10] sm:$0xff]
        %v1641 = vld [vmem:[%s1637 + $0x18] sm:$0xff]
        %v1642 = vld [vmem:[%s1637 + $0x20] sm:$0xff]
        %v1643 = vld [vmem:[%s1637 + $0x28] sm:$0xff]
        %v1644 = vld [vmem:[%s1637 + $0x30] sm:$0xff]
        %v1645 = vld [vmem:[%s1637 + $0x38] sm:$0xff]
        %v1654 = vunpack.c.l.b16 %v1638
        %v1655 = vunpack.c.h.b16 %v1638
        %v1656 = vunpack.c.l.b16 %v1639
        %v1657 = vunpack.c.h.b16 %v1639
        %v1658 = vunpack.c.l.b16 %v1640
        %v1659 = vunpack.c.h.b16 %v1640
        %v1660 = vunpack.c.l.b16 %v1641
        %v1661 = vunpack.c.h.b16 %v1641
        %v1662 = vunpack.c.l.b16 %v1642
        %v1663 = vunpack.c.h.b16 %v1642
        %v1664 = vunpack.c.l.b16 %v1643
        %v1665 = vunpack.c.h.b16 %v1643
        %v1666 = vunpack.c.l.b16 %v1644
        %v1667 = vunpack.c.h.b16 %v1644
        %v1668 = vunpack.c.l.b16 %v1645
        %v1669 = vunpack.c.h.b16 %v1645
        %v1670 = vpack.c.b16 %v1656, %v1654
        %v1671 = vpack.c.b16 %v1657, %v1655
        %v1672 = vpack.c.b16 %v1660, %v1658
        %v1673 = vpack.c.b16 %v1661, %v1659
        %v1674 = vpack.c.b16 %v1664, %v1662
        %v1675 = vpack.c.b16 %v1665, %v1663
        %v1676 = vpack.c.b16 %v1668, %v1666
        %v1677 = vpack.c.b16 %v1669, %v1667
        %1686 = vmatprep.subr.bf16.mxu0 0
        %1687 = vmatpush1.bf16.msra.mxu0 %v841
        %1688 = vmatprep.subr.bf16.mxu0 0
        %1689 = vmatpush1.bf16.msra.mxu0 %v840
        %1690 = vmatprep.subr.bf16.mxu0 0
        %1691 = vmatpush1.bf16.msra.mxu0 %v839
        %1692 = vmatprep.subr.bf16.mxu0 0
        %1693 = vmatpush1.bf16.msra.mxu0 %v838
        %1694 = vmatprep.subr.bf16.mxu0 0
        %1695 = vmatpush1.bf16.msra.mxu0 %v837
        %1696 = vmatprep.subr.bf16.mxu0 0
        %1697 = vmatpush1.bf16.msra.mxu0 %v836
        %1698 = vmatprep.subr.bf16.mxu0 0
        %1699 = vmatpush1.bf16.msra.mxu0 %v835
        %1700 = vmatprep.subr.bf16.mxu0 0
        %1701 = vmatpush1.bf16.msra.mxu0 %v834
        %1702 = vmatprep.subr.bf16.mxu0 0
        %1703 = vmatpush2.bf16.msra.mxu0 %v849
        %1704 = vmatprep.subr.bf16.mxu0 0
        %1705 = vmatpush2.bf16.msra.mxu0 %v848
        %1706 = vmatprep.subr.bf16.mxu0 0
        %1707 = vmatpush2.bf16.msra.mxu0 %v847
        %1708 = vmatprep.subr.bf16.mxu0 0
        %1709 = vmatpush2.bf16.msra.mxu0 %v846
        %1710 = vmatprep.subr.bf16.mxu0 0
        %1711 = vmatpush2.bf16.msra.mxu0 %v845
        %1712 = vmatprep.subr.bf16.mxu0 0
        %1713 = vmatpush2.bf16.msra.mxu0 %v844
        %1714 = vmatprep.subr.bf16.mxu0 0
        %1715 = vmatpush2.bf16.msra.mxu0 %v843
        %1716 = vmatprep.subr.bf16.mxu0 0
        %1717 = vmatpush2.bf16.msra.mxu0 %v842
        %1718 = vmatprep.mubr.bf16.mxu0 %v1671
        %1719 = vmatmul.mubr.bf16.gmra.mxu0 %v1670
        %v1720 = vpop.f32.mrf.mxu0
        %v1721 = vadd.f32 0.0, %v1720
        %v1722 = vpop.f32.mrf.mxu0
        %v1723 = vpop.f32.mrf.mxu0
        %v1724 = vadd.f32 0.0, %v1723
        %v1725 = vpop.f32.mrf.mxu0
        %1726 = vmatprep.mubr.bf16.mxu0 %v1673
        %1727 = vmatmul.mubr.bf16.gmra.mxu0 %v1672
        %v1728 = vpop.f32.mrf.mxu0
        %v1729 = vadd.f32 0.0, %v1728
        %v1730 = vpop.f32.mrf.mxu0
        %v1731 = vpop.f32.mrf.mxu0
        %v1732 = vadd.f32 0.0, %v1731
        %v1733 = vpop.f32.mrf.mxu0
        %1734 = vmatprep.mubr.bf16.mxu0 %v1675
        %1735 = vmatmul.mubr.bf16.gmra.mxu0 %v1674
        %v1736 = vpop.f32.mrf.mxu0
        %v1737 = vadd.f32 0.0, %v1736
        %v1738 = vpop.f32.mrf.mxu0
        %v1739 = vpop.f32.mrf.mxu0
        %v1740 = vadd.f32 0.0, %v1739
        %v1741 = vpop.f32.mrf.mxu0
        %1742 = vmatprep.mubr.bf16.mxu0 %v1677
        %1743 = vmatmul.mubr.bf16.gmra.mxu0 %v1676
        %v1744 = vpop.f32.mrf.mxu0
        %v1745 = vadd.f32 0.0, %v1744
        %v1746 = vpop.f32.mrf.mxu0
        %v1747 = vpop.f32.mrf.mxu0
        %v1748 = vadd.f32 0.0, %v1747
        %v1749 = vpop.f32.mrf.mxu0
        %1750 = vdwg.mxu0
        %v1751 = vpack.c.bf16 %v1724, %v1721
        %v1752 = vpack.c.bf16 %v1732, %v1729
        %v1753 = vpack.c.bf16 %v1740, %v1737
        %v1754 = vpack.c.bf16 %v1748, %v1745
        %s1755 = scalar_lea.vmem [#allocation5], 8
        %v1756 = vld [vmem:[%s1755] sm:$0x3]
        %v1758 = vsel %vm1056, %v1751, 0
        %v1761 = vsel %vm1056, %v1752, 0
        %v1764 = vsel %vm1056, %v1753, 0
        %v1767 = vsel %vm1056, %v1754, 0
        %v1770 = vand.u32 %v1756, %v1072
        %1772 = vmatprep.subr.bf16.mxu0 0
        %1773 = vmatpush1.bf16.msra.mxu0 0
        %1774 = vmatprep.subr.bf16.mxu0 0
        %1775 = vmatpush1.bf16.msra.mxu0 0
        %1776 = vmatprep.subr.bf16.mxu0 0
        %1777 = vmatpush1.bf16.msra.mxu0 0
        %1778 = vmatprep.subr.bf16.mxu0 0
        %1779 = vmatpush1.bf16.msra.mxu0 0
        %1780 = vmatprep.subr.bf16.mxu0 0
        %1781 = vmatpush1.bf16.msra.mxu0 0
        %1782 = vmatprep.subr.bf16.mxu0 0
        %1783 = vmatpush1.bf16.msra.mxu0 0
        %1784 = vmatprep.subr.bf16.mxu0 0
        %1785 = vmatpush1.bf16.msra.mxu0 0
        %1786 = vmatprep.subr.bf16.mxu0 0
        %1787 = vmatpush1.bf16.msra.mxu0 %v1770
        %1788 = vmatprep.subr.bf16.mxu0 0
        %1789 = vmatpush2.bf16.msra.mxu0 0
        %1790 = vmatprep.subr.bf16.mxu0 0
        %1791 = vmatpush2.bf16.msra.mxu0 0
        %1792 = vmatprep.subr.bf16.mxu0 0
        %1793 = vmatpush2.bf16.msra.mxu0 0
        %1794 = vmatprep.subr.bf16.mxu0 0
        %1795 = vmatpush2.bf16.msra.mxu0 0
        %1796 = vmatprep.subr.bf16.mxu0 0
        %1797 = vmatpush2.bf16.msra.mxu0 0
        %1798 = vmatprep.subr.bf16.mxu0 0
        %1799 = vmatpush2.bf16.msra.mxu0 0
        %1800 = vmatprep.subr.bf16.mxu0 0
        %1801 = vmatpush2.bf16.msra.mxu0 0
        %1802 = vmatprep.subr.bf16.mxu0 0
        %1803 = vmatpush2.bf16.msra.mxu0 0
        %1804 = vmatprep.mubr.bf16.mxu0 0
        %1805 = vmatmul.mubr.bf16.gmra.mxu0 %v1758
        %v1806 = vpop.f32.mrf.mxu0
        %v1807 = vadd.f32 0.0, %v1806
        %v1808 = vpop.f32.mrf.mxu0
        %v1809 = vpop.f32.mrf.mxu0
        %v1810 = vadd.f32 0.0, %v1809
        %v1811 = vpop.f32.mrf.mxu0
        %1812 = vmatprep.mubr.bf16.mxu0 0
        %1813 = vmatmul.mubr.bf16.gmra.mxu0 %v1761
        %v1814 = vpop.f32.mrf.mxu0
        %v1815 = vadd.f32 0.0, %v1814
        %v1816 = vpop.f32.mrf.mxu0
        %v1817 = vpop.f32.mrf.mxu0
        %v1818 = vadd.f32 0.0, %v1817
        %v1819 = vpop.f32.mrf.mxu0
        %1820 = vmatprep.mubr.bf16.mxu0 0
        %1821 = vmatmul.mubr.bf16.gmra.mxu0 %v1764
        %v1822 = vpop.f32.mrf.mxu0
        %v1823 = vadd.f32 0.0, %v1822
        %v1824 = vpop.f32.mrf.mxu0
        %v1825 = vpop.f32.mrf.mxu0
        %v1826 = vadd.f32 0.0, %v1825
        %v1827 = vpop.f32.mrf.mxu0
        %1828 = vmatprep.mubr.bf16.mxu0 0
        %1829 = vmatmul.mubr.bf16.gmra.mxu0 %v1767
        %v1830 = vpop.f32.mrf.mxu0
        %v1831 = vadd.f32 0.0, %v1830
        %v1832 = vpop.f32.mrf.mxu0
        %v1833 = vpop.f32.mrf.mxu0
        %v1834 = vadd.f32 0.0, %v1833
        %v1835 = vpop.f32.mrf.mxu0
        %1836 = vdwg.mxu0
        %v1837 = vadd.f32 %v1629, %v1807
        %v1838 = vadd.f32 %v1630, %v1810
        %v1839 = vadd.f32 %v1631, %v1815
        %v1840 = vadd.f32 %v1632, %v1818
        %v1841 = vadd.f32 %v1633, %v1823
        %v1842 = vadd.f32 %v1634, %v1826
        %v1843 = vadd.f32 %v1635, %v1831
        %v1844 = vadd.f32 %v1636, %v1834
        %s1845 = scalar_lea.vmem [#allocation3], 320
        %v1846 = vld [vmem:[%s1845] sm:$0xff]
        %v1847 = vld [vmem:[%s1845 + $0x8] sm:$0xff]
        %v1848 = vld [vmem:[%s1845 + $0x10] sm:$0xff]
        %v1849 = vld [vmem:[%s1845 + $0x18] sm:$0xff]
        %v1850 = vld [vmem:[%s1845 + $0x20] sm:$0xff]
        %v1851 = vld [vmem:[%s1845 + $0x28] sm:$0xff]
        %v1852 = vld [vmem:[%s1845 + $0x30] sm:$0xff]
        %v1853 = vld [vmem:[%s1845 + $0x38] sm:$0xff]
        %v1862 = vunpack.c.l.b16 %v1846
        %v1863 = vunpack.c.h.b16 %v1846
        %v1864 = vunpack.c.l.b16 %v1847
        %v1865 = vunpack.c.h.b16 %v1847
        %v1866 = vunpack.c.l.b16 %v1848
        %v1867 = vunpack.c.h.b16 %v1848
        %v1868 = vunpack.c.l.b16 %v1849
        %v1869 = vunpack.c.h.b16 %v1849
        %v1870 = vunpack.c.l.b16 %v1850
        %v1871 = vunpack.c.h.b16 %v1850
        %v1872 = vunpack.c.l.b16 %v1851
        %v1873 = vunpack.c.h.b16 %v1851
        %v1874 = vunpack.c.l.b16 %v1852
        %v1875 = vunpack.c.h.b16 %v1852
        %v1876 = vunpack.c.l.b16 %v1853
        %v1877 = vunpack.c.h.b16 %v1853
        %v1878 = vpack.c.b16 %v1864, %v1862
        %v1879 = vpack.c.b16 %v1865, %v1863
        %v1880 = vpack.c.b16 %v1868, %v1866
        %v1881 = vpack.c.b16 %v1869, %v1867
        %v1882 = vpack.c.b16 %v1872, %v1870
        %v1883 = vpack.c.b16 %v1873, %v1871
        %v1884 = vpack.c.b16 %v1876, %v1874
        %v1885 = vpack.c.b16 %v1877, %v1875
        %1894 = vmatprep.subr.bf16.mxu0 0
        %1895 = vmatpush1.bf16.msra.mxu0 %v841
        %1896 = vmatprep.subr.bf16.mxu0 0
        %1897 = vmatpush1.bf16.msra.mxu0 %v840
        %1898 = vmatprep.subr.bf16.mxu0 0
        %1899 = vmatpush1.bf16.msra.mxu0 %v839
        %1900 = vmatprep.subr.bf16.mxu0 0
        %1901 = vmatpush1.bf16.msra.mxu0 %v838
        %1902 = vmatprep.subr.bf16.mxu0 0
        %1903 = vmatpush1.bf16.msra.mxu0 %v837
        %1904 = vmatprep.subr.bf16.mxu0 0
        %1905 = vmatpush1.bf16.msra.mxu0 %v836
        %1906 = vmatprep.subr.bf16.mxu0 0
        %1907 = vmatpush1.bf16.msra.mxu0 %v835
        %1908 = vmatprep.subr.bf16.mxu0 0
        %1909 = vmatpush1.bf16.msra.mxu0 %v834
        %1910 = vmatprep.subr.bf16.mxu0 0
        %1911 = vmatpush2.bf16.msra.mxu0 %v849
        %1912 = vmatprep.subr.bf16.mxu0 0
        %1913 = vmatpush2.bf16.msra.mxu0 %v848
        %1914 = vmatprep.subr.bf16.mxu0 0
        %1915 = vmatpush2.bf16.msra.mxu0 %v847
        %1916 = vmatprep.subr.bf16.mxu0 0
        %1917 = vmatpush2.bf16.msra.mxu0 %v846
        %1918 = vmatprep.subr.bf16.mxu0 0
        %1919 = vmatpush2.bf16.msra.mxu0 %v845
        %1920 = vmatprep.subr.bf16.mxu0 0
        %1921 = vmatpush2.bf16.msra.mxu0 %v844
        %1922 = vmatprep.subr.bf16.mxu0 0
        %1923 = vmatpush2.bf16.msra.mxu0 %v843
        %1924 = vmatprep.subr.bf16.mxu0 0
        %1925 = vmatpush2.bf16.msra.mxu0 %v842
        %1926 = vmatprep.mubr.bf16.mxu0 %v1879
        %1927 = vmatmul.mubr.bf16.gmra.mxu0 %v1878
        %v1928 = vpop.f32.mrf.mxu0
        %v1929 = vadd.f32 0.0, %v1928
        %v1930 = vpop.f32.mrf.mxu0
        %v1931 = vpop.f32.mrf.mxu0
        %v1932 = vadd.f32 0.0, %v1931
        %v1933 = vpop.f32.mrf.mxu0
        %1934 = vmatprep.mubr.bf16.mxu0 %v1881
        %1935 = vmatmul.mubr.bf16.gmra.mxu0 %v1880
        %v1936 = vpop.f32.mrf.mxu0
        %v1937 = vadd.f32 0.0, %v1936
        %v1938 = vpop.f32.mrf.mxu0
        %v1939 = vpop.f32.mrf.mxu0
        %v1940 = vadd.f32 0.0, %v1939
        %v1941 = vpop.f32.mrf.mxu0
        %1942 = vmatprep.mubr.bf16.mxu0 %v1883
        %1943 = vmatmul.mubr.bf16.gmra.mxu0 %v1882
        %v1944 = vpop.f32.mrf.mxu0
        %v1945 = vadd.f32 0.0, %v1944
        %v1946 = vpop.f32.mrf.mxu0
        %v1947 = vpop.f32.mrf.mxu0
        %v1948 = vadd.f32 0.0, %v1947
        %v1949 = vpop.f32.mrf.mxu0
        %1950 = vmatprep.mubr.bf16.mxu0 %v1885
        %1951 = vmatmul.mubr.bf16.gmra.mxu0 %v1884
        %v1952 = vpop.f32.mrf.mxu0
        %v1953 = vadd.f32 0.0, %v1952
        %v1954 = vpop.f32.mrf.mxu0
        %v1955 = vpop.f32.mrf.mxu0
        %v1956 = vadd.f32 0.0, %v1955
        %v1957 = vpop.f32.mrf.mxu0
        %1958 = vdwg.mxu0
        %v1959 = vpack.c.bf16 %v1932, %v1929
        %v1960 = vpack.c.bf16 %v1940, %v1937
        %v1961 = vpack.c.bf16 %v1948, %v1945
        %v1962 = vpack.c.bf16 %v1956, %v1953
        %s1963 = scalar_lea.vmem [#allocation5], 10
        %v1964 = vld [vmem:[%s1963] sm:$0x3]
        %v1966 = vsel %vm1056, %v1959, 0
        %v1969 = vsel %vm1056, %v1960, 0
        %v1972 = vsel %vm1056, %v1961, 0
        %v1975 = vsel %vm1056, %v1962, 0
        %v1978 = vand.u32 %v1964, %v1072
        %1980 = vmatprep.subr.bf16.mxu0 0
        %1981 = vmatpush1.bf16.msra.mxu0 0
        %1982 = vmatprep.subr.bf16.mxu0 0
        %1983 = vmatpush1.bf16.msra.mxu0 0
        %1984 = vmatprep.subr.bf16.mxu0 0
        %1985 = vmatpush1.bf16.msra.mxu0 0
        %1986 = vmatprep.subr.bf16.mxu0 0
        %1987 = vmatpush1.bf16.msra.mxu0 0
        %1988 = vmatprep.subr.bf16.mxu0 0
        %1989 = vmatpush1.bf16.msra.mxu0 0
        %1990 = vmatprep.subr.bf16.mxu0 0
        %1991 = vmatpush1.bf16.msra.mxu0 0
        %1992 = vmatprep.subr.bf16.mxu0 0
        %1993 = vmatpush1.bf16.msra.mxu0 0
        %1994 = vmatprep.subr.bf16.mxu0 0
        %1995 = vmatpush1.bf16.msra.mxu0 %v1978
        %1996 = vmatprep.subr.bf16.mxu0 0
        %1997 = vmatpush2.bf16.msra.mxu0 0
        %1998 = vmatprep.subr.bf16.mxu0 0
        %1999 = vmatpush2.bf16.msra.mxu0 0
        %2000 = vmatprep.subr.bf16.mxu0 0
        %2001 = vmatpush2.bf16.msra.mxu0 0
        %2002 = vmatprep.subr.bf16.mxu0 0
        %2003 = vmatpush2.bf16.msra.mxu0 0
        %2004 = vmatprep.subr.bf16.mxu0 0
        %2005 = vmatpush2.bf16.msra.mxu0 0
        %2006 = vmatprep.subr.bf16.mxu0 0
        %2007 = vmatpush2.bf16.msra.mxu0 0
        %2008 = vmatprep.subr.bf16.mxu0 0
        %2009 = vmatpush2.bf16.msra.mxu0 0
        %2010 = vmatprep.subr.bf16.mxu0 0
        %2011 = vmatpush2.bf16.msra.mxu0 0
        %2012 = vmatprep.mubr.bf16.mxu0 0
        %2013 = vmatmul.mubr.bf16.gmra.mxu0 %v1966
        %v2014 = vpop.f32.mrf.mxu0
        %v2015 = vadd.f32 0.0, %v2014
        %v2016 = vpop.f32.mrf.mxu0
        %v2017 = vpop.f32.mrf.mxu0
        %v2018 = vadd.f32 0.0, %v2017
        %v2019 = vpop.f32.mrf.mxu0
        %2020 = vmatprep.mubr.bf16.mxu0 0
        %2021 = vmatmul.mubr.bf16.gmra.mxu0 %v1969
        %v2022 = vpop.f32.mrf.mxu0
        %v2023 = vadd.f32 0.0, %v2022
        %v2024 = vpop.f32.mrf.mxu0
        %v2025 = vpop.f32.mrf.mxu0
        %v2026 = vadd.f32 0.0, %v2025
        %v2027 = vpop.f32.mrf.mxu0
        %2028 = vmatprep.mubr.bf16.mxu0 0
        %2029 = vmatmul.mubr.bf16.gmra.mxu0 %v1972
        %v2030 = vpop.f32.mrf.mxu0
        %v2031 = vadd.f32 0.0, %v2030
        %v2032 = vpop.f32.mrf.mxu0
        %v2033 = vpop.f32.mrf.mxu0
        %v2034 = vadd.f32 0.0, %v2033
        %v2035 = vpop.f32.mrf.mxu0
        %2036 = vmatprep.mubr.bf16.mxu0 0
        %2037 = vmatmul.mubr.bf16.gmra.mxu0 %v1975
        %v2038 = vpop.f32.mrf.mxu0
        %v2039 = vadd.f32 0.0, %v2038
        %v2040 = vpop.f32.mrf.mxu0
        %v2041 = vpop.f32.mrf.mxu0
        %v2042 = vadd.f32 0.0, %v2041
        %v2043 = vpop.f32.mrf.mxu0
        %2044 = vdwg.mxu0
        %v2045 = vadd.f32 %v1837, %v2015
        %v2046 = vadd.f32 %v1838, %v2018
        %v2047 = vadd.f32 %v1839, %v2023
        %v2048 = vadd.f32 %v1840, %v2026
        %v2049 = vadd.f32 %v1841, %v2031
        %v2050 = vadd.f32 %v1842, %v2034
        %v2051 = vadd.f32 %v1843, %v2039
        %v2052 = vadd.f32 %v1844, %v2042
        %s2053 = scalar_lea.vmem [#allocation3], 384
        %v2054 = vld [vmem:[%s2053] sm:$0xff]
        %v2055 = vld [vmem:[%s2053 + $0x8] sm:$0xff]
        %v2056 = vld [vmem:[%s2053 + $0x10] sm:$0xff]
        %v2057 = vld [vmem:[%s2053 + $0x18] sm:$0xff]
        %v2058 = vld [vmem:[%s2053 + $0x20] sm:$0xff]
        %v2059 = vld [vmem:[%s2053 + $0x28] sm:$0xff]
        %v2060 = vld [vmem:[%s2053 + $0x30] sm:$0xff]
        %v2061 = vld [vmem:[%s2053 + $0x38] sm:$0xff]
        %v2070 = vunpack.c.l.b16 %v2054
        %v2071 = vunpack.c.h.b16 %v2054
        %v2072 = vunpack.c.l.b16 %v2055
        %v2073 = vunpack.c.h.b16 %v2055
        %v2074 = vunpack.c.l.b16 %v2056
        %v2075 = vunpack.c.h.b16 %v2056
        %v2076 = vunpack.c.l.b16 %v2057
        %v2077 = vunpack.c.h.b16 %v2057
        %v2078 = vunpack.c.l.b16 %v2058
        %v2079 = vunpack.c.h.b16 %v2058
        %v2080 = vunpack.c.l.b16 %v2059
        %v2081 = vunpack.c.h.b16 %v2059
        %v2082 = vunpack.c.l.b16 %v2060
        %v2083 = vunpack.c.h.b16 %v2060
        %v2084 = vunpack.c.l.b16 %v2061
        %v2085 = vunpack.c.h.b16 %v2061
        %v2086 = vpack.c.b16 %v2072, %v2070
        %v2087 = vpack.c.b16 %v2073, %v2071
        %v2088 = vpack.c.b16 %v2076, %v2074
        %v2089 = vpack.c.b16 %v2077, %v2075
        %v2090 = vpack.c.b16 %v2080, %v2078
        %v2091 = vpack.c.b16 %v2081, %v2079
        %v2092 = vpack.c.b16 %v2084, %v2082
        %v2093 = vpack.c.b16 %v2085, %v2083
        %2102 = vmatprep.subr.bf16.mxu0 0
        %2103 = vmatpush1.bf16.msra.mxu0 %v841
        %2104 = vmatprep.subr.bf16.mxu0 0
        %2105 = vmatpush1.bf16.msra.mxu0 %v840
        %2106 = vmatprep.subr.bf16.mxu0 0
        %2107 = vmatpush1.bf16.msra.mxu0 %v839
        %2108 = vmatprep.subr.bf16.mxu0 0
        %2109 = vmatpush1.bf16.msra.mxu0 %v838
        %2110 = vmatprep.subr.bf16.mxu0 0
        %2111 = vmatpush1.bf16.msra.mxu0 %v837
        %2112 = vmatprep.subr.bf16.mxu0 0
        %2113 = vmatpush1.bf16.msra.mxu0 %v836
        %2114 = vmatprep.subr.bf16.mxu0 0
        %2115 = vmatpush1.bf16.msra.mxu0 %v835
        %2116 = vmatprep.subr.bf16.mxu0 0
        %2117 = vmatpush1.bf16.msra.mxu0 %v834
        %2118 = vmatprep.subr.bf16.mxu0 0
        %2119 = vmatpush2.bf16.msra.mxu0 %v849
        %2120 = vmatprep.subr.bf16.mxu0 0
        %2121 = vmatpush2.bf16.msra.mxu0 %v848
        %2122 = vmatprep.subr.bf16.mxu0 0
        %2123 = vmatpush2.bf16.msra.mxu0 %v847
        %2124 = vmatprep.subr.bf16.mxu0 0
        %2125 = vmatpush2.bf16.msra.mxu0 %v846
        %2126 = vmatprep.subr.bf16.mxu0 0
        %2127 = vmatpush2.bf16.msra.mxu0 %v845
        %2128 = vmatprep.subr.bf16.mxu0 0
        %2129 = vmatpush2.bf16.msra.mxu0 %v844
        %2130 = vmatprep.subr.bf16.mxu0 0
        %2131 = vmatpush2.bf16.msra.mxu0 %v843
        %2132 = vmatprep.subr.bf16.mxu0 0
        %2133 = vmatpush2.bf16.msra.mxu0 %v842
        %2134 = vmatprep.mubr.bf16.mxu0 %v2087
        %2135 = vmatmul.mubr.bf16.gmra.mxu0 %v2086
        %v2136 = vpop.f32.mrf.mxu0
        %v2137 = vadd.f32 0.0, %v2136
        %v2138 = vpop.f32.mrf.mxu0
        %v2139 = vpop.f32.mrf.mxu0
        %v2140 = vadd.f32 0.0, %v2139
        %v2141 = vpop.f32.mrf.mxu0
        %2142 = vmatprep.mubr.bf16.mxu0 %v2089
        %2143 = vmatmul.mubr.bf16.gmra.mxu0 %v2088
        %v2144 = vpop.f32.mrf.mxu0
        %v2145 = vadd.f32 0.0, %v2144
        %v2146 = vpop.f32.mrf.mxu0
        %v2147 = vpop.f32.mrf.mxu0
        %v2148 = vadd.f32 0.0, %v2147
        %v2149 = vpop.f32.mrf.mxu0
        %2150 = vmatprep.mubr.bf16.mxu0 %v2091
        %2151 = vmatmul.mubr.bf16.gmra.mxu0 %v2090
        %v2152 = vpop.f32.mrf.mxu0
        %v2153 = vadd.f32 0.0, %v2152
        %v2154 = vpop.f32.mrf.mxu0
        %v2155 = vpop.f32.mrf.mxu0
        %v2156 = vadd.f32 0.0, %v2155
        %v2157 = vpop.f32.mrf.mxu0
        %2158 = vmatprep.mubr.bf16.mxu0 %v2093
        %2159 = vmatmul.mubr.bf16.gmra.mxu0 %v2092
        %v2160 = vpop.f32.mrf.mxu0
        %v2161 = vadd.f32 0.0, %v2160
        %v2162 = vpop.f32.mrf.mxu0
        %v2163 = vpop.f32.mrf.mxu0
        %v2164 = vadd.f32 0.0, %v2163
        %v2165 = vpop.f32.mrf.mxu0
        %2166 = vdwg.mxu0
        %v2167 = vpack.c.bf16 %v2140, %v2137
        %v2168 = vpack.c.bf16 %v2148, %v2145
        %v2169 = vpack.c.bf16 %v2156, %v2153
        %v2170 = vpack.c.bf16 %v2164, %v2161
        %s2171 = scalar_lea.vmem [#allocation5], 12
        %v2172 = vld [vmem:[%s2171] sm:$0x3]
        %v2174 = vsel %vm1056, %v2167, 0
        %v2177 = vsel %vm1056, %v2168, 0
        %v2180 = vsel %vm1056, %v2169, 0
        %v2183 = vsel %vm1056, %v2170, 0
        %v2186 = vand.u32 %v2172, %v1072
        %2188 = vmatprep.subr.bf16.mxu0 0
        %2189 = vmatpush1.bf16.msra.mxu0 0
        %2190 = vmatprep.subr.bf16.mxu0 0
        %2191 = vmatpush1.bf16.msra.mxu0 0
        %2192 = vmatprep.subr.bf16.mxu0 0
        %2193 = vmatpush1.bf16.msra.mxu0 0
        %2194 = vmatprep.subr.bf16.mxu0 0
        %2195 = vmatpush1.bf16.msra.mxu0 0
        %2196 = vmatprep.subr.bf16.mxu0 0
        %2197 = vmatpush1.bf16.msra.mxu0 0
        %2198 = vmatprep.subr.bf16.mxu0 0
        %2199 = vmatpush1.bf16.msra.mxu0 0
        %2200 = vmatprep.subr.bf16.mxu0 0
        %2201 = vmatpush1.bf16.msra.mxu0 0
        %2202 = vmatprep.subr.bf16.mxu0 0
        %2203 = vmatpush1.bf16.msra.mxu0 %v2186
        %2204 = vmatprep.subr.bf16.mxu0 0
        %2205 = vmatpush2.bf16.msra.mxu0 0
        %2206 = vmatprep.subr.bf16.mxu0 0
        %2207 = vmatpush2.bf16.msra.mxu0 0
        %2208 = vmatprep.subr.bf16.mxu0 0
        %2209 = vmatpush2.bf16.msra.mxu0 0
        %2210 = vmatprep.subr.bf16.mxu0 0
        %2211 = vmatpush2.bf16.msra.mxu0 0
        %2212 = vmatprep.subr.bf16.mxu0 0
        %2213 = vmatpush2.bf16.msra.mxu0 0
        %2214 = vmatprep.subr.bf16.mxu0 0
        %2215 = vmatpush2.bf16.msra.mxu0 0
        %2216 = vmatprep.subr.bf16.mxu0 0
        %2217 = vmatpush2.bf16.msra.mxu0 0
        %2218 = vmatprep.subr.bf16.mxu0 0
        %2219 = vmatpush2.bf16.msra.mxu0 0
        %2220 = vmatprep.mubr.bf16.mxu0 0
        %2221 = vmatmul.mubr.bf16.gmra.mxu0 %v2174
        %v2222 = vpop.f32.mrf.mxu0
        %v2223 = vadd.f32 0.0, %v2222
        %v2224 = vpop.f32.mrf.mxu0
        %v2225 = vpop.f32.mrf.mxu0
        %v2226 = vadd.f32 0.0, %v2225
        %v2227 = vpop.f32.mrf.mxu0
        %2228 = vmatprep.mubr.bf16.mxu0 0
        %2229 = vmatmul.mubr.bf16.gmra.mxu0 %v2177
        %v2230 = vpop.f32.mrf.mxu0
        %v2231 = vadd.f32 0.0, %v2230
        %v2232 = vpop.f32.mrf.mxu0
        %v2233 = vpop.f32.mrf.mxu0
        %v2234 = vadd.f32 0.0, %v2233
        %v2235 = vpop.f32.mrf.mxu0
        %2236 = vmatprep.mubr.bf16.mxu0 0
        %2237 = vmatmul.mubr.bf16.gmra.mxu0 %v2180
        %v2238 = vpop.f32.mrf.mxu0
        %v2239 = vadd.f32 0.0, %v2238
        %v2240 = vpop.f32.mrf.mxu0
        %v2241 = vpop.f32.mrf.mxu0
        %v2242 = vadd.f32 0.0, %v2241
        %v2243 = vpop.f32.mrf.mxu0
        %2244 = vmatprep.mubr.bf16.mxu0 0
        %2245 = vmatmul.mubr.bf16.gmra.mxu0 %v2183
        %v2246 = vpop.f32.mrf.mxu0
        %v2247 = vadd.f32 0.0, %v2246
        %v2248 = vpop.f32.mrf.mxu0
        %v2249 = vpop.f32.mrf.mxu0
        %v2250 = vadd.f32 0.0, %v2249
        %v2251 = vpop.f32.mrf.mxu0
        %2252 = vdwg.mxu0
        %v2253 = vadd.f32 %v2045, %v2223
        %v2254 = vadd.f32 %v2046, %v2226
        %v2255 = vadd.f32 %v2047, %v2231
        %v2256 = vadd.f32 %v2048, %v2234
        %v2257 = vadd.f32 %v2049, %v2239
        %v2258 = vadd.f32 %v2050, %v2242
        %v2259 = vadd.f32 %v2051, %v2247
        %v2260 = vadd.f32 %v2052, %v2250
        %s2261 = scalar_lea.vmem [#allocation3], 448
        %v2262 = vld [vmem:[%s2261] sm:$0xff]
        %v2263 = vld [vmem:[%s2261 + $0x8] sm:$0xff]
        %v2264 = vld [vmem:[%s2261 + $0x10] sm:$0xff]
        %v2265 = vld [vmem:[%s2261 + $0x18] sm:$0xff]
        %v2266 = vld [vmem:[%s2261 + $0x20] sm:$0xff]
        %v2267 = vld [vmem:[%s2261 + $0x28] sm:$0xff]
        %v2268 = vld [vmem:[%s2261 + $0x30] sm:$0xff]
        %v2269 = vld [vmem:[%s2261 + $0x38] sm:$0xff]
        %v2278 = vunpack.c.l.b16 %v2262
        %v2279 = vunpack.c.h.b16 %v2262
        %v2280 = vunpack.c.l.b16 %v2263
        %v2281 = vunpack.c.h.b16 %v2263
        %v2282 = vunpack.c.l.b16 %v2264
        %v2283 = vunpack.c.h.b16 %v2264
        %v2284 = vunpack.c.l.b16 %v2265
        %v2285 = vunpack.c.h.b16 %v2265
        %v2286 = vunpack.c.l.b16 %v2266
        %v2287 = vunpack.c.h.b16 %v2266
        %v2288 = vunpack.c.l.b16 %v2267
        %v2289 = vunpack.c.h.b16 %v2267
        %v2290 = vunpack.c.l.b16 %v2268
        %v2291 = vunpack.c.h.b16 %v2268
        %v2292 = vunpack.c.l.b16 %v2269
        %v2293 = vunpack.c.h.b16 %v2269
        %v2294 = vpack.c.b16 %v2280, %v2278
        %v2295 = vpack.c.b16 %v2281, %v2279
        %v2296 = vpack.c.b16 %v2284, %v2282
        %v2297 = vpack.c.b16 %v2285, %v2283
        %v2298 = vpack.c.b16 %v2288, %v2286
        %v2299 = vpack.c.b16 %v2289, %v2287
        %v2300 = vpack.c.b16 %v2292, %v2290
        %v2301 = vpack.c.b16 %v2293, %v2291
        %2310 = vmatprep.subr.bf16.mxu0 0
        %2311 = vmatpush1.bf16.msra.mxu0 %v841
        %2312 = vmatprep.subr.bf16.mxu0 0
        %2313 = vmatpush1.bf16.msra.mxu0 %v840
        %2314 = vmatprep.subr.bf16.mxu0 0
        %2315 = vmatpush1.bf16.msra.mxu0 %v839
        %2316 = vmatprep.subr.bf16.mxu0 0
        %2317 = vmatpush1.bf16.msra.mxu0 %v838
        %2318 = vmatprep.subr.bf16.mxu0 0
        %2319 = vmatpush1.bf16.msra.mxu0 %v837
        %2320 = vmatprep.subr.bf16.mxu0 0
        %2321 = vmatpush1.bf16.msra.mxu0 %v836
        %2322 = vmatprep.subr.bf16.mxu0 0
        %2323 = vmatpush1.bf16.msra.mxu0 %v835
        %2324 = vmatprep.subr.bf16.mxu0 0
        %2325 = vmatpush1.bf16.msra.mxu0 %v834
        %2326 = vmatprep.subr.bf16.mxu0 0
        %2327 = vmatpush2.bf16.msra.mxu0 %v849
        %2328 = vmatprep.subr.bf16.mxu0 0
        %2329 = vmatpush2.bf16.msra.mxu0 %v848
        %2330 = vmatprep.subr.bf16.mxu0 0
        %2331 = vmatpush2.bf16.msra.mxu0 %v847
        %2332 = vmatprep.subr.bf16.mxu0 0
        %2333 = vmatpush2.bf16.msra.mxu0 %v846
        %2334 = vmatprep.subr.bf16.mxu0 0
        %2335 = vmatpush2.bf16.msra.mxu0 %v845
        %2336 = vmatprep.subr.bf16.mxu0 0
        %2337 = vmatpush2.bf16.msra.mxu0 %v844
        %2338 = vmatprep.subr.bf16.mxu0 0
        %2339 = vmatpush2.bf16.msra.mxu0 %v843
        %2340 = vmatprep.subr.bf16.mxu0 0
        %2341 = vmatpush2.bf16.msra.mxu0 %v842
        %2342 = vmatprep.mubr.bf16.mxu0 %v2295
        %2343 = vmatmul.mubr.bf16.gmra.mxu0 %v2294
        %v2344 = vpop.f32.mrf.mxu0
        %v2345 = vadd.f32 0.0, %v2344
        %v2346 = vpop.f32.mrf.mxu0
        %v2347 = vpop.f32.mrf.mxu0
        %v2348 = vadd.f32 0.0, %v2347
        %v2349 = vpop.f32.mrf.mxu0
        %2350 = vmatprep.mubr.bf16.mxu0 %v2297
        %2351 = vmatmul.mubr.bf16.gmra.mxu0 %v2296
        %v2352 = vpop.f32.mrf.mxu0
        %v2353 = vadd.f32 0.0, %v2352
        %v2354 = vpop.f32.mrf.mxu0
        %v2355 = vpop.f32.mrf.mxu0
        %v2356 = vadd.f32 0.0, %v2355
        %v2357 = vpop.f32.mrf.mxu0
        %2358 = vmatprep.mubr.bf16.mxu0 %v2299
        %2359 = vmatmul.mubr.bf16.gmra.mxu0 %v2298
        %v2360 = vpop.f32.mrf.mxu0
        %v2361 = vadd.f32 0.0, %v2360
        %v2362 = vpop.f32.mrf.mxu0
        %v2363 = vpop.f32.mrf.mxu0
        %v2364 = vadd.f32 0.0, %v2363
        %v2365 = vpop.f32.mrf.mxu0
        %2366 = vmatprep.mubr.bf16.mxu0 %v2301
        %2367 = vmatmul.mubr.bf16.gmra.mxu0 %v2300
        %v2368 = vpop.f32.mrf.mxu0
        %v2369 = vadd.f32 0.0, %v2368
        %v2370 = vpop.f32.mrf.mxu0
        %v2371 = vpop.f32.mrf.mxu0
        %v2372 = vadd.f32 0.0, %v2371
        %v2373 = vpop.f32.mrf.mxu0
        %2374 = vdwg.mxu0
        %v2375 = vpack.c.bf16 %v2348, %v2345
        %v2376 = vpack.c.bf16 %v2356, %v2353
        %v2377 = vpack.c.bf16 %v2364, %v2361
        %v2378 = vpack.c.bf16 %v2372, %v2369
        %s2379 = scalar_lea.vmem [#allocation5], 14
        %v2380 = vld [vmem:[%s2379] sm:$0x3]
        %v2382 = vsel %vm1056, %v2375, 0
        %v2385 = vsel %vm1056, %v2376, 0
        %v2388 = vsel %vm1056, %v2377, 0
        %v2391 = vsel %vm1056, %v2378, 0
        %v2394 = vand.u32 %v2380, %v1072
        %2396 = vmatprep.subr.bf16.mxu0 0
        %2397 = vmatpush1.bf16.msra.mxu0 0
        %2398 = vmatprep.subr.bf16.mxu0 0
        %2399 = vmatpush1.bf16.msra.mxu0 0
        %2400 = vmatprep.subr.bf16.mxu0 0
        %2401 = vmatpush1.bf16.msra.mxu0 0
        %2402 = vmatprep.subr.bf16.mxu0 0
        %2403 = vmatpush1.bf16.msra.mxu0 0
        %2404 = vmatprep.subr.bf16.mxu0 0
        %2405 = vmatpush1.bf16.msra.mxu0 0
        %2406 = vmatprep.subr.bf16.mxu0 0
        %2407 = vmatpush1.bf16.msra.mxu0 0
        %2408 = vmatprep.subr.bf16.mxu0 0
        %2409 = vmatpush1.bf16.msra.mxu0 0
        %2410 = vmatprep.subr.bf16.mxu0 0
        %2411 = vmatpush1.bf16.msra.mxu0 %v2394
        %2412 = vmatprep.subr.bf16.mxu0 0
        %2413 = vmatpush2.bf16.msra.mxu0 0
        %2414 = vmatprep.subr.bf16.mxu0 0
        %2415 = vmatpush2.bf16.msra.mxu0 0
        %2416 = vmatprep.subr.bf16.mxu0 0
        %2417 = vmatpush2.bf16.msra.mxu0 0
        %2418 = vmatprep.subr.bf16.mxu0 0
        %2419 = vmatpush2.bf16.msra.mxu0 0
        %2420 = vmatprep.subr.bf16.mxu0 0
        %2421 = vmatpush2.bf16.msra.mxu0 0
        %2422 = vmatprep.subr.bf16.mxu0 0
        %2423 = vmatpush2.bf16.msra.mxu0 0
        %2424 = vmatprep.subr.bf16.mxu0 0
        %2425 = vmatpush2.bf16.msra.mxu0 0
        %2426 = vmatprep.subr.bf16.mxu0 0
        %2427 = vmatpush2.bf16.msra.mxu0 0
        %2428 = vmatprep.mubr.bf16.mxu0 0
        %2429 = vmatmul.mubr.bf16.gmra.mxu0 %v2382
        %v2430 = vpop.f32.mrf.mxu0
        %v2431 = vadd.f32 0.0, %v2430
        %v2432 = vpop.f32.mrf.mxu0
        %v2433 = vpop.f32.mrf.mxu0
        %v2434 = vadd.f32 0.0, %v2433
        %v2435 = vpop.f32.mrf.mxu0
        %2436 = vmatprep.mubr.bf16.mxu0 0
        %2437 = vmatmul.mubr.bf16.gmra.mxu0 %v2385
        %v2438 = vpop.f32.mrf.mxu0
        %v2439 = vadd.f32 0.0, %v2438
        %v2440 = vpop.f32.mrf.mxu0
        %v2441 = vpop.f32.mrf.mxu0
        %v2442 = vadd.f32 0.0, %v2441
        %v2443 = vpop.f32.mrf.mxu0
        %2444 = vmatprep.mubr.bf16.mxu0 0
        %2445 = vmatmul.mubr.bf16.gmra.mxu0 %v2388
        %v2446 = vpop.f32.mrf.mxu0
        %v2447 = vadd.f32 0.0, %v2446
        %v2448 = vpop.f32.mrf.mxu0
        %v2449 = vpop.f32.mrf.mxu0
        %v2450 = vadd.f32 0.0, %v2449
        %v2451 = vpop.f32.mrf.mxu0
        %2452 = vmatprep.mubr.bf16.mxu0 0
        %2453 = vmatmul.mubr.bf16.gmra.mxu0 %v2391
        %v2454 = vpop.f32.mrf.mxu0
        %v2455 = vadd.f32 0.0, %v2454
        %v2456 = vpop.f32.mrf.mxu0
        %v2457 = vpop.f32.mrf.mxu0
        %v2458 = vadd.f32 0.0, %v2457
        %v2459 = vpop.f32.mrf.mxu0
        %2460 = vdwg.mxu0
        %v2461 = vadd.f32 %v2253, %v2431
        %v2462 = vadd.f32 %v2254, %v2434
        %v2463 = vadd.f32 %v2255, %v2439
        %v2464 = vadd.f32 %v2256, %v2442
        %v2465 = vadd.f32 %v2257, %v2447
        %v2466 = vadd.f32 %v2258, %v2450
        %v2467 = vadd.f32 %v2259, %v2455
        %v2468 = vadd.f32 %v2260, %v2458
        %s2469 = scalar_lea.vmem [#allocation3], 512
        %v2470 = vld [vmem:[%s2469] sm:$0xff]
        %v2471 = vld [vmem:[%s2469 + $0x8] sm:$0xff]
        %v2472 = vld [vmem:[%s2469 + $0x10] sm:$0xff]
        %v2473 = vld [vmem:[%s2469 + $0x18] sm:$0xff]
        %v2474 = vld [vmem:[%s2469 + $0x20] sm:$0xff]
        %v2475 = vld [vmem:[%s2469 + $0x28] sm:$0xff]
        %v2476 = vld [vmem:[%s2469 + $0x30] sm:$0xff]
        %v2477 = vld [vmem:[%s2469 + $0x38] sm:$0xff]
        %v2486 = vunpack.c.l.b16 %v2470
        %v2487 = vunpack.c.h.b16 %v2470
        %v2488 = vunpack.c.l.b16 %v2471
        %v2489 = vunpack.c.h.b16 %v2471
        %v2490 = vunpack.c.l.b16 %v2472
        %v2491 = vunpack.c.h.b16 %v2472
        %v2492 = vunpack.c.l.b16 %v2473
        %v2493 = vunpack.c.h.b16 %v2473
        %v2494 = vunpack.c.l.b16 %v2474
        %v2495 = vunpack.c.h.b16 %v2474
        %v2496 = vunpack.c.l.b16 %v2475
        %v2497 = vunpack.c.h.b16 %v2475
        %v2498 = vunpack.c.l.b16 %v2476
        %v2499 = vunpack.c.h.b16 %v2476
        %v2500 = vunpack.c.l.b16 %v2477
        %v2501 = vunpack.c.h.b16 %v2477
        %v2502 = vpack.c.b16 %v2488, %v2486
        %v2503 = vpack.c.b16 %v2489, %v2487
        %v2504 = vpack.c.b16 %v2492, %v2490
        %v2505 = vpack.c.b16 %v2493, %v2491
        %v2506 = vpack.c.b16 %v2496, %v2494
        %v2507 = vpack.c.b16 %v2497, %v2495
        %v2508 = vpack.c.b16 %v2500, %v2498
        %v2509 = vpack.c.b16 %v2501, %v2499
        %2518 = vmatprep.subr.bf16.mxu0 0
        %2519 = vmatpush1.bf16.msra.mxu0 %v841
        %2520 = vmatprep.subr.bf16.mxu0 0
        %2521 = vmatpush1.bf16.msra.mxu0 %v840
        %2522 = vmatprep.subr.bf16.mxu0 0
        %2523 = vmatpush1.bf16.msra.mxu0 %v839
        %2524 = vmatprep.subr.bf16.mxu0 0
        %2525 = vmatpush1.bf16.msra.mxu0 %v838
        %2526 = vmatprep.subr.bf16.mxu0 0
        %2527 = vmatpush1.bf16.msra.mxu0 %v837
        %2528 = vmatprep.subr.bf16.mxu0 0
        %2529 = vmatpush1.bf16.msra.mxu0 %v836
        %2530 = vmatprep.subr.bf16.mxu0 0
        %2531 = vmatpush1.bf16.msra.mxu0 %v835
        %2532 = vmatprep.subr.bf16.mxu0 0
        %2533 = vmatpush1.bf16.msra.mxu0 %v834
        %2534 = vmatprep.subr.bf16.mxu0 0
        %2535 = vmatpush2.bf16.msra.mxu0 %v849
        %2536 = vmatprep.subr.bf16.mxu0 0
        %2537 = vmatpush2.bf16.msra.mxu0 %v848
        %2538 = vmatprep.subr.bf16.mxu0 0
        %2539 = vmatpush2.bf16.msra.mxu0 %v847
        %2540 = vmatprep.subr.bf16.mxu0 0
        %2541 = vmatpush2.bf16.msra.mxu0 %v846
        %2542 = vmatprep.subr.bf16.mxu0 0
        %2543 = vmatpush2.bf16.msra.mxu0 %v845
        %2544 = vmatprep.subr.bf16.mxu0 0
        %2545 = vmatpush2.bf16.msra.mxu0 %v844
        %2546 = vmatprep.subr.bf16.mxu0 0
        %2547 = vmatpush2.bf16.msra.mxu0 %v843
        %2548 = vmatprep.subr.bf16.mxu0 0
        %2549 = vmatpush2.bf16.msra.mxu0 %v842
        %2550 = vmatprep.mubr.bf16.mxu0 %v2503
        %2551 = vmatmul.mubr.bf16.gmra.mxu0 %v2502
        %v2552 = vpop.f32.mrf.mxu0
        %v2553 = vadd.f32 0.0, %v2552
        %v2554 = vpop.f32.mrf.mxu0
        %v2555 = vpop.f32.mrf.mxu0
        %v2556 = vadd.f32 0.0, %v2555
        %v2557 = vpop.f32.mrf.mxu0
        %2558 = vmatprep.mubr.bf16.mxu0 %v2505
        %2559 = vmatmul.mubr.bf16.gmra.mxu0 %v2504
        %v2560 = vpop.f32.mrf.mxu0
        %v2561 = vadd.f32 0.0, %v2560
        %v2562 = vpop.f32.mrf.mxu0
        %v2563 = vpop.f32.mrf.mxu0
        %v2564 = vadd.f32 0.0, %v2563
        %v2565 = vpop.f32.mrf.mxu0
        %2566 = vmatprep.mubr.bf16.mxu0 %v2507
        %2567 = vmatmul.mubr.bf16.gmra.mxu0 %v2506
        %v2568 = vpop.f32.mrf.mxu0
        %v2569 = vadd.f32 0.0, %v2568
        %v2570 = vpop.f32.mrf.mxu0
        %v2571 = vpop.f32.mrf.mxu0
        %v2572 = vadd.f32 0.0, %v2571
        %v2573 = vpop.f32.mrf.mxu0
        %2574 = vmatprep.mubr.bf16.mxu0 %v2509
        %2575 = vmatmul.mubr.bf16.gmra.mxu0 %v2508
        %v2576 = vpop.f32.mrf.mxu0
        %v2577 = vadd.f32 0.0, %v2576
        %v2578 = vpop.f32.mrf.mxu0
        %v2579 = vpop.f32.mrf.mxu0
        %v2580 = vadd.f32 0.0, %v2579
        %v2581 = vpop.f32.mrf.mxu0
        %2582 = vdwg.mxu0
        %v2583 = vpack.c.bf16 %v2556, %v2553
        %v2584 = vpack.c.bf16 %v2564, %v2561
        %v2585 = vpack.c.bf16 %v2572, %v2569
        %v2586 = vpack.c.bf16 %v2580, %v2577
        %s2587 = scalar_lea.vmem [#allocation5], 16
        %v2588 = vld [vmem:[%s2587] sm:$0x3]
        %v2590 = vsel %vm1056, %v2583, 0
        %v2593 = vsel %vm1056, %v2584, 0
        %v2596 = vsel %vm1056, %v2585, 0
        %v2599 = vsel %vm1056, %v2586, 0
        %v2602 = vand.u32 %v2588, %v1072
        %2604 = vmatprep.subr.bf16.mxu0 0
        %2605 = vmatpush1.bf16.msra.mxu0 0
        %2606 = vmatprep.subr.bf16.mxu0 0
        %2607 = vmatpush1.bf16.msra.mxu0 0
        %2608 = vmatprep.subr.bf16.mxu0 0
        %2609 = vmatpush1.bf16.msra.mxu0 0
        %2610 = vmatprep.subr.bf16.mxu0 0
        %2611 = vmatpush1.bf16.msra.mxu0 0
        %2612 = vmatprep.subr.bf16.mxu0 0
        %2613 = vmatpush1.bf16.msra.mxu0 0
        %2614 = vmatprep.subr.bf16.mxu0 0
        %2615 = vmatpush1.bf16.msra.mxu0 0
        %2616 = vmatprep.subr.bf16.mxu0 0
        %2617 = vmatpush1.bf16.msra.mxu0 0
        %2618 = vmatprep.subr.bf16.mxu0 0
        %2619 = vmatpush1.bf16.msra.mxu0 %v2602
        %2620 = vmatprep.subr.bf16.mxu0 0
        %2621 = vmatpush2.bf16.msra.mxu0 0
        %2622 = vmatprep.subr.bf16.mxu0 0
        %2623 = vmatpush2.bf16.msra.mxu0 0
        %2624 = vmatprep.subr.bf16.mxu0 0
        %2625 = vmatpush2.bf16.msra.mxu0 0
        %2626 = vmatprep.subr.bf16.mxu0 0
        %2627 = vmatpush2.bf16.msra.mxu0 0
        %2628 = vmatprep.subr.bf16.mxu0 0
        %2629 = vmatpush2.bf16.msra.mxu0 0
        %2630 = vmatprep.subr.bf16.mxu0 0
        %2631 = vmatpush2.bf16.msra.mxu0 0
        %2632 = vmatprep.subr.bf16.mxu0 0
        %2633 = vmatpush2.bf16.msra.mxu0 0
        %2634 = vmatprep.subr.bf16.mxu0 0
        %2635 = vmatpush2.bf16.msra.mxu0 0
        %2636 = vmatprep.mubr.bf16.mxu0 0
        %2637 = vmatmul.mubr.bf16.gmra.mxu0 %v2590
        %v2638 = vpop.f32.mrf.mxu0
        %v2639 = vadd.f32 0.0, %v2638
        %v2640 = vpop.f32.mrf.mxu0
        %v2641 = vpop.f32.mrf.mxu0
        %v2642 = vadd.f32 0.0, %v2641
        %v2643 = vpop.f32.mrf.mxu0
        %2644 = vmatprep.mubr.bf16.mxu0 0
        %2645 = vmatmul.mubr.bf16.gmra.mxu0 %v2593
        %v2646 = vpop.f32.mrf.mxu0
        %v2647 = vadd.f32 0.0, %v2646
        %v2648 = vpop.f32.mrf.mxu0
        %v2649 = vpop.f32.mrf.mxu0
        %v2650 = vadd.f32 0.0, %v2649
        %v2651 = vpop.f32.mrf.mxu0
        %2652 = vmatprep.mubr.bf16.mxu0 0
        %2653 = vmatmul.mubr.bf16.gmra.mxu0 %v2596
        %v2654 = vpop.f32.mrf.mxu0
        %v2655 = vadd.f32 0.0, %v2654
        %v2656 = vpop.f32.mrf.mxu0
        %v2657 = vpop.f32.mrf.mxu0
        %v2658 = vadd.f32 0.0, %v2657
        %v2659 = vpop.f32.mrf.mxu0
        %2660 = vmatprep.mubr.bf16.mxu0 0
        %2661 = vmatmul.mubr.bf16.gmra.mxu0 %v2599
        %v2662 = vpop.f32.mrf.mxu0
        %v2663 = vadd.f32 0.0, %v2662
        %v2664 = vpop.f32.mrf.mxu0
        %v2665 = vpop.f32.mrf.mxu0
        %v2666 = vadd.f32 0.0, %v2665
        %v2667 = vpop.f32.mrf.mxu0
        %2668 = vdwg.mxu0
        %v2669 = vadd.f32 %v2461, %v2639
        %v2670 = vadd.f32 %v2462, %v2642
        %v2671 = vadd.f32 %v2463, %v2647
        %v2672 = vadd.f32 %v2464, %v2650
        %v2673 = vadd.f32 %v2465, %v2655
        %v2674 = vadd.f32 %v2466, %v2658
        %v2675 = vadd.f32 %v2467, %v2663
        %v2676 = vadd.f32 %v2468, %v2666
        %v2677 = vld [vmem:[%s3] sm:$0x1]
        %v2679 = vlaneseq
        %v2680 = vshrl.u32 %v2679, 7
        %v2681 = vsub.s32 0, %v2680
        %v2682 = vrot.slane %v2677, %v2681
        %v2684 = vmul.f32 %v2669, %v2682
        %v2685 = vmul.f32 %v2670, %v2682
        %v2686 = vmul.f32 %v2671, %v2682
        %v2687 = vmul.f32 %v2672, %v2682
        %v2688 = vmul.f32 %v2673, %v2682
        %v2689 = vmul.f32 %v2674, %v2682
        %v2690 = vmul.f32 %v2675, %v2682
        %v2691 = vmul.f32 %v2676, %v2682
        %v2692 = vld [vmem:[%s4] sm:$0x1]
        %v2694 = vlaneseq
        %v2695 = vshrl.u32 %v2694, 7
        %v2696 = vsub.s32 0, %v2695
        %v2697 = vrot.slane %v2692, %v2696
        %v2699 = vadd.f32 %v2684, %v2697
        %v2700 = vadd.f32 %v2685, %v2697
        %v2701 = vadd.f32 %v2686, %v2697
        %v2702 = vadd.f32 %v2687, %v2697
        %v2703 = vadd.f32 %v2688, %v2697
        %v2704 = vadd.f32 %v2689, %v2697
        %v2705 = vadd.f32 %v2690, %v2697
        %v2706 = vadd.f32 %v2691, %v2697
        %v2707 = vmax.f32 %v2699, 0.0
        %v2708 = vmax.f32 %v2700, 0.0
        %v2709 = vmax.f32 %v2701, 0.0
        %v2710 = vmax.f32 %v2702, 0.0
        %v2711 = vmax.f32 %v2703, 0.0
        %v2712 = vmax.f32 %v2704, 0.0
        %v2713 = vmax.f32 %v2705, 0.0
        %v2714 = vmax.f32 %v2706, 0.0
        %v2715 = vpack.c.bf16 %v2708, %v2707
        %v2716 = vpack.c.bf16 %v2710, %v2709
        %v2717 = vpack.c.bf16 %v2712, %v2711
        %v2718 = vpack.c.bf16 %v2714, %v2713
        %v2719 = vld [vmem:[#allocation7] sm:$0xf]
        %v2720 = vld [vmem:[#allocation7 + $0x4] sm:$0xf]
        %v2723 = vunpack.c.l.b16 %v2719
        %v2724 = vunpack.c.l.b16 %v2720
        %v2725 = vpack.c.b16 %v2724, %v2723
        %vm2726 = vcmask 523264
        %v2728 = vsel %vm2726, %v2725, 0
        %2730 = vmatprep.subr.bf16.mxu0 0
        %2731 = vmatpush1.bf16.msra.mxu0 0
        %2732 = vmatprep.subr.bf16.mxu0 0
        %2733 = vmatpush1.bf16.msra.mxu0 0
        %2734 = vmatprep.subr.bf16.mxu0 0
        %2735 = vmatpush1.bf16.msra.mxu0 0
        %2736 = vmatprep.subr.bf16.mxu0 0
        %2737 = vmatpush1.bf16.msra.mxu0 0
        %2738 = vmatprep.subr.bf16.mxu0 0
        %2739 = vmatpush1.bf16.msra.mxu0 %v2718
        %2740 = vmatprep.subr.bf16.mxu0 0
        %2741 = vmatpush1.bf16.msra.mxu0 %v2717
        %2742 = vmatprep.subr.bf16.mxu0 0
        %2743 = vmatpush1.bf16.msra.mxu0 %v2716
        %2744 = vmatprep.subr.bf16.mxu0 0
        %2745 = vmatpush1.bf16.msra.mxu0 %v2715
        %2746 = vmatprep.subr.bf16.mxu0 0
        %2747 = vmatpush2.bf16.msra.mxu0 0
        %2748 = vmatprep.subr.bf16.mxu0 0
        %2749 = vmatpush2.bf16.msra.mxu0 0
        %2750 = vmatprep.subr.bf16.mxu0 0
        %2751 = vmatpush2.bf16.msra.mxu0 0
        %2752 = vmatprep.subr.bf16.mxu0 0
        %2753 = vmatpush2.bf16.msra.mxu0 0
        %2754 = vmatprep.subr.bf16.mxu0 0
        %2755 = vmatpush2.bf16.msra.mxu0 0
        %2756 = vmatprep.subr.bf16.mxu0 0
        %2757 = vmatpush2.bf16.msra.mxu0 0
        %2758 = vmatprep.subr.bf16.mxu0 0
        %2759 = vmatpush2.bf16.msra.mxu0 0
        %2760 = vmatprep.subr.bf16.mxu0 0
        %2761 = vmatpush2.bf16.msra.mxu0 0
        %2762 = vmatprep.mubr.bf16.mxu0 0
        %2763 = vmatmul.mubr.bf16.gmra.mxu0 %v2728
        %v2764 = vpop.f32.mrf.mxu0
        %v2765 = vadd.f32 0.0, %v2764
        %v2766 = vpop.f32.mrf.mxu0
        %v2767 = vpop.f32.mrf.mxu0
        %v2768 = vadd.f32 0.0, %v2767
        %v2769 = vpop.f32.mrf.mxu0
        %2770 = vdwg.mxu0
        %v2771 = vpack.c.bf16 %v2768, %v2765
        %v2772 = vld [vmem:[#allocation8] sm:$0xf]
        %v2773 = vld [vmem:[#allocation8 + $0x4] sm:$0xf]
        %s2774 = scalar_lea.vmem [#allocation7], 8
        %v2775 = vld [vmem:[%s2774] sm:$0xf]
        %v2776 = vld [vmem:[%s2774 + $0x4] sm:$0xf]
        %v2779 = vunpack.c.l.b16 %v2775
        %v2780 = vunpack.c.l.b16 %v2776
        %v2781 = vpack.c.b16 %v2780, %v2779
        %v2783 = vsel %vm2726, %v2781, 0
        %2785 = vmatprep.subr.bf16.mxu0 0
        %2786 = vmatpush1.bf16.msra.mxu0 0
        %2787 = vmatprep.subr.bf16.mxu0 0
        %2788 = vmatpush1.bf16.msra.mxu0 0
        %2789 = vmatprep.subr.bf16.mxu0 0
        %2790 = vmatpush1.bf16.msra.mxu0 0
        %2791 = vmatprep.subr.bf16.mxu0 0
        %2792 = vmatpush1.bf16.msra.mxu0 0
        %2793 = vmatprep.subr.bf16.mxu0 0
        %2794 = vmatpush1.bf16.msra.mxu0 %v2718
        %2795 = vmatprep.subr.bf16.mxu0 0
        %2796 = vmatpush1.bf16.msra.mxu0 %v2717
        %2797 = vmatprep.subr.bf16.mxu0 0
        %2798 = vmatpush1.bf16.msra.mxu0 %v2716
        %2799 = vmatprep.subr.bf16.mxu0 0
        %2800 = vmatpush1.bf16.msra.mxu0 %v2715
        %2801 = vmatprep.subr.bf16.mxu0 0
        %2802 = vmatpush2.bf16.msra.mxu0 0
        %2803 = vmatprep.subr.bf16.mxu0 0
        %2804 = vmatpush2.bf16.msra.mxu0 0
        %2805 = vmatprep.subr.bf16.mxu0 0
        %2806 = vmatpush2.bf16.msra.mxu0 0
        %2807 = vmatprep.subr.bf16.mxu0 0
        %2808 = vmatpush2.bf16.msra.mxu0 0
        %2809 = vmatprep.subr.bf16.mxu0 0
        %2810 = vmatpush2.bf16.msra.mxu0 0
        %2811 = vmatprep.subr.bf16.mxu0 0
        %2812 = vmatpush2.bf16.msra.mxu0 0
        %2813 = vmatprep.subr.bf16.mxu0 0
        %2814 = vmatpush2.bf16.msra.mxu0 0
        %2815 = vmatprep.subr.bf16.mxu0 0
        %2816 = vmatpush2.bf16.msra.mxu0 0
        %2817 = vmatprep.mubr.bf16.mxu0 0
        %2818 = vmatmul.mubr.bf16.gmra.mxu0 %v2783
        %v2819 = vpop.f32.mrf.mxu0
        %v2820 = vadd.f32 0.0, %v2819
        %v2821 = vpop.f32.mrf.mxu0
        %v2822 = vpop.f32.mrf.mxu0
        %v2823 = vadd.f32 0.0, %v2822
        %v2824 = vpop.f32.mrf.mxu0
        %2825 = vdwg.mxu0
        %v2826 = vpack.c.bf16 %v2823, %v2820
        %s2827 = scalar_lea.vmem [#allocation8], 8
        %v2828 = vld [vmem:[%s2827] sm:$0xf]
        %v2829 = vld [vmem:[%s2827 + $0x4] sm:$0xf]
        %v2832 = vunpack.c.l.b16 %v2828
        %v2833 = vunpack.c.l.b16 %v2829
        %v2834 = vpack.c.b16 %v2833, %v2832
        %vm2836 = vcmask 130048
        %v2838 = vsel %vm2836, %v2826, 0
        %2840 = vmatprep.subr.bf16.mxu0 0
        %2841 = vmatpush1.bf16.msra.mxu0 0
        %2842 = vmatprep.subr.bf16.mxu0 0
        %2843 = vmatpush1.bf16.msra.mxu0 0
        %2844 = vmatprep.subr.bf16.mxu0 0
        %2845 = vmatpush1.bf16.msra.mxu0 0
        %2846 = vmatprep.subr.bf16.mxu0 0
        %2847 = vmatpush1.bf16.msra.mxu0 0
        %2848 = vmatprep.subr.bf16.mxu0 0
        %2849 = vmatpush1.bf16.msra.mxu0 0
        %2850 = vmatprep.subr.bf16.mxu0 0
        %2851 = vmatpush1.bf16.msra.mxu0 0
        %2852 = vmatprep.subr.bf16.mxu0 0
        %2853 = vmatpush1.bf16.msra.mxu0 0
        %2854 = vmatprep.subr.bf16.mxu0 0
        %2855 = vmatpush1.bf16.msra.mxu0 %v2834
        %2856 = vmatprep.subr.bf16.mxu0 0
        %2857 = vmatpush2.bf16.msra.mxu0 0
        %2858 = vmatprep.subr.bf16.mxu0 0
        %2859 = vmatpush2.bf16.msra.mxu0 0
        %2860 = vmatprep.subr.bf16.mxu0 0
        %2861 = vmatpush2.bf16.msra.mxu0 0
        %2862 = vmatprep.subr.bf16.mxu0 0
        %2863 = vmatpush2.bf16.msra.mxu0 0
        %2864 = vmatprep.subr.bf16.mxu0 0
        %2865 = vmatpush2.bf16.msra.mxu0 0
        %2866 = vmatprep.subr.bf16.mxu0 0
        %2867 = vmatpush2.bf16.msra.mxu0 0
        %2868 = vmatprep.subr.bf16.mxu0 0
        %2869 = vmatpush2.bf16.msra.mxu0 0
        %2870 = vmatprep.subr.bf16.mxu0 0
        %2871 = vmatpush2.bf16.msra.mxu0 0
        %2872 = vmatprep.mubr.bf16.mxu0 0
        %2873 = vmatmul.mubr.bf16.gmra.mxu0 %v2838
        %v2874 = vpop.f32.mrf.mxu0
        %v2875 = vadd.f32 0.0, %v2874
        %v2876 = vpop.f32.mrf.mxu0
        %v2877 = vpop.f32.mrf.mxu0
        %v2878 = vadd.f32 0.0, %v2877
        %v2879 = vpop.f32.mrf.mxu0
        %2880 = vdwg.mxu0
        %v2883 = vunpack.c.l.b16 %v2772
        %v2884 = vunpack.c.l.b16 %v2773
        %v2885 = vpack.c.b16 %v2884, %v2883
        %v2888 = vsel %vm2836, %v2771, 0
        %2890 = vmatprep.subr.bf16.mxu0 0
        %2891 = vmatpush1.bf16.msra.mxu0 0
        %2892 = vmatprep.subr.bf16.mxu0 0
        %2893 = vmatpush1.bf16.msra.mxu0 0
        %2894 = vmatprep.subr.bf16.mxu0 0
        %2895 = vmatpush1.bf16.msra.mxu0 0
        %2896 = vmatprep.subr.bf16.mxu0 0
        %2897 = vmatpush1.bf16.msra.mxu0 0
        %2898 = vmatprep.subr.bf16.mxu0 0
        %2899 = vmatpush1.bf16.msra.mxu0 0
        %2900 = vmatprep.subr.bf16.mxu0 0
        %2901 = vmatpush1.bf16.msra.mxu0 0
        %2902 = vmatprep.subr.bf16.mxu0 0
        %2903 = vmatpush1.bf16.msra.mxu0 0
        %2904 = vmatprep.subr.bf16.mxu0 0
        %2905 = vmatpush1.bf16.msra.mxu0 %v2885
        %2906 = vmatprep.subr.bf16.mxu0 0
        %2907 = vmatpush2.bf16.msra.mxu0 0
        %2908 = vmatprep.subr.bf16.mxu0 0
        %2909 = vmatpush2.bf16.msra.mxu0 0
        %2910 = vmatprep.subr.bf16.mxu0 0
        %2911 = vmatpush2.bf16.msra.mxu0 0
        %2912 = vmatprep.subr.bf16.mxu0 0
        %2913 = vmatpush2.bf16.msra.mxu0 0
        %2914 = vmatprep.subr.bf16.mxu0 0
        %2915 = vmatpush2.bf16.msra.mxu0 0
        %2916 = vmatprep.subr.bf16.mxu0 0
        %2917 = vmatpush2.bf16.msra.mxu0 0
        %2918 = vmatprep.subr.bf16.mxu0 0
        %2919 = vmatpush2.bf16.msra.mxu0 0
        %2920 = vmatprep.subr.bf16.mxu0 0
        %2921 = vmatpush2.bf16.msra.mxu0 0
        %2922 = vmatprep.mubr.bf16.mxu0 0
        %2923 = vmatmul.mubr.bf16.gmra.mxu0 %v2888
        %v2924 = vpop.f32.mrf.mxu0
        %v2925 = vadd.f32 %v2875, %v2924
        %v2926 = vpop.f32.mrf.mxu0
        %v2927 = vpop.f32.mrf.mxu0
        %v2928 = vadd.f32 %v2878, %v2927
        %v2929 = vpop.f32.mrf.mxu0
        %2930 = vdwg.mxu0
        %s2931 = scalar_lea.vmem [#allocation7], 16
        %v2932 = vld [vmem:[%s2931] sm:$0xf]
        %v2933 = vld [vmem:[%s2931 + $0x4] sm:$0xf]
        %v2936 = vunpack.c.l.b16 %v2932
        %v2937 = vunpack.c.l.b16 %v2933
        %v2938 = vpack.c.b16 %v2937, %v2936
        %v2940 = vsel %vm2726, %v2938, 0
        %2942 = vmatprep.subr.bf16.mxu0 0
        %2943 = vmatpush1.bf16.msra.mxu0 0
        %2944 = vmatprep.subr.bf16.mxu0 0
        %2945 = vmatpush1.bf16.msra.mxu0 0
        %2946 = vmatprep.subr.bf16.mxu0 0
        %2947 = vmatpush1.bf16.msra.mxu0 0
        %2948 = vmatprep.subr.bf16.mxu0 0
        %2949 = vmatpush1.bf16.msra.mxu0 0
        %2950 = vmatprep.subr.bf16.mxu0 0
        %2951 = vmatpush1.bf16.msra.mxu0 %v2718
        %2952 = vmatprep.subr.bf16.mxu0 0
        %2953 = vmatpush1.bf16.msra.mxu0 %v2717
        %2954 = vmatprep.subr.bf16.mxu0 0
        %2955 = vmatpush1.bf16.msra.mxu0 %v2716
        %2956 = vmatprep.subr.bf16.mxu0 0
        %2957 = vmatpush1.bf16.msra.mxu0 %v2715
        %2958 = vmatprep.subr.bf16.mxu0 0
        %2959 = vmatpush2.bf16.msra.mxu0 0
        %2960 = vmatprep.subr.bf16.mxu0 0
        %2961 = vmatpush2.bf16.msra.mxu0 0
        %2962 = vmatprep.subr.bf16.mxu0 0
        %2963 = vmatpush2.bf16.msra.mxu0 0
        %2964 = vmatprep.subr.bf16.mxu0 0
        %2965 = vmatpush2.bf16.msra.mxu0 0
        %2966 = vmatprep.subr.bf16.mxu0 0
        %2967 = vmatpush2.bf16.msra.mxu0 0
        %2968 = vmatprep.subr.bf16.mxu0 0
        %2969 = vmatpush2.bf16.msra.mxu0 0
        %2970 = vmatprep.subr.bf16.mxu0 0
        %2971 = vmatpush2.bf16.msra.mxu0 0
        %2972 = vmatprep.subr.bf16.mxu0 0
        %2973 = vmatpush2.bf16.msra.mxu0 0
        %2974 = vmatprep.mubr.bf16.mxu0 0
        %2975 = vmatmul.mubr.bf16.gmra.mxu0 %v2940
        %v2976 = vpop.f32.mrf.mxu0
        %v2977 = vadd.f32 0.0, %v2976
        %v2978 = vpop.f32.mrf.mxu0
        %v2979 = vpop.f32.mrf.mxu0
        %v2980 = vadd.f32 0.0, %v2979
        %v2981 = vpop.f32.mrf.mxu0
        %2982 = vdwg.mxu0
        %v2983 = vpack.c.bf16 %v2980, %v2977
        %s2984 = scalar_lea.vmem [#allocation8], 16
        %v2985 = vld [vmem:[%s2984] sm:$0xf]
        %v2986 = vld [vmem:[%s2984 + $0x4] sm:$0xf]
        %v2989 = vunpack.c.l.b16 %v2985
        %v2990 = vunpack.c.l.b16 %v2986
        %v2991 = vpack.c.b16 %v2990, %v2989
        %v2994 = vsel %vm2836, %v2983, 0
        %2996 = vmatprep.subr.bf16.mxu0 0
        %2997 = vmatpush1.bf16.msra.mxu0 0
        %2998 = vmatprep.subr.bf16.mxu0 0
        %2999 = vmatpush1.bf16.msra.mxu0 0
        %3000 = vmatprep.subr.bf16.mxu0 0
        %3001 = vmatpush1.bf16.msra.mxu0 0
        %3002 = vmatprep.subr.bf16.mxu0 0
        %3003 = vmatpush1.bf16.msra.mxu0 0
        %3004 = vmatprep.subr.bf16.mxu0 0
        %3005 = vmatpush1.bf16.msra.mxu0 0
        %3006 = vmatprep.subr.bf16.mxu0 0
        %3007 = vmatpush1.bf16.msra.mxu0 0
        %3008 = vmatprep.subr.bf16.mxu0 0
        %3009 = vmatpush1.bf16.msra.mxu0 0
        %3010 = vmatprep.subr.bf16.mxu0 0
        %3011 = vmatpush1.bf16.msra.mxu0 %v2991
        %3012 = vmatprep.subr.bf16.mxu0 0
        %3013 = vmatpush2.bf16.msra.mxu0 0
        %3014 = vmatprep.subr.bf16.mxu0 0
        %3015 = vmatpush2.bf16.msra.mxu0 0
        %3016 = vmatprep.subr.bf16.mxu0 0
        %3017 = vmatpush2.bf16.msra.mxu0 0
        %3018 = vmatprep.subr.bf16.mxu0 0
        %3019 = vmatpush2.bf16.msra.mxu0 0
        %3020 = vmatprep.subr.bf16.mxu0 0
        %3021 = vmatpush2.bf16.msra.mxu0 0
        %3022 = vmatprep.subr.bf16.mxu0 0
        %3023 = vmatpush2.bf16.msra.mxu0 0
        %3024 = vmatprep.subr.bf16.mxu0 0
        %3025 = vmatpush2.bf16.msra.mxu0 0
        %3026 = vmatprep.subr.bf16.mxu0 0
        %3027 = vmatpush2.bf16.msra.mxu0 0
        %3028 = vmatprep.mubr.bf16.mxu0 0
        %3029 = vmatmul.mubr.bf16.gmra.mxu0 %v2994
        %v3030 = vpop.f32.mrf.mxu0
        %v3031 = vadd.f32 0.0, %v3030
        %v3032 = vpop.f32.mrf.mxu0
        %v3033 = vpop.f32.mrf.mxu0
        %v3034 = vadd.f32 0.0, %v3033
        %v3035 = vpop.f32.mrf.mxu0
        %3036 = vdwg.mxu0
        %v3037 = vadd.f32 %v2925, %v3031
        %v3038 = vadd.f32 %v2928, %v3034
        %s3039 = scalar_lea.vmem [#allocation7], 24
        %v3040 = vld [vmem:[%s3039] sm:$0xf]
        %v3041 = vld [vmem:[%s3039 + $0x4] sm:$0xf]
        %v3044 = vunpack.c.l.b16 %v3040
        %v3045 = vunpack.c.l.b16 %v3041
        %v3046 = vpack.c.b16 %v3045, %v3044
        %v3048 = vsel %vm2726, %v3046, 0
        %3050 = vmatprep.subr.bf16.mxu0 0
        %3051 = vmatpush1.bf16.msra.mxu0 0
        %3052 = vmatprep.subr.bf16.mxu0 0
        %3053 = vmatpush1.bf16.msra.mxu0 0
        %3054 = vmatprep.subr.bf16.mxu0 0
        %3055 = vmatpush1.bf16.msra.mxu0 0
        %3056 = vmatprep.subr.bf16.mxu0 0
        %3057 = vmatpush1.bf16.msra.mxu0 0
        %3058 = vmatprep.subr.bf16.mxu0 0
        %3059 = vmatpush1.bf16.msra.mxu0 %v2718
        %3060 = vmatprep.subr.bf16.mxu0 0
        %3061 = vmatpush1.bf16.msra.mxu0 %v2717
        %3062 = vmatprep.subr.bf16.mxu0 0
        %3063 = vmatpush1.bf16.msra.mxu0 %v2716
        %3064 = vmatprep.subr.bf16.mxu0 0
        %3065 = vmatpush1.bf16.msra.mxu0 %v2715
        %3066 = vmatprep.subr.bf16.mxu0 0
        %3067 = vmatpush2.bf16.msra.mxu0 0
        %3068 = vmatprep.subr.bf16.mxu0 0
        %3069 = vmatpush2.bf16.msra.mxu0 0
        %3070 = vmatprep.subr.bf16.mxu0 0
        %3071 = vmatpush2.bf16.msra.mxu0 0
        %3072 = vmatprep.subr.bf16.mxu0 0
        %3073 = vmatpush2.bf16.msra.mxu0 0
        %3074 = vmatprep.subr.bf16.mxu0 0
        %3075 = vmatpush2.bf16.msra.mxu0 0
        %3076 = vmatprep.subr.bf16.mxu0 0
        %3077 = vmatpush2.bf16.msra.mxu0 0
        %3078 = vmatprep.subr.bf16.mxu0 0
        %3079 = vmatpush2.bf16.msra.mxu0 0
        %3080 = vmatprep.subr.bf16.mxu0 0
        %3081 = vmatpush2.bf16.msra.mxu0 0
        %3082 = vmatprep.mubr.bf16.mxu0 0
        %3083 = vmatmul.mubr.bf16.gmra.mxu0 %v3048
        %v3084 = vpop.f32.mrf.mxu0
        %v3085 = vadd.f32 0.0, %v3084
        %v3086 = vpop.f32.mrf.mxu0
        %v3087 = vpop.f32.mrf.mxu0
        %v3088 = vadd.f32 0.0, %v3087
        %v3089 = vpop.f32.mrf.mxu0
        %3090 = vdwg.mxu0
        %v3091 = vpack.c.bf16 %v3088, %v3085
        %s3092 = scalar_lea.vmem [#allocation8], 24
        %v3093 = vld [vmem:[%s3092] sm:$0xf]
        %v3094 = vld [vmem:[%s3092 + $0x4] sm:$0xf]
        %v3097 = vunpack.c.l.b16 %v3093
        %v3098 = vunpack.c.l.b16 %v3094
        %v3099 = vpack.c.b16 %v3098, %v3097
        %v3102 = vsel %vm2836, %v3091, 0
        %3104 = vmatprep.subr.bf16.mxu0 0
        %3105 = vmatpush1.bf16.msra.mxu0 0
        %3106 = vmatprep.subr.bf16.mxu0 0
        %3107 = vmatpush1.bf16.msra.mxu0 0
        %3108 = vmatprep.subr.bf16.mxu0 0
        %3109 = vmatpush1.bf16.msra.mxu0 0
        %3110 = vmatprep.subr.bf16.mxu0 0
        %3111 = vmatpush1.bf16.msra.mxu0 0
        %3112 = vmatprep.subr.bf16.mxu0 0
        %3113 = vmatpush1.bf16.msra.mxu0 0
        %3114 = vmatprep.subr.bf16.mxu0 0
        %3115 = vmatpush1.bf16.msra.mxu0 0
        %3116 = vmatprep.subr.bf16.mxu0 0
        %3117 = vmatpush1.bf16.msra.mxu0 0
        %3118 = vmatprep.subr.bf16.mxu0 0
        %3119 = vmatpush1.bf16.msra.mxu0 %v3099
        %3120 = vmatprep.subr.bf16.mxu0 0
        %3121 = vmatpush2.bf16.msra.mxu0 0
        %3122 = vmatprep.subr.bf16.mxu0 0
        %3123 = vmatpush2.bf16.msra.mxu0 0
        %3124 = vmatprep.subr.bf16.mxu0 0
        %3125 = vmatpush2.bf16.msra.mxu0 0
        %3126 = vmatprep.subr.bf16.mxu0 0
        %3127 = vmatpush2.bf16.msra.mxu0 0
        %3128 = vmatprep.subr.bf16.mxu0 0
        %3129 = vmatpush2.bf16.msra.mxu0 0
        %3130 = vmatprep.subr.bf16.mxu0 0
        %3131 = vmatpush2.bf16.msra.mxu0 0
        %3132 = vmatprep.subr.bf16.mxu0 0
        %3133 = vmatpush2.bf16.msra.mxu0 0
        %3134 = vmatprep.subr.bf16.mxu0 0
        %3135 = vmatpush2.bf16.msra.mxu0 0
        %3136 = vmatprep.mubr.bf16.mxu0 0
        %3137 = vmatmul.mubr.bf16.gmra.mxu0 %v3102
        %v3138 = vpop.f32.mrf.mxu0
        %v3139 = vadd.f32 0.0, %v3138
        %v3140 = vpop.f32.mrf.mxu0
        %v3141 = vpop.f32.mrf.mxu0
        %v3142 = vadd.f32 0.0, %v3141
        %v3143 = vpop.f32.mrf.mxu0
        %3144 = vdwg.mxu0
        %v3145 = vadd.f32 %v3037, %v3139
        %v3146 = vadd.f32 %v3038, %v3142
        %s3147 = scalar_lea.vmem [#allocation7], 32
        %v3148 = vld [vmem:[%s3147] sm:$0xf]
        %v3149 = vld [vmem:[%s3147 + $0x4] sm:$0xf]
        %v3152 = vunpack.c.l.b16 %v3148
        %v3153 = vunpack.c.l.b16 %v3149
        %v3154 = vpack.c.b16 %v3153, %v3152
        %v3156 = vsel %vm2726, %v3154, 0
        %3158 = vmatprep.subr.bf16.mxu0 0
        %3159 = vmatpush1.bf16.msra.mxu0 0
        %3160 = vmatprep.subr.bf16.mxu0 0
        %3161 = vmatpush1.bf16.msra.mxu0 0
        %3162 = vmatprep.subr.bf16.mxu0 0
        %3163 = vmatpush1.bf16.msra.mxu0 0
        %3164 = vmatprep.subr.bf16.mxu0 0
        %3165 = vmatpush1.bf16.msra.mxu0 0
        %3166 = vmatprep.subr.bf16.mxu0 0
        %3167 = vmatpush1.bf16.msra.mxu0 %v2718
        %3168 = vmatprep.subr.bf16.mxu0 0
        %3169 = vmatpush1.bf16.msra.mxu0 %v2717
        %3170 = vmatprep.subr.bf16.mxu0 0
        %3171 = vmatpush1.bf16.msra.mxu0 %v2716
        %3172 = vmatprep.subr.bf16.mxu0 0
        %3173 = vmatpush1.bf16.msra.mxu0 %v2715
        %3174 = vmatprep.subr.bf16.mxu0 0
        %3175 = vmatpush2.bf16.msra.mxu0 0
        %3176 = vmatprep.subr.bf16.mxu0 0
        %3177 = vmatpush2.bf16.msra.mxu0 0
        %3178 = vmatprep.subr.bf16.mxu0 0
        %3179 = vmatpush2.bf16.msra.mxu0 0
        %3180 = vmatprep.subr.bf16.mxu0 0
        %3181 = vmatpush2.bf16.msra.mxu0 0
        %3182 = vmatprep.subr.bf16.mxu0 0
        %3183 = vmatpush2.bf16.msra.mxu0 0
        %3184 = vmatprep.subr.bf16.mxu0 0
        %3185 = vmatpush2.bf16.msra.mxu0 0
        %3186 = vmatprep.subr.bf16.mxu0 0
        %3187 = vmatpush2.bf16.msra.mxu0 0
        %3188 = vmatprep.subr.bf16.mxu0 0
        %3189 = vmatpush2.bf16.msra.mxu0 0
        %3190 = vmatprep.mubr.bf16.mxu0 0
        %3191 = vmatmul.mubr.bf16.gmra.mxu0 %v3156
        %v3192 = vpop.f32.mrf.mxu0
        %v3193 = vadd.f32 0.0, %v3192
        %v3194 = vpop.f32.mrf.mxu0
        %v3195 = vpop.f32.mrf.mxu0
        %v3196 = vadd.f32 0.0, %v3195
        %v3197 = vpop.f32.mrf.mxu0
        %3198 = vdwg.mxu0
        %v3199 = vpack.c.bf16 %v3196, %v3193
        %s3200 = scalar_lea.vmem [#allocation8], 32
        %v3201 = vld [vmem:[%s3200] sm:$0xf]
        %v3202 = vld [vmem:[%s3200 + $0x4] sm:$0xf]
        %v3205 = vunpack.c.l.b16 %v3201
        %v3206 = vunpack.c.l.b16 %v3202
        %v3207 = vpack.c.b16 %v3206, %v3205
        %v3210 = vsel %vm2836, %v3199, 0
        %3212 = vmatprep.subr.bf16.mxu0 0
        %3213 = vmatpush1.bf16.msra.mxu0 0
        %3214 = vmatprep.subr.bf16.mxu0 0
        %3215 = vmatpush1.bf16.msra.mxu0 0
        %3216 = vmatprep.subr.bf16.mxu0 0
        %3217 = vmatpush1.bf16.msra.mxu0 0
        %3218 = vmatprep.subr.bf16.mxu0 0
        %3219 = vmatpush1.bf16.msra.mxu0 0
        %3220 = vmatprep.subr.bf16.mxu0 0
        %3221 = vmatpush1.bf16.msra.mxu0 0
        %3222 = vmatprep.subr.bf16.mxu0 0
        %3223 = vmatpush1.bf16.msra.mxu0 0
        %3224 = vmatprep.subr.bf16.mxu0 0
        %3225 = vmatpush1.bf16.msra.mxu0 0
        %3226 = vmatprep.subr.bf16.mxu0 0
        %3227 = vmatpush1.bf16.msra.mxu0 %v3207
        %3228 = vmatprep.subr.bf16.mxu0 0
        %3229 = vmatpush2.bf16.msra.mxu0 0
        %3230 = vmatprep.subr.bf16.mxu0 0
        %3231 = vmatpush2.bf16.msra.mxu0 0
        %3232 = vmatprep.subr.bf16.mxu0 0
        %3233 = vmatpush2.bf16.msra.mxu0 0
        %3234 = vmatprep.subr.bf16.mxu0 0
        %3235 = vmatpush2.bf16.msra.mxu0 0
        %3236 = vmatprep.subr.bf16.mxu0 0
        %3237 = vmatpush2.bf16.msra.mxu0 0
        %3238 = vmatprep.subr.bf16.mxu0 0
        %3239 = vmatpush2.bf16.msra.mxu0 0
        %3240 = vmatprep.subr.bf16.mxu0 0
        %3241 = vmatpush2.bf16.msra.mxu0 0
        %3242 = vmatprep.subr.bf16.mxu0 0
        %3243 = vmatpush2.bf16.msra.mxu0 0
        %3244 = vmatprep.mubr.bf16.mxu0 0
        %3245 = vmatmul.mubr.bf16.gmra.mxu0 %v3210
        %v3246 = vpop.f32.mrf.mxu0
        %v3247 = vadd.f32 0.0, %v3246
        %v3248 = vpop.f32.mrf.mxu0
        %v3249 = vpop.f32.mrf.mxu0
        %v3250 = vadd.f32 0.0, %v3249
        %v3251 = vpop.f32.mrf.mxu0
        %3252 = vdwg.mxu0
        %v3253 = vadd.f32 %v3145, %v3247
        %v3254 = vadd.f32 %v3146, %v3250
        %s3255 = scalar_lea.vmem [#allocation7], 40
        %v3256 = vld [vmem:[%s3255] sm:$0xf]
        %v3257 = vld [vmem:[%s3255 + $0x4] sm:$0xf]
        %v3260 = vunpack.c.l.b16 %v3256
        %v3261 = vunpack.c.l.b16 %v3257
        %v3262 = vpack.c.b16 %v3261, %v3260
        %v3264 = vsel %vm2726, %v3262, 0
        %3266 = vmatprep.subr.bf16.mxu0 0
        %3267 = vmatpush1.bf16.msra.mxu0 0
        %3268 = vmatprep.subr.bf16.mxu0 0
        %3269 = vmatpush1.bf16.msra.mxu0 0
        %3270 = vmatprep.subr.bf16.mxu0 0
        %3271 = vmatpush1.bf16.msra.mxu0 0
        %3272 = vmatprep.subr.bf16.mxu0 0
        %3273 = vmatpush1.bf16.msra.mxu0 0
        %3274 = vmatprep.subr.bf16.mxu0 0
        %3275 = vmatpush1.bf16.msra.mxu0 %v2718
        %3276 = vmatprep.subr.bf16.mxu0 0
        %3277 = vmatpush1.bf16.msra.mxu0 %v2717
        %3278 = vmatprep.subr.bf16.mxu0 0
        %3279 = vmatpush1.bf16.msra.mxu0 %v2716
        %3280 = vmatprep.subr.bf16.mxu0 0
        %3281 = vmatpush1.bf16.msra.mxu0 %v2715
        %3282 = vmatprep.subr.bf16.mxu0 0
        %3283 = vmatpush2.bf16.msra.mxu0 0
        %3284 = vmatprep.subr.bf16.mxu0 0
        %3285 = vmatpush2.bf16.msra.mxu0 0
        %3286 = vmatprep.subr.bf16.mxu0 0
        %3287 = vmatpush2.bf16.msra.mxu0 0
        %3288 = vmatprep.subr.bf16.mxu0 0
        %3289 = vmatpush2.bf16.msra.mxu0 0
        %3290 = vmatprep.subr.bf16.mxu0 0
        %3291 = vmatpush2.bf16.msra.mxu0 0
        %3292 = vmatprep.subr.bf16.mxu0 0
        %3293 = vmatpush2.bf16.msra.mxu0 0
        %3294 = vmatprep.subr.bf16.mxu0 0
        %3295 = vmatpush2.bf16.msra.mxu0 0
        %3296 = vmatprep.subr.bf16.mxu0 0
        %3297 = vmatpush2.bf16.msra.mxu0 0
        %3298 = vmatprep.mubr.bf16.mxu0 0
        %3299 = vmatmul.mubr.bf16.gmra.mxu0 %v3264
        %v3300 = vpop.f32.mrf.mxu0
        %v3301 = vadd.f32 0.0, %v3300
        %v3302 = vpop.f32.mrf.mxu0
        %v3303 = vpop.f32.mrf.mxu0
        %v3304 = vadd.f32 0.0, %v3303
        %v3305 = vpop.f32.mrf.mxu0
        %3306 = vdwg.mxu0
        %v3307 = vpack.c.bf16 %v3304, %v3301
        %s3308 = scalar_lea.vmem [#allocation8], 40
        %v3309 = vld [vmem:[%s3308] sm:$0xf]
        %v3310 = vld [vmem:[%s3308 + $0x4] sm:$0xf]
        %v3313 = vunpack.c.l.b16 %v3309
        %v3314 = vunpack.c.l.b16 %v3310
        %v3315 = vpack.c.b16 %v3314, %v3313
        %v3318 = vsel %vm2836, %v3307, 0
        %3320 = vmatprep.subr.bf16.mxu0 0
        %3321 = vmatpush1.bf16.msra.mxu0 0
        %3322 = vmatprep.subr.bf16.mxu0 0
        %3323 = vmatpush1.bf16.msra.mxu0 0
        %3324 = vmatprep.subr.bf16.mxu0 0
        %3325 = vmatpush1.bf16.msra.mxu0 0
        %3326 = vmatprep.subr.bf16.mxu0 0
        %3327 = vmatpush1.bf16.msra.mxu0 0
        %3328 = vmatprep.subr.bf16.mxu0 0
        %3329 = vmatpush1.bf16.msra.mxu0 0
        %3330 = vmatprep.subr.bf16.mxu0 0
        %3331 = vmatpush1.bf16.msra.mxu0 0
        %3332 = vmatprep.subr.bf16.mxu0 0
        %3333 = vmatpush1.bf16.msra.mxu0 0
        %3334 = vmatprep.subr.bf16.mxu0 0
        %3335 = vmatpush1.bf16.msra.mxu0 %v3315
        %3336 = vmatprep.subr.bf16.mxu0 0
        %3337 = vmatpush2.bf16.msra.mxu0 0
        %3338 = vmatprep.subr.bf16.mxu0 0
        %3339 = vmatpush2.bf16.msra.mxu0 0
        %3340 = vmatprep.subr.bf16.mxu0 0
        %3341 = vmatpush2.bf16.msra.mxu0 0
        %3342 = vmatprep.subr.bf16.mxu0 0
        %3343 = vmatpush2.bf16.msra.mxu0 0
        %3344 = vmatprep.subr.bf16.mxu0 0
        %3345 = vmatpush2.bf16.msra.mxu0 0
        %3346 = vmatprep.subr.bf16.mxu0 0
        %3347 = vmatpush2.bf16.msra.mxu0 0
        %3348 = vmatprep.subr.bf16.mxu0 0
        %3349 = vmatpush2.bf16.msra.mxu0 0
        %3350 = vmatprep.subr.bf16.mxu0 0
        %3351 = vmatpush2.bf16.msra.mxu0 0
        %3352 = vmatprep.mubr.bf16.mxu0 0
        %3353 = vmatmul.mubr.bf16.gmra.mxu0 %v3318
        %v3354 = vpop.f32.mrf.mxu0
        %v3355 = vadd.f32 0.0, %v3354
        %v3356 = vpop.f32.mrf.mxu0
        %v3357 = vpop.f32.mrf.mxu0
        %v3358 = vadd.f32 0.0, %v3357
        %v3359 = vpop.f32.mrf.mxu0
        %3360 = vdwg.mxu0
        %v3361 = vadd.f32 %v3253, %v3355
        %v3362 = vadd.f32 %v3254, %v3358
        %s3363 = scalar_lea.vmem [#allocation7], 48
        %v3364 = vld [vmem:[%s3363] sm:$0xf]
        %v3365 = vld [vmem:[%s3363 + $0x4] sm:$0xf]
        %v3368 = vunpack.c.l.b16 %v3364
        %v3369 = vunpack.c.l.b16 %v3365
        %v3370 = vpack.c.b16 %v3369, %v3368
        %v3372 = vsel %vm2726, %v3370, 0
        %3374 = vmatprep.subr.bf16.mxu0 0
        %3375 = vmatpush1.bf16.msra.mxu0 0
        %3376 = vmatprep.subr.bf16.mxu0 0
        %3377 = vmatpush1.bf16.msra.mxu0 0
        %3378 = vmatprep.subr.bf16.mxu0 0
        %3379 = vmatpush1.bf16.msra.mxu0 0
        %3380 = vmatprep.subr.bf16.mxu0 0
        %3381 = vmatpush1.bf16.msra.mxu0 0
        %3382 = vmatprep.subr.bf16.mxu0 0
        %3383 = vmatpush1.bf16.msra.mxu0 %v2718
        %3384 = vmatprep.subr.bf16.mxu0 0
        %3385 = vmatpush1.bf16.msra.mxu0 %v2717
        %3386 = vmatprep.subr.bf16.mxu0 0
        %3387 = vmatpush1.bf16.msra.mxu0 %v2716
        %3388 = vmatprep.subr.bf16.mxu0 0
        %3389 = vmatpush1.bf16.msra.mxu0 %v2715
        %3390 = vmatprep.subr.bf16.mxu0 0
        %3391 = vmatpush2.bf16.msra.mxu0 0
        %3392 = vmatprep.subr.bf16.mxu0 0
        %3393 = vmatpush2.bf16.msra.mxu0 0
        %3394 = vmatprep.subr.bf16.mxu0 0
        %3395 = vmatpush2.bf16.msra.mxu0 0
        %3396 = vmatprep.subr.bf16.mxu0 0
        %3397 = vmatpush2.bf16.msra.mxu0 0
        %3398 = vmatprep.subr.bf16.mxu0 0
        %3399 = vmatpush2.bf16.msra.mxu0 0
        %3400 = vmatprep.subr.bf16.mxu0 0
        %3401 = vmatpush2.bf16.msra.mxu0 0
        %3402 = vmatprep.subr.bf16.mxu0 0
        %3403 = vmatpush2.bf16.msra.mxu0 0
        %3404 = vmatprep.subr.bf16.mxu0 0
        %3405 = vmatpush2.bf16.msra.mxu0 0
        %3406 = vmatprep.mubr.bf16.mxu0 0
        %3407 = vmatmul.mubr.bf16.gmra.mxu0 %v3372
        %v3408 = vpop.f32.mrf.mxu0
        %v3409 = vadd.f32 0.0, %v3408
        %v3410 = vpop.f32.mrf.mxu0
        %v3411 = vpop.f32.mrf.mxu0
        %v3412 = vadd.f32 0.0, %v3411
        %v3413 = vpop.f32.mrf.mxu0
        %3414 = vdwg.mxu0
        %v3415 = vpack.c.bf16 %v3412, %v3409
        %s3416 = scalar_lea.vmem [#allocation8], 48
        %v3417 = vld [vmem:[%s3416] sm:$0xf]
        %v3418 = vld [vmem:[%s3416 + $0x4] sm:$0xf]
        %v3421 = vunpack.c.l.b16 %v3417
        %v3422 = vunpack.c.l.b16 %v3418
        %v3423 = vpack.c.b16 %v3422, %v3421
        %v3426 = vsel %vm2836, %v3415, 0
        %3428 = vmatprep.subr.bf16.mxu0 0
        %3429 = vmatpush1.bf16.msra.mxu0 0
        %3430 = vmatprep.subr.bf16.mxu0 0
        %3431 = vmatpush1.bf16.msra.mxu0 0
        %3432 = vmatprep.subr.bf16.mxu0 0
        %3433 = vmatpush1.bf16.msra.mxu0 0
        %3434 = vmatprep.subr.bf16.mxu0 0
        %3435 = vmatpush1.bf16.msra.mxu0 0
        %3436 = vmatprep.subr.bf16.mxu0 0
        %3437 = vmatpush1.bf16.msra.mxu0 0
        %3438 = vmatprep.subr.bf16.mxu0 0
        %3439 = vmatpush1.bf16.msra.mxu0 0
        %3440 = vmatprep.subr.bf16.mxu0 0
        %3441 = vmatpush1.bf16.msra.mxu0 0
        %3442 = vmatprep.subr.bf16.mxu0 0
        %3443 = vmatpush1.bf16.msra.mxu0 %v3423
        %3444 = vmatprep.subr.bf16.mxu0 0
        %3445 = vmatpush2.bf16.msra.mxu0 0
        %3446 = vmatprep.subr.bf16.mxu0 0
        %3447 = vmatpush2.bf16.msra.mxu0 0
        %3448 = vmatprep.subr.bf16.mxu0 0
        %3449 = vmatpush2.bf16.msra.mxu0 0
        %3450 = vmatprep.subr.bf16.mxu0 0
        %3451 = vmatpush2.bf16.msra.mxu0 0
        %3452 = vmatprep.subr.bf16.mxu0 0
        %3453 = vmatpush2.bf16.msra.mxu0 0
        %3454 = vmatprep.subr.bf16.mxu0 0
        %3455 = vmatpush2.bf16.msra.mxu0 0
        %3456 = vmatprep.subr.bf16.mxu0 0
        %3457 = vmatpush2.bf16.msra.mxu0 0
        %3458 = vmatprep.subr.bf16.mxu0 0
        %3459 = vmatpush2.bf16.msra.mxu0 0
        %3460 = vmatprep.mubr.bf16.mxu0 0
        %3461 = vmatmul.mubr.bf16.gmra.mxu0 %v3426
        %v3462 = vpop.f32.mrf.mxu0
        %v3463 = vadd.f32 0.0, %v3462
        %v3464 = vpop.f32.mrf.mxu0
        %v3465 = vpop.f32.mrf.mxu0
        %v3466 = vadd.f32 0.0, %v3465
        %v3467 = vpop.f32.mrf.mxu0
        %3468 = vdwg.mxu0
        %v3469 = vadd.f32 %v3361, %v3463
        %v3470 = vadd.f32 %v3362, %v3466
        %s3471 = scalar_lea.vmem [#allocation7], 56
        %v3472 = vld [vmem:[%s3471] sm:$0xf]
        %v3473 = vld [vmem:[%s3471 + $0x4] sm:$0xf]
        %v3476 = vunpack.c.l.b16 %v3472
        %v3477 = vunpack.c.l.b16 %v3473
        %v3478 = vpack.c.b16 %v3477, %v3476
        %v3480 = vsel %vm2726, %v3478, 0
        %3482 = vmatprep.subr.bf16.mxu0 0
        %3483 = vmatpush1.bf16.msra.mxu0 0
        %3484 = vmatprep.subr.bf16.mxu0 0
        %3485 = vmatpush1.bf16.msra.mxu0 0
        %3486 = vmatprep.subr.bf16.mxu0 0
        %3487 = vmatpush1.bf16.msra.mxu0 0
        %3488 = vmatprep.subr.bf16.mxu0 0
        %3489 = vmatpush1.bf16.msra.mxu0 0
        %3490 = vmatprep.subr.bf16.mxu0 0
        %3491 = vmatpush1.bf16.msra.mxu0 %v2718
        %3492 = vmatprep.subr.bf16.mxu0 0
        %3493 = vmatpush1.bf16.msra.mxu0 %v2717
        %3494 = vmatprep.subr.bf16.mxu0 0
        %3495 = vmatpush1.bf16.msra.mxu0 %v2716
        %3496 = vmatprep.subr.bf16.mxu0 0
        %3497 = vmatpush1.bf16.msra.mxu0 %v2715
        %3498 = vmatprep.subr.bf16.mxu0 0
        %3499 = vmatpush2.bf16.msra.mxu0 0
        %3500 = vmatprep.subr.bf16.mxu0 0
        %3501 = vmatpush2.bf16.msra.mxu0 0
        %3502 = vmatprep.subr.bf16.mxu0 0
        %3503 = vmatpush2.bf16.msra.mxu0 0
        %3504 = vmatprep.subr.bf16.mxu0 0
        %3505 = vmatpush2.bf16.msra.mxu0 0
        %3506 = vmatprep.subr.bf16.mxu0 0
        %3507 = vmatpush2.bf16.msra.mxu0 0
        %3508 = vmatprep.subr.bf16.mxu0 0
        %3509 = vmatpush2.bf16.msra.mxu0 0
        %3510 = vmatprep.subr.bf16.mxu0 0
        %3511 = vmatpush2.bf16.msra.mxu0 0
        %3512 = vmatprep.subr.bf16.mxu0 0
        %3513 = vmatpush2.bf16.msra.mxu0 0
        %3514 = vmatprep.mubr.bf16.mxu0 0
        %3515 = vmatmul.mubr.bf16.gmra.mxu0 %v3480
        %v3516 = vpop.f32.mrf.mxu0
        %v3517 = vadd.f32 0.0, %v3516
        %v3518 = vpop.f32.mrf.mxu0
        %v3519 = vpop.f32.mrf.mxu0
        %v3520 = vadd.f32 0.0, %v3519
        %v3521 = vpop.f32.mrf.mxu0
        %3522 = vdwg.mxu0
        %v3523 = vpack.c.bf16 %v3520, %v3517
        %s3524 = scalar_lea.vmem [#allocation8], 56
        %v3525 = vld [vmem:[%s3524] sm:$0xf]
        %v3526 = vld [vmem:[%s3524 + $0x4] sm:$0xf]
        %v3529 = vunpack.c.l.b16 %v3525
        %v3530 = vunpack.c.l.b16 %v3526
        %v3531 = vpack.c.b16 %v3530, %v3529
        %v3534 = vsel %vm2836, %v3523, 0
        %3536 = vmatprep.subr.bf16.mxu0 0
        %3537 = vmatpush1.bf16.msra.mxu0 0
        %3538 = vmatprep.subr.bf16.mxu0 0
        %3539 = vmatpush1.bf16.msra.mxu0 0
        %3540 = vmatprep.subr.bf16.mxu0 0
        %3541 = vmatpush1.bf16.msra.mxu0 0
        %3542 = vmatprep.subr.bf16.mxu0 0
        %3543 = vmatpush1.bf16.msra.mxu0 0
        %3544 = vmatprep.subr.bf16.mxu0 0
        %3545 = vmatpush1.bf16.msra.mxu0 0
        %3546 = vmatprep.subr.bf16.mxu0 0
        %3547 = vmatpush1.bf16.msra.mxu0 0
        %3548 = vmatprep.subr.bf16.mxu0 0
        %3549 = vmatpush1.bf16.msra.mxu0 0
        %3550 = vmatprep.subr.bf16.mxu0 0
        %3551 = vmatpush1.bf16.msra.mxu0 %v3531
        %3552 = vmatprep.subr.bf16.mxu0 0
        %3553 = vmatpush2.bf16.msra.mxu0 0
        %3554 = vmatprep.subr.bf16.mxu0 0
        %3555 = vmatpush2.bf16.msra.mxu0 0
        %3556 = vmatprep.subr.bf16.mxu0 0
        %3557 = vmatpush2.bf16.msra.mxu0 0
        %3558 = vmatprep.subr.bf16.mxu0 0
        %3559 = vmatpush2.bf16.msra.mxu0 0
        %3560 = vmatprep.subr.bf16.mxu0 0
        %3561 = vmatpush2.bf16.msra.mxu0 0
        %3562 = vmatprep.subr.bf16.mxu0 0
        %3563 = vmatpush2.bf16.msra.mxu0 0
        %3564 = vmatprep.subr.bf16.mxu0 0
        %3565 = vmatpush2.bf16.msra.mxu0 0
        %3566 = vmatprep.subr.bf16.mxu0 0
        %3567 = vmatpush2.bf16.msra.mxu0 0
        %3568 = vmatprep.mubr.bf16.mxu0 0
        %3569 = vmatmul.mubr.bf16.gmra.mxu0 %v3534
        %v3570 = vpop.f32.mrf.mxu0
        %v3571 = vadd.f32 0.0, %v3570
        %v3572 = vpop.f32.mrf.mxu0
        %v3573 = vpop.f32.mrf.mxu0
        %v3574 = vadd.f32 0.0, %v3573
        %v3575 = vpop.f32.mrf.mxu0
        %3576 = vdwg.mxu0
        %v3577 = vadd.f32 %v3469, %v3571
        %v3578 = vadd.f32 %v3470, %v3574
        %s3579 = scalar_lea.vmem [#allocation7], 64
        %v3580 = vld [vmem:[%s3579] sm:$0xf]
        %v3581 = vld [vmem:[%s3579 + $0x4] sm:$0xf]
        %v3584 = vunpack.c.l.b16 %v3580
        %v3585 = vunpack.c.l.b16 %v3581
        %v3586 = vpack.c.b16 %v3585, %v3584
        %v3588 = vsel %vm2726, %v3586, 0
        %3590 = vmatprep.subr.bf16.mxu0 0
        %3591 = vmatpush1.bf16.msra.mxu0 0
        %3592 = vmatprep.subr.bf16.mxu0 0
        %3593 = vmatpush1.bf16.msra.mxu0 0
        %3594 = vmatprep.subr.bf16.mxu0 0
        %3595 = vmatpush1.bf16.msra.mxu0 0
        %3596 = vmatprep.subr.bf16.mxu0 0
        %3597 = vmatpush1.bf16.msra.mxu0 0
        %3598 = vmatprep.subr.bf16.mxu0 0
        %3599 = vmatpush1.bf16.msra.mxu0 %v2718
        %3600 = vmatprep.subr.bf16.mxu0 0
        %3601 = vmatpush1.bf16.msra.mxu0 %v2717
        %3602 = vmatprep.subr.bf16.mxu0 0
        %3603 = vmatpush1.bf16.msra.mxu0 %v2716
        %3604 = vmatprep.subr.bf16.mxu0 0
        %3605 = vmatpush1.bf16.msra.mxu0 %v2715
        %3606 = vmatprep.subr.bf16.mxu0 0
        %3607 = vmatpush2.bf16.msra.mxu0 0
        %3608 = vmatprep.subr.bf16.mxu0 0
        %3609 = vmatpush2.bf16.msra.mxu0 0
        %3610 = vmatprep.subr.bf16.mxu0 0
        %3611 = vmatpush2.bf16.msra.mxu0 0
        %3612 = vmatprep.subr.bf16.mxu0 0
        %3613 = vmatpush2.bf16.msra.mxu0 0
        %3614 = vmatprep.subr.bf16.mxu0 0
        %3615 = vmatpush2.bf16.msra.mxu0 0
        %3616 = vmatprep.subr.bf16.mxu0 0
        %3617 = vmatpush2.bf16.msra.mxu0 0
        %3618 = vmatprep.subr.bf16.mxu0 0
        %3619 = vmatpush2.bf16.msra.mxu0 0
        %3620 = vmatprep.subr.bf16.mxu0 0
        %3621 = vmatpush2.bf16.msra.mxu0 0
        %3622 = vmatprep.mubr.bf16.mxu0 0
        %3623 = vmatmul.mubr.bf16.gmra.mxu0 %v3588
        %v3624 = vpop.f32.mrf.mxu0
        %v3625 = vadd.f32 0.0, %v3624
        %v3626 = vpop.f32.mrf.mxu0
        %v3627 = vpop.f32.mrf.mxu0
        %v3628 = vadd.f32 0.0, %v3627
        %v3629 = vpop.f32.mrf.mxu0
        %3630 = vdwg.mxu0
        %v3631 = vpack.c.bf16 %v3628, %v3625
        %s3632 = scalar_lea.vmem [#allocation8], 64
        %v3633 = vld [vmem:[%s3632] sm:$0xf]
        %v3634 = vld [vmem:[%s3632 + $0x4] sm:$0xf]
        %v3637 = vunpack.c.l.b16 %v3633
        %v3638 = vunpack.c.l.b16 %v3634
        %v3639 = vpack.c.b16 %v3638, %v3637
        %v3642 = vsel %vm2836, %v3631, 0
        %3644 = vmatprep.subr.bf16.mxu0 0
        %3645 = vmatpush1.bf16.msra.mxu0 0
        %3646 = vmatprep.subr.bf16.mxu0 0
        %3647 = vmatpush1.bf16.msra.mxu0 0
        %3648 = vmatprep.subr.bf16.mxu0 0
        %3649 = vmatpush1.bf16.msra.mxu0 0
        %3650 = vmatprep.subr.bf16.mxu0 0
        %3651 = vmatpush1.bf16.msra.mxu0 0
        %3652 = vmatprep.subr.bf16.mxu0 0
        %3653 = vmatpush1.bf16.msra.mxu0 0
        %3654 = vmatprep.subr.bf16.mxu0 0
        %3655 = vmatpush1.bf16.msra.mxu0 0
        %3656 = vmatprep.subr.bf16.mxu0 0
        %3657 = vmatpush1.bf16.msra.mxu0 0
        %3658 = vmatprep.subr.bf16.mxu0 0
        %3659 = vmatpush1.bf16.msra.mxu0 %v3639
        %3660 = vmatprep.subr.bf16.mxu0 0
        %3661 = vmatpush2.bf16.msra.mxu0 0
        %3662 = vmatprep.subr.bf16.mxu0 0
        %3663 = vmatpush2.bf16.msra.mxu0 0
        %3664 = vmatprep.subr.bf16.mxu0 0
        %3665 = vmatpush2.bf16.msra.mxu0 0
        %3666 = vmatprep.subr.bf16.mxu0 0
        %3667 = vmatpush2.bf16.msra.mxu0 0
        %3668 = vmatprep.subr.bf16.mxu0 0
        %3669 = vmatpush2.bf16.msra.mxu0 0
        %3670 = vmatprep.subr.bf16.mxu0 0
        %3671 = vmatpush2.bf16.msra.mxu0 0
        %3672 = vmatprep.subr.bf16.mxu0 0
        %3673 = vmatpush2.bf16.msra.mxu0 0
        %3674 = vmatprep.subr.bf16.mxu0 0
        %3675 = vmatpush2.bf16.msra.mxu0 0
        %3676 = vmatprep.mubr.bf16.mxu0 0
        %3677 = vmatmul.mubr.bf16.gmra.mxu0 %v3642
        %v3678 = vpop.f32.mrf.mxu0
        %v3679 = vadd.f32 0.0, %v3678
        %v3680 = vpop.f32.mrf.mxu0
        %v3681 = vpop.f32.mrf.mxu0
        %v3682 = vadd.f32 0.0, %v3681
        %v3683 = vpop.f32.mrf.mxu0
        %3684 = vdwg.mxu0
        %v3685 = vadd.f32 %v3577, %v3679
        %v3686 = vadd.f32 %v3578, %v3682
        %v3687 = vld [vmem:[%s7] sm:$0x1]
        %v3689 = vlaneseq
        %v3690 = vshrl.u32 %v3689, 7
        %v3691 = vsub.s32 0, %v3690
        %v3692 = vrot.slane %v3687, %v3691
        %v3694 = vmul.f32 %v3685, %v3692
        %v3695 = vmul.f32 %v3686, %v3692
        %v3696 = vld [vmem:[%s8] sm:$0x1]
        %v3698 = vlaneseq
        %v3699 = vshrl.u32 %v3698, 7
        %v3700 = vsub.s32 0, %v3699
        %v3701 = vrot.slane %v3696, %v3700
        %v3703 = vadd.f32 %v3694, %v3701
        %v3704 = vadd.f32 %v3695, %v3701
        %v3705 = vmax.f32 %v3703, 0.0
        %v3706 = vmax.f32 %v3704, 0.0
        %v3707 = vpack.c.bf16 %v3706, %v3705
        %v3708 = vld [vmem:[#allocation10] sm:$0x3]
        %v3710 = vsel %vm2836, %v3708, 0
        %3712 = vmatprep.subr.bf16.mxu0 0
        %3713 = vmatpush1.bf16.msra.mxu0 0
        %3714 = vmatprep.subr.bf16.mxu0 0
        %3715 = vmatpush1.bf16.msra.mxu0 0
        %3716 = vmatprep.subr.bf16.mxu0 0
        %3717 = vmatpush1.bf16.msra.mxu0 0
        %3718 = vmatprep.subr.bf16.mxu0 0
        %3719 = vmatpush1.bf16.msra.mxu0 0
        %3720 = vmatprep.subr.bf16.mxu0 0
        %3721 = vmatpush1.bf16.msra.mxu0 0
        %3722 = vmatprep.subr.bf16.mxu0 0
        %3723 = vmatpush1.bf16.msra.mxu0 0
        %3724 = vmatprep.subr.bf16.mxu0 0
        %3725 = vmatpush1.bf16.msra.mxu0 0
        %3726 = vmatprep.subr.bf16.mxu0 0
        %3727 = vmatpush1.bf16.msra.mxu0 %v3707
        %3728 = vmatprep.subr.bf16.mxu0 0
        %3729 = vmatpush2.bf16.msra.mxu0 0
        %3730 = vmatprep.subr.bf16.mxu0 0
        %3731 = vmatpush2.bf16.msra.mxu0 0
        %3732 = vmatprep.subr.bf16.mxu0 0
        %3733 = vmatpush2.bf16.msra.mxu0 0
        %3734 = vmatprep.subr.bf16.mxu0 0
        %3735 = vmatpush2.bf16.msra.mxu0 0
        %3736 = vmatprep.subr.bf16.mxu0 0
        %3737 = vmatpush2.bf16.msra.mxu0 0
        %3738 = vmatprep.subr.bf16.mxu0 0
        %3739 = vmatpush2.bf16.msra.mxu0 0
        %3740 = vmatprep.subr.bf16.mxu0 0
        %3741 = vmatpush2.bf16.msra.mxu0 0
        %3742 = vmatprep.subr.bf16.mxu0 0
        %3743 = vmatpush2.bf16.msra.mxu0 0
        %3744 = vmatprep.mubr.bf16.mxu0 0
        %3745 = vmatmul.mubr.bf16.gmra.mxu0 %v3710
        %v3746 = vpop.f32.mrf.mxu0
        %v3747 = vadd.f32 0.0, %v3746
        %v3748 = vpop.f32.mrf.mxu0
        %v3749 = vpop.f32.mrf.mxu0
        %v3750 = vpop.f32.mrf.mxu0
        %3751 = vdwg.mxu0
        %v3752 = vpack.c.bf16 %v3747, %v3747
        %v3753 = vld [vmem:[#allocation11] sm:$0xf]
        %v3754 = vld [vmem:[#allocation11 + $0x4] sm:$0xf]
        %v3755 = vld [vmem:[#allocation11 + $0x8] sm:$0xf]
        %v3756 = vld [vmem:[#allocation11 + $0xc] sm:$0xf]
        %s3757 = scalar_lea.vmem [#allocation10], 2
        %v3758 = vld [vmem:[%s3757] sm:$0x3]
        %v3760 = vsel %vm2836, %v3758, 0
        %3762 = vmatprep.subr.bf16.mxu0 0
        %3763 = vmatpush1.bf16.msra.mxu0 0
        %3764 = vmatprep.subr.bf16.mxu0 0
        %3765 = vmatpush1.bf16.msra.mxu0 0
        %3766 = vmatprep.subr.bf16.mxu0 0
        %3767 = vmatpush1.bf16.msra.mxu0 0
        %3768 = vmatprep.subr.bf16.mxu0 0
        %3769 = vmatpush1.bf16.msra.mxu0 0
        %3770 = vmatprep.subr.bf16.mxu0 0
        %3771 = vmatpush1.bf16.msra.mxu0 0
        %3772 = vmatprep.subr.bf16.mxu0 0
        %3773 = vmatpush1.bf16.msra.mxu0 0
        %3774 = vmatprep.subr.bf16.mxu0 0
        %3775 = vmatpush1.bf16.msra.mxu0 0
        %3776 = vmatprep.subr.bf16.mxu0 0
        %3777 = vmatpush1.bf16.msra.mxu0 %v3707
        %3778 = vmatprep.subr.bf16.mxu0 0
        %3779 = vmatpush2.bf16.msra.mxu0 0
        %3780 = vmatprep.subr.bf16.mxu0 0
        %3781 = vmatpush2.bf16.msra.mxu0 0
        %3782 = vmatprep.subr.bf16.mxu0 0
        %3783 = vmatpush2.bf16.msra.mxu0 0
        %3784 = vmatprep.subr.bf16.mxu0 0
        %3785 = vmatpush2.bf16.msra.mxu0 0
        %3786 = vmatprep.subr.bf16.mxu0 0
        %3787 = vmatpush2.bf16.msra.mxu0 0
        %3788 = vmatprep.subr.bf16.mxu0 0
        %3789 = vmatpush2.bf16.msra.mxu0 0
        %3790 = vmatprep.subr.bf16.mxu0 0
        %3791 = vmatpush2.bf16.msra.mxu0 0
        %3792 = vmatprep.subr.bf16.mxu0 0
        %3793 = vmatpush2.bf16.msra.mxu0 0
        %3794 = vmatprep.mubr.bf16.mxu0 0
        %3795 = vmatmul.mubr.bf16.gmra.mxu0 %v3760
        %v3796 = vpop.f32.mrf.mxu0
        %v3797 = vadd.f32 0.0, %v3796
        %v3798 = vpop.f32.mrf.mxu0
        %v3799 = vpop.f32.mrf.mxu0
        %v3800 = vpop.f32.mrf.mxu0
        %3801 = vdwg.mxu0
        %v3802 = vpack.c.bf16 %v3797, %v3797
        %s3803 = scalar_lea.vmem [#allocation11], 16
        %v3804 = vld [vmem:[%s3803] sm:$0xf]
        %v3805 = vld [vmem:[%s3803 + $0x4] sm:$0xf]
        %v3806 = vld [vmem:[%s3803 + $0x8] sm:$0xf]
        %v3807 = vld [vmem:[%s3803 + $0xc] sm:$0xf]
        %v3812 = vunpack.c.l.b16 %v3804
        %v3813 = vunpack.c.l.b16 %v3805
        %v3814 = vunpack.c.l.b16 %v3806
        %v3815 = vunpack.c.l.b16 %v3807
        %v3816 = vpack.c.b16 %v3813, %v3812
        %v3817 = vpack.c.b16 %v3815, %v3814
        %vm3820 = vcmask 261120
        %v3822 = vsel %vm3820, %v3802, 0
        %3824 = vmatprep.subr.bf16.mxu0 0
        %3825 = vmatpush1.bf16.msra.mxu0 0
        %3826 = vmatprep.subr.bf16.mxu0 0
        %3827 = vmatpush1.bf16.msra.mxu0 0
        %3828 = vmatprep.subr.bf16.mxu0 0
        %3829 = vmatpush1.bf16.msra.mxu0 0
        %3830 = vmatprep.subr.bf16.mxu0 0
        %3831 = vmatpush1.bf16.msra.mxu0 0
        %3832 = vmatprep.subr.bf16.mxu0 0
        %3833 = vmatpush1.bf16.msra.mxu0 0
        %3834 = vmatprep.subr.bf16.mxu0 0
        %3835 = vmatpush1.bf16.msra.mxu0 0
        %3836 = vmatprep.subr.bf16.mxu0 0
        %3837 = vmatpush1.bf16.msra.mxu0 %v3817
        %3838 = vmatprep.subr.bf16.mxu0 0
        %3839 = vmatpush1.bf16.msra.mxu0 %v3816
        %3840 = vmatprep.subr.bf16.mxu0 0
        %3841 = vmatpush2.bf16.msra.mxu0 0
        %3842 = vmatprep.subr.bf16.mxu0 0
        %3843 = vmatpush2.bf16.msra.mxu0 0
        %3844 = vmatprep.subr.bf16.mxu0 0
        %3845 = vmatpush2.bf16.msra.mxu0 0
        %3846 = vmatprep.subr.bf16.mxu0 0
        %3847 = vmatpush2.bf16.msra.mxu0 0
        %3848 = vmatprep.subr.bf16.mxu0 0
        %3849 = vmatpush2.bf16.msra.mxu0 0
        %3850 = vmatprep.subr.bf16.mxu0 0
        %3851 = vmatpush2.bf16.msra.mxu0 0
        %3852 = vmatprep.subr.bf16.mxu0 0
        %3853 = vmatpush2.bf16.msra.mxu0 0
        %3854 = vmatprep.subr.bf16.mxu0 0
        %3855 = vmatpush2.bf16.msra.mxu0 0
        %3856 = vmatprep.mubr.bf16.mxu0 0
        %3857 = vmatmul.mubr.bf16.gmra.mxu0 %v3822
        %v3858 = vpop.f32.mrf.mxu0
        %v3859 = vadd.f32 0.0, %v3858
        %v3860 = vpop.f32.mrf.mxu0
        %v3861 = vpop.f32.mrf.mxu0
        %v3862 = vpop.f32.mrf.mxu0
        %3863 = vdwg.mxu0
        %v3868 = vunpack.c.l.b16 %v3753
        %v3869 = vunpack.c.l.b16 %v3754
        %v3870 = vunpack.c.l.b16 %v3755
        %v3871 = vunpack.c.l.b16 %v3756
        %v3872 = vpack.c.b16 %v3869, %v3868
        %v3873 = vpack.c.b16 %v3871, %v3870
        %v3877 = vsel %vm3820, %v3752, 0
        %3879 = vmatprep.subr.bf16.mxu0 0
        %3880 = vmatpush1.bf16.msra.mxu0 0
        %3881 = vmatprep.subr.bf16.mxu0 0
        %3882 = vmatpush1.bf16.msra.mxu0 0
        %3883 = vmatprep.subr.bf16.mxu0 0
        %3884 = vmatpush1.bf16.msra.mxu0 0
        %3885 = vmatprep.subr.bf16.mxu0 0
        %3886 = vmatpush1.bf16.msra.mxu0 0
        %3887 = vmatprep.subr.bf16.mxu0 0
        %3888 = vmatpush1.bf16.msra.mxu0 0
        %3889 = vmatprep.subr.bf16.mxu0 0
        %3890 = vmatpush1.bf16.msra.mxu0 0
        %3891 = vmatprep.subr.bf16.mxu0 0
        %3892 = vmatpush1.bf16.msra.mxu0 %v3873
        %3893 = vmatprep.subr.bf16.mxu0 0
        %3894 = vmatpush1.bf16.msra.mxu0 %v3872
        %3895 = vmatprep.subr.bf16.mxu0 0
        %3896 = vmatpush2.bf16.msra.mxu0 0
        %3897 = vmatprep.subr.bf16.mxu0 0
        %3898 = vmatpush2.bf16.msra.mxu0 0
        %3899 = vmatprep.subr.bf16.mxu0 0
        %3900 = vmatpush2.bf16.msra.mxu0 0
        %3901 = vmatprep.subr.bf16.mxu0 0
        %3902 = vmatpush2.bf16.msra.mxu0 0
        %3903 = vmatprep.subr.bf16.mxu0 0
        %3904 = vmatpush2.bf16.msra.mxu0 0
        %3905 = vmatprep.subr.bf16.mxu0 0
        %3906 = vmatpush2.bf16.msra.mxu0 0
        %3907 = vmatprep.subr.bf16.mxu0 0
        %3908 = vmatpush2.bf16.msra.mxu0 0
        %3909 = vmatprep.subr.bf16.mxu0 0
        %3910 = vmatpush2.bf16.msra.mxu0 0
        %3911 = vmatprep.mubr.bf16.mxu0 0
        %3912 = vmatmul.mubr.bf16.gmra.mxu0 %v3877
        %v3913 = vpop.f32.mrf.mxu0
        %v3914 = vadd.f32 %v3859, %v3913
        %v3915 = vpop.f32.mrf.mxu0
        %v3916 = vpop.f32.mrf.mxu0
        %v3917 = vpop.f32.mrf.mxu0
        %3918 = vdwg.mxu0
        %s3919 = scalar_lea.vmem [#allocation10], 4
        %v3920 = vld [vmem:[%s3919] sm:$0x3]
        %v3922 = vsel %vm2836, %v3920, 0
        %3924 = vmatprep.subr.bf16.mxu0 0
        %3925 = vmatpush1.bf16.msra.mxu0 0
        %3926 = vmatprep.subr.bf16.mxu0 0
        %3927 = vmatpush1.bf16.msra.mxu0 0
        %3928 = vmatprep.subr.bf16.mxu0 0
        %3929 = vmatpush1.bf16.msra.mxu0 0
        %3930 = vmatprep.subr.bf16.mxu0 0
        %3931 = vmatpush1.bf16.msra.mxu0 0
        %3932 = vmatprep.subr.bf16.mxu0 0
        %3933 = vmatpush1.bf16.msra.mxu0 0
        %3934 = vmatprep.subr.bf16.mxu0 0
        %3935 = vmatpush1.bf16.msra.mxu0 0
        %3936 = vmatprep.subr.bf16.mxu0 0
        %3937 = vmatpush1.bf16.msra.mxu0 0
        %3938 = vmatprep.subr.bf16.mxu0 0
        %3939 = vmatpush1.bf16.msra.mxu0 %v3707
        %3940 = vmatprep.subr.bf16.mxu0 0
        %3941 = vmatpush2.bf16.msra.mxu0 0
        %3942 = vmatprep.subr.bf16.mxu0 0
        %3943 = vmatpush2.bf16.msra.mxu0 0
        %3944 = vmatprep.subr.bf16.mxu0 0
        %3945 = vmatpush2.bf16.msra.mxu0 0
        %3946 = vmatprep.subr.bf16.mxu0 0
        %3947 = vmatpush2.bf16.msra.mxu0 0
        %3948 = vmatprep.subr.bf16.mxu0 0
        %3949 = vmatpush2.bf16.msra.mxu0 0
        %3950 = vmatprep.subr.bf16.mxu0 0
        %3951 = vmatpush2.bf16.msra.mxu0 0
        %3952 = vmatprep.subr.bf16.mxu0 0
        %3953 = vmatpush2.bf16.msra.mxu0 0
        %3954 = vmatprep.subr.bf16.mxu0 0
        %3955 = vmatpush2.bf16.msra.mxu0 0
        %3956 = vmatprep.mubr.bf16.mxu0 0
        %3957 = vmatmul.mubr.bf16.gmra.mxu0 %v3922
        %v3958 = vpop.f32.mrf.mxu0
        %v3959 = vadd.f32 0.0, %v3958
        %v3960 = vpop.f32.mrf.mxu0
        %v3961 = vpop.f32.mrf.mxu0
        %v3962 = vpop.f32.mrf.mxu0
        %3963 = vdwg.mxu0
        %v3964 = vpack.c.bf16 %v3959, %v3959
        %s3965 = scalar_lea.vmem [#allocation11], 32
        %v3966 = vld [vmem:[%s3965] sm:$0xf]
        %v3967 = vld [vmem:[%s3965 + $0x4] sm:$0xf]
        %v3968 = vld [vmem:[%s3965 + $0x8] sm:$0xf]
        %v3969 = vld [vmem:[%s3965 + $0xc] sm:$0xf]
        %v3974 = vunpack.c.l.b16 %v3966
        %v3975 = vunpack.c.l.b16 %v3967
        %v3976 = vunpack.c.l.b16 %v3968
        %v3977 = vunpack.c.l.b16 %v3969
        %v3978 = vpack.c.b16 %v3975, %v3974
        %v3979 = vpack.c.b16 %v3977, %v3976
        %v3983 = vsel %vm3820, %v3964, 0
        %3985 = vmatprep.subr.bf16.mxu0 0
        %3986 = vmatpush1.bf16.msra.mxu0 0
        %3987 = vmatprep.subr.bf16.mxu0 0
        %3988 = vmatpush1.bf16.msra.mxu0 0
        %3989 = vmatprep.subr.bf16.mxu0 0
        %3990 = vmatpush1.bf16.msra.mxu0 0
        %3991 = vmatprep.subr.bf16.mxu0 0
        %3992 = vmatpush1.bf16.msra.mxu0 0
        %3993 = vmatprep.subr.bf16.mxu0 0
        %3994 = vmatpush1.bf16.msra.mxu0 0
        %3995 = vmatprep.subr.bf16.mxu0 0
        %3996 = vmatpush1.bf16.msra.mxu0 0
        %3997 = vmatprep.subr.bf16.mxu0 0
        %3998 = vmatpush1.bf16.msra.mxu0 %v3979
        %3999 = vmatprep.subr.bf16.mxu0 0
        %4000 = vmatpush1.bf16.msra.mxu0 %v3978
        %4001 = vmatprep.subr.bf16.mxu0 0
        %4002 = vmatpush2.bf16.msra.mxu0 0
        %4003 = vmatprep.subr.bf16.mxu0 0
        %4004 = vmatpush2.bf16.msra.mxu0 0
        %4005 = vmatprep.subr.bf16.mxu0 0
        %4006 = vmatpush2.bf16.msra.mxu0 0
        %4007 = vmatprep.subr.bf16.mxu0 0
        %4008 = vmatpush2.bf16.msra.mxu0 0
        %4009 = vmatprep.subr.bf16.mxu0 0
        %4010 = vmatpush2.bf16.msra.mxu0 0
        %4011 = vmatprep.subr.bf16.mxu0 0
        %4012 = vmatpush2.bf16.msra.mxu0 0
        %4013 = vmatprep.subr.bf16.mxu0 0
        %4014 = vmatpush2.bf16.msra.mxu0 0
        %4015 = vmatprep.subr.bf16.mxu0 0
        %4016 = vmatpush2.bf16.msra.mxu0 0
        %4017 = vmatprep.mubr.bf16.mxu0 0
        %4018 = vmatmul.mubr.bf16.gmra.mxu0 %v3983
        %v4019 = vpop.f32.mrf.mxu0
        %v4020 = vadd.f32 0.0, %v4019
        %v4021 = vpop.f32.mrf.mxu0
        %v4022 = vpop.f32.mrf.mxu0
        %v4023 = vpop.f32.mrf.mxu0
        %4024 = vdwg.mxu0
        %v4025 = vadd.f32 %v3914, %v4020
        %s4026 = scalar_lea.vmem [#allocation10], 6
        %v4027 = vld [vmem:[%s4026] sm:$0x3]
        %v4029 = vsel %vm2836, %v4027, 0
        %4031 = vmatprep.subr.bf16.mxu0 0
        %4032 = vmatpush1.bf16.msra.mxu0 0
        %4033 = vmatprep.subr.bf16.mxu0 0
        %4034 = vmatpush1.bf16.msra.mxu0 0
        %4035 = vmatprep.subr.bf16.mxu0 0
        %4036 = vmatpush1.bf16.msra.mxu0 0
        %4037 = vmatprep.subr.bf16.mxu0 0
        %4038 = vmatpush1.bf16.msra.mxu0 0
        %4039 = vmatprep.subr.bf16.mxu0 0
        %4040 = vmatpush1.bf16.msra.mxu0 0
        %4041 = vmatprep.subr.bf16.mxu0 0
        %4042 = vmatpush1.bf16.msra.mxu0 0
        %4043 = vmatprep.subr.bf16.mxu0 0
        %4044 = vmatpush1.bf16.msra.mxu0 0
        %4045 = vmatprep.subr.bf16.mxu0 0
        %4046 = vmatpush1.bf16.msra.mxu0 %v3707
        %4047 = vmatprep.subr.bf16.mxu0 0
        %4048 = vmatpush2.bf16.msra.mxu0 0
        %4049 = vmatprep.subr.bf16.mxu0 0
        %4050 = vmatpush2.bf16.msra.mxu0 0
        %4051 = vmatprep.subr.bf16.mxu0 0
        %4052 = vmatpush2.bf16.msra.mxu0 0
        %4053 = vmatprep.subr.bf16.mxu0 0
        %4054 = vmatpush2.bf16.msra.mxu0 0
        %4055 = vmatprep.subr.bf16.mxu0 0
        %4056 = vmatpush2.bf16.msra.mxu0 0
        %4057 = vmatprep.subr.bf16.mxu0 0
        %4058 = vmatpush2.bf16.msra.mxu0 0
        %4059 = vmatprep.subr.bf16.mxu0 0
        %4060 = vmatpush2.bf16.msra.mxu0 0
        %4061 = vmatprep.subr.bf16.mxu0 0
        %4062 = vmatpush2.bf16.msra.mxu0 0
        %4063 = vmatprep.mubr.bf16.mxu0 0
        %4064 = vmatmul.mubr.bf16.gmra.mxu0 %v4029
        %v4065 = vpop.f32.mrf.mxu0
        %v4066 = vadd.f32 0.0, %v4065
        %v4067 = vpop.f32.mrf.mxu0
        %v4068 = vpop.f32.mrf.mxu0
        %v4069 = vpop.f32.mrf.mxu0
        %4070 = vdwg.mxu0
        %v4071 = vpack.c.bf16 %v4066, %v4066
        %s4072 = scalar_lea.vmem [#allocation11], 48
        %v4073 = vld [vmem:[%s4072] sm:$0xf]
        %v4074 = vld [vmem:[%s4072 + $0x4] sm:$0xf]
        %v4075 = vld [vmem:[%s4072 + $0x8] sm:$0xf]
        %v4076 = vld [vmem:[%s4072 + $0xc] sm:$0xf]
        %v4081 = vunpack.c.l.b16 %v4073
        %v4082 = vunpack.c.l.b16 %v4074
        %v4083 = vunpack.c.l.b16 %v4075
        %v4084 = vunpack.c.l.b16 %v4076
        %v4085 = vpack.c.b16 %v4082, %v4081
        %v4086 = vpack.c.b16 %v4084, %v4083
        %v4090 = vsel %vm3820, %v4071, 0
        %4092 = vmatprep.subr.bf16.mxu0 0
        %4093 = vmatpush1.bf16.msra.mxu0 0
        %4094 = vmatprep.subr.bf16.mxu0 0
        %4095 = vmatpush1.bf16.msra.mxu0 0
        %4096 = vmatprep.subr.bf16.mxu0 0
        %4097 = vmatpush1.bf16.msra.mxu0 0
        %4098 = vmatprep.subr.bf16.mxu0 0
        %4099 = vmatpush1.bf16.msra.mxu0 0
        %4100 = vmatprep.subr.bf16.mxu0 0
        %4101 = vmatpush1.bf16.msra.mxu0 0
        %4102 = vmatprep.subr.bf16.mxu0 0
        %4103 = vmatpush1.bf16.msra.mxu0 0
        %4104 = vmatprep.subr.bf16.mxu0 0
        %4105 = vmatpush1.bf16.msra.mxu0 %v4086
        %4106 = vmatprep.subr.bf16.mxu0 0
        %4107 = vmatpush1.bf16.msra.mxu0 %v4085
        %4108 = vmatprep.subr.bf16.mxu0 0
        %4109 = vmatpush2.bf16.msra.mxu0 0
        %4110 = vmatprep.subr.bf16.mxu0 0
        %4111 = vmatpush2.bf16.msra.mxu0 0
        %4112 = vmatprep.subr.bf16.mxu0 0
        %4113 = vmatpush2.bf16.msra.mxu0 0
        %4114 = vmatprep.subr.bf16.mxu0 0
        %4115 = vmatpush2.bf16.msra.mxu0 0
        %4116 = vmatprep.subr.bf16.mxu0 0
        %4117 = vmatpush2.bf16.msra.mxu0 0
        %4118 = vmatprep.subr.bf16.mxu0 0
        %4119 = vmatpush2.bf16.msra.mxu0 0
        %4120 = vmatprep.subr.bf16.mxu0 0
        %4121 = vmatpush2.bf16.msra.mxu0 0
        %4122 = vmatprep.subr.bf16.mxu0 0
        %4123 = vmatpush2.bf16.msra.mxu0 0
        %4124 = vmatprep.mubr.bf16.mxu0 0
        %4125 = vmatmul.mubr.bf16.gmra.mxu0 %v4090
        %v4126 = vpop.f32.mrf.mxu0
        %v4127 = vadd.f32 0.0, %v4126
        %v4128 = vpop.f32.mrf.mxu0
        %v4129 = vpop.f32.mrf.mxu0
        %v4130 = vpop.f32.mrf.mxu0
        %4131 = vdwg.mxu0
        %v4132 = vadd.f32 %v4025, %v4127
        %s4133 = scalar_lea.vmem [#allocation10], 8
        %v4134 = vld [vmem:[%s4133] sm:$0x3]
        %v4136 = vsel %vm2836, %v4134, 0
        %4138 = vmatprep.subr.bf16.mxu0 0
        %4139 = vmatpush1.bf16.msra.mxu0 0
        %4140 = vmatprep.subr.bf16.mxu0 0
        %4141 = vmatpush1.bf16.msra.mxu0 0
        %4142 = vmatprep.subr.bf16.mxu0 0
        %4143 = vmatpush1.bf16.msra.mxu0 0
        %4144 = vmatprep.subr.bf16.mxu0 0
        %4145 = vmatpush1.bf16.msra.mxu0 0
        %4146 = vmatprep.subr.bf16.mxu0 0
        %4147 = vmatpush1.bf16.msra.mxu0 0
        %4148 = vmatprep.subr.bf16.mxu0 0
        %4149 = vmatpush1.bf16.msra.mxu0 0
        %4150 = vmatprep.subr.bf16.mxu0 0
        %4151 = vmatpush1.bf16.msra.mxu0 0
        %4152 = vmatprep.subr.bf16.mxu0 0
        %4153 = vmatpush1.bf16.msra.mxu0 %v3707
        %4154 = vmatprep.subr.bf16.mxu0 0
        %4155 = vmatpush2.bf16.msra.mxu0 0
        %4156 = vmatprep.subr.bf16.mxu0 0
        %4157 = vmatpush2.bf16.msra.mxu0 0
        %4158 = vmatprep.subr.bf16.mxu0 0
        %4159 = vmatpush2.bf16.msra.mxu0 0
        %4160 = vmatprep.subr.bf16.mxu0 0
        %4161 = vmatpush2.bf16.msra.mxu0 0
        %4162 = vmatprep.subr.bf16.mxu0 0
        %4163 = vmatpush2.bf16.msra.mxu0 0
        %4164 = vmatprep.subr.bf16.mxu0 0
        %4165 = vmatpush2.bf16.msra.mxu0 0
        %4166 = vmatprep.subr.bf16.mxu0 0
        %4167 = vmatpush2.bf16.msra.mxu0 0
        %4168 = vmatprep.subr.bf16.mxu0 0
        %4169 = vmatpush2.bf16.msra.mxu0 0
        %4170 = vmatprep.mubr.bf16.mxu0 0
        %4171 = vmatmul.mubr.bf16.gmra.mxu0 %v4136
        %v4172 = vpop.f32.mrf.mxu0
        %v4173 = vadd.f32 0.0, %v4172
        %v4174 = vpop.f32.mrf.mxu0
        %v4175 = vpop.f32.mrf.mxu0
        %v4176 = vpop.f32.mrf.mxu0
        %4177 = vdwg.mxu0
        %v4178 = vpack.c.bf16 %v4173, %v4173
        %s4179 = scalar_lea.vmem [#allocation11], 64
        %v4180 = vld [vmem:[%s4179] sm:$0xf]
        %v4181 = vld [vmem:[%s4179 + $0x4] sm:$0xf]
        %v4182 = vld [vmem:[%s4179 + $0x8] sm:$0xf]
        %v4183 = vld [vmem:[%s4179 + $0xc] sm:$0xf]
        %v4188 = vunpack.c.l.b16 %v4180
        %v4189 = vunpack.c.l.b16 %v4181
        %v4190 = vunpack.c.l.b16 %v4182
        %v4191 = vunpack.c.l.b16 %v4183
        %v4192 = vpack.c.b16 %v4189, %v4188
        %v4193 = vpack.c.b16 %v4191, %v4190
        %v4197 = vsel %vm3820, %v4178, 0
        %4199 = vmatprep.subr.bf16.mxu0 0
        %4200 = vmatpush1.bf16.msra.mxu0 0
        %4201 = vmatprep.subr.bf16.mxu0 0
        %4202 = vmatpush1.bf16.msra.mxu0 0
        %4203 = vmatprep.subr.bf16.mxu0 0
        %4204 = vmatpush1.bf16.msra.mxu0 0
        %4205 = vmatprep.subr.bf16.mxu0 0
        %4206 = vmatpush1.bf16.msra.mxu0 0
        %4207 = vmatprep.subr.bf16.mxu0 0
        %4208 = vmatpush1.bf16.msra.mxu0 0
        %4209 = vmatprep.subr.bf16.mxu0 0
        %4210 = vmatpush1.bf16.msra.mxu0 0
        %4211 = vmatprep.subr.bf16.mxu0 0
        %4212 = vmatpush1.bf16.msra.mxu0 %v4193
        %4213 = vmatprep.subr.bf16.mxu0 0
        %4214 = vmatpush1.bf16.msra.mxu0 %v4192
        %4215 = vmatprep.subr.bf16.mxu0 0
        %4216 = vmatpush2.bf16.msra.mxu0 0
        %4217 = vmatprep.subr.bf16.mxu0 0
        %4218 = vmatpush2.bf16.msra.mxu0 0
        %4219 = vmatprep.subr.bf16.mxu0 0
        %4220 = vmatpush2.bf16.msra.mxu0 0
        %4221 = vmatprep.subr.bf16.mxu0 0
        %4222 = vmatpush2.bf16.msra.mxu0 0
        %4223 = vmatprep.subr.bf16.mxu0 0
        %4224 = vmatpush2.bf16.msra.mxu0 0
        %4225 = vmatprep.subr.bf16.mxu0 0
        %4226 = vmatpush2.bf16.msra.mxu0 0
        %4227 = vmatprep.subr.bf16.mxu0 0
        %4228 = vmatpush2.bf16.msra.mxu0 0
        %4229 = vmatprep.subr.bf16.mxu0 0
        %4230 = vmatpush2.bf16.msra.mxu0 0
        %4231 = vmatprep.mubr.bf16.mxu0 0
        %4232 = vmatmul.mubr.bf16.gmra.mxu0 %v4197
        %v4233 = vpop.f32.mrf.mxu0
        %v4234 = vadd.f32 0.0, %v4233
        %v4235 = vpop.f32.mrf.mxu0
        %v4236 = vpop.f32.mrf.mxu0
        %v4237 = vpop.f32.mrf.mxu0
        %4238 = vdwg.mxu0
        %v4239 = vadd.f32 %v4132, %v4234
        %s4240 = scalar_lea.vmem [#allocation10], 10
        %v4241 = vld [vmem:[%s4240] sm:$0x3]
        %v4243 = vsel %vm2836, %v4241, 0
        %4245 = vmatprep.subr.bf16.mxu0 0
        %4246 = vmatpush1.bf16.msra.mxu0 0
        %4247 = vmatprep.subr.bf16.mxu0 0
        %4248 = vmatpush1.bf16.msra.mxu0 0
        %4249 = vmatprep.subr.bf16.mxu0 0
        %4250 = vmatpush1.bf16.msra.mxu0 0
        %4251 = vmatprep.subr.bf16.mxu0 0
        %4252 = vmatpush1.bf16.msra.mxu0 0
        %4253 = vmatprep.subr.bf16.mxu0 0
        %4254 = vmatpush1.bf16.msra.mxu0 0
        %4255 = vmatprep.subr.bf16.mxu0 0
        %4256 = vmatpush1.bf16.msra.mxu0 0
        %4257 = vmatprep.subr.bf16.mxu0 0
        %4258 = vmatpush1.bf16.msra.mxu0 0
        %4259 = vmatprep.subr.bf16.mxu0 0
        %4260 = vmatpush1.bf16.msra.mxu0 %v3707
        %4261 = vmatprep.subr.bf16.mxu0 0
        %4262 = vmatpush2.bf16.msra.mxu0 0
        %4263 = vmatprep.subr.bf16.mxu0 0
        %4264 = vmatpush2.bf16.msra.mxu0 0
        %4265 = vmatprep.subr.bf16.mxu0 0
        %4266 = vmatpush2.bf16.msra.mxu0 0
        %4267 = vmatprep.subr.bf16.mxu0 0
        %4268 = vmatpush2.bf16.msra.mxu0 0
        %4269 = vmatprep.subr.bf16.mxu0 0
        %4270 = vmatpush2.bf16.msra.mxu0 0
        %4271 = vmatprep.subr.bf16.mxu0 0
        %4272 = vmatpush2.bf16.msra.mxu0 0
        %4273 = vmatprep.subr.bf16.mxu0 0
        %4274 = vmatpush2.bf16.msra.mxu0 0
        %4275 = vmatprep.subr.bf16.mxu0 0
        %4276 = vmatpush2.bf16.msra.mxu0 0
        %4277 = vmatprep.mubr.bf16.mxu0 0
        %4278 = vmatmul.mubr.bf16.gmra.mxu0 %v4243
        %v4279 = vpop.f32.mrf.mxu0
        %v4280 = vadd.f32 0.0, %v4279
        %v4281 = vpop.f32.mrf.mxu0
        %v4282 = vpop.f32.mrf.mxu0
        %v4283 = vpop.f32.mrf.mxu0
        %4284 = vdwg.mxu0
        %v4285 = vpack.c.bf16 %v4280, %v4280
        %s4286 = scalar_lea.vmem [#allocation11], 80
        %v4287 = vld [vmem:[%s4286] sm:$0xf]
        %v4288 = vld [vmem:[%s4286 + $0x4] sm:$0xf]
        %v4289 = vld [vmem:[%s4286 + $0x8] sm:$0xf]
        %v4290 = vld [vmem:[%s4286 + $0xc] sm:$0xf]
        %v4295 = vunpack.c.l.b16 %v4287
        %v4296 = vunpack.c.l.b16 %v4288
        %v4297 = vunpack.c.l.b16 %v4289
        %v4298 = vunpack.c.l.b16 %v4290
        %v4299 = vpack.c.b16 %v4296, %v4295
        %v4300 = vpack.c.b16 %v4298, %v4297
        %v4304 = vsel %vm3820, %v4285, 0
        %4306 = vmatprep.subr.bf16.mxu0 0
        %4307 = vmatpush1.bf16.msra.mxu0 0
        %4308 = vmatprep.subr.bf16.mxu0 0
        %4309 = vmatpush1.bf16.msra.mxu0 0
        %4310 = vmatprep.subr.bf16.mxu0 0
        %4311 = vmatpush1.bf16.msra.mxu0 0
        %4312 = vmatprep.subr.bf16.mxu0 0
        %4313 = vmatpush1.bf16.msra.mxu0 0
        %4314 = vmatprep.subr.bf16.mxu0 0
        %4315 = vmatpush1.bf16.msra.mxu0 0
        %4316 = vmatprep.subr.bf16.mxu0 0
        %4317 = vmatpush1.bf16.msra.mxu0 0
        %4318 = vmatprep.subr.bf16.mxu0 0
        %4319 = vmatpush1.bf16.msra.mxu0 %v4300
        %4320 = vmatprep.subr.bf16.mxu0 0
        %4321 = vmatpush1.bf16.msra.mxu0 %v4299
        %4322 = vmatprep.subr.bf16.mxu0 0
        %4323 = vmatpush2.bf16.msra.mxu0 0
        %4324 = vmatprep.subr.bf16.mxu0 0
        %4325 = vmatpush2.bf16.msra.mxu0 0
        %4326 = vmatprep.subr.bf16.mxu0 0
        %4327 = vmatpush2.bf16.msra.mxu0 0
        %4328 = vmatprep.subr.bf16.mxu0 0
        %4329 = vmatpush2.bf16.msra.mxu0 0
        %4330 = vmatprep.subr.bf16.mxu0 0
        %4331 = vmatpush2.bf16.msra.mxu0 0
        %4332 = vmatprep.subr.bf16.mxu0 0
        %4333 = vmatpush2.bf16.msra.mxu0 0
        %4334 = vmatprep.subr.bf16.mxu0 0
        %4335 = vmatpush2.bf16.msra.mxu0 0
        %4336 = vmatprep.subr.bf16.mxu0 0
        %4337 = vmatpush2.bf16.msra.mxu0 0
        %4338 = vmatprep.mubr.bf16.mxu0 0
        %4339 = vmatmul.mubr.bf16.gmra.mxu0 %v4304
        %v4340 = vpop.f32.mrf.mxu0
        %v4341 = vadd.f32 0.0, %v4340
        %v4342 = vpop.f32.mrf.mxu0
        %v4343 = vpop.f32.mrf.mxu0
        %v4344 = vpop.f32.mrf.mxu0
        %4345 = vdwg.mxu0
        %v4346 = vadd.f32 %v4239, %v4341
        %s4347 = scalar_lea.vmem [#allocation10], 12
        %v4348 = vld [vmem:[%s4347] sm:$0x3]
        %v4350 = vsel %vm2836, %v4348, 0
        %4352 = vmatprep.subr.bf16.mxu0 0
        %4353 = vmatpush1.bf16.msra.mxu0 0
        %4354 = vmatprep.subr.bf16.mxu0 0
        %4355 = vmatpush1.bf16.msra.mxu0 0
        %4356 = vmatprep.subr.bf16.mxu0 0
        %4357 = vmatpush1.bf16.msra.mxu0 0
        %4358 = vmatprep.subr.bf16.mxu0 0
        %4359 = vmatpush1.bf16.msra.mxu0 0
        %4360 = vmatprep.subr.bf16.mxu0 0
        %4361 = vmatpush1.bf16.msra.mxu0 0
        %4362 = vmatprep.subr.bf16.mxu0 0
        %4363 = vmatpush1.bf16.msra.mxu0 0
        %4364 = vmatprep.subr.bf16.mxu0 0
        %4365 = vmatpush1.bf16.msra.mxu0 0
        %4366 = vmatprep.subr.bf16.mxu0 0
        %4367 = vmatpush1.bf16.msra.mxu0 %v3707
        %4368 = vmatprep.subr.bf16.mxu0 0
        %4369 = vmatpush2.bf16.msra.mxu0 0
        %4370 = vmatprep.subr.bf16.mxu0 0
        %4371 = vmatpush2.bf16.msra.mxu0 0
        %4372 = vmatprep.subr.bf16.mxu0 0
        %4373 = vmatpush2.bf16.msra.mxu0 0
        %4374 = vmatprep.subr.bf16.mxu0 0
        %4375 = vmatpush2.bf16.msra.mxu0 0
        %4376 = vmatprep.subr.bf16.mxu0 0
        %4377 = vmatpush2.bf16.msra.mxu0 0
        %4378 = vmatprep.subr.bf16.mxu0 0
        %4379 = vmatpush2.bf16.msra.mxu0 0
        %4380 = vmatprep.subr.bf16.mxu0 0
        %4381 = vmatpush2.bf16.msra.mxu0 0
        %4382 = vmatprep.subr.bf16.mxu0 0
        %4383 = vmatpush2.bf16.msra.mxu0 0
        %4384 = vmatprep.mubr.bf16.mxu0 0
        %4385 = vmatmul.mubr.bf16.gmra.mxu0 %v4350
        %v4386 = vpop.f32.mrf.mxu0
        %v4387 = vadd.f32 0.0, %v4386
        %v4388 = vpop.f32.mrf.mxu0
        %v4389 = vpop.f32.mrf.mxu0
        %v4390 = vpop.f32.mrf.mxu0
        %4391 = vdwg.mxu0
        %v4392 = vpack.c.bf16 %v4387, %v4387
        %s4393 = scalar_lea.vmem [#allocation11], 96
        %v4394 = vld [vmem:[%s4393] sm:$0xf]
        %v4395 = vld [vmem:[%s4393 + $0x4] sm:$0xf]
        %v4396 = vld [vmem:[%s4393 + $0x8] sm:$0xf]
        %v4397 = vld [vmem:[%s4393 + $0xc] sm:$0xf]
        %v4402 = vunpack.c.l.b16 %v4394
        %v4403 = vunpack.c.l.b16 %v4395
        %v4404 = vunpack.c.l.b16 %v4396
        %v4405 = vunpack.c.l.b16 %v4397
        %v4406 = vpack.c.b16 %v4403, %v4402
        %v4407 = vpack.c.b16 %v4405, %v4404
        %v4411 = vsel %vm3820, %v4392, 0
        %4413 = vmatprep.subr.bf16.mxu0 0
        %4414 = vmatpush1.bf16.msra.mxu0 0
        %4415 = vmatprep.subr.bf16.mxu0 0
        %4416 = vmatpush1.bf16.msra.mxu0 0
        %4417 = vmatprep.subr.bf16.mxu0 0
        %4418 = vmatpush1.bf16.msra.mxu0 0
        %4419 = vmatprep.subr.bf16.mxu0 0
        %4420 = vmatpush1.bf16.msra.mxu0 0
        %4421 = vmatprep.subr.bf16.mxu0 0
        %4422 = vmatpush1.bf16.msra.mxu0 0
        %4423 = vmatprep.subr.bf16.mxu0 0
        %4424 = vmatpush1.bf16.msra.mxu0 0
        %4425 = vmatprep.subr.bf16.mxu0 0
        %4426 = vmatpush1.bf16.msra.mxu0 %v4407
        %4427 = vmatprep.subr.bf16.mxu0 0
        %4428 = vmatpush1.bf16.msra.mxu0 %v4406
        %4429 = vmatprep.subr.bf16.mxu0 0
        %4430 = vmatpush2.bf16.msra.mxu0 0
        %4431 = vmatprep.subr.bf16.mxu0 0
        %4432 = vmatpush2.bf16.msra.mxu0 0
        %4433 = vmatprep.subr.bf16.mxu0 0
        %4434 = vmatpush2.bf16.msra.mxu0 0
        %4435 = vmatprep.subr.bf16.mxu0 0
        %4436 = vmatpush2.bf16.msra.mxu0 0
        %4437 = vmatprep.subr.bf16.mxu0 0
        %4438 = vmatpush2.bf16.msra.mxu0 0
        %4439 = vmatprep.subr.bf16.mxu0 0
        %4440 = vmatpush2.bf16.msra.mxu0 0
        %4441 = vmatprep.subr.bf16.mxu0 0
        %4442 = vmatpush2.bf16.msra.mxu0 0
        %4443 = vmatprep.subr.bf16.mxu0 0
        %4444 = vmatpush2.bf16.msra.mxu0 0
        %4445 = vmatprep.mubr.bf16.mxu0 0
        %4446 = vmatmul.mubr.bf16.gmra.mxu0 %v4411
        %v4447 = vpop.f32.mrf.mxu0
        %v4448 = vadd.f32 0.0, %v4447
        %v4449 = vpop.f32.mrf.mxu0
        %v4450 = vpop.f32.mrf.mxu0
        %v4451 = vpop.f32.mrf.mxu0
        %4452 = vdwg.mxu0
        %v4453 = vadd.f32 %v4346, %v4448
        %s4454 = scalar_lea.vmem [#allocation10], 14
        %v4455 = vld [vmem:[%s4454] sm:$0x3]
        %v4457 = vsel %vm2836, %v4455, 0
        %4459 = vmatprep.subr.bf16.mxu0 0
        %4460 = vmatpush1.bf16.msra.mxu0 0
        %4461 = vmatprep.subr.bf16.mxu0 0
        %4462 = vmatpush1.bf16.msra.mxu0 0
        %4463 = vmatprep.subr.bf16.mxu0 0
        %4464 = vmatpush1.bf16.msra.mxu0 0
        %4465 = vmatprep.subr.bf16.mxu0 0
        %4466 = vmatpush1.bf16.msra.mxu0 0
        %4467 = vmatprep.subr.bf16.mxu0 0
        %4468 = vmatpush1.bf16.msra.mxu0 0
        %4469 = vmatprep.subr.bf16.mxu0 0
        %4470 = vmatpush1.bf16.msra.mxu0 0
        %4471 = vmatprep.subr.bf16.mxu0 0
        %4472 = vmatpush1.bf16.msra.mxu0 0
        %4473 = vmatprep.subr.bf16.mxu0 0
        %4474 = vmatpush1.bf16.msra.mxu0 %v3707
        %4475 = vmatprep.subr.bf16.mxu0 0
        %4476 = vmatpush2.bf16.msra.mxu0 0
        %4477 = vmatprep.subr.bf16.mxu0 0
        %4478 = vmatpush2.bf16.msra.mxu0 0
        %4479 = vmatprep.subr.bf16.mxu0 0
        %4480 = vmatpush2.bf16.msra.mxu0 0
        %4481 = vmatprep.subr.bf16.mxu0 0
        %4482 = vmatpush2.bf16.msra.mxu0 0
        %4483 = vmatprep.subr.bf16.mxu0 0
        %4484 = vmatpush2.bf16.msra.mxu0 0
        %4485 = vmatprep.subr.bf16.mxu0 0
        %4486 = vmatpush2.bf16.msra.mxu0 0
        %4487 = vmatprep.subr.bf16.mxu0 0
        %4488 = vmatpush2.bf16.msra.mxu0 0
        %4489 = vmatprep.subr.bf16.mxu0 0
        %4490 = vmatpush2.bf16.msra.mxu0 0
        %4491 = vmatprep.mubr.bf16.mxu0 0
        %4492 = vmatmul.mubr.bf16.gmra.mxu0 %v4457
        %v4493 = vpop.f32.mrf.mxu0
        %v4494 = vadd.f32 0.0, %v4493
        %v4495 = vpop.f32.mrf.mxu0
        %v4496 = vpop.f32.mrf.mxu0
        %v4497 = vpop.f32.mrf.mxu0
        %4498 = vdwg.mxu0
        %v4499 = vpack.c.bf16 %v4494, %v4494
        %s4500 = scalar_lea.vmem [#allocation11], 112
        %v4501 = vld [vmem:[%s4500] sm:$0xf]
        %v4502 = vld [vmem:[%s4500 + $0x4] sm:$0xf]
        %v4503 = vld [vmem:[%s4500 + $0x8] sm:$0xf]
        %v4504 = vld [vmem:[%s4500 + $0xc] sm:$0xf]
        %v4509 = vunpack.c.l.b16 %v4501
        %v4510 = vunpack.c.l.b16 %v4502
        %v4511 = vunpack.c.l.b16 %v4503
        %v4512 = vunpack.c.l.b16 %v4504
        %v4513 = vpack.c.b16 %v4510, %v4509
        %v4514 = vpack.c.b16 %v4512, %v4511
        %v4518 = vsel %vm3820, %v4499, 0
        %4520 = vmatprep.subr.bf16.mxu0 0
        %4521 = vmatpush1.bf16.msra.mxu0 0
        %4522 = vmatprep.subr.bf16.mxu0 0
        %4523 = vmatpush1.bf16.msra.mxu0 0
        %4524 = vmatprep.subr.bf16.mxu0 0
        %4525 = vmatpush1.bf16.msra.mxu0 0
        %4526 = vmatprep.subr.bf16.mxu0 0
        %4527 = vmatpush1.bf16.msra.mxu0 0
        %4528 = vmatprep.subr.bf16.mxu0 0
        %4529 = vmatpush1.bf16.msra.mxu0 0
        %4530 = vmatprep.subr.bf16.mxu0 0
        %4531 = vmatpush1.bf16.msra.mxu0 0
        %4532 = vmatprep.subr.bf16.mxu0 0
        %4533 = vmatpush1.bf16.msra.mxu0 %v4514
        %4534 = vmatprep.subr.bf16.mxu0 0
        %4535 = vmatpush1.bf16.msra.mxu0 %v4513
        %4536 = vmatprep.subr.bf16.mxu0 0
        %4537 = vmatpush2.bf16.msra.mxu0 0
        %4538 = vmatprep.subr.bf16.mxu0 0
        %4539 = vmatpush2.bf16.msra.mxu0 0
        %4540 = vmatprep.subr.bf16.mxu0 0
        %4541 = vmatpush2.bf16.msra.mxu0 0
        %4542 = vmatprep.subr.bf16.mxu0 0
        %4543 = vmatpush2.bf16.msra.mxu0 0
        %4544 = vmatprep.subr.bf16.mxu0 0
        %4545 = vmatpush2.bf16.msra.mxu0 0
        %4546 = vmatprep.subr.bf16.mxu0 0
        %4547 = vmatpush2.bf16.msra.mxu0 0
        %4548 = vmatprep.subr.bf16.mxu0 0
        %4549 = vmatpush2.bf16.msra.mxu0 0
        %4550 = vmatprep.subr.bf16.mxu0 0
        %4551 = vmatpush2.bf16.msra.mxu0 0
        %4552 = vmatprep.mubr.bf16.mxu0 0
        %4553 = vmatmul.mubr.bf16.gmra.mxu0 %v4518
        %v4554 = vpop.f32.mrf.mxu0
        %v4555 = vadd.f32 0.0, %v4554
        %v4556 = vpop.f32.mrf.mxu0
        %v4557 = vpop.f32.mrf.mxu0
        %v4558 = vpop.f32.mrf.mxu0
        %4559 = vdwg.mxu0
        %v4560 = vadd.f32 %v4453, %v4555
        %s4561 = scalar_lea.vmem [#allocation10], 16
        %v4562 = vld [vmem:[%s4561] sm:$0x3]
        %v4564 = vsel %vm2836, %v4562, 0
        %4566 = vmatprep.subr.bf16.mxu0 0
        %4567 = vmatpush1.bf16.msra.mxu0 0
        %4568 = vmatprep.subr.bf16.mxu0 0
        %4569 = vmatpush1.bf16.msra.mxu0 0
        %4570 = vmatprep.subr.bf16.mxu0 0
        %4571 = vmatpush1.bf16.msra.mxu0 0
        %4572 = vmatprep.subr.bf16.mxu0 0
        %4573 = vmatpush1.bf16.msra.mxu0 0
        %4574 = vmatprep.subr.bf16.mxu0 0
        %4575 = vmatpush1.bf16.msra.mxu0 0
        %4576 = vmatprep.subr.bf16.mxu0 0
        %4577 = vmatpush1.bf16.msra.mxu0 0
        %4578 = vmatprep.subr.bf16.mxu0 0
        %4579 = vmatpush1.bf16.msra.mxu0 0
        %4580 = vmatprep.subr.bf16.mxu0 0
        %4581 = vmatpush1.bf16.msra.mxu0 %v3707
        %4582 = vmatprep.subr.bf16.mxu0 0
        %4583 = vmatpush2.bf16.msra.mxu0 0
        %4584 = vmatprep.subr.bf16.mxu0 0
        %4585 = vmatpush2.bf16.msra.mxu0 0
        %4586 = vmatprep.subr.bf16.mxu0 0
        %4587 = vmatpush2.bf16.msra.mxu0 0
        %4588 = vmatprep.subr.bf16.mxu0 0
        %4589 = vmatpush2.bf16.msra.mxu0 0
        %4590 = vmatprep.subr.bf16.mxu0 0
        %4591 = vmatpush2.bf16.msra.mxu0 0
        %4592 = vmatprep.subr.bf16.mxu0 0
        %4593 = vmatpush2.bf16.msra.mxu0 0
        %4594 = vmatprep.subr.bf16.mxu0 0
        %4595 = vmatpush2.bf16.msra.mxu0 0
        %4596 = vmatprep.subr.bf16.mxu0 0
        %4597 = vmatpush2.bf16.msra.mxu0 0
        %4598 = vmatprep.mubr.bf16.mxu0 0
        %4599 = vmatmul.mubr.bf16.gmra.mxu0 %v4564
        %v4600 = vpop.f32.mrf.mxu0
        %v4601 = vadd.f32 0.0, %v4600
        %v4602 = vpop.f32.mrf.mxu0
        %v4603 = vpop.f32.mrf.mxu0
        %v4604 = vpop.f32.mrf.mxu0
        %4605 = vdwg.mxu0
        %v4606 = vpack.c.bf16 %v4601, %v4601
        %s4607 = scalar_lea.vmem [#allocation11], 128
        %v4608 = vld [vmem:[%s4607] sm:$0xf]
        %v4609 = vld [vmem:[%s4607 + $0x4] sm:$0xf]
        %v4610 = vld [vmem:[%s4607 + $0x8] sm:$0xf]
        %v4611 = vld [vmem:[%s4607 + $0xc] sm:$0xf]
        %v4616 = vunpack.c.l.b16 %v4608
        %v4617 = vunpack.c.l.b16 %v4609
        %v4618 = vunpack.c.l.b16 %v4610
        %v4619 = vunpack.c.l.b16 %v4611
        %v4620 = vpack.c.b16 %v4617, %v4616
        %v4621 = vpack.c.b16 %v4619, %v4618
        %v4625 = vsel %vm3820, %v4606, 0
        %4627 = vmatprep.subr.bf16.mxu0 0
        %4628 = vmatpush1.bf16.msra.mxu0 0
        %4629 = vmatprep.subr.bf16.mxu0 0
        %4630 = vmatpush1.bf16.msra.mxu0 0
        %4631 = vmatprep.subr.bf16.mxu0 0
        %4632 = vmatpush1.bf16.msra.mxu0 0
        %4633 = vmatprep.subr.bf16.mxu0 0
        %4634 = vmatpush1.bf16.msra.mxu0 0
        %4635 = vmatprep.subr.bf16.mxu0 0
        %4636 = vmatpush1.bf16.msra.mxu0 0
        %4637 = vmatprep.subr.bf16.mxu0 0
        %4638 = vmatpush1.bf16.msra.mxu0 0
        %4639 = vmatprep.subr.bf16.mxu0 0
        %4640 = vmatpush1.bf16.msra.mxu0 %v4621
        %4641 = vmatprep.subr.bf16.mxu0 0
        %4642 = vmatpush1.bf16.msra.mxu0 %v4620
        %4643 = vmatprep.subr.bf16.mxu0 0
        %4644 = vmatpush2.bf16.msra.mxu0 0
        %4645 = vmatprep.subr.bf16.mxu0 0
        %4646 = vmatpush2.bf16.msra.mxu0 0
        %4647 = vmatprep.subr.bf16.mxu0 0
        %4648 = vmatpush2.bf16.msra.mxu0 0
        %4649 = vmatprep.subr.bf16.mxu0 0
        %4650 = vmatpush2.bf16.msra.mxu0 0
        %4651 = vmatprep.subr.bf16.mxu0 0
        %4652 = vmatpush2.bf16.msra.mxu0 0
        %4653 = vmatprep.subr.bf16.mxu0 0
        %4654 = vmatpush2.bf16.msra.mxu0 0
        %4655 = vmatprep.subr.bf16.mxu0 0
        %4656 = vmatpush2.bf16.msra.mxu0 0
        %4657 = vmatprep.subr.bf16.mxu0 0
        %4658 = vmatpush2.bf16.msra.mxu0 0
        %4659 = vmatprep.mubr.bf16.mxu0 0
        %4660 = vmatmul.mubr.bf16.gmra.mxu0 %v4625
        %v4661 = vpop.f32.mrf.mxu0
        %v4662 = vadd.f32 0.0, %v4661
        %v4663 = vpop.f32.mrf.mxu0
        %v4664 = vpop.f32.mrf.mxu0
        %v4665 = vpop.f32.mrf.mxu0
        %4666 = vdwg.mxu0
        %v4667 = vadd.f32 %v4560, %v4662
        %v4668 = vld [vmem:[%s11] sm:$0x1]
        %v4670 = vlaneseq
        %v4671 = vshrl.u32 %v4670, 7
        %v4672 = vsub.s32 0, %v4671
        %v4673 = vrot.slane %v4668, %v4672
        %v4675 = vmul.f32 %v4667, %v4673
        %v4676 = vld [vmem:[%s12] sm:$0x1]
        %v4678 = vlaneseq
        %v4679 = vshrl.u32 %v4678, 7
        %v4680 = vsub.s32 0, %v4679
        %v4681 = vrot.slane %v4676, %v4680
        %v4683 = vadd.f32 %v4675, %v4681
        %v4684 = vmax.f32 %v4683, 0.0
        %v4685 = vpack.c.bf16 %v4684, %v4684
        %v4686 = vld [vmem:[%s13] sm:$0x1]
        %vm4687 = vcmask 31744
        %v4689 = vsel %vm4687, %v4686, 0
        %v4692 = vsel %vm1070, %v4685, 0
        %4694 = vmatprep.subr.bf16.mxu0 0
        %4695 = vmatpush1.bf16.msra.mxu0 0
        %4696 = vmatprep.subr.bf16.mxu0 0
        %4697 = vmatpush1.bf16.msra.mxu0 0
        %4698 = vmatprep.subr.bf16.mxu0 0
        %4699 = vmatpush1.bf16.msra.mxu0 0
        %4700 = vmatprep.subr.bf16.mxu0 0
        %4701 = vmatpush1.bf16.msra.mxu0 0
        %4702 = vmatprep.subr.bf16.mxu0 0
        %4703 = vmatpush1.bf16.msra.mxu0 0
        %4704 = vmatprep.subr.bf16.mxu0 0
        %4705 = vmatpush1.bf16.msra.mxu0 0
        %4706 = vmatprep.subr.bf16.mxu0 0
        %4707 = vmatpush1.bf16.msra.mxu0 0
        %4708 = vmatprep.subr.bf16.mxu0 0
        %4709 = vmatpush1.bf16.msra.mxu0 %v4692
        %4710 = vmatprep.subr.bf16.mxu0 0
        %4711 = vmatpush2.bf16.msra.mxu0 0
        %4712 = vmatprep.subr.bf16.mxu0 0
        %4713 = vmatpush2.bf16.msra.mxu0 0
        %4714 = vmatprep.subr.bf16.mxu0 0
        %4715 = vmatpush2.bf16.msra.mxu0 0
        %4716 = vmatprep.subr.bf16.mxu0 0
        %4717 = vmatpush2.bf16.msra.mxu0 0
        %4718 = vmatprep.subr.bf16.mxu0 0
        %4719 = vmatpush2.bf16.msra.mxu0 0
        %4720 = vmatprep.subr.bf16.mxu0 0
        %4721 = vmatpush2.bf16.msra.mxu0 0
        %4722 = vmatprep.subr.bf16.mxu0 0
        %4723 = vmatpush2.bf16.msra.mxu0 0
        %4724 = vmatprep.subr.bf16.mxu0 0
        %4725 = vmatpush2.bf16.msra.mxu0 0
        %4726 = vmatprep.mubr.bf16.mxu0 0
        %4727 = vmatmul.mubr.bf16.gmra.mxu0 %v4689
        %v4728 = vpop.f32.mrf.mxu0
        %v4729 = vadd.f32 0.0, %v4728
        %v4730 = vpop.f32.mrf.mxu0
        %v4731 = vpop.f32.mrf.mxu0
        %v4732 = vpop.f32.mrf.mxu0
        %4733 = vdwg.mxu0
        %v4734 = vpack.c.bf16 %v4729, %v4729
        %v4735 = vld [vmem:[%s14] sm:$0xf]
        %v4736 = vld [vmem:[%s14 + $0x4] sm:$0xf]
        %v4737 = vld [vmem:[%s14 + $0x8] sm:$0xf]
        %v4738 = vld [vmem:[%s14 + $0xc] sm:$0xf]
        %v4739 = vld [vmem:[%s14 + $0x10] sm:$0xf]
        %v4740 = vld [vmem:[%s14 + $0x14] sm:$0xf]
        %v4741 = vld [vmem:[%s14 + $0x18] sm:$0xf]
        %v4742 = vld [vmem:[%s14 + $0x1c] sm:$0xf]
        %s4743 = scalar_lea.vmem %s13, 1
        %v4744 = vld [vmem:[%s4743] sm:$0x1]
        %v4746 = vsel %vm4687, %v4744, 0
        %4748 = vmatprep.subr.bf16.mxu0 0
        %4749 = vmatpush1.bf16.msra.mxu0 0
        %4750 = vmatprep.subr.bf16.mxu0 0
        %4751 = vmatpush1.bf16.msra.mxu0 0
        %4752 = vmatprep.subr.bf16.mxu0 0
        %4753 = vmatpush1.bf16.msra.mxu0 0
        %4754 = vmatprep.subr.bf16.mxu0 0
        %4755 = vmatpush1.bf16.msra.mxu0 0
        %4756 = vmatprep.subr.bf16.mxu0 0
        %4757 = vmatpush1.bf16.msra.mxu0 0
        %4758 = vmatprep.subr.bf16.mxu0 0
        %4759 = vmatpush1.bf16.msra.mxu0 0
        %4760 = vmatprep.subr.bf16.mxu0 0
        %4761 = vmatpush1.bf16.msra.mxu0 0
        %4762 = vmatprep.subr.bf16.mxu0 0
        %4763 = vmatpush1.bf16.msra.mxu0 %v4692
        %4764 = vmatprep.subr.bf16.mxu0 0
        %4765 = vmatpush2.bf16.msra.mxu0 0
        %4766 = vmatprep.subr.bf16.mxu0 0
        %4767 = vmatpush2.bf16.msra.mxu0 0
        %4768 = vmatprep.subr.bf16.mxu0 0
        %4769 = vmatpush2.bf16.msra.mxu0 0
        %4770 = vmatprep.subr.bf16.mxu0 0
        %4771 = vmatpush2.bf16.msra.mxu0 0
        %4772 = vmatprep.subr.bf16.mxu0 0
        %4773 = vmatpush2.bf16.msra.mxu0 0
        %4774 = vmatprep.subr.bf16.mxu0 0
        %4775 = vmatpush2.bf16.msra.mxu0 0
        %4776 = vmatprep.subr.bf16.mxu0 0
        %4777 = vmatpush2.bf16.msra.mxu0 0
        %4778 = vmatprep.subr.bf16.mxu0 0
        %4779 = vmatpush2.bf16.msra.mxu0 0
        %4780 = vmatprep.mubr.bf16.mxu0 0
        %4781 = vmatmul.mubr.bf16.gmra.mxu0 %v4746
        %v4782 = vpop.f32.mrf.mxu0
        %v4783 = vadd.f32 0.0, %v4782
        %v4784 = vpop.f32.mrf.mxu0
        %v4785 = vpop.f32.mrf.mxu0
        %v4786 = vpop.f32.mrf.mxu0
        %4787 = vdwg.mxu0
        %v4788 = vpack.c.bf16 %v4783, %v4783
        %s4789 = scalar_lea.vmem %s14, 32
        %v4790 = vld [vmem:[%s4789] sm:$0xf]
        %v4791 = vld [vmem:[%s4789 + $0x4] sm:$0xf]
        %v4792 = vld [vmem:[%s4789 + $0x8] sm:$0xf]
        %v4793 = vld [vmem:[%s4789 + $0xc] sm:$0xf]
        %v4794 = vld [vmem:[%s4789 + $0x10] sm:$0xf]
        %v4795 = vld [vmem:[%s4789 + $0x14] sm:$0xf]
        %v4796 = vld [vmem:[%s4789 + $0x18] sm:$0xf]
        %v4797 = vld [vmem:[%s4789 + $0x1c] sm:$0xf]
        %v4806 = vunpack.c.l.b16 %v4790
        %v4807 = vunpack.c.l.b16 %v4791
        %v4808 = vunpack.c.l.b16 %v4792
        %v4809 = vunpack.c.l.b16 %v4793
        %v4810 = vunpack.c.l.b16 %v4794
        %v4811 = vunpack.c.l.b16 %v4795
        %v4812 = vunpack.c.l.b16 %v4796
        %v4813 = vunpack.c.l.b16 %v4797
        %v4814 = vpack.c.b16 %v4807, %v4806
        %v4815 = vpack.c.b16 %v4809, %v4808
        %v4816 = vpack.c.b16 %v4811, %v4810
        %v4817 = vpack.c.b16 %v4813, %v4812
        %v4823 = vsel %vm2726, %v4788, 0
        %4825 = vmatprep.subr.bf16.mxu0 0
        %4826 = vmatpush1.bf16.msra.mxu0 0
        %4827 = vmatprep.subr.bf16.mxu0 0
        %4828 = vmatpush1.bf16.msra.mxu0 0
        %4829 = vmatprep.subr.bf16.mxu0 0
        %4830 = vmatpush1.bf16.msra.mxu0 0
        %4831 = vmatprep.subr.bf16.mxu0 0
        %4832 = vmatpush1.bf16.msra.mxu0 0
        %4833 = vmatprep.subr.bf16.mxu0 0
        %4834 = vmatpush1.bf16.msra.mxu0 %v4817
        %4835 = vmatprep.subr.bf16.mxu0 0
        %4836 = vmatpush1.bf16.msra.mxu0 %v4816
        %4837 = vmatprep.subr.bf16.mxu0 0
        %4838 = vmatpush1.bf16.msra.mxu0 %v4815
        %4839 = vmatprep.subr.bf16.mxu0 0
        %4840 = vmatpush1.bf16.msra.mxu0 %v4814
        %4841 = vmatprep.subr.bf16.mxu0 0
        %4842 = vmatpush2.bf16.msra.mxu0 0
        %4843 = vmatprep.subr.bf16.mxu0 0
        %4844 = vmatpush2.bf16.msra.mxu0 0
        %4845 = vmatprep.subr.bf16.mxu0 0
        %4846 = vmatpush2.bf16.msra.mxu0 0
        %4847 = vmatprep.subr.bf16.mxu0 0
        %4848 = vmatpush2.bf16.msra.mxu0 0
        %4849 = vmatprep.subr.bf16.mxu0 0
        %4850 = vmatpush2.bf16.msra.mxu0 0
        %4851 = vmatprep.subr.bf16.mxu0 0
        %4852 = vmatpush2.bf16.msra.mxu0 0
        %4853 = vmatprep.subr.bf16.mxu0 0
        %4854 = vmatpush2.bf16.msra.mxu0 0
        %4855 = vmatprep.subr.bf16.mxu0 0
        %4856 = vmatpush2.bf16.msra.mxu0 0
        %4857 = vmatprep.mubr.bf16.mxu0 0
        %4858 = vmatmul.mubr.bf16.gmra.mxu0 %v4823
        %v4859 = vpop.f32.mrf.mxu0
        %v4860 = vadd.f32 0.0, %v4859
        %v4861 = vpop.f32.mrf.mxu0
        %v4862 = vpop.f32.mrf.mxu0
        %v4863 = vpop.f32.mrf.mxu0
        %4864 = vdwg.mxu0
        %v4873 = vunpack.c.l.b16 %v4735
        %v4874 = vunpack.c.l.b16 %v4736
        %v4875 = vunpack.c.l.b16 %v4737
        %v4876 = vunpack.c.l.b16 %v4738
        %v4877 = vunpack.c.l.b16 %v4739
        %v4878 = vunpack.c.l.b16 %v4740
        %v4879 = vunpack.c.l.b16 %v4741
        %v4880 = vunpack.c.l.b16 %v4742
        %v4881 = vpack.c.b16 %v4874, %v4873
        %v4882 = vpack.c.b16 %v4876, %v4875
        %v4883 = vpack.c.b16 %v4878, %v4877
        %v4884 = vpack.c.b16 %v4880, %v4879
        %v4890 = vsel %vm2726, %v4734, 0
        %4892 = vmatprep.subr.bf16.mxu0 0
        %4893 = vmatpush1.bf16.msra.mxu0 0
        %4894 = vmatprep.subr.bf16.mxu0 0
        %4895 = vmatpush1.bf16.msra.mxu0 0
        %4896 = vmatprep.subr.bf16.mxu0 0
        %4897 = vmatpush1.bf16.msra.mxu0 0
        %4898 = vmatprep.subr.bf16.mxu0 0
        %4899 = vmatpush1.bf16.msra.mxu0 0
        %4900 = vmatprep.subr.bf16.mxu0 0
        %4901 = vmatpush1.bf16.msra.mxu0 %v4884
        %4902 = vmatprep.subr.bf16.mxu0 0
        %4903 = vmatpush1.bf16.msra.mxu0 %v4883
        %4904 = vmatprep.subr.bf16.mxu0 0
        %4905 = vmatpush1.bf16.msra.mxu0 %v4882
        %4906 = vmatprep.subr.bf16.mxu0 0
        %4907 = vmatpush1.bf16.msra.mxu0 %v4881
        %4908 = vmatprep.subr.bf16.mxu0 0
        %4909 = vmatpush2.bf16.msra.mxu0 0
        %4910 = vmatprep.subr.bf16.mxu0 0
        %4911 = vmatpush2.bf16.msra.mxu0 0
        %4912 = vmatprep.subr.bf16.mxu0 0
        %4913 = vmatpush2.bf16.msra.mxu0 0
        %4914 = vmatprep.subr.bf16.mxu0 0
        %4915 = vmatpush2.bf16.msra.mxu0 0
        %4916 = vmatprep.subr.bf16.mxu0 0
        %4917 = vmatpush2.bf16.msra.mxu0 0
        %4918 = vmatprep.subr.bf16.mxu0 0
        %4919 = vmatpush2.bf16.msra.mxu0 0
        %4920 = vmatprep.subr.bf16.mxu0 0
        %4921 = vmatpush2.bf16.msra.mxu0 0
        %4922 = vmatprep.subr.bf16.mxu0 0
        %4923 = vmatpush2.bf16.msra.mxu0 0
        %4924 = vmatprep.mubr.bf16.mxu0 0
        %4925 = vmatmul.mubr.bf16.gmra.mxu0 %v4890
        %v4926 = vpop.f32.mrf.mxu0
        %v4927 = vadd.f32 %v4860, %v4926
        %v4928 = vpop.f32.mrf.mxu0
        %v4929 = vpop.f32.mrf.mxu0
        %v4930 = vpop.f32.mrf.mxu0
        %4931 = vdwg.mxu0
        %s4932 = scalar_lea.vmem %s13, 2
        %v4933 = vld [vmem:[%s4932] sm:$0x1]
        %v4935 = vsel %vm4687, %v4933, 0
        %4937 = vmatprep.subr.bf16.mxu0 0
        %4938 = vmatpush1.bf16.msra.mxu0 0
        %4939 = vmatprep.subr.bf16.mxu0 0
        %4940 = vmatpush1.bf16.msra.mxu0 0
        %4941 = vmatprep.subr.bf16.mxu0 0
        %4942 = vmatpush1.bf16.msra.mxu0 0
        %4943 = vmatprep.subr.bf16.mxu0 0
        %4944 = vmatpush1.bf16.msra.mxu0 0
        %4945 = vmatprep.subr.bf16.mxu0 0
        %4946 = vmatpush1.bf16.msra.mxu0 0
        %4947 = vmatprep.subr.bf16.mxu0 0
        %4948 = vmatpush1.bf16.msra.mxu0 0
        %4949 = vmatprep.subr.bf16.mxu0 0
        %4950 = vmatpush1.bf16.msra.mxu0 0
        %4951 = vmatprep.subr.bf16.mxu0 0
        %4952 = vmatpush1.bf16.msra.mxu0 %v4692
        %4953 = vmatprep.subr.bf16.mxu0 0
        %4954 = vmatpush2.bf16.msra.mxu0 0
        %4955 = vmatprep.subr.bf16.mxu0 0
        %4956 = vmatpush2.bf16.msra.mxu0 0
        %4957 = vmatprep.subr.bf16.mxu0 0
        %4958 = vmatpush2.bf16.msra.mxu0 0
        %4959 = vmatprep.subr.bf16.mxu0 0
        %4960 = vmatpush2.bf16.msra.mxu0 0
        %4961 = vmatprep.subr.bf16.mxu0 0
        %4962 = vmatpush2.bf16.msra.mxu0 0
        %4963 = vmatprep.subr.bf16.mxu0 0
        %4964 = vmatpush2.bf16.msra.mxu0 0
        %4965 = vmatprep.subr.bf16.mxu0 0
        %4966 = vmatpush2.bf16.msra.mxu0 0
        %4967 = vmatprep.subr.bf16.mxu0 0
        %4968 = vmatpush2.bf16.msra.mxu0 0
        %4969 = vmatprep.mubr.bf16.mxu0 0
        %4970 = vmatmul.mubr.bf16.gmra.mxu0 %v4935
        %v4971 = vpop.f32.mrf.mxu0
        %v4972 = vadd.f32 0.0, %v4971
        %v4973 = vpop.f32.mrf.mxu0
        %v4974 = vpop.f32.mrf.mxu0
        %v4975 = vpop.f32.mrf.mxu0
        %4976 = vdwg.mxu0
        %v4977 = vpack.c.bf16 %v4972, %v4972
        %s4978 = scalar_lea.vmem %s14, 64
        %v4979 = vld [vmem:[%s4978] sm:$0xf]
        %v4980 = vld [vmem:[%s4978 + $0x4] sm:$0xf]
        %v4981 = vld [vmem:[%s4978 + $0x8] sm:$0xf]
        %v4982 = vld [vmem:[%s4978 + $0xc] sm:$0xf]
        %v4983 = vld [vmem:[%s4978 + $0x10] sm:$0xf]
        %v4984 = vld [vmem:[%s4978 + $0x14] sm:$0xf]
        %v4985 = vld [vmem:[%s4978 + $0x18] sm:$0xf]
        %v4986 = vld [vmem:[%s4978 + $0x1c] sm:$0xf]
        %v4995 = vunpack.c.l.b16 %v4979
        %v4996 = vunpack.c.l.b16 %v4980
        %v4997 = vunpack.c.l.b16 %v4981
        %v4998 = vunpack.c.l.b16 %v4982
        %v4999 = vunpack.c.l.b16 %v4983
        %v5000 = vunpack.c.l.b16 %v4984
        %v5001 = vunpack.c.l.b16 %v4985
        %v5002 = vunpack.c.l.b16 %v4986
        %v5003 = vpack.c.b16 %v4996, %v4995
        %v5004 = vpack.c.b16 %v4998, %v4997
        %v5005 = vpack.c.b16 %v5000, %v4999
        %v5006 = vpack.c.b16 %v5002, %v5001
        %v5012 = vsel %vm2726, %v4977, 0
        %5014 = vmatprep.subr.bf16.mxu0 0
        %5015 = vmatpush1.bf16.msra.mxu0 0
        %5016 = vmatprep.subr.bf16.mxu0 0
        %5017 = vmatpush1.bf16.msra.mxu0 0
        %5018 = vmatprep.subr.bf16.mxu0 0
        %5019 = vmatpush1.bf16.msra.mxu0 0
        %5020 = vmatprep.subr.bf16.mxu0 0
        %5021 = vmatpush1.bf16.msra.mxu0 0
        %5022 = vmatprep.subr.bf16.mxu0 0
        %5023 = vmatpush1.bf16.msra.mxu0 %v5006
        %5024 = vmatprep.subr.bf16.mxu0 0
        %5025 = vmatpush1.bf16.msra.mxu0 %v5005
        %5026 = vmatprep.subr.bf16.mxu0 0
        %5027 = vmatpush1.bf16.msra.mxu0 %v5004
        %5028 = vmatprep.subr.bf16.mxu0 0
        %5029 = vmatpush1.bf16.msra.mxu0 %v5003
        %5030 = vmatprep.subr.bf16.mxu0 0
        %5031 = vmatpush2.bf16.msra.mxu0 0
        %5032 = vmatprep.subr.bf16.mxu0 0
        %5033 = vmatpush2.bf16.msra.mxu0 0
        %5034 = vmatprep.subr.bf16.mxu0 0
        %5035 = vmatpush2.bf16.msra.mxu0 0
        %5036 = vmatprep.subr.bf16.mxu0 0
        %5037 = vmatpush2.bf16.msra.mxu0 0
        %5038 = vmatprep.subr.bf16.mxu0 0
        %5039 = vmatpush2.bf16.msra.mxu0 0
        %5040 = vmatprep.subr.bf16.mxu0 0
        %5041 = vmatpush2.bf16.msra.mxu0 0
        %5042 = vmatprep.subr.bf16.mxu0 0
        %5043 = vmatpush2.bf16.msra.mxu0 0
        %5044 = vmatprep.subr.bf16.mxu0 0
        %5045 = vmatpush2.bf16.msra.mxu0 0
        %5046 = vmatprep.mubr.bf16.mxu0 0
        %5047 = vmatmul.mubr.bf16.gmra.mxu0 %v5012
        %v5048 = vpop.f32.mrf.mxu0
        %v5049 = vadd.f32 0.0, %v5048
        %v5050 = vpop.f32.mrf.mxu0
        %v5051 = vpop.f32.mrf.mxu0
        %v5052 = vpop.f32.mrf.mxu0
        %5053 = vdwg.mxu0
        %v5054 = vadd.f32 %v4927, %v5049
        %s5055 = scalar_lea.vmem %s13, 3
        %v5056 = vld [vmem:[%s5055] sm:$0x1]
        %v5058 = vsel %vm4687, %v5056, 0
        %5060 = vmatprep.subr.bf16.mxu0 0
        %5061 = vmatpush1.bf16.msra.mxu0 0
        %5062 = vmatprep.subr.bf16.mxu0 0
        %5063 = vmatpush1.bf16.msra.mxu0 0
        %5064 = vmatprep.subr.bf16.mxu0 0
        %5065 = vmatpush1.bf16.msra.mxu0 0
        %5066 = vmatprep.subr.bf16.mxu0 0
        %5067 = vmatpush1.bf16.msra.mxu0 0
        %5068 = vmatprep.subr.bf16.mxu0 0
        %5069 = vmatpush1.bf16.msra.mxu0 0
        %5070 = vmatprep.subr.bf16.mxu0 0
        %5071 = vmatpush1.bf16.msra.mxu0 0
        %5072 = vmatprep.subr.bf16.mxu0 0
        %5073 = vmatpush1.bf16.msra.mxu0 0
        %5074 = vmatprep.subr.bf16.mxu0 0
        %5075 = vmatpush1.bf16.msra.mxu0 %v4692
        %5076 = vmatprep.subr.bf16.mxu0 0
        %5077 = vmatpush2.bf16.msra.mxu0 0
        %5078 = vmatprep.subr.bf16.mxu0 0
        %5079 = vmatpush2.bf16.msra.mxu0 0
        %5080 = vmatprep.subr.bf16.mxu0 0
        %5081 = vmatpush2.bf16.msra.mxu0 0
        %5082 = vmatprep.subr.bf16.mxu0 0
        %5083 = vmatpush2.bf16.msra.mxu0 0
        %5084 = vmatprep.subr.bf16.mxu0 0
        %5085 = vmatpush2.bf16.msra.mxu0 0
        %5086 = vmatprep.subr.bf16.mxu0 0
        %5087 = vmatpush2.bf16.msra.mxu0 0
        %5088 = vmatprep.subr.bf16.mxu0 0
        %5089 = vmatpush2.bf16.msra.mxu0 0
        %5090 = vmatprep.subr.bf16.mxu0 0
        %5091 = vmatpush2.bf16.msra.mxu0 0
        %5092 = vmatprep.mubr.bf16.mxu0 0
        %5093 = vmatmul.mubr.bf16.gmra.mxu0 %v5058
        %v5094 = vpop.f32.mrf.mxu0
        %v5095 = vadd.f32 0.0, %v5094
        %v5096 = vpop.f32.mrf.mxu0
        %v5097 = vpop.f32.mrf.mxu0
        %v5098 = vpop.f32.mrf.mxu0
        %5099 = vdwg.mxu0
        %v5100 = vpack.c.bf16 %v5095, %v5095
        %s5101 = scalar_lea.vmem %s14, 96
        %v5102 = vld [vmem:[%s5101] sm:$0xf]
        %v5103 = vld [vmem:[%s5101 + $0x4] sm:$0xf]
        %v5104 = vld [vmem:[%s5101 + $0x8] sm:$0xf]
        %v5105 = vld [vmem:[%s5101 + $0xc] sm:$0xf]
        %v5106 = vld [vmem:[%s5101 + $0x10] sm:$0xf]
        %v5107 = vld [vmem:[%s5101 + $0x14] sm:$0xf]
        %v5108 = vld [vmem:[%s5101 + $0x18] sm:$0xf]
        %v5109 = vld [vmem:[%s5101 + $0x1c] sm:$0xf]
        %v5118 = vunpack.c.l.b16 %v5102
        %v5119 = vunpack.c.l.b16 %v5103
        %v5120 = vunpack.c.l.b16 %v5104
        %v5121 = vunpack.c.l.b16 %v5105
        %v5122 = vunpack.c.l.b16 %v5106
        %v5123 = vunpack.c.l.b16 %v5107
        %v5124 = vunpack.c.l.b16 %v5108
        %v5125 = vunpack.c.l.b16 %v5109
        %v5126 = vpack.c.b16 %v5119, %v5118
        %v5127 = vpack.c.b16 %v5121, %v5120
        %v5128 = vpack.c.b16 %v5123, %v5122
        %v5129 = vpack.c.b16 %v5125, %v5124
        %v5135 = vsel %vm2726, %v5100, 0
        %5137 = vmatprep.subr.bf16.mxu0 0
        %5138 = vmatpush1.bf16.msra.mxu0 0
        %5139 = vmatprep.subr.bf16.mxu0 0
        %5140 = vmatpush1.bf16.msra.mxu0 0
        %5141 = vmatprep.subr.bf16.mxu0 0
        %5142 = vmatpush1.bf16.msra.mxu0 0
        %5143 = vmatprep.subr.bf16.mxu0 0
        %5144 = vmatpush1.bf16.msra.mxu0 0
        %5145 = vmatprep.subr.bf16.mxu0 0
        %5146 = vmatpush1.bf16.msra.mxu0 %v5129
        %5147 = vmatprep.subr.bf16.mxu0 0
        %5148 = vmatpush1.bf16.msra.mxu0 %v5128
        %5149 = vmatprep.subr.bf16.mxu0 0
        %5150 = vmatpush1.bf16.msra.mxu0 %v5127
        %5151 = vmatprep.subr.bf16.mxu0 0
        %5152 = vmatpush1.bf16.msra.mxu0 %v5126
        %5153 = vmatprep.subr.bf16.mxu0 0
        %5154 = vmatpush2.bf16.msra.mxu0 0
        %5155 = vmatprep.subr.bf16.mxu0 0
        %5156 = vmatpush2.bf16.msra.mxu0 0
        %5157 = vmatprep.subr.bf16.mxu0 0
        %5158 = vmatpush2.bf16.msra.mxu0 0
        %5159 = vmatprep.subr.bf16.mxu0 0
        %5160 = vmatpush2.bf16.msra.mxu0 0
        %5161 = vmatprep.subr.bf16.mxu0 0
        %5162 = vmatpush2.bf16.msra.mxu0 0
        %5163 = vmatprep.subr.bf16.mxu0 0
        %5164 = vmatpush2.bf16.msra.mxu0 0
        %5165 = vmatprep.subr.bf16.mxu0 0
        %5166 = vmatpush2.bf16.msra.mxu0 0
        %5167 = vmatprep.subr.bf16.mxu0 0
        %5168 = vmatpush2.bf16.msra.mxu0 0
        %5169 = vmatprep.mubr.bf16.mxu0 0
        %5170 = vmatmul.mubr.bf16.gmra.mxu0 %v5135
        %v5171 = vpop.f32.mrf.mxu0
        %v5172 = vadd.f32 0.0, %v5171
        %v5173 = vpop.f32.mrf.mxu0
        %v5174 = vpop.f32.mrf.mxu0
        %v5175 = vpop.f32.mrf.mxu0
        %5176 = vdwg.mxu0
        %v5177 = vadd.f32 %v5054, %v5172
        %s5178 = scalar_lea.vmem %s13, 4
        %v5179 = vld [vmem:[%s5178] sm:$0x1]
        %v5181 = vsel %vm4687, %v5179, 0
        %5183 = vmatprep.subr.bf16.mxu0 0
        %5184 = vmatpush1.bf16.msra.mxu0 0
        %5185 = vmatprep.subr.bf16.mxu0 0
        %5186 = vmatpush1.bf16.msra.mxu0 0
        %5187 = vmatprep.subr.bf16.mxu0 0
        %5188 = vmatpush1.bf16.msra.mxu0 0
        %5189 = vmatprep.subr.bf16.mxu0 0
        %5190 = vmatpush1.bf16.msra.mxu0 0
        %5191 = vmatprep.subr.bf16.mxu0 0
        %5192 = vmatpush1.bf16.msra.mxu0 0
        %5193 = vmatprep.subr.bf16.mxu0 0
        %5194 = vmatpush1.bf16.msra.mxu0 0
        %5195 = vmatprep.subr.bf16.mxu0 0
        %5196 = vmatpush1.bf16.msra.mxu0 0
        %5197 = vmatprep.subr.bf16.mxu0 0
        %5198 = vmatpush1.bf16.msra.mxu0 %v4692
        %5199 = vmatprep.subr.bf16.mxu0 0
        %5200 = vmatpush2.bf16.msra.mxu0 0
        %5201 = vmatprep.subr.bf16.mxu0 0
        %5202 = vmatpush2.bf16.msra.mxu0 0
        %5203 = vmatprep.subr.bf16.mxu0 0
        %5204 = vmatpush2.bf16.msra.mxu0 0
        %5205 = vmatprep.subr.bf16.mxu0 0
        %5206 = vmatpush2.bf16.msra.mxu0 0
        %5207 = vmatprep.subr.bf16.mxu0 0
        %5208 = vmatpush2.bf16.msra.mxu0 0
        %5209 = vmatprep.subr.bf16.mxu0 0
        %5210 = vmatpush2.bf16.msra.mxu0 0
        %5211 = vmatprep.subr.bf16.mxu0 0
        %5212 = vmatpush2.bf16.msra.mxu0 0
        %5213 = vmatprep.subr.bf16.mxu0 0
        %5214 = vmatpush2.bf16.msra.mxu0 0
        %5215 = vmatprep.mubr.bf16.mxu0 0
        %5216 = vmatmul.mubr.bf16.gmra.mxu0 %v5181
        %v5217 = vpop.f32.mrf.mxu0
        %v5218 = vadd.f32 0.0, %v5217
        %v5219 = vpop.f32.mrf.mxu0
        %v5220 = vpop.f32.mrf.mxu0
        %v5221 = vpop.f32.mrf.mxu0
        %5222 = vdwg.mxu0
        %v5223 = vpack.c.bf16 %v5218, %v5218
        %s5224 = scalar_lea.vmem %s14, 128
        %v5225 = vld [vmem:[%s5224] sm:$0xf]
        %v5226 = vld [vmem:[%s5224 + $0x4] sm:$0xf]
        %v5227 = vld [vmem:[%s5224 + $0x8] sm:$0xf]
        %v5228 = vld [vmem:[%s5224 + $0xc] sm:$0xf]
        %v5229 = vld [vmem:[%s5224 + $0x10] sm:$0xf]
        %v5230 = vld [vmem:[%s5224 + $0x14] sm:$0xf]
        %v5231 = vld [vmem:[%s5224 + $0x18] sm:$0xf]
        %v5232 = vld [vmem:[%s5224 + $0x1c] sm:$0xf]
        %v5241 = vunpack.c.l.b16 %v5225
        %v5242 = vunpack.c.l.b16 %v5226
        %v5243 = vunpack.c.l.b16 %v5227
        %v5244 = vunpack.c.l.b16 %v5228
        %v5245 = vunpack.c.l.b16 %v5229
        %v5246 = vunpack.c.l.b16 %v5230
        %v5247 = vunpack.c.l.b16 %v5231
        %v5248 = vunpack.c.l.b16 %v5232
        %v5249 = vpack.c.b16 %v5242, %v5241
        %v5250 = vpack.c.b16 %v5244, %v5243
        %v5251 = vpack.c.b16 %v5246, %v5245
        %v5252 = vpack.c.b16 %v5248, %v5247
        %v5258 = vsel %vm2726, %v5223, 0
        %5260 = vmatprep.subr.bf16.mxu0 0
        %5261 = vmatpush1.bf16.msra.mxu0 0
        %5262 = vmatprep.subr.bf16.mxu0 0
        %5263 = vmatpush1.bf16.msra.mxu0 0
        %5264 = vmatprep.subr.bf16.mxu0 0
        %5265 = vmatpush1.bf16.msra.mxu0 0
        %5266 = vmatprep.subr.bf16.mxu0 0
        %5267 = vmatpush1.bf16.msra.mxu0 0
        %5268 = vmatprep.subr.bf16.mxu0 0
        %5269 = vmatpush1.bf16.msra.mxu0 %v5252
        %5270 = vmatprep.subr.bf16.mxu0 0
        %5271 = vmatpush1.bf16.msra.mxu0 %v5251
        %5272 = vmatprep.subr.bf16.mxu0 0
        %5273 = vmatpush1.bf16.msra.mxu0 %v5250
        %5274 = vmatprep.subr.bf16.mxu0 0
        %5275 = vmatpush1.bf16.msra.mxu0 %v5249
        %5276 = vmatprep.subr.bf16.mxu0 0
        %5277 = vmatpush2.bf16.msra.mxu0 0
        %5278 = vmatprep.subr.bf16.mxu0 0
        %5279 = vmatpush2.bf16.msra.mxu0 0
        %5280 = vmatprep.subr.bf16.mxu0 0
        %5281 = vmatpush2.bf16.msra.mxu0 0
        %5282 = vmatprep.subr.bf16.mxu0 0
        %5283 = vmatpush2.bf16.msra.mxu0 0
        %5284 = vmatprep.subr.bf16.mxu0 0
        %5285 = vmatpush2.bf16.msra.mxu0 0
        %5286 = vmatprep.subr.bf16.mxu0 0
        %5287 = vmatpush2.bf16.msra.mxu0 0
        %5288 = vmatprep.subr.bf16.mxu0 0
        %5289 = vmatpush2.bf16.msra.mxu0 0
        %5290 = vmatprep.subr.bf16.mxu0 0
        %5291 = vmatpush2.bf16.msra.mxu0 0
        %5292 = vmatprep.mubr.bf16.mxu0 0
        %5293 = vmatmul.mubr.bf16.gmra.mxu0 %v5258
        %v5294 = vpop.f32.mrf.mxu0
        %v5295 = vadd.f32 0.0, %v5294
        %v5296 = vpop.f32.mrf.mxu0
        %v5297 = vpop.f32.mrf.mxu0
        %v5298 = vpop.f32.mrf.mxu0
        %5299 = vdwg.mxu0
        %v5300 = vadd.f32 %v5177, %v5295
        %s5301 = scalar_lea.vmem %s13, 5
        %v5302 = vld [vmem:[%s5301] sm:$0x1]
        %v5304 = vsel %vm4687, %v5302, 0
        %5306 = vmatprep.subr.bf16.mxu0 0
        %5307 = vmatpush1.bf16.msra.mxu0 0
        %5308 = vmatprep.subr.bf16.mxu0 0
        %5309 = vmatpush1.bf16.msra.mxu0 0
        %5310 = vmatprep.subr.bf16.mxu0 0
        %5311 = vmatpush1.bf16.msra.mxu0 0
        %5312 = vmatprep.subr.bf16.mxu0 0
        %5313 = vmatpush1.bf16.msra.mxu0 0
        %5314 = vmatprep.subr.bf16.mxu0 0
        %5315 = vmatpush1.bf16.msra.mxu0 0
        %5316 = vmatprep.subr.bf16.mxu0 0
        %5317 = vmatpush1.bf16.msra.mxu0 0
        %5318 = vmatprep.subr.bf16.mxu0 0
        %5319 = vmatpush1.bf16.msra.mxu0 0
        %5320 = vmatprep.subr.bf16.mxu0 0
        %5321 = vmatpush1.bf16.msra.mxu0 %v4692
        %5322 = vmatprep.subr.bf16.mxu0 0
        %5323 = vmatpush2.bf16.msra.mxu0 0
        %5324 = vmatprep.subr.bf16.mxu0 0
        %5325 = vmatpush2.bf16.msra.mxu0 0
        %5326 = vmatprep.subr.bf16.mxu0 0
        %5327 = vmatpush2.bf16.msra.mxu0 0
        %5328 = vmatprep.subr.bf16.mxu0 0
        %5329 = vmatpush2.bf16.msra.mxu0 0
        %5330 = vmatprep.subr.bf16.mxu0 0
        %5331 = vmatpush2.bf16.msra.mxu0 0
        %5332 = vmatprep.subr.bf16.mxu0 0
        %5333 = vmatpush2.bf16.msra.mxu0 0
        %5334 = vmatprep.subr.bf16.mxu0 0
        %5335 = vmatpush2.bf16.msra.mxu0 0
        %5336 = vmatprep.subr.bf16.mxu0 0
        %5337 = vmatpush2.bf16.msra.mxu0 0
        %5338 = vmatprep.mubr.bf16.mxu0 0
        %5339 = vmatmul.mubr.bf16.gmra.mxu0 %v5304
        %v5340 = vpop.f32.mrf.mxu0
        %v5341 = vadd.f32 0.0, %v5340
        %v5342 = vpop.f32.mrf.mxu0
        %v5343 = vpop.f32.mrf.mxu0
        %v5344 = vpop.f32.mrf.mxu0
        %5345 = vdwg.mxu0
        %v5346 = vpack.c.bf16 %v5341, %v5341
        %s5347 = scalar_lea.vmem %s14, 160
        %v5348 = vld [vmem:[%s5347] sm:$0xf]
        %v5349 = vld [vmem:[%s5347 + $0x4] sm:$0xf]
        %v5350 = vld [vmem:[%s5347 + $0x8] sm:$0xf]
        %v5351 = vld [vmem:[%s5347 + $0xc] sm:$0xf]
        %v5352 = vld [vmem:[%s5347 + $0x10] sm:$0xf]
        %v5353 = vld [vmem:[%s5347 + $0x14] sm:$0xf]
        %v5354 = vld [vmem:[%s5347 + $0x18] sm:$0xf]
        %v5355 = vld [vmem:[%s5347 + $0x1c] sm:$0xf]
        %v5364 = vunpack.c.l.b16 %v5348
        %v5365 = vunpack.c.l.b16 %v5349
        %v5366 = vunpack.c.l.b16 %v5350
        %v5367 = vunpack.c.l.b16 %v5351
        %v5368 = vunpack.c.l.b16 %v5352
        %v5369 = vunpack.c.l.b16 %v5353
        %v5370 = vunpack.c.l.b16 %v5354
        %v5371 = vunpack.c.l.b16 %v5355
        %v5372 = vpack.c.b16 %v5365, %v5364
        %v5373 = vpack.c.b16 %v5367, %v5366
        %v5374 = vpack.c.b16 %v5369, %v5368
        %v5375 = vpack.c.b16 %v5371, %v5370
        %v5381 = vsel %vm2726, %v5346, 0
        %5383 = vmatprep.subr.bf16.mxu0 0
        %5384 = vmatpush1.bf16.msra.mxu0 0
        %5385 = vmatprep.subr.bf16.mxu0 0
        %5386 = vmatpush1.bf16.msra.mxu0 0
        %5387 = vmatprep.subr.bf16.mxu0 0
        %5388 = vmatpush1.bf16.msra.mxu0 0
        %5389 = vmatprep.subr.bf16.mxu0 0
        %5390 = vmatpush1.bf16.msra.mxu0 0
        %5391 = vmatprep.subr.bf16.mxu0 0
        %5392 = vmatpush1.bf16.msra.mxu0 %v5375
        %5393 = vmatprep.subr.bf16.mxu0 0
        %5394 = vmatpush1.bf16.msra.mxu0 %v5374
        %5395 = vmatprep.subr.bf16.mxu0 0
        %5396 = vmatpush1.bf16.msra.mxu0 %v5373
        %5397 = vmatprep.subr.bf16.mxu0 0
        %5398 = vmatpush1.bf16.msra.mxu0 %v5372
        %5399 = vmatprep.subr.bf16.mxu0 0
        %5400 = vmatpush2.bf16.msra.mxu0 0
        %5401 = vmatprep.subr.bf16.mxu0 0
        %5402 = vmatpush2.bf16.msra.mxu0 0
        %5403 = vmatprep.subr.bf16.mxu0 0
        %5404 = vmatpush2.bf16.msra.mxu0 0
        %5405 = vmatprep.subr.bf16.mxu0 0
        %5406 = vmatpush2.bf16.msra.mxu0 0
        %5407 = vmatprep.subr.bf16.mxu0 0
        %5408 = vmatpush2.bf16.msra.mxu0 0
        %5409 = vmatprep.subr.bf16.mxu0 0
        %5410 = vmatpush2.bf16.msra.mxu0 0
        %5411 = vmatprep.subr.bf16.mxu0 0
        %5412 = vmatpush2.bf16.msra.mxu0 0
        %5413 = vmatprep.subr.bf16.mxu0 0
        %5414 = vmatpush2.bf16.msra.mxu0 0
        %5415 = vmatprep.mubr.bf16.mxu0 0
        %5416 = vmatmul.mubr.bf16.gmra.mxu0 %v5381
        %v5417 = vpop.f32.mrf.mxu0
        %v5418 = vadd.f32 0.0, %v5417
        %v5419 = vpop.f32.mrf.mxu0
        %v5420 = vpop.f32.mrf.mxu0
        %v5421 = vpop.f32.mrf.mxu0
        %5422 = vdwg.mxu0
        %v5423 = vadd.f32 %v5300, %v5418
        %s5424 = scalar_lea.vmem %s13, 6
        %v5425 = vld [vmem:[%s5424] sm:$0x1]
        %v5427 = vsel %vm4687, %v5425, 0
        %5429 = vmatprep.subr.bf16.mxu0 0
        %5430 = vmatpush1.bf16.msra.mxu0 0
        %5431 = vmatprep.subr.bf16.mxu0 0
        %5432 = vmatpush1.bf16.msra.mxu0 0
        %5433 = vmatprep.subr.bf16.mxu0 0
        %5434 = vmatpush1.bf16.msra.mxu0 0
        %5435 = vmatprep.subr.bf16.mxu0 0
        %5436 = vmatpush1.bf16.msra.mxu0 0
        %5437 = vmatprep.subr.bf16.mxu0 0
        %5438 = vmatpush1.bf16.msra.mxu0 0
        %5439 = vmatprep.subr.bf16.mxu0 0
        %5440 = vmatpush1.bf16.msra.mxu0 0
        %5441 = vmatprep.subr.bf16.mxu0 0
        %5442 = vmatpush1.bf16.msra.mxu0 0
        %5443 = vmatprep.subr.bf16.mxu0 0
        %5444 = vmatpush1.bf16.msra.mxu0 %v4692
        %5445 = vmatprep.subr.bf16.mxu0 0
        %5446 = vmatpush2.bf16.msra.mxu0 0
        %5447 = vmatprep.subr.bf16.mxu0 0
        %5448 = vmatpush2.bf16.msra.mxu0 0
        %5449 = vmatprep.subr.bf16.mxu0 0
        %5450 = vmatpush2.bf16.msra.mxu0 0
        %5451 = vmatprep.subr.bf16.mxu0 0
        %5452 = vmatpush2.bf16.msra.mxu0 0
        %5453 = vmatprep.subr.bf16.mxu0 0
        %5454 = vmatpush2.bf16.msra.mxu0 0
        %5455 = vmatprep.subr.bf16.mxu0 0
        %5456 = vmatpush2.bf16.msra.mxu0 0
        %5457 = vmatprep.subr.bf16.mxu0 0
        %5458 = vmatpush2.bf16.msra.mxu0 0
        %5459 = vmatprep.subr.bf16.mxu0 0
        %5460 = vmatpush2.bf16.msra.mxu0 0
        %5461 = vmatprep.mubr.bf16.mxu0 0
        %5462 = vmatmul.mubr.bf16.gmra.mxu0 %v5427
        %v5463 = vpop.f32.mrf.mxu0
        %v5464 = vadd.f32 0.0, %v5463
        %v5465 = vpop.f32.mrf.mxu0
        %v5466 = vpop.f32.mrf.mxu0
        %v5467 = vpop.f32.mrf.mxu0
        %5468 = vdwg.mxu0
        %v5469 = vpack.c.bf16 %v5464, %v5464
        %s5470 = scalar_lea.vmem %s14, 192
        %v5471 = vld [vmem:[%s5470] sm:$0xf]
        %v5472 = vld [vmem:[%s5470 + $0x4] sm:$0xf]
        %v5473 = vld [vmem:[%s5470 + $0x8] sm:$0xf]
        %v5474 = vld [vmem:[%s5470 + $0xc] sm:$0xf]
        %v5475 = vld [vmem:[%s5470 + $0x10] sm:$0xf]
        %v5476 = vld [vmem:[%s5470 + $0x14] sm:$0xf]
        %v5477 = vld [vmem:[%s5470 + $0x18] sm:$0xf]
        %v5478 = vld [vmem:[%s5470 + $0x1c] sm:$0xf]
        %v5487 = vunpack.c.l.b16 %v5471
        %v5488 = vunpack.c.l.b16 %v5472
        %v5489 = vunpack.c.l.b16 %v5473
        %v5490 = vunpack.c.l.b16 %v5474
        %v5491 = vunpack.c.l.b16 %v5475
        %v5492 = vunpack.c.l.b16 %v5476
        %v5493 = vunpack.c.l.b16 %v5477
        %v5494 = vunpack.c.l.b16 %v5478
        %v5495 = vpack.c.b16 %v5488, %v5487
        %v5496 = vpack.c.b16 %v5490, %v5489
        %v5497 = vpack.c.b16 %v5492, %v5491
        %v5498 = vpack.c.b16 %v5494, %v5493
        %v5504 = vsel %vm2726, %v5469, 0
        %5506 = vmatprep.subr.bf16.mxu0 0
        %5507 = vmatpush1.bf16.msra.mxu0 0
        %5508 = vmatprep.subr.bf16.mxu0 0
        %5509 = vmatpush1.bf16.msra.mxu0 0
        %5510 = vmatprep.subr.bf16.mxu0 0
        %5511 = vmatpush1.bf16.msra.mxu0 0
        %5512 = vmatprep.subr.bf16.mxu0 0
        %5513 = vmatpush1.bf16.msra.mxu0 0
        %5514 = vmatprep.subr.bf16.mxu0 0
        %5515 = vmatpush1.bf16.msra.mxu0 %v5498
        %5516 = vmatprep.subr.bf16.mxu0 0
        %5517 = vmatpush1.bf16.msra.mxu0 %v5497
        %5518 = vmatprep.subr.bf16.mxu0 0
        %5519 = vmatpush1.bf16.msra.mxu0 %v5496
        %5520 = vmatprep.subr.bf16.mxu0 0
        %5521 = vmatpush1.bf16.msra.mxu0 %v5495
        %5522 = vmatprep.subr.bf16.mxu0 0
        %5523 = vmatpush2.bf16.msra.mxu0 0
        %5524 = vmatprep.subr.bf16.mxu0 0
        %5525 = vmatpush2.bf16.msra.mxu0 0
        %5526 = vmatprep.subr.bf16.mxu0 0
        %5527 = vmatpush2.bf16.msra.mxu0 0
        %5528 = vmatprep.subr.bf16.mxu0 0
        %5529 = vmatpush2.bf16.msra.mxu0 0
        %5530 = vmatprep.subr.bf16.mxu0 0
        %5531 = vmatpush2.bf16.msra.mxu0 0
        %5532 = vmatprep.subr.bf16.mxu0 0
        %5533 = vmatpush2.bf16.msra.mxu0 0
        %5534 = vmatprep.subr.bf16.mxu0 0
        %5535 = vmatpush2.bf16.msra.mxu0 0
        %5536 = vmatprep.subr.bf16.mxu0 0
        %5537 = vmatpush2.bf16.msra.mxu0 0
        %5538 = vmatprep.mubr.bf16.mxu0 0
        %5539 = vmatmul.mubr.bf16.gmra.mxu0 %v5504
        %v5540 = vpop.f32.mrf.mxu0
        %v5541 = vadd.f32 0.0, %v5540
        %v5542 = vpop.f32.mrf.mxu0
        %v5543 = vpop.f32.mrf.mxu0
        %v5544 = vpop.f32.mrf.mxu0
        %5545 = vdwg.mxu0
        %v5546 = vadd.f32 %v5423, %v5541
        %s5547 = scalar_lea.vmem %s13, 7
        %v5548 = vld [vmem:[%s5547] sm:$0x1]
        %v5550 = vsel %vm4687, %v5548, 0
        %5552 = vmatprep.subr.bf16.mxu0 0
        %5553 = vmatpush1.bf16.msra.mxu0 0
        %5554 = vmatprep.subr.bf16.mxu0 0
        %5555 = vmatpush1.bf16.msra.mxu0 0
        %5556 = vmatprep.subr.bf16.mxu0 0
        %5557 = vmatpush1.bf16.msra.mxu0 0
        %5558 = vmatprep.subr.bf16.mxu0 0
        %5559 = vmatpush1.bf16.msra.mxu0 0
        %5560 = vmatprep.subr.bf16.mxu0 0
        %5561 = vmatpush1.bf16.msra.mxu0 0
        %5562 = vmatprep.subr.bf16.mxu0 0
        %5563 = vmatpush1.bf16.msra.mxu0 0
        %5564 = vmatprep.subr.bf16.mxu0 0
        %5565 = vmatpush1.bf16.msra.mxu0 0
        %5566 = vmatprep.subr.bf16.mxu0 0
        %5567 = vmatpush1.bf16.msra.mxu0 %v4692
        %5568 = vmatprep.subr.bf16.mxu0 0
        %5569 = vmatpush2.bf16.msra.mxu0 0
        %5570 = vmatprep.subr.bf16.mxu0 0
        %5571 = vmatpush2.bf16.msra.mxu0 0
        %5572 = vmatprep.subr.bf16.mxu0 0
        %5573 = vmatpush2.bf16.msra.mxu0 0
        %5574 = vmatprep.subr.bf16.mxu0 0
        %5575 = vmatpush2.bf16.msra.mxu0 0
        %5576 = vmatprep.subr.bf16.mxu0 0
        %5577 = vmatpush2.bf16.msra.mxu0 0
        %5578 = vmatprep.subr.bf16.mxu0 0
        %5579 = vmatpush2.bf16.msra.mxu0 0
        %5580 = vmatprep.subr.bf16.mxu0 0
        %5581 = vmatpush2.bf16.msra.mxu0 0
        %5582 = vmatprep.subr.bf16.mxu0 0
        %5583 = vmatpush2.bf16.msra.mxu0 0
        %5584 = vmatprep.mubr.bf16.mxu0 0
        %5585 = vmatmul.mubr.bf16.gmra.mxu0 %v5550
        %v5586 = vpop.f32.mrf.mxu0
        %v5587 = vadd.f32 0.0, %v5586
        %v5588 = vpop.f32.mrf.mxu0
        %v5589 = vpop.f32.mrf.mxu0
        %v5590 = vpop.f32.mrf.mxu0
        %5591 = vdwg.mxu0
        %v5592 = vpack.c.bf16 %v5587, %v5587
        %s5593 = scalar_lea.vmem %s14, 224
        %v5594 = vld [vmem:[%s5593] sm:$0xf]
        %v5595 = vld [vmem:[%s5593 + $0x4] sm:$0xf]
        %v5596 = vld [vmem:[%s5593 + $0x8] sm:$0xf]
        %v5597 = vld [vmem:[%s5593 + $0xc] sm:$0xf]
        %v5598 = vld [vmem:[%s5593 + $0x10] sm:$0xf]
        %v5599 = vld [vmem:[%s5593 + $0x14] sm:$0xf]
        %v5600 = vld [vmem:[%s5593 + $0x18] sm:$0xf]
        %v5601 = vld [vmem:[%s5593 + $0x1c] sm:$0xf]
        %v5610 = vunpack.c.l.b16 %v5594
        %v5611 = vunpack.c.l.b16 %v5595
        %v5612 = vunpack.c.l.b16 %v5596
        %v5613 = vunpack.c.l.b16 %v5597
        %v5614 = vunpack.c.l.b16 %v5598
        %v5615 = vunpack.c.l.b16 %v5599
        %v5616 = vunpack.c.l.b16 %v5600
        %v5617 = vunpack.c.l.b16 %v5601
        %v5618 = vpack.c.b16 %v5611, %v5610
        %v5619 = vpack.c.b16 %v5613, %v5612
        %v5620 = vpack.c.b16 %v5615, %v5614
        %v5621 = vpack.c.b16 %v5617, %v5616
        %v5627 = vsel %vm2726, %v5592, 0
        %5629 = vmatprep.subr.bf16.mxu0 0
        %5630 = vmatpush1.bf16.msra.mxu0 0
        %5631 = vmatprep.subr.bf16.mxu0 0
        %5632 = vmatpush1.bf16.msra.mxu0 0
        %5633 = vmatprep.subr.bf16.mxu0 0
        %5634 = vmatpush1.bf16.msra.mxu0 0
        %5635 = vmatprep.subr.bf16.mxu0 0
        %5636 = vmatpush1.bf16.msra.mxu0 0
        %5637 = vmatprep.subr.bf16.mxu0 0
        %5638 = vmatpush1.bf16.msra.mxu0 %v5621
        %5639 = vmatprep.subr.bf16.mxu0 0
        %5640 = vmatpush1.bf16.msra.mxu0 %v5620
        %5641 = vmatprep.subr.bf16.mxu0 0
        %5642 = vmatpush1.bf16.msra.mxu0 %v5619
        %5643 = vmatprep.subr.bf16.mxu0 0
        %5644 = vmatpush1.bf16.msra.mxu0 %v5618
        %5645 = vmatprep.subr.bf16.mxu0 0
        %5646 = vmatpush2.bf16.msra.mxu0 0
        %5647 = vmatprep.subr.bf16.mxu0 0
        %5648 = vmatpush2.bf16.msra.mxu0 0
        %5649 = vmatprep.subr.bf16.mxu0 0
        %5650 = vmatpush2.bf16.msra.mxu0 0
        %5651 = vmatprep.subr.bf16.mxu0 0
        %5652 = vmatpush2.bf16.msra.mxu0 0
        %5653 = vmatprep.subr.bf16.mxu0 0
        %5654 = vmatpush2.bf16.msra.mxu0 0
        %5655 = vmatprep.subr.bf16.mxu0 0
        %5656 = vmatpush2.bf16.msra.mxu0 0
        %5657 = vmatprep.subr.bf16.mxu0 0
        %5658 = vmatpush2.bf16.msra.mxu0 0
        %5659 = vmatprep.subr.bf16.mxu0 0
        %5660 = vmatpush2.bf16.msra.mxu0 0
        %5661 = vmatprep.mubr.bf16.mxu0 0
        %5662 = vmatmul.mubr.bf16.gmra.mxu0 %v5627
        %v5663 = vpop.f32.mrf.mxu0
        %v5664 = vadd.f32 0.0, %v5663
        %v5665 = vpop.f32.mrf.mxu0
        %v5666 = vpop.f32.mrf.mxu0
        %v5667 = vpop.f32.mrf.mxu0
        %5668 = vdwg.mxu0
        %v5669 = vadd.f32 %v5546, %v5664
        %s5670 = scalar_lea.vmem %s13, 8
        %v5671 = vld [vmem:[%s5670] sm:$0x1]
        %v5673 = vsel %vm4687, %v5671, 0
        %5675 = vmatprep.subr.bf16.mxu0 0
        %5676 = vmatpush1.bf16.msra.mxu0 0
        %5677 = vmatprep.subr.bf16.mxu0 0
        %5678 = vmatpush1.bf16.msra.mxu0 0
        %5679 = vmatprep.subr.bf16.mxu0 0
        %5680 = vmatpush1.bf16.msra.mxu0 0
        %5681 = vmatprep.subr.bf16.mxu0 0
        %5682 = vmatpush1.bf16.msra.mxu0 0
        %5683 = vmatprep.subr.bf16.mxu0 0
        %5684 = vmatpush1.bf16.msra.mxu0 0
        %5685 = vmatprep.subr.bf16.mxu0 0
        %5686 = vmatpush1.bf16.msra.mxu0 0
        %5687 = vmatprep.subr.bf16.mxu0 0
        %5688 = vmatpush1.bf16.msra.mxu0 0
        %5689 = vmatprep.subr.bf16.mxu0 0
        %5690 = vmatpush1.bf16.msra.mxu0 %v4692
        %5691 = vmatprep.subr.bf16.mxu0 0
        %5692 = vmatpush2.bf16.msra.mxu0 0
        %5693 = vmatprep.subr.bf16.mxu0 0
        %5694 = vmatpush2.bf16.msra.mxu0 0
        %5695 = vmatprep.subr.bf16.mxu0 0
        %5696 = vmatpush2.bf16.msra.mxu0 0
        %5697 = vmatprep.subr.bf16.mxu0 0
        %5698 = vmatpush2.bf16.msra.mxu0 0
        %5699 = vmatprep.subr.bf16.mxu0 0
        %5700 = vmatpush2.bf16.msra.mxu0 0
        %5701 = vmatprep.subr.bf16.mxu0 0
        %5702 = vmatpush2.bf16.msra.mxu0 0
        %5703 = vmatprep.subr.bf16.mxu0 0
        %5704 = vmatpush2.bf16.msra.mxu0 0
        %5705 = vmatprep.subr.bf16.mxu0 0
        %5706 = vmatpush2.bf16.msra.mxu0 0
        %5707 = vmatprep.mubr.bf16.mxu0 0
        %5708 = vmatmul.mubr.bf16.gmra.mxu0 %v5673
        %v5709 = vpop.f32.mrf.mxu0
        %v5710 = vadd.f32 0.0, %v5709
        %v5711 = vpop.f32.mrf.mxu0
        %v5712 = vpop.f32.mrf.mxu0
        %v5713 = vpop.f32.mrf.mxu0
        %5714 = vdwg.mxu0
        %v5715 = vpack.c.bf16 %v5710, %v5710
        %s5716 = scalar_lea.vmem %s14, 256
        %v5717 = vld [vmem:[%s5716] sm:$0xf]
        %v5718 = vld [vmem:[%s5716 + $0x4] sm:$0xf]
        %v5719 = vld [vmem:[%s5716 + $0x8] sm:$0xf]
        %v5720 = vld [vmem:[%s5716 + $0xc] sm:$0xf]
        %v5721 = vld [vmem:[%s5716 + $0x10] sm:$0xf]
        %v5722 = vld [vmem:[%s5716 + $0x14] sm:$0xf]
        %v5723 = vld [vmem:[%s5716 + $0x18] sm:$0xf]
        %v5724 = vld [vmem:[%s5716 + $0x1c] sm:$0xf]
        %v5733 = vunpack.c.l.b16 %v5717
        %v5734 = vunpack.c.l.b16 %v5718
        %v5735 = vunpack.c.l.b16 %v5719
        %v5736 = vunpack.c.l.b16 %v5720
        %v5737 = vunpack.c.l.b16 %v5721
        %v5738 = vunpack.c.l.b16 %v5722
        %v5739 = vunpack.c.l.b16 %v5723
        %v5740 = vunpack.c.l.b16 %v5724
        %v5741 = vpack.c.b16 %v5734, %v5733
        %v5742 = vpack.c.b16 %v5736, %v5735
        %v5743 = vpack.c.b16 %v5738, %v5737
        %v5744 = vpack.c.b16 %v5740, %v5739
        %v5750 = vsel %vm2726, %v5715, 0
        %5752 = vmatprep.subr.bf16.mxu0 0
        %5753 = vmatpush1.bf16.msra.mxu0 0
        %5754 = vmatprep.subr.bf16.mxu0 0
        %5755 = vmatpush1.bf16.msra.mxu0 0
        %5756 = vmatprep.subr.bf16.mxu0 0
        %5757 = vmatpush1.bf16.msra.mxu0 0
        %5758 = vmatprep.subr.bf16.mxu0 0
        %5759 = vmatpush1.bf16.msra.mxu0 0
        %5760 = vmatprep.subr.bf16.mxu0 0
        %5761 = vmatpush1.bf16.msra.mxu0 %v5744
        %5762 = vmatprep.subr.bf16.mxu0 0
        %5763 = vmatpush1.bf16.msra.mxu0 %v5743
        %5764 = vmatprep.subr.bf16.mxu0 0
        %5765 = vmatpush1.bf16.msra.mxu0 %v5742
        %5766 = vmatprep.subr.bf16.mxu0 0
        %5767 = vmatpush1.bf16.msra.mxu0 %v5741
        %5768 = vmatprep.subr.bf16.mxu0 0
        %5769 = vmatpush2.bf16.msra.mxu0 0
        %5770 = vmatprep.subr.bf16.mxu0 0
        %5771 = vmatpush2.bf16.msra.mxu0 0
        %5772 = vmatprep.subr.bf16.mxu0 0
        %5773 = vmatpush2.bf16.msra.mxu0 0
        %5774 = vmatprep.subr.bf16.mxu0 0
        %5775 = vmatpush2.bf16.msra.mxu0 0
        %5776 = vmatprep.subr.bf16.mxu0 0
        %5777 = vmatpush2.bf16.msra.mxu0 0
        %5778 = vmatprep.subr.bf16.mxu0 0
        %5779 = vmatpush2.bf16.msra.mxu0 0
        %5780 = vmatprep.subr.bf16.mxu0 0
        %5781 = vmatpush2.bf16.msra.mxu0 0
        %5782 = vmatprep.subr.bf16.mxu0 0
        %5783 = vmatpush2.bf16.msra.mxu0 0
        %5784 = vmatprep.mubr.bf16.mxu0 0
        %5785 = vmatmul.mubr.bf16.gmra.mxu0 %v5750
        %v5786 = vpop.f32.mrf.mxu0
        %v5787 = vadd.f32 0.0, %v5786
        %v5788 = vpop.f32.mrf.mxu0
        %v5789 = vpop.f32.mrf.mxu0
        %v5790 = vpop.f32.mrf.mxu0
        %5791 = vdwg.mxu0
        %v5792 = vadd.f32 %v5669, %v5787
        %v5793 = vld [vmem:[%s15] sm:$0x1]
        %v5794 = vmul.f32 %v5792, %v5793
        %v5795 = vld [vmem:[%s16] sm:$0x1]
        %v5796 = vadd.f32 %v5794, %v5795
        %v5797 = vmax.f32 %v5796, 0.0
        %v5798 = vadd.f32 %v5797, 0.0
        %v5799 = vld [vmem:[%s17] sm:$0x1]
        %v5800 = vmul.f32 %v5798, %v5799
        %v5801 = vsel %vm1069, %v5800, 0.0
        %5802 = vadd.xlane.f32.xlu0 %v5801
        %v5803 = vpop.xlane.xlu0 %5802
        %v5804 = vld [vmem:[#allocation2] sm:$0x1]
        %v5805 = vadd.f32 %v5803, %v5804
        %vm5806 = vcmask 0
        %5807 = vst.msk [vmem:[%s688] sm:$0x1] %vm5806, %v5805
        %p5808 = scmp.lt.s32.totalorder %s36, 1
        %s5809 = scalar_select %p5808, %s36, 1
        %s5810 = scalar_lea.vmem %s19, %s5809
        // Predicated region
        $region121: #{tpu_custom_call.1} parent=95 // pred_check
          %p5811 = pneg %p458
        $region122: #{tpu_custom_call.1} parent=95 // pred_check_branch
          %5813 = sbr.rel (%p5811) target = $region124
        $region123: #{tpu_custom_call.1} parent=95 // pred_region
          _
        $region124: #{tpu_custom_call.1} parent=95 // pred_fallthru
          _
      $region96: #{tpu_custom_call.1} parent=5 // pred_fallthru
        _
      %p5814 = scmp.le.s32.totalorder 2, %s31
      // Predicated region
      $region125: #{tpu_custom_call.1} parent=5 // pred_check
        %p5815 = pneg %p5814
      $region126: #{tpu_custom_call.1} parent=5 // pred_check_branch
        %5817 = sbr.rel (%p5815) target = $region128
      $region127: #{tpu_custom_call.1} parent=5 // pred_region
        %s5818 = ssub.s32 %s31, 2
        // Predicated region
        $region129: #{tpu_custom_call.1} parent=127 // pred_check
          %p5819 = pneg %p464
        $region130: #{tpu_custom_call.1} parent=127 // pred_check_branch
          %5821 = sbr.rel (%p5819) target = $region132
        $region131: #{tpu_custom_call.1} parent=127 // pred_region
          %p5822 = scmp.lt.s32.totalorder %s37, 1
          %s5823 = scalar_select %p5822, %s37, 1
          %s5824 = scalar_lea.vmem %s19, %s5823
        $region132: #{tpu_custom_call.1} parent=127 // pred_fallthru
          _
      $region128: #{tpu_custom_call.1} parent=5 // pred_fallthru
        _
    $region6: #{tpu_custom_call.1} parent=1 // loop_footer
      %s35 = sadd.s32 1, %s31
    $region7: #{tpu_custom_call.1} parent=1 // loop_footer_branch
      %30 = sbr.rel target = $region3
    $region8: #{tpu_custom_call.1} parent=1 // loop_exit
      _
    %5825 = vsyncpa [#allocation4], 1
    %s5826 = scalar_lea.sflag [#allocation4], 1
    %5827 = vsyncpa %s5826, 1
    %5828 = vsyncpa [#allocation6], 1
    %5829 = vsyncpa [#allocation9], 1
    %5830 = vsyncpa [#allocation12], 1

</llo_original>
